<compile_context>
chip_gen: v5e
topology: v5e:2x2
jax: 0.10.0
libtpu: 0.0.40
codegen_flags: <defaults>
</compile_context>

<pallas_src>
import functools

import jax
import jax.numpy as jnp
from jax.experimental import pallas as pl
from jax.experimental.pallas import tpu as pltpu


# ---------------------------------------------------------------------------
# Pallas kernels
# ---------------------------------------------------------------------------

def _conv_bn_lrelu_kernel(p_ref, w_ref, g_ref, bt_ref, o_ref, *, lrelu):
    """Fused im2col-GEMM + BatchNorm(batch stats, one pass) + optional LeakyReLU.

    p_ref : (M, K)    im2col patches, bf16, M = N*OH*OW
    w_ref : (K, Cout) bf16
    g_ref, bt_ref : (1, Cout) f32  BN gamma / beta
    o_ref : (M, Cout) bf16
    """
    # MXU: bf16 x bf16 -> f32 accumulate.
    y = jnp.dot(p_ref[...], w_ref[...], preferred_element_type=jnp.float32)
    m = jnp.float32(y.shape[0])
    # One-pass batch statistics over rows (== over N, H, W); biased variance.
    s1 = jnp.sum(y, axis=0, keepdims=True)
    s2 = jnp.sum(y * y, axis=0, keepdims=True)
    mean = s1 / m
    var = s2 / m - mean * mean
    scale = g_ref[...] * jax.lax.rsqrt(var + 1e-5)
    shift = bt_ref[...] - mean * scale
    y = y * scale + shift
    if lrelu:
        y = jnp.where(y > 0, y, 0.2 * y)
    o_ref[...] = y.astype(o_ref.dtype)


def _dense_head_kernel(f_ref, a_ref, w6f_ref, w6a_ref, b6_ref,
                       w7h_ref, w7a_ref, b7_ref, o_ref):
    """Fused dense6 + LeakyReLU + dense7.

    The concat([flat, a]) / concat([h, a]) of the reference module is expressed
    as split matmuls: Linear(concat(u, a)) == u @ Wu + a @ Wa + b.
    """
    h = (jnp.dot(f_ref[...], w6f_ref[...], preferred_element_type=jnp.float32)
         + jnp.dot(a_ref[...], w6a_ref[...], preferred_element_type=jnp.float32)
         + b6_ref[...])
    h = jnp.where(h > 0, h, 0.2 * h)
    h = h.astype(jnp.bfloat16)
    out = (jnp.dot(h, w7h_ref[...], preferred_element_type=jnp.float32)
           + jnp.dot(a_ref[...], w7a_ref[...], preferred_element_type=jnp.float32)
           + b7_ref[...])
    o_ref[...] = out


def _vmem_specs(n):
    return [pl.BlockSpec(memory_space=pltpu.MemorySpace.VMEM) for _ in range(n)]


def conv_block(patches, w, gamma, beta, *, lrelu):
    M = patches.shape[0]
    cout = w.shape[1]
    kern = functools.partial(_conv_bn_lrelu_kernel, lrelu=lrelu)
    return pl.pallas_call(
        kern,
        out_shape=jax.ShapeDtypeStruct((M, cout), jnp.bfloat16),
        in_specs=_vmem_specs(4),
        out_specs=pl.BlockSpec(memory_space=pltpu.MemorySpace.VMEM),
    )(patches, w, gamma, beta)


def dense_head(flat, a, w6f, w6a, b6, w7h, w7a, b7):
    N = flat.shape[0]
    return pl.pallas_call(
        _dense_head_kernel,
        out_shape=jax.ShapeDtypeStruct((N, 1), jnp.float32),
        in_specs=_vmem_specs(8),
        out_specs=pl.BlockSpec(memory_space=pltpu.MemorySpace.VMEM),
    )(flat, a, w6f, w6a, b6, w7h, w7a, b7)


# ---------------------------------------------------------------------------
# Glue: im2col patch extraction (trace-time unrolled slicing, plain JAX, bf16)
# ---------------------------------------------------------------------------

def im2col(x_nhwc, k, stride, pad, c_pad=0):
    N, H, W, C = x_nhwc.shape
    xp = jnp.pad(x_nhwc, ((0, 0), (pad, pad), (pad, pad), (0, c_pad)))
    C += c_pad
    OH = (H + 2 * pad - k) // stride + 1
    OW = (W + 2 * pad - k) // stride + 1
    pieces = []
    for i in range(k):
        for j in range(k):
            pieces.append(
                xp[:, i:i + OH * stride:stride, j:j + OW * stride:stride, :]
            )
    # (N, OH, OW, k*k, C) -> (N*OH*OW, k*k*C); feature order = (ki, kj, cin)
    p = jnp.stack(pieces, axis=-2).reshape(N * OH * OW, k * k * C)
    return p, OH, OW


# ---------------------------------------------------------------------------
# Parameter construction (deterministic, synthetic, PyTorch-style layouts)
# ---------------------------------------------------------------------------

def make_params(key, in_channels=4, lookahead=1, num_actions=18, ngf=64):
    cin = in_channels + lookahead
    specs = [  # (cin, cout, k)
        (cin, ngf, 8),
        (ngf, ngf * 2, 4),
        (ngf * 2, ngf * 4, 4),
        (ngf * 4, 16, 3),
    ]
    params = {}
    keys = jax.random.split(key, 4 * 4 + 4)
    ki = 0
    for idx, (ci, co, k) in enumerate(specs, start=1):
        params[f"conv{idx}_w"] = 0.05 * jax.random.normal(
            keys[ki], (co, ci, k, k), jnp.float32); ki += 1          # OIHW
        params[f"conv{idx}_b"] = 0.05 * jax.random.normal(
            keys[ki], (co,), jnp.float32); ki += 1                   # cancelled by BN
        params[f"bn{idx}_g"] = 1.0 + 0.05 * jax.random.normal(
            keys[ki], (co,), jnp.float32); ki += 1
        params[f"bn{idx}_bt"] = 0.05 * jax.random.normal(
            keys[ki], (co,), jnp.float32); ki += 1

    d6_in = 16 * 25 + num_actions * lookahead          # 418
    d7_in = 18 + num_actions * lookahead                # 36
    params["dense6_w"] = 0.05 * jax.random.normal(keys[ki], (18, d6_in), jnp.float32); ki += 1
    params["dense6_b"] = 0.05 * jax.random.normal(keys[ki], (18,), jnp.float32); ki += 1
    params["dense7_w"] = 0.05 * jax.random.normal(keys[ki], (1, d7_in), jnp.float32); ki += 1
    params["dense7_b"] = 0.05 * jax.random.normal(keys[ki], (1,), jnp.float32); ki += 1
    return params


# conv1 gets its input channels zero-padded 5 -> 6 so K = 8*8*6 = 384 (mult. of 128)
CONV_CFG = [  # (kernel, stride, pad, lrelu_after_bn, extra_cin_zero_pad)
    (8, 4, 1, True, 1),    # K: 320 -> 384
    (4, 2, 1, True, 0),    # K = 1024
    (4, 2, 1, True, 0),    # K = 2048
    (3, 1, 1, False, 0),   # K = 2304; conv4/norm4: no LeakyReLU before flatten
]


def prepare_params(p):
    """Convert PyTorch-layout params to kernel-ready (bf16 GEMM) layouts."""
    kp = {}
    for idx, (_, _, _, _, cpad) in enumerate(CONV_CFG, start=1):
        w = jnp.transpose(p[f"conv{idx}_w"], (2, 3, 1, 0))        # OIHW -> HWIO
        if cpad:
            w = jnp.pad(w, ((0, 0), (0, 0), (0, cpad), (0, 0)))   # zero rows for padded cin
        kh, kw, ci, co = w.shape
        kp[f"conv{idx}_w"] = w.reshape(kh * kw * ci, co).astype(jnp.bfloat16)
        kp[f"bn{idx}_g"] = p[f"bn{idx}_g"].reshape(1, -1).astype(jnp.float32)
        kp[f"bn{idx}_bt"] = p[f"bn{idx}_bt"].reshape(1, -1).astype(jnp.float32)
        # conv bias intentionally dropped: training-mode BN mean subtraction cancels it.

    # dense6: rows [0:400) correspond to the PyTorch NCHW flatten (index c*25 + h*5 + w).
    # Our kernel flatten is NHWC row-major (index (h*5+w)*16 + c); permute weight rows.
    w6 = p["dense6_w"].T                                           # (418, 18)
    w6f = w6[:400].reshape(16, 25, 18).transpose(1, 0, 2).reshape(400, 18)
    kp["d6_wf"] = w6f.astype(jnp.bfloat16)
    kp["d6_wa"] = w6[400:].astype(jnp.bfloat16)                    # (num_actions, 18)
    kp["d6_b"] = p["dense6_b"].reshape(1, -1).astype(jnp.float32)

    w7 = p["dense7_w"].T                                           # (36, 1)
    kp["d7_wh"] = w7[:18].astype(jnp.bfloat16)
    kp["d7_wa"] = w7[18:].astype(jnp.bfloat16)
    kp["d7_b"] = p["dense7_b"].reshape(1, -1).astype(jnp.float32)
    return kp


# ---------------------------------------------------------------------------
# Forward pass (matches _netD.forward)
# ---------------------------------------------------------------------------

def netD_forward(kparams, x_nchw, a):
    N = x_nchw.shape[0]
    x = jnp.transpose(x_nchw, (0, 2, 3, 1)).astype(jnp.bfloat16)   # NCHW -> NHWC, bf16
    a_bf = a.astype(jnp.bfloat16)

    for idx, (k, s, p, lrelu, cpad) in enumerate(CONV_CFG, start=1):
        patches, OH, OW = im2col(x, k, s, p, cpad)
        out = conv_block(
            patches,
            kparams[f"conv{idx}_w"],
            kparams[f"bn{idx}_g"], kparams[f"bn{idx}_bt"],
            lrelu=lrelu,
        )
        x = out.reshape(N, OH, OW, out.shape[-1])

    # Free row-major flatten: (N,5,5,16) -> (N,400) in (h,w,c) order; the dense6
    # weight rows were permuted to match the PyTorch NCHW flatten semantics.
    flat = x.reshape(N, -1)
    return dense_head(flat, a_bf,
                      kparams["d6_wf"], kparams["d6_wa"], kparams["d6_b"],
                      kparams["d7_wh"], kparams["d7_wa"], kparams["d7_b"])


# ---------------------------------------------------------------------------
# Main
# ---------------------------------------------------------------------------

if __name__ == "__main__":
    key = jax.random.PRNGKey(0)
    kx, ka, kp = jax.random.split(key, 3)

    # Module geometry forces 84x84 spatial input (16*25 flattened features).
    batch = 2
    in_channels, lookahead, num_actions = 4, 1, 18
    x = jax.random.normal(kx, (batch, in_channels + lookahead, 84, 84), jnp.float32)
    a = jax.random.normal(ka, (batch, num_actions * lookahead), jnp.float32)

    params = prepare_params(make_params(kp, in_channels, lookahead, num_actions, ngf=64))

    fwd = jax.jit(netD_forward)
    out = fwd(params, x, a)
    jax.block_until_ready(out)
    assert out.shape == (batch, 1), out.shape
    print("KERNEL_OK")
</pallas_src>

<mosaic_0001>
module attributes {stable_mosaic.version = 11 : i64} {
  func.func @_conv_bn_lrelu_kernel(%arg0: memref<800x384xbf16, #tpu.memory_space<vmem>>, %arg1: memref<384x64xbf16, #tpu.memory_space<vmem>>, %arg2: memref<1x64xf32, #tpu.memory_space<vmem>>, %arg3: memref<1x64xf32, #tpu.memory_space<vmem>>, %arg4: memref<800x64xbf16, #tpu.memory_space<vmem>>) attributes {dimension_semantics = [], scalar_prefetch = 0 : i64, scratch_operands = 0 : i64, tpu.core_type = #tpu.core_type<tc>} {
    %c0 = arith.constant 0 : index
    %c0_0 = arith.constant 0 : index
    %0 = vector.load %arg0[%c0, %c0_0] : memref<800x384xbf16, #tpu.memory_space<vmem>>, vector<800x384xbf16>
    %c0_1 = arith.constant 0 : index
    %c0_2 = arith.constant 0 : index
    %1 = vector.load %arg1[%c0_1, %c0_2] : memref<384x64xbf16, #tpu.memory_space<vmem>>, vector<384x64xbf16>
    %cst = arith.constant dense<0.000000e+00> : vector<800x64xf32>
    %2 = tpu.matmul %0, %1, %cst {dimension_numbers = #tpu.dot_dimension_numbers<[1], [0], [0], [1], [0, 0, 1, 1], [], []>} : vector<800x384xbf16>, vector<384x64xbf16>, vector<800x64xf32> -> vector<800x64xf32>
    %cst_3 = arith.constant dense<0.000000e+00> : vector<64xf32>
    %3 = vector.multi_reduction <add>, %2, %cst_3 [0] : vector<800x64xf32> to vector<64xf32>
    %4 = vector.shape_cast %3 : vector<64xf32> to vector<1x64xf32>
    %5 = arith.mulf %2, %2 : vector<800x64xf32>
    %cst_4 = arith.constant dense<0.000000e+00> : vector<64xf32>
    %6 = vector.multi_reduction <add>, %5, %cst_4 [0] : vector<800x64xf32> to vector<64xf32>
    %7 = vector.shape_cast %6 : vector<64xf32> to vector<1x64xf32>
    %cst_5 = arith.constant 8.000000e+02 : f32
    %8 = vector.broadcast %cst_5 : f32 to vector<1x64xf32>
    %9 = arith.divf %4, %8 : vector<1x64xf32>
    %cst_6 = arith.constant 8.000000e+02 : f32
    %10 = vector.broadcast %cst_6 : f32 to vector<1x64xf32>
    %11 = arith.divf %7, %10 : vector<1x64xf32>
    %12 = arith.mulf %9, %9 : vector<1x64xf32>
    %13 = arith.subf %11, %12 : vector<1x64xf32>
    %c0_7 = arith.constant 0 : index
    %c0_8 = arith.constant 0 : index
    %14 = vector.load %arg2[%c0_7, %c0_8] : memref<1x64xf32, #tpu.memory_space<vmem>>, vector<1x64xf32>
    %cst_9 = arith.constant 9.99999974E-6 : f32
    %15 = vector.broadcast %cst_9 : f32 to vector<1x64xf32>
    %16 = arith.addf %13, %15 : vector<1x64xf32>
    %17 = math.rsqrt %16 : vector<1x64xf32>
    %18 = arith.mulf %14, %17 : vector<1x64xf32>
    %c0_10 = arith.constant 0 : index
    %c0_11 = arith.constant 0 : index
    %19 = vector.load %arg3[%c0_10, %c0_11] : memref<1x64xf32, #tpu.memory_space<vmem>>, vector<1x64xf32>
    %20 = arith.mulf %9, %18 : vector<1x64xf32>
    %21 = arith.subf %19, %20 : vector<1x64xf32>
    %22 = vector.broadcast %18 : vector<1x64xf32> to vector<800x64xf32>
    %23 = arith.mulf %2, %22 : vector<800x64xf32>
    %24 = vector.broadcast %21 : vector<1x64xf32> to vector<800x64xf32>
    %25 = arith.addf %23, %24 : vector<800x64xf32>
    %cst_12 = arith.constant 0.000000e+00 : f32
    %26 = vector.broadcast %cst_12 : f32 to vector<800x64xf32>
    %27 = arith.cmpf ogt, %25, %26 : vector<800x64xf32>
    %cst_13 = arith.constant 2.000000e-01 : f32
    %28 = vector.broadcast %cst_13 : f32 to vector<800x64xf32>
    %29 = arith.mulf %28, %25 : vector<800x64xf32>
    %30 = arith.select %27, %25, %29 : vector<800x64xi1>, vector<800x64xf32>
    %31 = arith.truncf %30 : vector<800x64xf32> to vector<800x64xbf16>
    %c0_14 = arith.constant 0 : index
    %c0_15 = arith.constant 0 : index
    %32 = vector.load %arg4[%c0_14, %c0_15] : memref<800x64xbf16, #tpu.memory_space<vmem>>, vector<800x64xbf16>
    tpu.vector_store %arg4[%c0_14, %c0_15], %31 {strides = array<i32>} : memref<800x64xbf16, #tpu.memory_space<vmem>>, vector<800x64xbf16>,
    return
  }
}

module attributes {stable_mosaic.version = 11 : i64} {
  func.func @_conv_bn_lrelu_kernel(%arg0: memref<200x1024xbf16, #tpu.memory_space<vmem>>, %arg1: memref<1024x128xbf16, #tpu.memory_space<vmem>>, %arg2: memref<1x128xf32, #tpu.memory_space<vmem>>, %arg3: memref<1x128xf32, #tpu.memory_space<vmem>>, %arg4: memref<200x128xbf16, #tpu.memory_space<vmem>>) attributes {dimension_semantics = [], scalar_prefetch = 0 : i64, scratch_operands = 0 : i64, tpu.core_type = #tpu.core_type<tc>} {
    %c0 = arith.constant 0 : index
    %c0_0 = arith.constant 0 : index
    %0 = vector.load %arg0[%c0, %c0_0] : memref<200x1024xbf16, #tpu.memory_space<vmem>>, vector<200x1024xbf16>
    %c0_1 = arith.constant 0 : index
    %c0_2 = arith.constant 0 : index
    %1 = vector.load %arg1[%c0_1, %c0_2] : memref<1024x128xbf16, #tpu.memory_space<vmem>>, vector<1024x128xbf16>
    %cst = arith.constant dense<0.000000e+00> : vector<200x128xf32>
    %2 = tpu.matmul %0, %1, %cst {dimension_numbers = #tpu.dot_dimension_numbers<[1], [0], [0], [1], [0, 0, 1, 1], [], []>} : vector<200x1024xbf16>, vector<1024x128xbf16>, vector<200x128xf32> -> vector<200x128xf32>
    %cst_3 = arith.constant dense<0.000000e+00> : vector<128xf32>
    %3 = vector.multi_reduction <add>, %2, %cst_3 [0] : vector<200x128xf32> to vector<128xf32>
    %4 = vector.shape_cast %3 : vector<128xf32> to vector<1x128xf32>
    %5 = arith.mulf %2, %2 : vector<200x128xf32>
    %cst_4 = arith.constant dense<0.000000e+00> : vector<128xf32>
    %6 = vector.multi_reduction <add>, %5, %cst_4 [0] : vector<200x128xf32> to vector<128xf32>
    %7 = vector.shape_cast %6 : vector<128xf32> to vector<1x128xf32>
    %cst_5 = arith.constant 2.000000e+02 : f32
    %8 = vector.broadcast %cst_5 : f32 to vector<1x128xf32>
    %9 = arith.divf %4, %8 : vector<1x128xf32>
    %cst_6 = arith.constant 2.000000e+02 : f32
    %10 = vector.broadcast %cst_6 : f32 to vector<1x128xf32>
    %11 = arith.divf %7, %10 : vector<1x128xf32>
    %12 = arith.mulf %9, %9 : vector<1x128xf32>
    %13 = arith.subf %11, %12 : vector<1x128xf32>
    %c0_7 = arith.constant 0 : index
    %c0_8 = arith.constant 0 : index
    %14 = vector.load %arg2[%c0_7, %c0_8] : memref<1x128xf32, #tpu.memory_space<vmem>>, vector<1x128xf32>
    %cst_9 = arith.constant 9.99999974E-6 : f32
    %15 = vector.broadcast %cst_9 : f32 to vector<1x128xf32>
    %16 = arith.addf %13, %15 : vector<1x128xf32>
    %17 = math.rsqrt %16 : vector<1x128xf32>
    %18 = arith.mulf %14, %17 : vector<1x128xf32>
    %c0_10 = arith.constant 0 : index
    %c0_11 = arith.constant 0 : index
    %19 = vector.load %arg3[%c0_10, %c0_11] : memref<1x128xf32, #tpu.memory_space<vmem>>, vector<1x128xf32>
    %20 = arith.mulf %9, %18 : vector<1x128xf32>
    %21 = arith.subf %19, %20 : vector<1x128xf32>
    %22 = vector.broadcast %18 : vector<1x128xf32> to vector<200x128xf32>
    %23 = arith.mulf %2, %22 : vector<200x128xf32>
    %24 = vector.broadcast %21 : vector<1x128xf32> to vector<200x128xf32>
    %25 = arith.addf %23, %24 : vector<200x128xf32>
    %cst_12 = arith.constant 0.000000e+00 : f32
    %26 = vector.broadcast %cst_12 : f32 to vector<200x128xf32>
    %27 = arith.cmpf ogt, %25, %26 : vector<200x128xf32>
    %cst_13 = arith.constant 2.000000e-01 : f32
    %28 = vector.broadcast %cst_13 : f32 to vector<200x128xf32>
    %29 = arith.mulf %28, %25 : vector<200x128xf32>
    %30 = arith.select %27, %25, %29 : vector<200x128xi1>, vector<200x128xf32>
    %31 = arith.truncf %30 : vector<200x128xf32> to vector<200x128xbf16>
    %c0_14 = arith.constant 0 : index
    %c0_15 = arith.constant 0 : index
    %32 = vector.load %arg4[%c0_14, %c0_15] : memref<200x128xbf16, #tpu.memory_space<vmem>>, vector<200x128xbf16>
    tpu.vector_store %arg4[%c0_14, %c0_15], %31 {strides = array<i32>} : memref<200x128xbf16, #tpu.memory_space<vmem>>, vector<200x128xbf16>,
    return
  }
}

module attributes {stable_mosaic.version = 11 : i64} {
  func.func @_conv_bn_lrelu_kernel(%arg0: memref<50x2048xbf16, #tpu.memory_space<vmem>>, %arg1: memref<2048x256xbf16, #tpu.memory_space<vmem>>, %arg2: memref<1x256xf32, #tpu.memory_space<vmem>>, %arg3: memref<1x256xf32, #tpu.memory_space<vmem>>, %arg4: memref<50x256xbf16, #tpu.memory_space<vmem>>) attributes {dimension_semantics = [], scalar_prefetch = 0 : i64, scratch_operands = 0 : i64, tpu.core_type = #tpu.core_type<tc>} {
    %c0 = arith.constant 0 : index
    %c0_0 = arith.constant 0 : index
    %0 = vector.load %arg0[%c0, %c0_0] : memref<50x2048xbf16, #tpu.memory_space<vmem>>, vector<50x2048xbf16>
    %c0_1 = arith.constant 0 : index
    %c0_2 = arith.constant 0 : index
    %1 = vector.load %arg1[%c0_1, %c0_2] : memref<2048x256xbf16, #tpu.memory_space<vmem>>, vector<2048x256xbf16>
    %cst = arith.constant dense<0.000000e+00> : vector<50x256xf32>
    %2 = tpu.matmul %0, %1, %cst {dimension_numbers = #tpu.dot_dimension_numbers<[1], [0], [0], [1], [0, 0, 1, 1], [], []>} : vector<50x2048xbf16>, vector<2048x256xbf16>, vector<50x256xf32> -> vector<50x256xf32>
    %cst_3 = arith.constant dense<0.000000e+00> : vector<256xf32>
    %3 = vector.multi_reduction <add>, %2, %cst_3 [0] : vector<50x256xf32> to vector<256xf32>
    %4 = vector.shape_cast %3 : vector<256xf32> to vector<1x256xf32>
    %5 = arith.mulf %2, %2 : vector<50x256xf32>
    %cst_4 = arith.constant dense<0.000000e+00> : vector<256xf32>
    %6 = vector.multi_reduction <add>, %5, %cst_4 [0] : vector<50x256xf32> to vector<256xf32>
    %7 = vector.shape_cast %6 : vector<256xf32> to vector<1x256xf32>
    %cst_5 = arith.constant 5.000000e+01 : f32
    %8 = vector.broadcast %cst_5 : f32 to vector<1x256xf32>
    %9 = arith.divf %4, %8 : vector<1x256xf32>
    %cst_6 = arith.constant 5.000000e+01 : f32
    %10 = vector.broadcast %cst_6 : f32 to vector<1x256xf32>
    %11 = arith.divf %7, %10 : vector<1x256xf32>
    %12 = arith.mulf %9, %9 : vector<1x256xf32>
    %13 = arith.subf %11, %12 : vector<1x256xf32>
    %c0_7 = arith.constant 0 : index
    %c0_8 = arith.constant 0 : index
    %14 = vector.load %arg2[%c0_7, %c0_8] : memref<1x256xf32, #tpu.memory_space<vmem>>, vector<1x256xf32>
    %cst_9 = arith.constant 9.99999974E-6 : f32
    %15 = vector.broadcast %cst_9 : f32 to vector<1x256xf32>
    %16 = arith.addf %13, %15 : vector<1x256xf32>
    %17 = math.rsqrt %16 : vector<1x256xf32>
    %18 = arith.mulf %14, %17 : vector<1x256xf32>
    %c0_10 = arith.constant 0 : index
    %c0_11 = arith.constant 0 : index
    %19 = vector.load %arg3[%c0_10, %c0_11] : memref<1x256xf32, #tpu.memory_space<vmem>>, vector<1x256xf32>
    %20 = arith.mulf %9, %18 : vector<1x256xf32>
    %21 = arith.subf %19, %20 : vector<1x256xf32>
    %22 = vector.broadcast %18 : vector<1x256xf32> to vector<50x256xf32>
    %23 = arith.mulf %2, %22 : vector<50x256xf32>
    %24 = vector.broadcast %21 : vector<1x256xf32> to vector<50x256xf32>
    %25 = arith.addf %23, %24 : vector<50x256xf32>
    %cst_12 = arith.constant 0.000000e+00 : f32
    %26 = vector.broadcast %cst_12 : f32 to vector<50x256xf32>
    %27 = arith.cmpf ogt, %25, %26 : vector<50x256xf32>
    %cst_13 = arith.constant 2.000000e-01 : f32
    %28 = vector.broadcast %cst_13 : f32 to vector<50x256xf32>
    %29 = arith.mulf %28, %25 : vector<50x256xf32>
    %30 = arith.select %27, %25, %29 : vector<50x256xi1>, vector<50x256xf32>
    %31 = arith.truncf %30 : vector<50x256xf32> to vector<50x256xbf16>
    %c0_14 = arith.constant 0 : index
    %c0_15 = arith.constant 0 : index
    %32 = vector.load %arg4[%c0_14, %c0_15] : memref<50x256xbf16, #tpu.memory_space<vmem>>, vector<50x256xbf16>
    tpu.vector_store %arg4[%c0_14, %c0_15], %31 {strides = array<i32>} : memref<50x256xbf16, #tpu.memory_space<vmem>>, vector<50x256xbf16>,
    return
  }
}

module attributes {stable_mosaic.version = 11 : i64} {
  func.func @_conv_bn_lrelu_kernel(%arg0: memref<50x2304xbf16, #tpu.memory_space<vmem>>, %arg1: memref<2304x16xbf16, #tpu.memory_space<vmem>>, %arg2: memref<1x16xf32, #tpu.memory_space<vmem>>, %arg3: memref<1x16xf32, #tpu.memory_space<vmem>>, %arg4: memref<50x16xbf16, #tpu.memory_space<vmem>>) attributes {dimension_semantics = [], scalar_prefetch = 0 : i64, scratch_operands = 0 : i64, tpu.core_type = #tpu.core_type<tc>} {
    %c0 = arith.constant 0 : index
    %c0_0 = arith.constant 0 : index
    %0 = vector.load %arg0[%c0, %c0_0] : memref<50x2304xbf16, #tpu.memory_space<vmem>>, vector<50x2304xbf16>
    %c0_1 = arith.constant 0 : index
    %c0_2 = arith.constant 0 : index
    %1 = vector.load %arg1[%c0_1, %c0_2] : memref<2304x16xbf16, #tpu.memory_space<vmem>>, vector<2304x16xbf16>
    %cst = arith.constant dense<0.000000e+00> : vector<50x16xf32>
    %2 = tpu.matmul %0, %1, %cst {dimension_numbers = #tpu.dot_dimension_numbers<[1], [0], [0], [1], [0, 0, 1, 1], [], []>} : vector<50x2304xbf16>, vector<2304x16xbf16>, vector<50x16xf32> -> vector<50x16xf32>
    %cst_3 = arith.constant dense<0.000000e+00> : vector<16xf32>
    %3 = vector.multi_reduction <add>, %2, %cst_3 [0] : vector<50x16xf32> to vector<16xf32>
    %4 = vector.shape_cast %3 : vector<16xf32> to vector<1x16xf32>
    %5 = arith.mulf %2, %2 : vector<50x16xf32>
    %cst_4 = arith.constant dense<0.000000e+00> : vector<16xf32>
    %6 = vector.multi_reduction <add>, %5, %cst_4 [0] : vector<50x16xf32> to vector<16xf32>
    %7 = vector.shape_cast %6 : vector<16xf32> to vector<1x16xf32>
    %cst_5 = arith.constant 5.000000e+01 : f32
    %8 = vector.broadcast %cst_5 : f32 to vector<1x16xf32>
    %9 = arith.divf %4, %8 : vector<1x16xf32>
    %cst_6 = arith.constant 5.000000e+01 : f32
    %10 = vector.broadcast %cst_6 : f32 to vector<1x16xf32>
    %11 = arith.divf %7, %10 : vector<1x16xf32>
    %12 = arith.mulf %9, %9 : vector<1x16xf32>
    %13 = arith.subf %11, %12 : vector<1x16xf32>
    %c0_7 = arith.constant 0 : index
    %c0_8 = arith.constant 0 : index
    %14 = vector.load %arg2[%c0_7, %c0_8] : memref<1x16xf32, #tpu.memory_space<vmem>>, vector<1x16xf32>
    %cst_9 = arith.constant 9.99999974E-6 : f32
    %15 = vector.broadcast %cst_9 : f32 to vector<1x16xf32>
    %16 = arith.addf %13, %15 : vector<1x16xf32>
    %17 = math.rsqrt %16 : vector<1x16xf32>
    %18 = arith.mulf %14, %17 : vector<1x16xf32>
    %c0_10 = arith.constant 0 : index
    %c0_11 = arith.constant 0 : index
    %19 = vector.load %arg3[%c0_10, %c0_11] : memref<1x16xf32, #tpu.memory_space<vmem>>, vector<1x16xf32>
    %20 = arith.mulf %9, %18 : vector<1x16xf32>
    %21 = arith.subf %19, %20 : vector<1x16xf32>
    %22 = vector.broadcast %18 : vector<1x16xf32> to vector<50x16xf32>
    %23 = arith.mulf %2, %22 : vector<50x16xf32>
    %24 = vector.broadcast %21 : vector<1x16xf32> to vector<50x16xf32>
    %25 = arith.addf %23, %24 : vector<50x16xf32>
    %26 = arith.truncf %25 : vector<50x16xf32> to vector<50x16xbf16>
    %c0_12 = arith.constant 0 : index
    %c0_13 = arith.constant 0 : index
    %27 = vector.load %arg4[%c0_12, %c0_13] : memref<50x16xbf16, #tpu.memory_space<vmem>>, vector<50x16xbf16>
    tpu.vector_store %arg4[%c0_12, %c0_13], %26 {strides = array<i32>} : memref<50x16xbf16, #tpu.memory_space<vmem>>, vector<50x16xbf16>,
    return
  }
}

module attributes {stable_mosaic.version = 11 : i64} {
  func.func @_dense_head_kernel(%arg0: memref<2x400xbf16, #tpu.memory_space<vmem>>, %arg1: memref<2x18xbf16, #tpu.memory_space<vmem>>, %arg2: memref<400x18xbf16, #tpu.memory_space<vmem>>, %arg3: memref<18x18xbf16, #tpu.memory_space<vmem>>, %arg4: memref<1x18xf32, #tpu.memory_space<vmem>>, %arg5: memref<18x1xbf16, #tpu.memory_space<vmem>>, %arg6: memref<18x1xbf16, #tpu.memory_space<vmem>>, %arg7: memref<1x1xf32, #tpu.memory_space<vmem>>, %arg8: memref<2x1xf32, #tpu.memory_space<vmem>>) attributes {dimension_semantics = [], scalar_prefetch = 0 : i64, scratch_operands = 0 : i64, tpu.core_type = #tpu.core_type<tc>} {
    %c0 = arith.constant 0 : index
    %c0_0 = arith.constant 0 : index
    %0 = vector.load %arg0[%c0, %c0_0] : memref<2x400xbf16, #tpu.memory_space<vmem>>, vector<2x400xbf16>
    %c0_1 = arith.constant 0 : index
    %c0_2 = arith.constant 0 : index
    %1 = vector.load %arg2[%c0_1, %c0_2] : memref<400x18xbf16, #tpu.memory_space<vmem>>, vector<400x18xbf16>
    %cst = arith.constant dense<0.000000e+00> : vector<2x18xf32>
    %2 = tpu.matmul %0, %1, %cst {dimension_numbers = #tpu.dot_dimension_numbers<[1], [0], [0], [1], [0, 0, 1, 1], [], []>} : vector<2x400xbf16>, vector<400x18xbf16>, vector<2x18xf32> -> vector<2x18xf32>
    %c0_3 = arith.constant 0 : index
    %c0_4 = arith.constant 0 : index
    %3 = vector.load %arg1[%c0_3, %c0_4] : memref<2x18xbf16, #tpu.memory_space<vmem>>, vector<2x18xbf16>
    %c0_5 = arith.constant 0 : index
    %c0_6 = arith.constant 0 : index
    %4 = vector.load %arg3[%c0_5, %c0_6] : memref<18x18xbf16, #tpu.memory_space<vmem>>, vector<18x18xbf16>
    %cst_7 = arith.constant dense<0.000000e+00> : vector<2x18xf32>
    %5 = tpu.matmul %3, %4, %cst_7 {dimension_numbers = #tpu.dot_dimension_numbers<[1], [0], [0], [1], [0, 0, 1, 1], [], []>} : vector<2x18xbf16>, vector<18x18xbf16>, vector<2x18xf32> -> vector<2x18xf32>
    %6 = arith.addf %2, %5 : vector<2x18xf32>
    %c0_8 = arith.constant 0 : index
    %c0_9 = arith.constant 0 : index
    %7 = vector.load %arg4[%c0_8, %c0_9] : memref<1x18xf32, #tpu.memory_space<vmem>>, vector<1x18xf32>
    %8 = vector.broadcast %7 : vector<1x18xf32> to vector<2x18xf32>
    %9 = arith.addf %6, %8 : vector<2x18xf32>
    %cst_10 = arith.constant 0.000000e+00 : f32
    %10 = vector.broadcast %cst_10 : f32 to vector<2x18xf32>
    %11 = arith.cmpf ogt, %9, %10 : vector<2x18xf32>
    %cst_11 = arith.constant 2.000000e-01 : f32
    %12 = vector.broadcast %cst_11 : f32 to vector<2x18xf32>
    %13 = arith.mulf %12, %9 : vector<2x18xf32>
    %14 = arith.select %11, %9, %13 : vector<2x18xi1>, vector<2x18xf32>
    %15 = arith.truncf %14 : vector<2x18xf32> to vector<2x18xbf16>
    %c0_12 = arith.constant 0 : index
    %c0_13 = arith.constant 0 : index
    %16 = vector.load %arg5[%c0_12, %c0_13] : memref<18x1xbf16, #tpu.memory_space<vmem>>, vector<18x1xbf16>
    %cst_14 = arith.constant dense<0.000000e+00> : vector<2x1xf32>
    %17 = tpu.matmul %15, %16, %cst_14 {dimension_numbers = #tpu.dot_dimension_numbers<[1], [0], [0], [1], [0, 0, 1, 1], [], []>} : vector<2x18xbf16>, vector<18x1xbf16>, vector<2x1xf32> -> vector<2x1xf32>
    %c0_15 = arith.constant 0 : index
    %c0_16 = arith.constant 0 : index
    %18 = vector.load %arg1[%c0_15, %c0_16] : memref<2x18xbf16, #tpu.memory_space<vmem>>, vector<2x18xbf16>
    %c0_17 = arith.constant 0 : index
    %c0_18 = arith.constant 0 : index
    %19 = vector.load %arg6[%c0_17, %c0_18] : memref<18x1xbf16, #tpu.memory_space<vmem>>, vector<18x1xbf16>
    %cst_19 = arith.constant dense<0.000000e+00> : vector<2x1xf32>
    %20 = tpu.matmul %18, %19, %cst_19 {dimension_numbers = #tpu.dot_dimension_numbers<[1], [0], [0], [1], [0, 0, 1, 1], [], []>} : vector<2x18xbf16>, vector<18x1xbf16>, vector<2x1xf32> -> vector<2x1xf32>
    %21 = arith.addf %17, %20 : vector<2x1xf32>
    %c0_20 = arith.constant 0 : index
    %c0_21 = arith.constant 0 : index
    %22 = vector.load %arg7[%c0_20, %c0_21] : memref<1x1xf32, #tpu.memory_space<vmem>>, vector<1x1xf32>
    %23 = vector.broadcast %22 : vector<1x1xf32> to vector<2x1xf32>
    %24 = arith.addf %21, %23 : vector<2x1xf32>
    %c0_22 = arith.constant 0 : index
    %c0_23 = arith.constant 0 : index
    %25 = vector.load %arg8[%c0_22, %c0_23] : memref<2x1xf32, #tpu.memory_space<vmem>>, vector<2x1xf32>
    tpu.vector_store %arg8[%c0_22, %c0_23], %24 {strides = array<i32>} : memref<2x1xf32, #tpu.memory_space<vmem>>, vector<2x1xf32>,
    return
  }
}

</mosaic_0001>

<llo_original>
// kernel: netD_forward.5
$region0: #{netD_forward.5}
  #allocation0 [shape = 'u32[]', space=smem, size = 0x4, offset = 0x4, fixed_abs, tag = 'smem constant byte address 0x4 - core index']
  #allocation1 [shape = 'u32[72,128]{1,0:T(1,128)}', space=vmem, size = 0x9000, scoped, tag = 'internal scratch']
  %s0 = inlined_call_operand.vmem [shape: bf16[800,384], index: 0, kind: input, shape index: {}]
  %s1 = inlined_call_operand.vmem [shape: bf16[384,64], index: 1, kind: input, shape index: {}]
  %s2 = inlined_call_operand.vmem [shape: f32[1,64], index: 2, kind: input, shape index: {}]
  %s3 = inlined_call_operand.vmem [shape: f32[1,64], index: 3, kind: input, shape index: {}]
  %s4 = inlined_call_operand.vmem [shape: bf16[800,64], index: 4, kind: output, shape index: {}]
  %s5 = sld [smem:[#allocation0]]
  $region26: #{netD_forward.5} parent=0
    _
  %s7 = ssub.s32 1, %s5
  %s8 = scalar_select 0, %s7, %s5
  // Predicated region
  $region2: #{netD_forward.5} parent=0 // pred_check
    _
  $region3: #{netD_forward.5} parent=0 // pred_check_branch
    %10 = sbr.rel (0) target = $region5
  $region4: #{netD_forward.5} parent=0 // pred_region
    _
  $region5: #{netD_forward.5} parent=0 // pred_fallthru
    _
  // Predicated region
  $region6: #{netD_forward.5} parent=0 // pred_check
    _
  $region7: #{netD_forward.5} parent=0 // pred_check_branch
    %12 = sbr.rel (0) target = $region9
  $region8: #{netD_forward.5} parent=0 // pred_region
    _
  $region9: #{netD_forward.5} parent=0 // pred_fallthru
    _
  // Predicated region
  $region10: #{netD_forward.5} parent=0 // pred_check
    _
  $region11: #{netD_forward.5} parent=0 // pred_check_branch
    %14 = sbr.rel (0) target = $region13
  $region12: #{netD_forward.5} parent=0 // pred_region
    _
  $region13: #{netD_forward.5} parent=0 // pred_fallthru
    _
  // Predicated region
  $region14: #{netD_forward.5} parent=0 // pred_check
    _
  $region15: #{netD_forward.5} parent=0 // pred_check_branch
    %16 = sbr.rel (0) target = $region17
  $region16: #{netD_forward.5} parent=0 // pred_region
    _
  $region17: #{netD_forward.5} parent=0 // pred_fallthru
    _
  %v17 = vld [vmem:[%s0] sm:$0xff]
  %v18 = vld [vmem:[%s0 + $0x8] sm:$0xf]
  %v19 = vld [vmem:[%s0 + $0xc] sm:$0xff]
  %v20 = vld [vmem:[%s0 + $0x14] sm:$0xf]
  %v21 = vld [vmem:[%s0 + $0x18] sm:$0xff]
  %v22 = vld [vmem:[%s0 + $0x20] sm:$0xf]
  %v23 = vld [vmem:[%s0 + $0x24] sm:$0xff]
  %v24 = vld [vmem:[%s0 + $0x2c] sm:$0xf]
  %v25 = vld [vmem:[%s0 + $0x30] sm:$0xff]
  %v26 = vld [vmem:[%s0 + $0x38] sm:$0xf]
  %v27 = vld [vmem:[%s0 + $0x3c] sm:$0xff]
  %v28 = vld [vmem:[%s0 + $0x44] sm:$0xf]
  %v29 = vld [vmem:[%s0 + $0x48] sm:$0xff]
  %v30 = vld [vmem:[%s0 + $0x50] sm:$0xf]
  %v31 = vld [vmem:[%s0 + $0x54] sm:$0xff]
  %v32 = vld [vmem:[%s0 + $0x5c] sm:$0xf]
  %v33 = vld [vmem:[%s0 + $0x60] sm:$0xff]
  %v34 = vld [vmem:[%s0 + $0x68] sm:$0xf]
  %v35 = vld [vmem:[%s0 + $0x6c] sm:$0xff]
  %v36 = vld [vmem:[%s0 + $0x74] sm:$0xf]
  %v37 = vld [vmem:[%s0 + $0x78] sm:$0xff]
  %v38 = vld [vmem:[%s0 + $0x80] sm:$0xf]
  %v39 = vld [vmem:[%s0 + $0x84] sm:$0xff]
  %v40 = vld [vmem:[%s0 + $0x8c] sm:$0xf]
  %v41 = vld [vmem:[%s0 + $0x90] sm:$0xff]
  %v42 = vld [vmem:[%s0 + $0x98] sm:$0xf]
  %v43 = vld [vmem:[%s0 + $0x9c] sm:$0xff]
  %v44 = vld [vmem:[%s0 + $0xa4] sm:$0xf]
  %v45 = vld [vmem:[%s0 + $0xa8] sm:$0xff]
  %v46 = vld [vmem:[%s0 + $0xb0] sm:$0xf]
  %v47 = vld [vmem:[%s0 + $0xb4] sm:$0xff]
  %v48 = vld [vmem:[%s0 + $0xbc] sm:$0xf]
  %v49 = vld [vmem:[%s0 + $0xc0] sm:$0xff]
  %v50 = vld [vmem:[%s0 + $0xc8] sm:$0xf]
  %v51 = vld [vmem:[%s0 + $0xcc] sm:$0xff]
  %v52 = vld [vmem:[%s0 + $0xd4] sm:$0xf]
  %v53 = vld [vmem:[%s0 + $0xd8] sm:$0xff]
  %v54 = vld [vmem:[%s0 + $0xe0] sm:$0xf]
  %v55 = vld [vmem:[%s0 + $0xe4] sm:$0xff]
  %v56 = vld [vmem:[%s0 + $0xec] sm:$0xf]
  %v57 = vld [vmem:[%s0 + $0xf0] sm:$0xff]
  %v58 = vld [vmem:[%s0 + $0xf8] sm:$0xf]
  %v59 = vld [vmem:[%s0 + $0xfc] sm:$0xff]
  %v60 = vld [vmem:[%s0 + $0x104] sm:$0xf]
  %v61 = vld [vmem:[%s0 + $0x108] sm:$0xff]
  %v62 = vld [vmem:[%s0 + $0x110] sm:$0xf]
  %v63 = vld [vmem:[%s0 + $0x114] sm:$0xff]
  %v64 = vld [vmem:[%s0 + $0x11c] sm:$0xf]
  %v65 = vld [vmem:[%s0 + $0x120] sm:$0xff]
  %v66 = vld [vmem:[%s0 + $0x128] sm:$0xf]
  %v67 = vld [vmem:[%s0 + $0x12c] sm:$0xff]
  %v68 = vld [vmem:[%s0 + $0x134] sm:$0xf]
  %v69 = vld [vmem:[%s0 + $0x138] sm:$0xff]
  %v70 = vld [vmem:[%s0 + $0x140] sm:$0xf]
  %v71 = vld [vmem:[%s0 + $0x144] sm:$0xff]
  %v72 = vld [vmem:[%s0 + $0x14c] sm:$0xf]
  %v73 = vld [vmem:[%s0 + $0x150] sm:$0xff]
  %v74 = vld [vmem:[%s0 + $0x158] sm:$0xf]
  %v75 = vld [vmem:[%s0 + $0x15c] sm:$0xff]
  %v76 = vld [vmem:[%s0 + $0x164] sm:$0xf]
  %v77 = vld [vmem:[%s0 + $0x168] sm:$0xff]
  %v78 = vld [vmem:[%s0 + $0x170] sm:$0xf]
  %v79 = vld [vmem:[%s0 + $0x174] sm:$0xff]
  %v80 = vld [vmem:[%s0 + $0x17c] sm:$0xf]
  %v81 = vld [vmem:[%s0 + $0x180] sm:$0xff]
  %v82 = vld [vmem:[%s0 + $0x188] sm:$0xf]
  %v83 = vld [vmem:[%s0 + $0x18c] sm:$0xff]
  %v84 = vld [vmem:[%s0 + $0x194] sm:$0xf]
  %v85 = vld [vmem:[%s0 + $0x198] sm:$0xff]
  %v86 = vld [vmem:[%s0 + $0x1a0] sm:$0xf]
  %v87 = vld [vmem:[%s0 + $0x1a4] sm:$0xff]
  %v88 = vld [vmem:[%s0 + $0x1ac] sm:$0xf]
  %v89 = vld [vmem:[%s0 + $0x1b0] sm:$0xff]
  %v90 = vld [vmem:[%s0 + $0x1b8] sm:$0xf]
  %v91 = vld [vmem:[%s0 + $0x1bc] sm:$0xff]
  %v92 = vld [vmem:[%s0 + $0x1c4] sm:$0xf]
  %v93 = vld [vmem:[%s0 + $0x1c8] sm:$0xff]
  %v94 = vld [vmem:[%s0 + $0x1d0] sm:$0xf]
  %v95 = vld [vmem:[%s0 + $0x1d4] sm:$0xff]
  %v96 = vld [vmem:[%s0 + $0x1dc] sm:$0xf]
  %v97 = vld [vmem:[%s0 + $0x1e0] sm:$0xff]
  %v98 = vld [vmem:[%s0 + $0x1e8] sm:$0xf]
  %v99 = vld [vmem:[%s0 + $0x1ec] sm:$0xff]
  %v100 = vld [vmem:[%s0 + $0x1f4] sm:$0xf]
  %v101 = vld [vmem:[%s0 + $0x1f8] sm:$0xff]
  %v102 = vld [vmem:[%s0 + $0x200] sm:$0xf]
  %v103 = vld [vmem:[%s0 + $0x204] sm:$0xff]
  %v104 = vld [vmem:[%s0 + $0x20c] sm:$0xf]
  %v105 = vld [vmem:[%s0 + $0x210] sm:$0xff]
  %v106 = vld [vmem:[%s0 + $0x218] sm:$0xf]
  %v107 = vld [vmem:[%s0 + $0x21c] sm:$0xff]
  %v108 = vld [vmem:[%s0 + $0x224] sm:$0xf]
  %v109 = vld [vmem:[%s0 + $0x228] sm:$0xff]
  %v110 = vld [vmem:[%s0 + $0x230] sm:$0xf]
  %v111 = vld [vmem:[%s0 + $0x234] sm:$0xff]
  %v112 = vld [vmem:[%s0 + $0x23c] sm:$0xf]
  %v113 = vld [vmem:[%s0 + $0x240] sm:$0xff]
  %v114 = vld [vmem:[%s0 + $0x248] sm:$0xf]
  %v115 = vld [vmem:[%s0 + $0x24c] sm:$0xff]
  %v116 = vld [vmem:[%s0 + $0x254] sm:$0xf]
  %v117 = vld [vmem:[%s0 + $0x258] sm:$0xff]
  %v118 = vld [vmem:[%s0 + $0x260] sm:$0xf]
  %v119 = vld [vmem:[%s0 + $0x264] sm:$0xff]
  %v120 = vld [vmem:[%s0 + $0x26c] sm:$0xf]
  %v121 = vld [vmem:[%s0 + $0x270] sm:$0xff]
  %v122 = vld [vmem:[%s0 + $0x278] sm:$0xf]
  %v123 = vld [vmem:[%s0 + $0x27c] sm:$0xff]
  %v124 = vld [vmem:[%s0 + $0x284] sm:$0xf]
  %v125 = vld [vmem:[%s0 + $0x288] sm:$0xff]
  %v126 = vld [vmem:[%s0 + $0x290] sm:$0xf]
  %v127 = vld [vmem:[%s0 + $0x294] sm:$0xff]
  %v128 = vld [vmem:[%s0 + $0x29c] sm:$0xf]
  %v129 = vld [vmem:[%s0 + $0x2a0] sm:$0xff]
  %v130 = vld [vmem:[%s0 + $0x2a8] sm:$0xf]
  %v131 = vld [vmem:[%s0 + $0x2ac] sm:$0xff]
  %v132 = vld [vmem:[%s0 + $0x2b4] sm:$0xf]
  %v133 = vld [vmem:[%s0 + $0x2b8] sm:$0xff]
  %v134 = vld [vmem:[%s0 + $0x2c0] sm:$0xf]
  %v135 = vld [vmem:[%s0 + $0x2c4] sm:$0xff]
  %v136 = vld [vmem:[%s0 + $0x2cc] sm:$0xf]
  %v137 = vld [vmem:[%s0 + $0x2d0] sm:$0xff]
  %v138 = vld [vmem:[%s0 + $0x2d8] sm:$0xf]
  %v139 = vld [vmem:[%s0 + $0x2dc] sm:$0xff]
  %v140 = vld [vmem:[%s0 + $0x2e4] sm:$0xf]
  %v141 = vld [vmem:[%s0 + $0x2e8] sm:$0xff]
  %v142 = vld [vmem:[%s0 + $0x2f0] sm:$0xf]
  %v143 = vld [vmem:[%s0 + $0x2f4] sm:$0xff]
  %v144 = vld [vmem:[%s0 + $0x2fc] sm:$0xf]
  %v145 = vld [vmem:[%s0 + $0x300] sm:$0xff]
  %v146 = vld [vmem:[%s0 + $0x308] sm:$0xf]
  %v147 = vld [vmem:[%s0 + $0x30c] sm:$0xff]
  %v148 = vld [vmem:[%s0 + $0x314] sm:$0xf]
  %v149 = vld [vmem:[%s0 + $0x318] sm:$0xff]
  %v150 = vld [vmem:[%s0 + $0x320] sm:$0xf]
  %v151 = vld [vmem:[%s0 + $0x324] sm:$0xff]
  %v152 = vld [vmem:[%s0 + $0x32c] sm:$0xf]
  %v153 = vld [vmem:[%s0 + $0x330] sm:$0xff]
  %v154 = vld [vmem:[%s0 + $0x338] sm:$0xf]
  %v155 = vld [vmem:[%s0 + $0x33c] sm:$0xff]
  %v156 = vld [vmem:[%s0 + $0x344] sm:$0xf]
  %v157 = vld [vmem:[%s0 + $0x348] sm:$0xff]
  %v158 = vld [vmem:[%s0 + $0x350] sm:$0xf]
  %v159 = vld [vmem:[%s0 + $0x354] sm:$0xff]
  %v160 = vld [vmem:[%s0 + $0x35c] sm:$0xf]
  %v161 = vld [vmem:[%s0 + $0x360] sm:$0xff]
  %v162 = vld [vmem:[%s0 + $0x368] sm:$0xf]
  %v163 = vld [vmem:[%s0 + $0x36c] sm:$0xff]
  %v164 = vld [vmem:[%s0 + $0x374] sm:$0xf]
  %v165 = vld [vmem:[%s0 + $0x378] sm:$0xff]
  %v166 = vld [vmem:[%s0 + $0x380] sm:$0xf]
  %v167 = vld [vmem:[%s0 + $0x384] sm:$0xff]
  %v168 = vld [vmem:[%s0 + $0x38c] sm:$0xf]
  %v169 = vld [vmem:[%s0 + $0x390] sm:$0xff]
  %v170 = vld [vmem:[%s0 + $0x398] sm:$0xf]
  %v171 = vld [vmem:[%s0 + $0x39c] sm:$0xff]
  %v172 = vld [vmem:[%s0 + $0x3a4] sm:$0xf]
  %v173 = vld [vmem:[%s0 + $0x3a8] sm:$0xff]
  %v174 = vld [vmem:[%s0 + $0x3b0] sm:$0xf]
  %v175 = vld [vmem:[%s0 + $0x3b4] sm:$0xff]
  %v176 = vld [vmem:[%s0 + $0x3bc] sm:$0xf]
  %v177 = vld [vmem:[%s0 + $0x3c0] sm:$0xff]
  %v178 = vld [vmem:[%s0 + $0x3c8] sm:$0xf]
  %v179 = vld [vmem:[%s0 + $0x3cc] sm:$0xff]
  %v180 = vld [vmem:[%s0 + $0x3d4] sm:$0xf]
  %v181 = vld [vmem:[%s0 + $0x3d8] sm:$0xff]
  %v182 = vld [vmem:[%s0 + $0x3e0] sm:$0xf]
  %v183 = vld [vmem:[%s0 + $0x3e4] sm:$0xff]
  %v184 = vld [vmem:[%s0 + $0x3ec] sm:$0xf]
  %v185 = vld [vmem:[%s0 + $0x3f0] sm:$0xff]
  %v186 = vld [vmem:[%s0 + $0x3f8] sm:$0xf]
  %v187 = vld [vmem:[%s0 + $0x3fc] sm:$0xff]
  %v188 = vld [vmem:[%s0 + $0x404] sm:$0xf]
  %v189 = vld [vmem:[%s0 + $0x408] sm:$0xff]
  %v190 = vld [vmem:[%s0 + $0x410] sm:$0xf]
  %v191 = vld [vmem:[%s0 + $0x414] sm:$0xff]
  %v192 = vld [vmem:[%s0 + $0x41c] sm:$0xf]
  %v193 = vld [vmem:[%s0 + $0x420] sm:$0xff]
  %v194 = vld [vmem:[%s0 + $0x428] sm:$0xf]
  %v195 = vld [vmem:[%s0 + $0x42c] sm:$0xff]
  %v196 = vld [vmem:[%s0 + $0x434] sm:$0xf]
  %v197 = vld [vmem:[%s0 + $0x438] sm:$0xff]
  %v198 = vld [vmem:[%s0 + $0x440] sm:$0xf]
  %v199 = vld [vmem:[%s0 + $0x444] sm:$0xff]
  %v200 = vld [vmem:[%s0 + $0x44c] sm:$0xf]
  %v201 = vld [vmem:[%s0 + $0x450] sm:$0xff]
  %v202 = vld [vmem:[%s0 + $0x458] sm:$0xf]
  %v203 = vld [vmem:[%s0 + $0x45c] sm:$0xff]
  %v204 = vld [vmem:[%s0 + $0x464] sm:$0xf]
  %v205 = vld [vmem:[%s0 + $0x468] sm:$0xff]
  %v206 = vld [vmem:[%s0 + $0x470] sm:$0xf]
  %v207 = vld [vmem:[%s0 + $0x474] sm:$0xff]
  %v208 = vld [vmem:[%s0 + $0x47c] sm:$0xf]
  %v209 = vld [vmem:[%s0 + $0x480] sm:$0xff]
  %v210 = vld [vmem:[%s0 + $0x488] sm:$0xf]
  %v211 = vld [vmem:[%s0 + $0x48c] sm:$0xff]
  %v212 = vld [vmem:[%s0 + $0x494] sm:$0xf]
  %v213 = vld [vmem:[%s0 + $0x498] sm:$0xff]
  %v214 = vld [vmem:[%s0 + $0x4a0] sm:$0xf]
  %v215 = vld [vmem:[%s0 + $0x4a4] sm:$0xff]
  %v216 = vld [vmem:[%s0 + $0x4ac] sm:$0xf]
  %v217 = vld [vmem:[%s1] sm:$0xf]
  %v218 = vld [vmem:[%s1 + $0x4] sm:$0xf]
  %v219 = vld [vmem:[%s1 + $0x8] sm:$0xf]
  %v220 = vld [vmem:[%s1 + $0xc] sm:$0xf]
  %v221 = vld [vmem:[%s1 + $0x10] sm:$0xf]
  %v222 = vld [vmem:[%s1 + $0x14] sm:$0xf]
  %v223 = vld [vmem:[%s1 + $0x18] sm:$0xf]
  %v224 = vld [vmem:[%s1 + $0x1c] sm:$0xf]
  %v225 = vld [vmem:[%s1 + $0x20] sm:$0xf]
  %v226 = vld [vmem:[%s1 + $0x24] sm:$0xf]
  %v227 = vld [vmem:[%s1 + $0x28] sm:$0xf]
  %v228 = vld [vmem:[%s1 + $0x2c] sm:$0xf]
  %v229 = vld [vmem:[%s1 + $0x30] sm:$0xf]
  %v230 = vld [vmem:[%s1 + $0x34] sm:$0xf]
  %v231 = vld [vmem:[%s1 + $0x38] sm:$0xf]
  %v232 = vld [vmem:[%s1 + $0x3c] sm:$0xf]
  %v233 = vld [vmem:[%s1 + $0x40] sm:$0xf]
  %v234 = vld [vmem:[%s1 + $0x44] sm:$0xf]
  %v235 = vld [vmem:[%s1 + $0x48] sm:$0xf]
  %v236 = vld [vmem:[%s1 + $0x4c] sm:$0xf]
  %v237 = vld [vmem:[%s1 + $0x50] sm:$0xf]
  %v238 = vld [vmem:[%s1 + $0x54] sm:$0xf]
  %v239 = vld [vmem:[%s1 + $0x58] sm:$0xf]
  %v240 = vld [vmem:[%s1 + $0x5c] sm:$0xf]
  %v241 = vld [vmem:[%s1 + $0x60] sm:$0xf]
  %v242 = vld [vmem:[%s1 + $0x64] sm:$0xf]
  %v243 = vld [vmem:[%s1 + $0x68] sm:$0xf]
  %v244 = vld [vmem:[%s1 + $0x6c] sm:$0xf]
  %v245 = vld [vmem:[%s1 + $0x70] sm:$0xf]
  %v246 = vld [vmem:[%s1 + $0x74] sm:$0xf]
  %v247 = vld [vmem:[%s1 + $0x78] sm:$0xf]
  %v248 = vld [vmem:[%s1 + $0x7c] sm:$0xf]
  %v249 = vld [vmem:[%s1 + $0x80] sm:$0xf]
  %v250 = vld [vmem:[%s1 + $0x84] sm:$0xf]
  %v251 = vld [vmem:[%s1 + $0x88] sm:$0xf]
  %v252 = vld [vmem:[%s1 + $0x8c] sm:$0xf]
  %v253 = vld [vmem:[%s1 + $0x90] sm:$0xf]
  %v254 = vld [vmem:[%s1 + $0x94] sm:$0xf]
  %v255 = vld [vmem:[%s1 + $0x98] sm:$0xf]
  %v256 = vld [vmem:[%s1 + $0x9c] sm:$0xf]
  %v257 = vld [vmem:[%s1 + $0xa0] sm:$0xf]
  %v258 = vld [vmem:[%s1 + $0xa4] sm:$0xf]
  %v259 = vld [vmem:[%s1 + $0xa8] sm:$0xf]
  %v260 = vld [vmem:[%s1 + $0xac] sm:$0xf]
  %v261 = vld [vmem:[%s1 + $0xb0] sm:$0xf]
  %v262 = vld [vmem:[%s1 + $0xb4] sm:$0xf]
  %v263 = vld [vmem:[%s1 + $0xb8] sm:$0xf]
  %v264 = vld [vmem:[%s1 + $0xbc] sm:$0xf]
  %v465 = vunpack.c.l.b16 %v17
  %v466 = vunpack.c.h.b16 %v17
  %v467 = vunpack.c.l.b16 %v18
  %v468 = vunpack.c.l.b16 %v19
  %v469 = vunpack.c.h.b16 %v19
  %v470 = vunpack.c.l.b16 %v20
  %v471 = vunpack.c.l.b16 %v21
  %v472 = vunpack.c.h.b16 %v21
  %v473 = vunpack.c.l.b16 %v22
  %v474 = vunpack.c.l.b16 %v23
  %v475 = vunpack.c.h.b16 %v23
  %v476 = vunpack.c.l.b16 %v24
  %v477 = vunpack.c.l.b16 %v25
  %v478 = vunpack.c.h.b16 %v25
  %v479 = vunpack.c.l.b16 %v26
  %v480 = vunpack.c.l.b16 %v27
  %v481 = vunpack.c.h.b16 %v27
  %v482 = vunpack.c.l.b16 %v28
  %v483 = vunpack.c.l.b16 %v29
  %v484 = vunpack.c.h.b16 %v29
  %v485 = vunpack.c.l.b16 %v30
  %v486 = vunpack.c.l.b16 %v31
  %v487 = vunpack.c.h.b16 %v31
  %v488 = vunpack.c.l.b16 %v32
  %v489 = vunpack.c.l.b16 %v33
  %v490 = vunpack.c.h.b16 %v33
  %v491 = vunpack.c.l.b16 %v34
  %v492 = vunpack.c.l.b16 %v35
  %v493 = vunpack.c.h.b16 %v35
  %v494 = vunpack.c.l.b16 %v36
  %v495 = vunpack.c.l.b16 %v37
  %v496 = vunpack.c.h.b16 %v37
  %v497 = vunpack.c.l.b16 %v38
  %v498 = vunpack.c.l.b16 %v39
  %v499 = vunpack.c.h.b16 %v39
  %v500 = vunpack.c.l.b16 %v40
  %v501 = vunpack.c.l.b16 %v41
  %v502 = vunpack.c.h.b16 %v41
  %v503 = vunpack.c.l.b16 %v42
  %v504 = vunpack.c.l.b16 %v43
  %v505 = vunpack.c.h.b16 %v43
  %v506 = vunpack.c.l.b16 %v44
  %v507 = vunpack.c.l.b16 %v45
  %v508 = vunpack.c.h.b16 %v45
  %v509 = vunpack.c.l.b16 %v46
  %v510 = vunpack.c.l.b16 %v47
  %v511 = vunpack.c.h.b16 %v47
  %v512 = vunpack.c.l.b16 %v48
  %v513 = vunpack.c.l.b16 %v49
  %v514 = vunpack.c.h.b16 %v49
  %v515 = vunpack.c.l.b16 %v50
  %v516 = vunpack.c.l.b16 %v51
  %v517 = vunpack.c.h.b16 %v51
  %v518 = vunpack.c.l.b16 %v52
  %v519 = vunpack.c.l.b16 %v53
  %v520 = vunpack.c.h.b16 %v53
  %v521 = vunpack.c.l.b16 %v54
  %v522 = vunpack.c.l.b16 %v55
  %v523 = vunpack.c.h.b16 %v55
  %v524 = vunpack.c.l.b16 %v56
  %v525 = vunpack.c.l.b16 %v57
  %v526 = vunpack.c.h.b16 %v57
  %v527 = vunpack.c.l.b16 %v58
  %v528 = vunpack.c.l.b16 %v59
  %v529 = vunpack.c.h.b16 %v59
  %v530 = vunpack.c.l.b16 %v60
  %v531 = vunpack.c.l.b16 %v61
  %v532 = vunpack.c.h.b16 %v61
  %v533 = vunpack.c.l.b16 %v62
  %v534 = vunpack.c.l.b16 %v63
  %v535 = vunpack.c.h.b16 %v63
  %v536 = vunpack.c.l.b16 %v64
  %v537 = vunpack.c.l.b16 %v65
  %v538 = vunpack.c.h.b16 %v65
  %v539 = vunpack.c.l.b16 %v66
  %v540 = vunpack.c.l.b16 %v67
  %v541 = vunpack.c.h.b16 %v67
  %v542 = vunpack.c.l.b16 %v68
  %v543 = vunpack.c.l.b16 %v69
  %v544 = vunpack.c.h.b16 %v69
  %v545 = vunpack.c.l.b16 %v70
  %v546 = vunpack.c.l.b16 %v71
  %v547 = vunpack.c.h.b16 %v71
  %v548 = vunpack.c.l.b16 %v72
  %v549 = vunpack.c.l.b16 %v73
  %v550 = vunpack.c.h.b16 %v73
  %v551 = vunpack.c.l.b16 %v74
  %v552 = vunpack.c.l.b16 %v75
  %v553 = vunpack.c.h.b16 %v75
  %v554 = vunpack.c.l.b16 %v76
  %v555 = vunpack.c.l.b16 %v77
  %v556 = vunpack.c.h.b16 %v77
  %v557 = vunpack.c.l.b16 %v78
  %v558 = vunpack.c.l.b16 %v79
  %v559 = vunpack.c.h.b16 %v79
  %v560 = vunpack.c.l.b16 %v80
  %v561 = vunpack.c.l.b16 %v81
  %v562 = vunpack.c.h.b16 %v81
  %v563 = vunpack.c.l.b16 %v82
  %v564 = vunpack.c.l.b16 %v83
  %v565 = vunpack.c.h.b16 %v83
  %v566 = vunpack.c.l.b16 %v84
  %v567 = vunpack.c.l.b16 %v85
  %v568 = vunpack.c.h.b16 %v85
  %v569 = vunpack.c.l.b16 %v86
  %v570 = vunpack.c.l.b16 %v87
  %v571 = vunpack.c.h.b16 %v87
  %v572 = vunpack.c.l.b16 %v88
  %v573 = vunpack.c.l.b16 %v89
  %v574 = vunpack.c.h.b16 %v89
  %v575 = vunpack.c.l.b16 %v90
  %v576 = vunpack.c.l.b16 %v91
  %v577 = vunpack.c.h.b16 %v91
  %v578 = vunpack.c.l.b16 %v92
  %v579 = vunpack.c.l.b16 %v93
  %v580 = vunpack.c.h.b16 %v93
  %v581 = vunpack.c.l.b16 %v94
  %v582 = vunpack.c.l.b16 %v95
  %v583 = vunpack.c.h.b16 %v95
  %v584 = vunpack.c.l.b16 %v96
  %v585 = vunpack.c.l.b16 %v97
  %v586 = vunpack.c.h.b16 %v97
  %v587 = vunpack.c.l.b16 %v98
  %v588 = vunpack.c.l.b16 %v99
  %v589 = vunpack.c.h.b16 %v99
  %v590 = vunpack.c.l.b16 %v100
  %v591 = vunpack.c.l.b16 %v101
  %v592 = vunpack.c.h.b16 %v101
  %v593 = vunpack.c.l.b16 %v102
  %v594 = vunpack.c.l.b16 %v103
  %v595 = vunpack.c.h.b16 %v103
  %v596 = vunpack.c.l.b16 %v104
  %v597 = vunpack.c.l.b16 %v105
  %v598 = vunpack.c.h.b16 %v105
  %v599 = vunpack.c.l.b16 %v106
  %v600 = vunpack.c.l.b16 %v107
  %v601 = vunpack.c.h.b16 %v107
  %v602 = vunpack.c.l.b16 %v108
  %v603 = vunpack.c.l.b16 %v109
  %v604 = vunpack.c.h.b16 %v109
  %v605 = vunpack.c.l.b16 %v110
  %v606 = vunpack.c.l.b16 %v111
  %v607 = vunpack.c.h.b16 %v111
  %v608 = vunpack.c.l.b16 %v112
  %v609 = vunpack.c.l.b16 %v113
  %v610 = vunpack.c.h.b16 %v113
  %v611 = vunpack.c.l.b16 %v114
  %v612 = vunpack.c.l.b16 %v115
  %v613 = vunpack.c.h.b16 %v115
  %v614 = vunpack.c.l.b16 %v116
  %v615 = vunpack.c.l.b16 %v117
  %v616 = vunpack.c.h.b16 %v117
  %v617 = vunpack.c.l.b16 %v118
  %v618 = vunpack.c.l.b16 %v119
  %v619 = vunpack.c.h.b16 %v119
  %v620 = vunpack.c.l.b16 %v120
  %v621 = vunpack.c.l.b16 %v121
  %v622 = vunpack.c.h.b16 %v121
  %v623 = vunpack.c.l.b16 %v122
  %v624 = vunpack.c.l.b16 %v123
  %v625 = vunpack.c.h.b16 %v123
  %v626 = vunpack.c.l.b16 %v124
  %v627 = vunpack.c.l.b16 %v125
  %v628 = vunpack.c.h.b16 %v125
  %v629 = vunpack.c.l.b16 %v126
  %v630 = vunpack.c.l.b16 %v127
  %v631 = vunpack.c.h.b16 %v127
  %v632 = vunpack.c.l.b16 %v128
  %v633 = vunpack.c.l.b16 %v129
  %v634 = vunpack.c.h.b16 %v129
  %v635 = vunpack.c.l.b16 %v130
  %v636 = vunpack.c.l.b16 %v131
  %v637 = vunpack.c.h.b16 %v131
  %v638 = vunpack.c.l.b16 %v132
  %v639 = vunpack.c.l.b16 %v133
  %v640 = vunpack.c.h.b16 %v133
  %v641 = vunpack.c.l.b16 %v134
  %v642 = vunpack.c.l.b16 %v135
  %v643 = vunpack.c.h.b16 %v135
  %v644 = vunpack.c.l.b16 %v136
  %v645 = vunpack.c.l.b16 %v137
  %v646 = vunpack.c.h.b16 %v137
  %v647 = vunpack.c.l.b16 %v138
  %v648 = vunpack.c.l.b16 %v139
  %v649 = vunpack.c.h.b16 %v139
  %v650 = vunpack.c.l.b16 %v140
  %v651 = vunpack.c.l.b16 %v141
  %v652 = vunpack.c.h.b16 %v141
  %v653 = vunpack.c.l.b16 %v142
  %v654 = vunpack.c.l.b16 %v143
  %v655 = vunpack.c.h.b16 %v143
  %v656 = vunpack.c.l.b16 %v144
  %v657 = vunpack.c.l.b16 %v145
  %v658 = vunpack.c.h.b16 %v145
  %v659 = vunpack.c.l.b16 %v146
  %v660 = vunpack.c.l.b16 %v147
  %v661 = vunpack.c.h.b16 %v147
  %v662 = vunpack.c.l.b16 %v148
  %v663 = vunpack.c.l.b16 %v149
  %v664 = vunpack.c.h.b16 %v149
  %v665 = vunpack.c.l.b16 %v150
  %v666 = vunpack.c.l.b16 %v151
  %v667 = vunpack.c.h.b16 %v151
  %v668 = vunpack.c.l.b16 %v152
  %v669 = vunpack.c.l.b16 %v153
  %v670 = vunpack.c.h.b16 %v153
  %v671 = vunpack.c.l.b16 %v154
  %v672 = vunpack.c.l.b16 %v155
  %v673 = vunpack.c.h.b16 %v155
  %v674 = vunpack.c.l.b16 %v156
  %v675 = vunpack.c.l.b16 %v157
  %v676 = vunpack.c.h.b16 %v157
  %v677 = vunpack.c.l.b16 %v158
  %v678 = vunpack.c.l.b16 %v159
  %v679 = vunpack.c.h.b16 %v159
  %v680 = vunpack.c.l.b16 %v160
  %v681 = vunpack.c.l.b16 %v161
  %v682 = vunpack.c.h.b16 %v161
  %v683 = vunpack.c.l.b16 %v162
  %v684 = vunpack.c.l.b16 %v163
  %v685 = vunpack.c.h.b16 %v163
  %v686 = vunpack.c.l.b16 %v164
  %v687 = vunpack.c.l.b16 %v165
  %v688 = vunpack.c.h.b16 %v165
  %v689 = vunpack.c.l.b16 %v166
  %v690 = vunpack.c.l.b16 %v167
  %v691 = vunpack.c.h.b16 %v167
  %v692 = vunpack.c.l.b16 %v168
  %v693 = vunpack.c.l.b16 %v169
  %v694 = vunpack.c.h.b16 %v169
  %v695 = vunpack.c.l.b16 %v170
  %v696 = vunpack.c.l.b16 %v171
  %v697 = vunpack.c.h.b16 %v171
  %v698 = vunpack.c.l.b16 %v172
  %v699 = vunpack.c.l.b16 %v173
  %v700 = vunpack.c.h.b16 %v173
  %v701 = vunpack.c.l.b16 %v174
  %v702 = vunpack.c.l.b16 %v175
  %v703 = vunpack.c.h.b16 %v175
  %v704 = vunpack.c.l.b16 %v176
  %v705 = vunpack.c.l.b16 %v177
  %v706 = vunpack.c.h.b16 %v177
  %v707 = vunpack.c.l.b16 %v178
  %v708 = vunpack.c.l.b16 %v179
  %v709 = vunpack.c.h.b16 %v179
  %v710 = vunpack.c.l.b16 %v180
  %v711 = vunpack.c.l.b16 %v181
  %v712 = vunpack.c.h.b16 %v181
  %v713 = vunpack.c.l.b16 %v182
  %v714 = vunpack.c.l.b16 %v183
  %v715 = vunpack.c.h.b16 %v183
  %v716 = vunpack.c.l.b16 %v184
  %v717 = vunpack.c.l.b16 %v185
  %v718 = vunpack.c.h.b16 %v185
  %v719 = vunpack.c.l.b16 %v186
  %v720 = vunpack.c.l.b16 %v187
  %v721 = vunpack.c.h.b16 %v187
  %v722 = vunpack.c.l.b16 %v188
  %v723 = vunpack.c.l.b16 %v189
  %v724 = vunpack.c.h.b16 %v189
  %v725 = vunpack.c.l.b16 %v190
  %v726 = vunpack.c.l.b16 %v191
  %v727 = vunpack.c.h.b16 %v191
  %v728 = vunpack.c.l.b16 %v192
  %v729 = vunpack.c.l.b16 %v193
  %v730 = vunpack.c.h.b16 %v193
  %v731 = vunpack.c.l.b16 %v194
  %v732 = vunpack.c.l.b16 %v195
  %v733 = vunpack.c.h.b16 %v195
  %v734 = vunpack.c.l.b16 %v196
  %v735 = vunpack.c.l.b16 %v197
  %v736 = vunpack.c.h.b16 %v197
  %v737 = vunpack.c.l.b16 %v198
  %v738 = vunpack.c.l.b16 %v199
  %v739 = vunpack.c.h.b16 %v199
  %v740 = vunpack.c.l.b16 %v200
  %v741 = vunpack.c.l.b16 %v201
  %v742 = vunpack.c.h.b16 %v201
  %v743 = vunpack.c.l.b16 %v202
  %v744 = vunpack.c.l.b16 %v203
  %v745 = vunpack.c.h.b16 %v203
  %v746 = vunpack.c.l.b16 %v204
  %v747 = vunpack.c.l.b16 %v205
  %v748 = vunpack.c.h.b16 %v205
  %v749 = vunpack.c.l.b16 %v206
  %v750 = vunpack.c.l.b16 %v207
  %v751 = vunpack.c.h.b16 %v207
  %v752 = vunpack.c.l.b16 %v208
  %v753 = vunpack.c.l.b16 %v209
  %v754 = vunpack.c.h.b16 %v209
  %v755 = vunpack.c.l.b16 %v210
  %v756 = vunpack.c.l.b16 %v211
  %v757 = vunpack.c.h.b16 %v211
  %v758 = vunpack.c.l.b16 %v212
  %v759 = vunpack.c.l.b16 %v213
  %v760 = vunpack.c.h.b16 %v213
  %v761 = vunpack.c.l.b16 %v214
  %v762 = vunpack.c.l.b16 %v215
  %v763 = vunpack.c.h.b16 %v215
  %v764 = vunpack.c.l.b16 %v216
  %v765 = vpack.c.b16 %v468, %v465
  %v766 = vpack.c.b16 %v469, %v466
  %v767 = vpack.c.b16 %v470, %v467
  %v768 = vpack.c.b16 %v474, %v471
  %v769 = vpack.c.b16 %v475, %v472
  %v770 = vpack.c.b16 %v476, %v473
  %v771 = vpack.c.b16 %v480, %v477
  %v772 = vpack.c.b16 %v481, %v478
  %v773 = vpack.c.b16 %v482, %v479
  %v774 = vpack.c.b16 %v486, %v483
  %v775 = vpack.c.b16 %v487, %v484
  %v776 = vpack.c.b16 %v488, %v485
  %v777 = vpack.c.b16 %v492, %v489
  %v778 = vpack.c.b16 %v493, %v490
  %v779 = vpack.c.b16 %v494, %v491
  %v780 = vpack.c.b16 %v498, %v495
  %v781 = vpack.c.b16 %v499, %v496
  %v782 = vpack.c.b16 %v500, %v497
  %v783 = vpack.c.b16 %v504, %v501
  %v784 = vpack.c.b16 %v505, %v502
  %v785 = vpack.c.b16 %v506, %v503
  %v786 = vpack.c.b16 %v510, %v507
  %v787 = vpack.c.b16 %v511, %v508
  %v788 = vpack.c.b16 %v512, %v509
  %v789 = vpack.c.b16 %v516, %v513
  %v790 = vpack.c.b16 %v517, %v514
  %v791 = vpack.c.b16 %v518, %v515
  %v792 = vpack.c.b16 %v522, %v519
  %v793 = vpack.c.b16 %v523, %v520
  %v794 = vpack.c.b16 %v524, %v521
  %v795 = vpack.c.b16 %v528, %v525
  %v796 = vpack.c.b16 %v529, %v526
  %v797 = vpack.c.b16 %v530, %v527
  %v798 = vpack.c.b16 %v534, %v531
  %v799 = vpack.c.b16 %v535, %v532
  %v800 = vpack.c.b16 %v536, %v533
  %v801 = vpack.c.b16 %v540, %v537
  %v802 = vpack.c.b16 %v541, %v538
  %v803 = vpack.c.b16 %v542, %v539
  %v804 = vpack.c.b16 %v546, %v543
  %v805 = vpack.c.b16 %v547, %v544
  %v806 = vpack.c.b16 %v548, %v545
  %v807 = vpack.c.b16 %v552, %v549
  %v808 = vpack.c.b16 %v553, %v550
  %v809 = vpack.c.b16 %v554, %v551
  %v810 = vpack.c.b16 %v558, %v555
  %v811 = vpack.c.b16 %v559, %v556
  %v812 = vpack.c.b16 %v560, %v557
  %v813 = vpack.c.b16 %v564, %v561
  %v814 = vpack.c.b16 %v565, %v562
  %v815 = vpack.c.b16 %v566, %v563
  %v816 = vpack.c.b16 %v570, %v567
  %v817 = vpack.c.b16 %v571, %v568
  %v818 = vpack.c.b16 %v572, %v569
  %v819 = vpack.c.b16 %v576, %v573
  %v820 = vpack.c.b16 %v577, %v574
  %v821 = vpack.c.b16 %v578, %v575
  %v822 = vpack.c.b16 %v582, %v579
  %v823 = vpack.c.b16 %v583, %v580
  %v824 = vpack.c.b16 %v584, %v581
  %v825 = vpack.c.b16 %v588, %v585
  %v826 = vpack.c.b16 %v589, %v586
  %v827 = vpack.c.b16 %v590, %v587
  %v828 = vpack.c.b16 %v594, %v591
  %v829 = vpack.c.b16 %v595, %v592
  %v830 = vpack.c.b16 %v596, %v593
  %v831 = vpack.c.b16 %v600, %v597
  %v832 = vpack.c.b16 %v601, %v598
  %v833 = vpack.c.b16 %v602, %v599
  %v834 = vpack.c.b16 %v606, %v603
  %v835 = vpack.c.b16 %v607, %v604
  %v836 = vpack.c.b16 %v608, %v605
  %v837 = vpack.c.b16 %v612, %v609
  %v838 = vpack.c.b16 %v613, %v610
  %v839 = vpack.c.b16 %v614, %v611
  %v840 = vpack.c.b16 %v618, %v615
  %v841 = vpack.c.b16 %v619, %v616
  %v842 = vpack.c.b16 %v620, %v617
  %v843 = vpack.c.b16 %v624, %v621
  %v844 = vpack.c.b16 %v625, %v622
  %v845 = vpack.c.b16 %v626, %v623
  %v846 = vpack.c.b16 %v630, %v627
  %v847 = vpack.c.b16 %v631, %v628
  %v848 = vpack.c.b16 %v632, %v629
  %v849 = vpack.c.b16 %v636, %v633
  %v850 = vpack.c.b16 %v637, %v634
  %v851 = vpack.c.b16 %v638, %v635
  %v852 = vpack.c.b16 %v642, %v639
  %v853 = vpack.c.b16 %v643, %v640
  %v854 = vpack.c.b16 %v644, %v641
  %v855 = vpack.c.b16 %v648, %v645
  %v856 = vpack.c.b16 %v649, %v646
  %v857 = vpack.c.b16 %v650, %v647
  %v858 = vpack.c.b16 %v654, %v651
  %v859 = vpack.c.b16 %v655, %v652
  %v860 = vpack.c.b16 %v656, %v653
  %v861 = vpack.c.b16 %v660, %v657
  %v862 = vpack.c.b16 %v661, %v658
  %v863 = vpack.c.b16 %v662, %v659
  %v864 = vpack.c.b16 %v666, %v663
  %v865 = vpack.c.b16 %v667, %v664
  %v866 = vpack.c.b16 %v668, %v665
  %v867 = vpack.c.b16 %v672, %v669
  %v868 = vpack.c.b16 %v673, %v670
  %v869 = vpack.c.b16 %v674, %v671
  %v870 = vpack.c.b16 %v678, %v675
  %v871 = vpack.c.b16 %v679, %v676
  %v872 = vpack.c.b16 %v680, %v677
  %v873 = vpack.c.b16 %v684, %v681
  %v874 = vpack.c.b16 %v685, %v682
  %v875 = vpack.c.b16 %v686, %v683
  %v876 = vpack.c.b16 %v690, %v687
  %v877 = vpack.c.b16 %v691, %v688
  %v878 = vpack.c.b16 %v692, %v689
  %v879 = vpack.c.b16 %v696, %v693
  %v880 = vpack.c.b16 %v697, %v694
  %v881 = vpack.c.b16 %v698, %v695
  %v882 = vpack.c.b16 %v702, %v699
  %v883 = vpack.c.b16 %v703, %v700
  %v884 = vpack.c.b16 %v704, %v701
  %v885 = vpack.c.b16 %v708, %v705
  %v886 = vpack.c.b16 %v709, %v706
  %v887 = vpack.c.b16 %v710, %v707
  %v888 = vpack.c.b16 %v714, %v711
  %v889 = vpack.c.b16 %v715, %v712
  %v890 = vpack.c.b16 %v716, %v713
  %v891 = vpack.c.b16 %v720, %v717
  %v892 = vpack.c.b16 %v721, %v718
  %v893 = vpack.c.b16 %v722, %v719
  %v894 = vpack.c.b16 %v726, %v723
  %v895 = vpack.c.b16 %v727, %v724
  %v896 = vpack.c.b16 %v728, %v725
  %v897 = vpack.c.b16 %v732, %v729
  %v898 = vpack.c.b16 %v733, %v730
  %v899 = vpack.c.b16 %v734, %v731
  %v900 = vpack.c.b16 %v738, %v735
  %v901 = vpack.c.b16 %v739, %v736
  %v902 = vpack.c.b16 %v740, %v737
  %v903 = vpack.c.b16 %v744, %v741
  %v904 = vpack.c.b16 %v745, %v742
  %v905 = vpack.c.b16 %v746, %v743
  %v906 = vpack.c.b16 %v750, %v747
  %v907 = vpack.c.b16 %v751, %v748
  %v908 = vpack.c.b16 %v752, %v749
  %v909 = vpack.c.b16 %v756, %v753
  %v910 = vpack.c.b16 %v757, %v754
  %v911 = vpack.c.b16 %v758, %v755
  %v912 = vpack.c.b16 %v762, %v759
  %v913 = vpack.c.b16 %v763, %v760
  %v914 = vpack.c.b16 %v764, %v761
  %v1113 = vunpack.c.l.b16 %v217
  %v1114 = vunpack.c.l.b16 %v218
  %v1115 = vunpack.c.l.b16 %v219
  %v1116 = vunpack.c.l.b16 %v220
  %v1117 = vunpack.c.l.b16 %v221
  %v1118 = vunpack.c.l.b16 %v222
  %v1119 = vunpack.c.l.b16 %v223
  %v1120 = vunpack.c.l.b16 %v224
  %v1121 = vunpack.c.l.b16 %v225
  %v1122 = vunpack.c.l.b16 %v226
  %v1123 = vunpack.c.l.b16 %v227
  %v1124 = vunpack.c.l.b16 %v228
  %v1125 = vunpack.c.l.b16 %v229
  %v1126 = vunpack.c.l.b16 %v230
  %v1127 = vunpack.c.l.b16 %v231
  %v1128 = vunpack.c.l.b16 %v232
  %v1129 = vunpack.c.l.b16 %v233
  %v1130 = vunpack.c.l.b16 %v234
  %v1131 = vunpack.c.l.b16 %v235
  %v1132 = vunpack.c.l.b16 %v236
  %v1133 = vunpack.c.l.b16 %v237
  %v1134 = vunpack.c.l.b16 %v238
  %v1135 = vunpack.c.l.b16 %v239
  %v1136 = vunpack.c.l.b16 %v240
  %v1137 = vunpack.c.l.b16 %v241
  %v1138 = vunpack.c.l.b16 %v242
  %v1139 = vunpack.c.l.b16 %v243
  %v1140 = vunpack.c.l.b16 %v244
  %v1141 = vunpack.c.l.b16 %v245
  %v1142 = vunpack.c.l.b16 %v246
  %v1143 = vunpack.c.l.b16 %v247
  %v1144 = vunpack.c.l.b16 %v248
  %v1145 = vunpack.c.l.b16 %v249
  %v1146 = vunpack.c.l.b16 %v250
  %v1147 = vunpack.c.l.b16 %v251
  %v1148 = vunpack.c.l.b16 %v252
  %v1149 = vunpack.c.l.b16 %v253
  %v1150 = vunpack.c.l.b16 %v254
  %v1151 = vunpack.c.l.b16 %v255
  %v1152 = vunpack.c.l.b16 %v256
  %v1153 = vunpack.c.l.b16 %v257
  %v1154 = vunpack.c.l.b16 %v258
  %v1155 = vunpack.c.l.b16 %v259
  %v1156 = vunpack.c.l.b16 %v260
  %v1157 = vunpack.c.l.b16 %v261
  %v1158 = vunpack.c.l.b16 %v262
  %v1159 = vunpack.c.l.b16 %v263
  %v1160 = vunpack.c.l.b16 %v264
  %v1161 = vpack.c.b16 %v1114, %v1113
  %v1162 = vpack.c.b16 %v1116, %v1115
  %v1163 = vpack.c.b16 %v1118, %v1117
  %v1164 = vpack.c.b16 %v1120, %v1119
  %v1165 = vpack.c.b16 %v1122, %v1121
  %v1166 = vpack.c.b16 %v1124, %v1123
  %v1167 = vpack.c.b16 %v1126, %v1125
  %v1168 = vpack.c.b16 %v1128, %v1127
  %v1169 = vpack.c.b16 %v1130, %v1129
  %v1170 = vpack.c.b16 %v1132, %v1131
  %v1171 = vpack.c.b16 %v1134, %v1133
  %v1172 = vpack.c.b16 %v1136, %v1135
  %v1173 = vpack.c.b16 %v1138, %v1137
  %v1174 = vpack.c.b16 %v1140, %v1139
  %v1175 = vpack.c.b16 %v1142, %v1141
  %v1176 = vpack.c.b16 %v1144, %v1143
  %v1177 = vpack.c.b16 %v1146, %v1145
  %v1178 = vpack.c.b16 %v1148, %v1147
  %v1179 = vpack.c.b16 %v1150, %v1149
  %v1180 = vpack.c.b16 %v1152, %v1151
  %v1181 = vpack.c.b16 %v1154, %v1153
  %v1182 = vpack.c.b16 %v1156, %v1155
  %v1183 = vpack.c.b16 %v1158, %v1157
  %v1184 = vpack.c.b16 %v1160, %v1159
  %1209 = vmatpush.bf16.msra.mxu0 %v1168
  %1210 = vmatpush.bf16.msra.mxu0 %v1167
  %1211 = vmatpush.bf16.msra.mxu0 %v1166
  %1212 = vmatpush.bf16.msra.mxu0 %v1165
  %1213 = vmatpush.bf16.msra.mxu0 %v1164
  %1214 = vmatpush.bf16.msra.mxu0 %v1163
  %1215 = vmatpush.bf16.msra.mxu0 %v1162
  %1216 = vmatpush.bf16.msra.mxu0 %v1161
  %1217 = vmatmul.bf16.gmra.mxu0 %v765
  %v1218 = vpop.f32.mrf.mxu0
  %v1219 = vadd.f32 0.0, %v1218
  %v1220 = vpop.f32.mrf.mxu0
  %v1221 = vadd.f32 0.0, %v1220
  %1222 = vmatmul.bf16.gmra.mxu0 %v768
  %v1223 = vpop.f32.mrf.mxu0
  %v1224 = vadd.f32 0.0, %v1223
  %v1225 = vpop.f32.mrf.mxu0
  %v1226 = vadd.f32 0.0, %v1225
  %1227 = vmatmul.bf16.gmra.mxu0 %v771
  %v1228 = vpop.f32.mrf.mxu0
  %v1229 = vadd.f32 0.0, %v1228
  %v1230 = vpop.f32.mrf.mxu0
  %v1231 = vadd.f32 0.0, %v1230
  %1232 = vmatmul.bf16.gmra.mxu0 %v774
  %v1233 = vpop.f32.mrf.mxu0
  %v1234 = vadd.f32 0.0, %v1233
  %v1235 = vpop.f32.mrf.mxu0
  %v1236 = vadd.f32 0.0, %v1235
  %1237 = vmatmul.bf16.gmra.mxu0 %v777
  %v1238 = vpop.f32.mrf.mxu0
  %v1239 = vadd.f32 0.0, %v1238
  %v1240 = vpop.f32.mrf.mxu0
  %v1241 = vadd.f32 0.0, %v1240
  %1242 = vmatmul.bf16.gmra.mxu0 %v780
  %v1243 = vpop.f32.mrf.mxu0
  %v1244 = vadd.f32 0.0, %v1243
  %v1245 = vpop.f32.mrf.mxu0
  %v1246 = vadd.f32 0.0, %v1245
  %1247 = vmatmul.bf16.gmra.mxu0 %v783
  %v1248 = vpop.f32.mrf.mxu0
  %v1249 = vadd.f32 0.0, %v1248
  %v1250 = vpop.f32.mrf.mxu0
  %v1251 = vadd.f32 0.0, %v1250
  %1252 = vmatmul.bf16.gmra.mxu0 %v786
  %v1253 = vpop.f32.mrf.mxu0
  %v1254 = vadd.f32 0.0, %v1253
  %v1255 = vpop.f32.mrf.mxu0
  %v1256 = vadd.f32 0.0, %v1255
  %1257 = vmatmul.bf16.gmra.mxu0 %v789
  %v1258 = vpop.f32.mrf.mxu0
  %v1259 = vadd.f32 0.0, %v1258
  %v1260 = vpop.f32.mrf.mxu0
  %v1261 = vadd.f32 0.0, %v1260
  %1262 = vmatmul.bf16.gmra.mxu0 %v792
  %v1263 = vpop.f32.mrf.mxu0
  %v1264 = vadd.f32 0.0, %v1263
  %v1265 = vpop.f32.mrf.mxu0
  %v1266 = vadd.f32 0.0, %v1265
  %1267 = vmatmul.bf16.gmra.mxu0 %v795
  %v1268 = vpop.f32.mrf.mxu0
  %v1269 = vadd.f32 0.0, %v1268
  %v1270 = vpop.f32.mrf.mxu0
  %v1271 = vadd.f32 0.0, %v1270
  %1272 = vmatmul.bf16.gmra.mxu0 %v798
  %v1273 = vpop.f32.mrf.mxu0
  %v1274 = vadd.f32 0.0, %v1273
  %v1275 = vpop.f32.mrf.mxu0
  %v1276 = vadd.f32 0.0, %v1275
  %1277 = vmatmul.bf16.gmra.mxu0 %v801
  %v1278 = vpop.f32.mrf.mxu0
  %v1279 = vadd.f32 0.0, %v1278
  %v1280 = vpop.f32.mrf.mxu0
  %v1281 = vadd.f32 0.0, %v1280
  %1282 = vmatmul.bf16.gmra.mxu0 %v804
  %v1283 = vpop.f32.mrf.mxu0
  %v1284 = vadd.f32 0.0, %v1283
  %v1285 = vpop.f32.mrf.mxu0
  %v1286 = vadd.f32 0.0, %v1285
  %1287 = vmatmul.bf16.gmra.mxu0 %v807
  %v1288 = vpop.f32.mrf.mxu0
  %v1289 = vadd.f32 0.0, %v1288
  %v1290 = vpop.f32.mrf.mxu0
  %v1291 = vadd.f32 0.0, %v1290
  %1292 = vmatmul.bf16.gmra.mxu0 %v810
  %v1293 = vpop.f32.mrf.mxu0
  %v1294 = vadd.f32 0.0, %v1293
  %v1295 = vpop.f32.mrf.mxu0
  %v1296 = vadd.f32 0.0, %v1295
  %1297 = vmatmul.bf16.gmra.mxu0 %v813
  %v1298 = vpop.f32.mrf.mxu0
  %v1299 = vadd.f32 0.0, %v1298
  %v1300 = vpop.f32.mrf.mxu0
  %v1301 = vadd.f32 0.0, %v1300
  %1302 = vmatmul.bf16.gmra.mxu0 %v816
  %v1303 = vpop.f32.mrf.mxu0
  %v1304 = vadd.f32 0.0, %v1303
  %v1305 = vpop.f32.mrf.mxu0
  %v1306 = vadd.f32 0.0, %v1305
  %1307 = vmatmul.bf16.gmra.mxu0 %v819
  %v1308 = vpop.f32.mrf.mxu0
  %v1309 = vadd.f32 0.0, %v1308
  %v1310 = vpop.f32.mrf.mxu0
  %v1311 = vadd.f32 0.0, %v1310
  %1312 = vmatmul.bf16.gmra.mxu0 %v822
  %v1313 = vpop.f32.mrf.mxu0
  %v1314 = vadd.f32 0.0, %v1313
  %v1315 = vpop.f32.mrf.mxu0
  %v1316 = vadd.f32 0.0, %v1315
  %1317 = vmatmul.bf16.gmra.mxu0 %v825
  %v1318 = vpop.f32.mrf.mxu0
  %v1319 = vadd.f32 0.0, %v1318
  %v1320 = vpop.f32.mrf.mxu0
  %v1321 = vadd.f32 0.0, %v1320
  %1322 = vmatmul.bf16.gmra.mxu0 %v828
  %v1323 = vpop.f32.mrf.mxu0
  %v1324 = vadd.f32 0.0, %v1323
  %v1325 = vpop.f32.mrf.mxu0
  %v1326 = vadd.f32 0.0, %v1325
  %1327 = vmatmul.bf16.gmra.mxu0 %v831
  %v1328 = vpop.f32.mrf.mxu0
  %v1329 = vadd.f32 0.0, %v1328
  %v1330 = vpop.f32.mrf.mxu0
  %v1331 = vadd.f32 0.0, %v1330
  %1332 = vmatmul.bf16.gmra.mxu0 %v834
  %v1333 = vpop.f32.mrf.mxu0
  %v1334 = vadd.f32 0.0, %v1333
  %v1335 = vpop.f32.mrf.mxu0
  %v1336 = vadd.f32 0.0, %v1335
  %1337 = vmatmul.bf16.gmra.mxu0 %v837
  %v1338 = vpop.f32.mrf.mxu0
  %v1339 = vadd.f32 0.0, %v1338
  %v1340 = vpop.f32.mrf.mxu0
  %v1341 = vadd.f32 0.0, %v1340
  %1342 = vmatmul.bf16.gmra.mxu0 %v840
  %v1343 = vpop.f32.mrf.mxu0
  %v1344 = vadd.f32 0.0, %v1343
  %v1345 = vpop.f32.mrf.mxu0
  %v1346 = vadd.f32 0.0, %v1345
  %1347 = vmatmul.bf16.gmra.mxu0 %v843
  %v1348 = vpop.f32.mrf.mxu0
  %v1349 = vadd.f32 0.0, %v1348
  %v1350 = vpop.f32.mrf.mxu0
  %v1351 = vadd.f32 0.0, %v1350
  %1352 = vmatmul.bf16.gmra.mxu0 %v846
  %v1353 = vpop.f32.mrf.mxu0
  %v1354 = vadd.f32 0.0, %v1353
  %v1355 = vpop.f32.mrf.mxu0
  %v1356 = vadd.f32 0.0, %v1355
  %1357 = vmatmul.bf16.gmra.mxu0 %v849
  %v1358 = vpop.f32.mrf.mxu0
  %v1359 = vadd.f32 0.0, %v1358
  %v1360 = vpop.f32.mrf.mxu0
  %v1361 = vadd.f32 0.0, %v1360
  %1362 = vmatmul.bf16.gmra.mxu0 %v852
  %v1363 = vpop.f32.mrf.mxu0
  %v1364 = vadd.f32 0.0, %v1363
  %v1365 = vpop.f32.mrf.mxu0
  %v1366 = vadd.f32 0.0, %v1365
  %1367 = vmatmul.bf16.gmra.mxu0 %v855
  %v1368 = vpop.f32.mrf.mxu0
  %v1369 = vadd.f32 0.0, %v1368
  %v1370 = vpop.f32.mrf.mxu0
  %v1371 = vadd.f32 0.0, %v1370
  %1372 = vmatmul.bf16.gmra.mxu0 %v858
  %v1373 = vpop.f32.mrf.mxu0
  %v1374 = vadd.f32 0.0, %v1373
  %v1375 = vpop.f32.mrf.mxu0
  %v1376 = vadd.f32 0.0, %v1375
  %1377 = vmatmul.bf16.gmra.mxu0 %v861
  %v1378 = vpop.f32.mrf.mxu0
  %v1379 = vadd.f32 0.0, %v1378
  %v1380 = vpop.f32.mrf.mxu0
  %v1381 = vadd.f32 0.0, %v1380
  %1382 = vmatmul.bf16.gmra.mxu0 %v864
  %v1383 = vpop.f32.mrf.mxu0
  %v1384 = vadd.f32 0.0, %v1383
  %v1385 = vpop.f32.mrf.mxu0
  %v1386 = vadd.f32 0.0, %v1385
  %1387 = vmatmul.bf16.gmra.mxu0 %v867
  %v1388 = vpop.f32.mrf.mxu0
  %v1389 = vadd.f32 0.0, %v1388
  %v1390 = vpop.f32.mrf.mxu0
  %v1391 = vadd.f32 0.0, %v1390
  %1392 = vmatmul.bf16.gmra.mxu0 %v870
  %v1393 = vpop.f32.mrf.mxu0
  %v1394 = vadd.f32 0.0, %v1393
  %v1395 = vpop.f32.mrf.mxu0
  %v1396 = vadd.f32 0.0, %v1395
  %1397 = vmatmul.bf16.gmra.mxu0 %v873
  %v1398 = vpop.f32.mrf.mxu0
  %v1399 = vadd.f32 0.0, %v1398
  %v1400 = vpop.f32.mrf.mxu0
  %v1401 = vadd.f32 0.0, %v1400
  %1402 = vmatmul.bf16.gmra.mxu0 %v876
  %v1403 = vpop.f32.mrf.mxu0
  %v1404 = vadd.f32 0.0, %v1403
  %v1405 = vpop.f32.mrf.mxu0
  %v1406 = vadd.f32 0.0, %v1405
  %1407 = vmatmul.bf16.gmra.mxu0 %v879
  %v1408 = vpop.f32.mrf.mxu0
  %v1409 = vadd.f32 0.0, %v1408
  %v1410 = vpop.f32.mrf.mxu0
  %v1411 = vadd.f32 0.0, %v1410
  %1412 = vmatmul.bf16.gmra.mxu0 %v882
  %v1413 = vpop.f32.mrf.mxu0
  %v1414 = vadd.f32 0.0, %v1413
  %v1415 = vpop.f32.mrf.mxu0
  %v1416 = vadd.f32 0.0, %v1415
  %1417 = vmatmul.bf16.gmra.mxu0 %v885
  %v1418 = vpop.f32.mrf.mxu0
  %v1419 = vadd.f32 0.0, %v1418
  %v1420 = vpop.f32.mrf.mxu0
  %v1421 = vadd.f32 0.0, %v1420
  %1422 = vmatmul.bf16.gmra.mxu0 %v888
  %v1423 = vpop.f32.mrf.mxu0
  %v1424 = vadd.f32 0.0, %v1423
  %v1425 = vpop.f32.mrf.mxu0
  %v1426 = vadd.f32 0.0, %v1425
  %1427 = vmatmul.bf16.gmra.mxu0 %v891
  %v1428 = vpop.f32.mrf.mxu0
  %v1429 = vadd.f32 0.0, %v1428
  %v1430 = vpop.f32.mrf.mxu0
  %v1431 = vadd.f32 0.0, %v1430
  %1432 = vmatmul.bf16.gmra.mxu0 %v894
  %v1433 = vpop.f32.mrf.mxu0
  %v1434 = vadd.f32 0.0, %v1433
  %v1435 = vpop.f32.mrf.mxu0
  %v1436 = vadd.f32 0.0, %v1435
  %1437 = vmatmul.bf16.gmra.mxu0 %v897
  %v1438 = vpop.f32.mrf.mxu0
  %v1439 = vadd.f32 0.0, %v1438
  %v1440 = vpop.f32.mrf.mxu0
  %v1441 = vadd.f32 0.0, %v1440
  %1442 = vmatmul.bf16.gmra.mxu0 %v900
  %v1443 = vpop.f32.mrf.mxu0
  %v1444 = vadd.f32 0.0, %v1443
  %v1445 = vpop.f32.mrf.mxu0
  %v1446 = vadd.f32 0.0, %v1445
  %1447 = vmatmul.bf16.gmra.mxu0 %v903
  %v1448 = vpop.f32.mrf.mxu0
  %v1449 = vadd.f32 0.0, %v1448
  %v1450 = vpop.f32.mrf.mxu0
  %v1451 = vadd.f32 0.0, %v1450
  %1452 = vmatmul.bf16.gmra.mxu0 %v906
  %v1453 = vpop.f32.mrf.mxu0
  %v1454 = vadd.f32 0.0, %v1453
  %v1455 = vpop.f32.mrf.mxu0
  %v1456 = vadd.f32 0.0, %v1455
  %1457 = vmatmul.bf16.gmra.mxu0 %v909
  %v1458 = vpop.f32.mrf.mxu0
  %v1459 = vadd.f32 0.0, %v1458
  %v1460 = vpop.f32.mrf.mxu0
  %v1461 = vadd.f32 0.0, %v1460
  %1462 = vmatmul.bf16.gmra.mxu0 %v912
  %v1463 = vpop.f32.mrf.mxu0
  %v1464 = vadd.f32 0.0, %v1463
  %v1465 = vpop.f32.mrf.mxu0
  %v1466 = vadd.f32 0.0, %v1465
  %1467 = vdwg.mxu0
  %1468 = vmatpush.bf16.msra.mxu0 %v1176
  %1469 = vmatpush.bf16.msra.mxu0 %v1175
  %1470 = vmatpush.bf16.msra.mxu0 %v1174
  %1471 = vmatpush.bf16.msra.mxu0 %v1173
  %1472 = vmatpush.bf16.msra.mxu0 %v1172
  %1473 = vmatpush.bf16.msra.mxu0 %v1171
  %1474 = vmatpush.bf16.msra.mxu0 %v1170
  %1475 = vmatpush.bf16.msra.mxu0 %v1169
  %1476 = vmatmul.bf16.gmra.mxu0 %v766
  %v1477 = vpop.f32.mrf.mxu0
  %v1478 = vadd.f32 %v1219, %v1477
  %v1479 = vpop.f32.mrf.mxu0
  %v1480 = vadd.f32 %v1221, %v1479
  %1481 = vmatmul.bf16.gmra.mxu0 %v769
  %v1482 = vpop.f32.mrf.mxu0
  %v1483 = vadd.f32 %v1224, %v1482
  %v1484 = vpop.f32.mrf.mxu0
  %v1485 = vadd.f32 %v1226, %v1484
  %1486 = vmatmul.bf16.gmra.mxu0 %v772
  %v1487 = vpop.f32.mrf.mxu0
  %v1488 = vadd.f32 %v1229, %v1487
  %v1489 = vpop.f32.mrf.mxu0
  %v1490 = vadd.f32 %v1231, %v1489
  %1491 = vmatmul.bf16.gmra.mxu0 %v775
  %v1492 = vpop.f32.mrf.mxu0
  %v1493 = vadd.f32 %v1234, %v1492
  %v1494 = vpop.f32.mrf.mxu0
  %v1495 = vadd.f32 %v1236, %v1494
  %1496 = vmatmul.bf16.gmra.mxu0 %v778
  %v1497 = vpop.f32.mrf.mxu0
  %v1498 = vadd.f32 %v1239, %v1497
  %v1499 = vpop.f32.mrf.mxu0
  %v1500 = vadd.f32 %v1241, %v1499
  %1501 = vmatmul.bf16.gmra.mxu0 %v781
  %v1502 = vpop.f32.mrf.mxu0
  %v1503 = vadd.f32 %v1244, %v1502
  %v1504 = vpop.f32.mrf.mxu0
  %v1505 = vadd.f32 %v1246, %v1504
  %1506 = vmatmul.bf16.gmra.mxu0 %v784
  %v1507 = vpop.f32.mrf.mxu0
  %v1508 = vadd.f32 %v1249, %v1507
  %v1509 = vpop.f32.mrf.mxu0
  %v1510 = vadd.f32 %v1251, %v1509
  %1511 = vmatmul.bf16.gmra.mxu0 %v787
  %v1512 = vpop.f32.mrf.mxu0
  %v1513 = vadd.f32 %v1254, %v1512
  %v1514 = vpop.f32.mrf.mxu0
  %v1515 = vadd.f32 %v1256, %v1514
  %1516 = vmatmul.bf16.gmra.mxu0 %v790
  %v1517 = vpop.f32.mrf.mxu0
  %v1518 = vadd.f32 %v1259, %v1517
  %v1519 = vpop.f32.mrf.mxu0
  %v1520 = vadd.f32 %v1261, %v1519
  %1521 = vmatmul.bf16.gmra.mxu0 %v793
  %v1522 = vpop.f32.mrf.mxu0
  %v1523 = vadd.f32 %v1264, %v1522
  %v1524 = vpop.f32.mrf.mxu0
  %v1525 = vadd.f32 %v1266, %v1524
  %1526 = vmatmul.bf16.gmra.mxu0 %v796
  %v1527 = vpop.f32.mrf.mxu0
  %v1528 = vadd.f32 %v1269, %v1527
  %v1529 = vpop.f32.mrf.mxu0
  %v1530 = vadd.f32 %v1271, %v1529
  %1531 = vmatmul.bf16.gmra.mxu0 %v799
  %v1532 = vpop.f32.mrf.mxu0
  %v1533 = vadd.f32 %v1274, %v1532
  %v1534 = vpop.f32.mrf.mxu0
  %v1535 = vadd.f32 %v1276, %v1534
  %1536 = vmatmul.bf16.gmra.mxu0 %v802
  %v1537 = vpop.f32.mrf.mxu0
  %v1538 = vadd.f32 %v1279, %v1537
  %v1539 = vpop.f32.mrf.mxu0
  %v1540 = vadd.f32 %v1281, %v1539
  %1541 = vmatmul.bf16.gmra.mxu0 %v805
  %v1542 = vpop.f32.mrf.mxu0
  %v1543 = vadd.f32 %v1284, %v1542
  %v1544 = vpop.f32.mrf.mxu0
  %v1545 = vadd.f32 %v1286, %v1544
  %1546 = vmatmul.bf16.gmra.mxu0 %v808
  %v1547 = vpop.f32.mrf.mxu0
  %v1548 = vadd.f32 %v1289, %v1547
  %v1549 = vpop.f32.mrf.mxu0
  %v1550 = vadd.f32 %v1291, %v1549
  %1551 = vmatmul.bf16.gmra.mxu0 %v811
  %v1552 = vpop.f32.mrf.mxu0
  %v1553 = vadd.f32 %v1294, %v1552
  %v1554 = vpop.f32.mrf.mxu0
  %v1555 = vadd.f32 %v1296, %v1554
  %1556 = vmatmul.bf16.gmra.mxu0 %v814
  %v1557 = vpop.f32.mrf.mxu0
  %v1558 = vadd.f32 %v1299, %v1557
  %v1559 = vpop.f32.mrf.mxu0
  %v1560 = vadd.f32 %v1301, %v1559
  %1561 = vmatmul.bf16.gmra.mxu0 %v817
  %v1562 = vpop.f32.mrf.mxu0
  %v1563 = vadd.f32 %v1304, %v1562
  %v1564 = vpop.f32.mrf.mxu0
  %v1565 = vadd.f32 %v1306, %v1564
  %1566 = vmatmul.bf16.gmra.mxu0 %v820
  %v1567 = vpop.f32.mrf.mxu0
  %v1568 = vadd.f32 %v1309, %v1567
  %v1569 = vpop.f32.mrf.mxu0
  %v1570 = vadd.f32 %v1311, %v1569
  %1571 = vmatmul.bf16.gmra.mxu0 %v823
  %v1572 = vpop.f32.mrf.mxu0
  %v1573 = vadd.f32 %v1314, %v1572
  %v1574 = vpop.f32.mrf.mxu0
  %v1575 = vadd.f32 %v1316, %v1574
  %1576 = vmatmul.bf16.gmra.mxu0 %v826
  %v1577 = vpop.f32.mrf.mxu0
  %v1578 = vadd.f32 %v1319, %v1577
  %v1579 = vpop.f32.mrf.mxu0
  %v1580 = vadd.f32 %v1321, %v1579
  %1581 = vmatmul.bf16.gmra.mxu0 %v829
  %v1582 = vpop.f32.mrf.mxu0
  %v1583 = vadd.f32 %v1324, %v1582
  %v1584 = vpop.f32.mrf.mxu0
  %v1585 = vadd.f32 %v1326, %v1584
  %1586 = vmatmul.bf16.gmra.mxu0 %v832
  %v1587 = vpop.f32.mrf.mxu0
  %v1588 = vadd.f32 %v1329, %v1587
  %v1589 = vpop.f32.mrf.mxu0
  %v1590 = vadd.f32 %v1331, %v1589
  %1591 = vmatmul.bf16.gmra.mxu0 %v835
  %v1592 = vpop.f32.mrf.mxu0
  %v1593 = vadd.f32 %v1334, %v1592
  %v1594 = vpop.f32.mrf.mxu0
  %v1595 = vadd.f32 %v1336, %v1594
  %1596 = vmatmul.bf16.gmra.mxu0 %v838
  %v1597 = vpop.f32.mrf.mxu0
  %v1598 = vadd.f32 %v1339, %v1597
  %v1599 = vpop.f32.mrf.mxu0
  %v1600 = vadd.f32 %v1341, %v1599
  %1601 = vmatmul.bf16.gmra.mxu0 %v841
  %v1602 = vpop.f32.mrf.mxu0
  %v1603 = vadd.f32 %v1344, %v1602
  %v1604 = vpop.f32.mrf.mxu0
  %v1605 = vadd.f32 %v1346, %v1604
  %1606 = vmatmul.bf16.gmra.mxu0 %v844
  %v1607 = vpop.f32.mrf.mxu0
  %v1608 = vadd.f32 %v1349, %v1607
  %v1609 = vpop.f32.mrf.mxu0
  %v1610 = vadd.f32 %v1351, %v1609
  %1611 = vmatmul.bf16.gmra.mxu0 %v847
  %v1612 = vpop.f32.mrf.mxu0
  %v1613 = vadd.f32 %v1354, %v1612
  %v1614 = vpop.f32.mrf.mxu0
  %v1615 = vadd.f32 %v1356, %v1614
  %1616 = vmatmul.bf16.gmra.mxu0 %v850
  %v1617 = vpop.f32.mrf.mxu0
  %v1618 = vadd.f32 %v1359, %v1617
  %v1619 = vpop.f32.mrf.mxu0
  %v1620 = vadd.f32 %v1361, %v1619
  %1621 = vmatmul.bf16.gmra.mxu0 %v853
  %v1622 = vpop.f32.mrf.mxu0
  %v1623 = vadd.f32 %v1364, %v1622
  %v1624 = vpop.f32.mrf.mxu0
  %v1625 = vadd.f32 %v1366, %v1624
  %1626 = vmatmul.bf16.gmra.mxu0 %v856
  %v1627 = vpop.f32.mrf.mxu0
  %v1628 = vadd.f32 %v1369, %v1627
  %v1629 = vpop.f32.mrf.mxu0
  %v1630 = vadd.f32 %v1371, %v1629
  %1631 = vmatmul.bf16.gmra.mxu0 %v859
  %v1632 = vpop.f32.mrf.mxu0
  %v1633 = vadd.f32 %v1374, %v1632
  %v1634 = vpop.f32.mrf.mxu0
  %v1635 = vadd.f32 %v1376, %v1634
  %1636 = vmatmul.bf16.gmra.mxu0 %v862
  %v1637 = vpop.f32.mrf.mxu0
  %v1638 = vadd.f32 %v1379, %v1637
  %v1639 = vpop.f32.mrf.mxu0
  %v1640 = vadd.f32 %v1381, %v1639
  %1641 = vmatmul.bf16.gmra.mxu0 %v865
  %v1642 = vpop.f32.mrf.mxu0
  %v1643 = vadd.f32 %v1384, %v1642
  %v1644 = vpop.f32.mrf.mxu0
  %v1645 = vadd.f32 %v1386, %v1644
  %1646 = vmatmul.bf16.gmra.mxu0 %v868
  %v1647 = vpop.f32.mrf.mxu0
  %v1648 = vadd.f32 %v1389, %v1647
  %v1649 = vpop.f32.mrf.mxu0
  %v1650 = vadd.f32 %v1391, %v1649
  %1651 = vmatmul.bf16.gmra.mxu0 %v871
  %v1652 = vpop.f32.mrf.mxu0
  %v1653 = vadd.f32 %v1394, %v1652
  %v1654 = vpop.f32.mrf.mxu0
  %v1655 = vadd.f32 %v1396, %v1654
  %1656 = vmatmul.bf16.gmra.mxu0 %v874
  %v1657 = vpop.f32.mrf.mxu0
  %v1658 = vadd.f32 %v1399, %v1657
  %v1659 = vpop.f32.mrf.mxu0
  %v1660 = vadd.f32 %v1401, %v1659
  %1661 = vmatmul.bf16.gmra.mxu0 %v877
  %v1662 = vpop.f32.mrf.mxu0
  %v1663 = vadd.f32 %v1404, %v1662
  %v1664 = vpop.f32.mrf.mxu0
  %v1665 = vadd.f32 %v1406, %v1664
  %1666 = vmatmul.bf16.gmra.mxu0 %v880
  %v1667 = vpop.f32.mrf.mxu0
  %v1668 = vadd.f32 %v1409, %v1667
  %v1669 = vpop.f32.mrf.mxu0
  %v1670 = vadd.f32 %v1411, %v1669
  %1671 = vmatmul.bf16.gmra.mxu0 %v883
  %v1672 = vpop.f32.mrf.mxu0
  %v1673 = vadd.f32 %v1414, %v1672
  %v1674 = vpop.f32.mrf.mxu0
  %v1675 = vadd.f32 %v1416, %v1674
  %1676 = vmatmul.bf16.gmra.mxu0 %v886
  %v1677 = vpop.f32.mrf.mxu0
  %v1678 = vadd.f32 %v1419, %v1677
  %v1679 = vpop.f32.mrf.mxu0
  %v1680 = vadd.f32 %v1421, %v1679
  %1681 = vmatmul.bf16.gmra.mxu0 %v889
  %v1682 = vpop.f32.mrf.mxu0
  %v1683 = vadd.f32 %v1424, %v1682
  %v1684 = vpop.f32.mrf.mxu0
  %v1685 = vadd.f32 %v1426, %v1684
  %1686 = vmatmul.bf16.gmra.mxu0 %v892
  %v1687 = vpop.f32.mrf.mxu0
  %v1688 = vadd.f32 %v1429, %v1687
  %v1689 = vpop.f32.mrf.mxu0
  %v1690 = vadd.f32 %v1431, %v1689
  %1691 = vmatmul.bf16.gmra.mxu0 %v895
  %v1692 = vpop.f32.mrf.mxu0
  %v1693 = vadd.f32 %v1434, %v1692
  %v1694 = vpop.f32.mrf.mxu0
  %v1695 = vadd.f32 %v1436, %v1694
  %1696 = vmatmul.bf16.gmra.mxu0 %v898
  %v1697 = vpop.f32.mrf.mxu0
  %v1698 = vadd.f32 %v1439, %v1697
  %v1699 = vpop.f32.mrf.mxu0
  %v1700 = vadd.f32 %v1441, %v1699
  %1701 = vmatmul.bf16.gmra.mxu0 %v901
  %v1702 = vpop.f32.mrf.mxu0
  %v1703 = vadd.f32 %v1444, %v1702
  %v1704 = vpop.f32.mrf.mxu0
  %v1705 = vadd.f32 %v1446, %v1704
  %1706 = vmatmul.bf16.gmra.mxu0 %v904
  %v1707 = vpop.f32.mrf.mxu0
  %v1708 = vadd.f32 %v1449, %v1707
  %v1709 = vpop.f32.mrf.mxu0
  %v1710 = vadd.f32 %v1451, %v1709
  %1711 = vmatmul.bf16.gmra.mxu0 %v907
  %v1712 = vpop.f32.mrf.mxu0
  %v1713 = vadd.f32 %v1454, %v1712
  %v1714 = vpop.f32.mrf.mxu0
  %v1715 = vadd.f32 %v1456, %v1714
  %1716 = vmatmul.bf16.gmra.mxu0 %v910
  %v1717 = vpop.f32.mrf.mxu0
  %v1718 = vadd.f32 %v1459, %v1717
  %v1719 = vpop.f32.mrf.mxu0
  %v1720 = vadd.f32 %v1461, %v1719
  %1721 = vmatmul.bf16.gmra.mxu0 %v913
  %v1722 = vpop.f32.mrf.mxu0
  %v1723 = vadd.f32 %v1464, %v1722
  %v1724 = vpop.f32.mrf.mxu0
  %v1725 = vadd.f32 %v1466, %v1724
  %1726 = vdwg.mxu0
  %1727 = vmatpush.bf16.msra.mxu0 %v1184
  %1728 = vmatpush.bf16.msra.mxu0 %v1183
  %1729 = vmatpush.bf16.msra.mxu0 %v1182
  %1730 = vmatpush.bf16.msra.mxu0 %v1181
  %1731 = vmatpush.bf16.msra.mxu0 %v1180
  %1732 = vmatpush.bf16.msra.mxu0 %v1179
  %1733 = vmatpush.bf16.msra.mxu0 %v1178
  %1734 = vmatpush.bf16.msra.mxu0 %v1177
  %1735 = vmatmul.bf16.gmra.mxu0 %v767
  %v1736 = vpop.f32.mrf.mxu0
  %v1737 = vadd.f32 %v1478, %v1736
  %v1738 = vpop.f32.mrf.mxu0
  %v1739 = vadd.f32 %v1480, %v1738
  %1740 = vmatmul.bf16.gmra.mxu0 %v770
  %v1741 = vpop.f32.mrf.mxu0
  %v1742 = vadd.f32 %v1483, %v1741
  %v1743 = vpop.f32.mrf.mxu0
  %v1744 = vadd.f32 %v1485, %v1743
  %1745 = vmatmul.bf16.gmra.mxu0 %v773
  %v1746 = vpop.f32.mrf.mxu0
  %v1747 = vadd.f32 %v1488, %v1746
  %v1748 = vpop.f32.mrf.mxu0
  %v1749 = vadd.f32 %v1490, %v1748
  %1750 = vmatmul.bf16.gmra.mxu0 %v776
  %v1751 = vpop.f32.mrf.mxu0
  %v1752 = vadd.f32 %v1493, %v1751
  %v1753 = vpop.f32.mrf.mxu0
  %v1754 = vadd.f32 %v1495, %v1753
  %1755 = vmatmul.bf16.gmra.mxu0 %v779
  %v1756 = vpop.f32.mrf.mxu0
  %v1757 = vadd.f32 %v1498, %v1756
  %v1758 = vpop.f32.mrf.mxu0
  %v1759 = vadd.f32 %v1500, %v1758
  %1760 = vmatmul.bf16.gmra.mxu0 %v782
  %v1761 = vpop.f32.mrf.mxu0
  %v1762 = vadd.f32 %v1503, %v1761
  %v1763 = vpop.f32.mrf.mxu0
  %v1764 = vadd.f32 %v1505, %v1763
  %1765 = vmatmul.bf16.gmra.mxu0 %v785
  %v1766 = vpop.f32.mrf.mxu0
  %v1767 = vadd.f32 %v1508, %v1766
  %v1768 = vpop.f32.mrf.mxu0
  %v1769 = vadd.f32 %v1510, %v1768
  %1770 = vmatmul.bf16.gmra.mxu0 %v788
  %v1771 = vpop.f32.mrf.mxu0
  %v1772 = vadd.f32 %v1513, %v1771
  %v1773 = vpop.f32.mrf.mxu0
  %v1774 = vadd.f32 %v1515, %v1773
  %1775 = vmatmul.bf16.gmra.mxu0 %v791
  %v1776 = vpop.f32.mrf.mxu0
  %v1777 = vadd.f32 %v1518, %v1776
  %v1778 = vpop.f32.mrf.mxu0
  %v1779 = vadd.f32 %v1520, %v1778
  %1780 = vmatmul.bf16.gmra.mxu0 %v794
  %v1781 = vpop.f32.mrf.mxu0
  %v1782 = vadd.f32 %v1523, %v1781
  %v1783 = vpop.f32.mrf.mxu0
  %v1784 = vadd.f32 %v1525, %v1783
  %1785 = vmatmul.bf16.gmra.mxu0 %v797
  %v1786 = vpop.f32.mrf.mxu0
  %v1787 = vadd.f32 %v1528, %v1786
  %v1788 = vpop.f32.mrf.mxu0
  %v1789 = vadd.f32 %v1530, %v1788
  %1790 = vmatmul.bf16.gmra.mxu0 %v800
  %v1791 = vpop.f32.mrf.mxu0
  %v1792 = vadd.f32 %v1533, %v1791
  %v1793 = vpop.f32.mrf.mxu0
  %v1794 = vadd.f32 %v1535, %v1793
  %1795 = vmatmul.bf16.gmra.mxu0 %v803
  %v1796 = vpop.f32.mrf.mxu0
  %v1797 = vadd.f32 %v1538, %v1796
  %v1798 = vpop.f32.mrf.mxu0
  %v1799 = vadd.f32 %v1540, %v1798
  %1800 = vmatmul.bf16.gmra.mxu0 %v806
  %v1801 = vpop.f32.mrf.mxu0
  %v1802 = vadd.f32 %v1543, %v1801
  %v1803 = vpop.f32.mrf.mxu0
  %v1804 = vadd.f32 %v1545, %v1803
  %1805 = vmatmul.bf16.gmra.mxu0 %v809
  %v1806 = vpop.f32.mrf.mxu0
  %v1807 = vadd.f32 %v1548, %v1806
  %v1808 = vpop.f32.mrf.mxu0
  %v1809 = vadd.f32 %v1550, %v1808
  %1810 = vmatmul.bf16.gmra.mxu0 %v812
  %v1811 = vpop.f32.mrf.mxu0
  %v1812 = vadd.f32 %v1553, %v1811
  %v1813 = vpop.f32.mrf.mxu0
  %v1814 = vadd.f32 %v1555, %v1813
  %1815 = vmatmul.bf16.gmra.mxu0 %v815
  %v1816 = vpop.f32.mrf.mxu0
  %v1817 = vadd.f32 %v1558, %v1816
  %v1818 = vpop.f32.mrf.mxu0
  %v1819 = vadd.f32 %v1560, %v1818
  %1820 = vmatmul.bf16.gmra.mxu0 %v818
  %v1821 = vpop.f32.mrf.mxu0
  %v1822 = vadd.f32 %v1563, %v1821
  %v1823 = vpop.f32.mrf.mxu0
  %v1824 = vadd.f32 %v1565, %v1823
  %1825 = vmatmul.bf16.gmra.mxu0 %v821
  %v1826 = vpop.f32.mrf.mxu0
  %v1827 = vadd.f32 %v1568, %v1826
  %v1828 = vpop.f32.mrf.mxu0
  %v1829 = vadd.f32 %v1570, %v1828
  %1830 = vmatmul.bf16.gmra.mxu0 %v824
  %v1831 = vpop.f32.mrf.mxu0
  %v1832 = vadd.f32 %v1573, %v1831
  %v1833 = vpop.f32.mrf.mxu0
  %v1834 = vadd.f32 %v1575, %v1833
  %1835 = vmatmul.bf16.gmra.mxu0 %v827
  %v1836 = vpop.f32.mrf.mxu0
  %v1837 = vadd.f32 %v1578, %v1836
  %v1838 = vpop.f32.mrf.mxu0
  %v1839 = vadd.f32 %v1580, %v1838
  %1840 = vmatmul.bf16.gmra.mxu0 %v830
  %v1841 = vpop.f32.mrf.mxu0
  %v1842 = vadd.f32 %v1583, %v1841
  %v1843 = vpop.f32.mrf.mxu0
  %v1844 = vadd.f32 %v1585, %v1843
  %1845 = vmatmul.bf16.gmra.mxu0 %v833
  %v1846 = vpop.f32.mrf.mxu0
  %v1847 = vadd.f32 %v1588, %v1846
  %v1848 = vpop.f32.mrf.mxu0
  %v1849 = vadd.f32 %v1590, %v1848
  %1850 = vmatmul.bf16.gmra.mxu0 %v836
  %v1851 = vpop.f32.mrf.mxu0
  %v1852 = vadd.f32 %v1593, %v1851
  %v1853 = vpop.f32.mrf.mxu0
  %v1854 = vadd.f32 %v1595, %v1853
  %1855 = vmatmul.bf16.gmra.mxu0 %v839
  %v1856 = vpop.f32.mrf.mxu0
  %v1857 = vadd.f32 %v1598, %v1856
  %v1858 = vpop.f32.mrf.mxu0
  %v1859 = vadd.f32 %v1600, %v1858
  %1860 = vmatmul.bf16.gmra.mxu0 %v842
  %v1861 = vpop.f32.mrf.mxu0
  %v1862 = vadd.f32 %v1603, %v1861
  %v1863 = vpop.f32.mrf.mxu0
  %v1864 = vadd.f32 %v1605, %v1863
  %1865 = vmatmul.bf16.gmra.mxu0 %v845
  %v1866 = vpop.f32.mrf.mxu0
  %v1867 = vadd.f32 %v1608, %v1866
  %v1868 = vpop.f32.mrf.mxu0
  %v1869 = vadd.f32 %v1610, %v1868
  %1870 = vmatmul.bf16.gmra.mxu0 %v848
  %v1871 = vpop.f32.mrf.mxu0
  %v1872 = vadd.f32 %v1613, %v1871
  %v1873 = vpop.f32.mrf.mxu0
  %v1874 = vadd.f32 %v1615, %v1873
  %1875 = vmatmul.bf16.gmra.mxu0 %v851
  %v1876 = vpop.f32.mrf.mxu0
  %v1877 = vadd.f32 %v1618, %v1876
  %v1878 = vpop.f32.mrf.mxu0
  %v1879 = vadd.f32 %v1620, %v1878
  %1880 = vmatmul.bf16.gmra.mxu0 %v854
  %v1881 = vpop.f32.mrf.mxu0
  %v1882 = vadd.f32 %v1623, %v1881
  %v1883 = vpop.f32.mrf.mxu0
  %v1884 = vadd.f32 %v1625, %v1883
  %1885 = vmatmul.bf16.gmra.mxu0 %v857
  %v1886 = vpop.f32.mrf.mxu0
  %v1887 = vadd.f32 %v1628, %v1886
  %v1888 = vpop.f32.mrf.mxu0
  %v1889 = vadd.f32 %v1630, %v1888
  %1890 = vmatmul.bf16.gmra.mxu0 %v860
  %v1891 = vpop.f32.mrf.mxu0
  %v1892 = vadd.f32 %v1633, %v1891
  %v1893 = vpop.f32.mrf.mxu0
  %v1894 = vadd.f32 %v1635, %v1893
  %1895 = vmatmul.bf16.gmra.mxu0 %v863
  %v1896 = vpop.f32.mrf.mxu0
  %v1897 = vadd.f32 %v1638, %v1896
  %v1898 = vpop.f32.mrf.mxu0
  %v1899 = vadd.f32 %v1640, %v1898
  %1900 = vmatmul.bf16.gmra.mxu0 %v866
  %v1901 = vpop.f32.mrf.mxu0
  %v1902 = vadd.f32 %v1643, %v1901
  %v1903 = vpop.f32.mrf.mxu0
  %v1904 = vadd.f32 %v1645, %v1903
  %1905 = vmatmul.bf16.gmra.mxu0 %v869
  %v1906 = vpop.f32.mrf.mxu0
  %v1907 = vadd.f32 %v1648, %v1906
  %v1908 = vpop.f32.mrf.mxu0
  %v1909 = vadd.f32 %v1650, %v1908
  %1910 = vmatmul.bf16.gmra.mxu0 %v872
  %v1911 = vpop.f32.mrf.mxu0
  %v1912 = vadd.f32 %v1653, %v1911
  %v1913 = vpop.f32.mrf.mxu0
  %v1914 = vadd.f32 %v1655, %v1913
  %1915 = vmatmul.bf16.gmra.mxu0 %v875
  %v1916 = vpop.f32.mrf.mxu0
  %v1917 = vadd.f32 %v1658, %v1916
  %v1918 = vpop.f32.mrf.mxu0
  %v1919 = vadd.f32 %v1660, %v1918
  %1920 = vmatmul.bf16.gmra.mxu0 %v878
  %v1921 = vpop.f32.mrf.mxu0
  %v1922 = vadd.f32 %v1663, %v1921
  %v1923 = vpop.f32.mrf.mxu0
  %v1924 = vadd.f32 %v1665, %v1923
  %1925 = vmatmul.bf16.gmra.mxu0 %v881
  %v1926 = vpop.f32.mrf.mxu0
  %v1927 = vadd.f32 %v1668, %v1926
  %v1928 = vpop.f32.mrf.mxu0
  %v1929 = vadd.f32 %v1670, %v1928
  %1930 = vmatmul.bf16.gmra.mxu0 %v884
  %v1931 = vpop.f32.mrf.mxu0
  %v1932 = vadd.f32 %v1673, %v1931
  %v1933 = vpop.f32.mrf.mxu0
  %v1934 = vadd.f32 %v1675, %v1933
  %1935 = vmatmul.bf16.gmra.mxu0 %v887
  %v1936 = vpop.f32.mrf.mxu0
  %v1937 = vadd.f32 %v1678, %v1936
  %v1938 = vpop.f32.mrf.mxu0
  %v1939 = vadd.f32 %v1680, %v1938
  %1940 = vmatmul.bf16.gmra.mxu0 %v890
  %v1941 = vpop.f32.mrf.mxu0
  %v1942 = vadd.f32 %v1683, %v1941
  %v1943 = vpop.f32.mrf.mxu0
  %v1944 = vadd.f32 %v1685, %v1943
  %1945 = vmatmul.bf16.gmra.mxu0 %v893
  %v1946 = vpop.f32.mrf.mxu0
  %v1947 = vadd.f32 %v1688, %v1946
  %v1948 = vpop.f32.mrf.mxu0
  %v1949 = vadd.f32 %v1690, %v1948
  %1950 = vmatmul.bf16.gmra.mxu0 %v896
  %v1951 = vpop.f32.mrf.mxu0
  %v1952 = vadd.f32 %v1693, %v1951
  %v1953 = vpop.f32.mrf.mxu0
  %v1954 = vadd.f32 %v1695, %v1953
  %1955 = vmatmul.bf16.gmra.mxu0 %v899
  %v1956 = vpop.f32.mrf.mxu0
  %v1957 = vadd.f32 %v1698, %v1956
  %v1958 = vpop.f32.mrf.mxu0
  %v1959 = vadd.f32 %v1700, %v1958
  %1960 = vmatmul.bf16.gmra.mxu0 %v902
  %v1961 = vpop.f32.mrf.mxu0
  %v1962 = vadd.f32 %v1703, %v1961
  %v1963 = vpop.f32.mrf.mxu0
  %v1964 = vadd.f32 %v1705, %v1963
  %1965 = vmatmul.bf16.gmra.mxu0 %v905
  %v1966 = vpop.f32.mrf.mxu0
  %v1967 = vadd.f32 %v1708, %v1966
  %v1968 = vpop.f32.mrf.mxu0
  %v1969 = vadd.f32 %v1710, %v1968
  %1970 = vmatmul.bf16.gmra.mxu0 %v908
  %v1971 = vpop.f32.mrf.mxu0
  %v1972 = vadd.f32 %v1713, %v1971
  %v1973 = vpop.f32.mrf.mxu0
  %v1974 = vadd.f32 %v1715, %v1973
  %1975 = vmatmul.bf16.gmra.mxu0 %v911
  %v1976 = vpop.f32.mrf.mxu0
  %v1977 = vadd.f32 %v1718, %v1976
  %v1978 = vpop.f32.mrf.mxu0
  %v1979 = vadd.f32 %v1720, %v1978
  %1980 = vmatmul.bf16.gmra.mxu0 %v914
  %v1981 = vpop.f32.mrf.mxu0
  %v1982 = vadd.f32 %v1723, %v1981
  %v1983 = vpop.f32.mrf.mxu0
  %v1984 = vadd.f32 %v1725, %v1983
  %1985 = vdwg.mxu0
  %vm1986 = vcmask 523264
  %v1987 = vsel %vm1986, %v1737, 0.0
  %v1988 = vsel %vm1986, %v1739, 0.0
  %v1989 = vadd.f32 %v1987, %v1988
  %v1990 = vsel %vm1986, %v1742, 0.0
  %v1991 = vadd.f32 %v1989, %v1990
  %v1992 = vsel %vm1986, %v1744, 0.0
  %v1993 = vadd.f32 %v1991, %v1992
  %v1994 = vsel %vm1986, %v1747, 0.0
  %v1995 = vadd.f32 %v1993, %v1994
  %v1996 = vsel %vm1986, %v1749, 0.0
  %v1997 = vadd.f32 %v1995, %v1996
  %v1998 = vsel %vm1986, %v1752, 0.0
  %v1999 = vadd.f32 %v1997, %v1998
  %v2000 = vsel %vm1986, %v1754, 0.0
  %v2001 = vadd.f32 %v1999, %v2000
  %v2002 = vsel %vm1986, %v1757, 0.0
  %v2003 = vadd.f32 %v2001, %v2002
  %v2004 = vsel %vm1986, %v1759, 0.0
  %v2005 = vadd.f32 %v2003, %v2004
  %v2006 = vsel %vm1986, %v1762, 0.0
  %v2007 = vadd.f32 %v2005, %v2006
  %v2008 = vsel %vm1986, %v1764, 0.0
  %v2009 = vadd.f32 %v2007, %v2008
  %v2010 = vsel %vm1986, %v1767, 0.0
  %v2011 = vadd.f32 %v2009, %v2010
  %v2012 = vsel %vm1986, %v1769, 0.0
  %v2013 = vadd.f32 %v2011, %v2012
  %v2014 = vsel %vm1986, %v1772, 0.0
  %v2015 = vadd.f32 %v2013, %v2014
  %v2016 = vsel %vm1986, %v1774, 0.0
  %v2017 = vadd.f32 %v2015, %v2016
  %v2018 = vsel %vm1986, %v1777, 0.0
  %v2019 = vadd.f32 %v2017, %v2018
  %v2020 = vsel %vm1986, %v1779, 0.0
  %v2021 = vadd.f32 %v2019, %v2020
  %v2022 = vsel %vm1986, %v1782, 0.0
  %v2023 = vadd.f32 %v2021, %v2022
  %v2024 = vsel %vm1986, %v1784, 0.0
  %v2025 = vadd.f32 %v2023, %v2024
  %v2026 = vsel %vm1986, %v1787, 0.0
  %v2027 = vadd.f32 %v2025, %v2026
  %v2028 = vsel %vm1986, %v1789, 0.0
  %v2029 = vadd.f32 %v2027, %v2028
  %v2030 = vsel %vm1986, %v1792, 0.0
  %v2031 = vadd.f32 %v2029, %v2030
  %v2032 = vsel %vm1986, %v1794, 0.0
  %v2033 = vadd.f32 %v2031, %v2032
  %v2034 = vsel %vm1986, %v1797, 0.0
  %v2035 = vadd.f32 %v2033, %v2034
  %v2036 = vsel %vm1986, %v1799, 0.0
  %v2037 = vadd.f32 %v2035, %v2036
  %v2038 = vsel %vm1986, %v1802, 0.0
  %v2039 = vadd.f32 %v2037, %v2038
  %v2040 = vsel %vm1986, %v1804, 0.0
  %v2041 = vadd.f32 %v2039, %v2040
  %v2042 = vsel %vm1986, %v1807, 0.0
  %v2043 = vadd.f32 %v2041, %v2042
  %v2044 = vsel %vm1986, %v1809, 0.0
  %v2045 = vadd.f32 %v2043, %v2044
  %v2046 = vsel %vm1986, %v1812, 0.0
  %v2047 = vadd.f32 %v2045, %v2046
  %v2048 = vsel %vm1986, %v1814, 0.0
  %v2049 = vadd.f32 %v2047, %v2048
  %v2050 = vsel %vm1986, %v1817, 0.0
  %v2051 = vadd.f32 %v2049, %v2050
  %v2052 = vsel %vm1986, %v1819, 0.0
  %v2053 = vadd.f32 %v2051, %v2052
  %v2054 = vsel %vm1986, %v1822, 0.0
  %v2055 = vadd.f32 %v2053, %v2054
  %v2056 = vsel %vm1986, %v1824, 0.0
  %v2057 = vadd.f32 %v2055, %v2056
  %v2058 = vsel %vm1986, %v1827, 0.0
  %v2059 = vadd.f32 %v2057, %v2058
  %v2060 = vsel %vm1986, %v1829, 0.0
  %v2061 = vadd.f32 %v2059, %v2060
  %v2062 = vsel %vm1986, %v1832, 0.0
  %v2063 = vadd.f32 %v2061, %v2062
  %v2064 = vsel %vm1986, %v1834, 0.0
  %v2065 = vadd.f32 %v2063, %v2064
  %v2066 = vsel %vm1986, %v1837, 0.0
  %v2067 = vadd.f32 %v2065, %v2066
  %v2068 = vsel %vm1986, %v1839, 0.0
  %v2069 = vadd.f32 %v2067, %v2068
  %v2070 = vsel %vm1986, %v1842, 0.0
  %v2071 = vadd.f32 %v2069, %v2070
  %v2072 = vsel %vm1986, %v1844, 0.0
  %v2073 = vadd.f32 %v2071, %v2072
  %v2074 = vsel %vm1986, %v1847, 0.0
  %v2075 = vadd.f32 %v2073, %v2074
  %v2076 = vsel %vm1986, %v1849, 0.0
  %v2077 = vadd.f32 %v2075, %v2076
  %v2078 = vsel %vm1986, %v1852, 0.0
  %v2079 = vadd.f32 %v2077, %v2078
  %v2080 = vsel %vm1986, %v1854, 0.0
  %v2081 = vadd.f32 %v2079, %v2080
  %v2082 = vsel %vm1986, %v1857, 0.0
  %v2083 = vadd.f32 %v2081, %v2082
  %v2084 = vsel %vm1986, %v1859, 0.0
  %v2085 = vadd.f32 %v2083, %v2084
  %v2086 = vsel %vm1986, %v1862, 0.0
  %v2087 = vadd.f32 %v2085, %v2086
  %v2088 = vsel %vm1986, %v1864, 0.0
  %v2089 = vadd.f32 %v2087, %v2088
  %v2090 = vsel %vm1986, %v1867, 0.0
  %v2091 = vadd.f32 %v2089, %v2090
  %v2092 = vsel %vm1986, %v1869, 0.0
  %v2093 = vadd.f32 %v2091, %v2092
  %v2094 = vsel %vm1986, %v1872, 0.0
  %v2095 = vadd.f32 %v2093, %v2094
  %v2096 = vsel %vm1986, %v1874, 0.0
  %v2097 = vadd.f32 %v2095, %v2096
  %v2098 = vsel %vm1986, %v1877, 0.0
  %v2099 = vadd.f32 %v2097, %v2098
  %v2100 = vsel %vm1986, %v1879, 0.0
  %v2101 = vadd.f32 %v2099, %v2100
  %v2102 = vsel %vm1986, %v1882, 0.0
  %v2103 = vadd.f32 %v2101, %v2102
  %v2104 = vsel %vm1986, %v1884, 0.0
  %v2105 = vadd.f32 %v2103, %v2104
  %v2106 = vsel %vm1986, %v1887, 0.0
  %v2107 = vadd.f32 %v2105, %v2106
  %v2108 = vsel %vm1986, %v1889, 0.0
  %v2109 = vadd.f32 %v2107, %v2108
  %v2110 = vsel %vm1986, %v1892, 0.0
  %v2111 = vadd.f32 %v2109, %v2110
  %v2112 = vsel %vm1986, %v1894, 0.0
  %v2113 = vadd.f32 %v2111, %v2112
  %v2114 = vsel %vm1986, %v1897, 0.0
  %v2115 = vadd.f32 %v2113, %v2114
  %v2116 = vsel %vm1986, %v1899, 0.0
  %v2117 = vadd.f32 %v2115, %v2116
  %v2118 = vsel %vm1986, %v1902, 0.0
  %v2119 = vadd.f32 %v2117, %v2118
  %v2120 = vsel %vm1986, %v1904, 0.0
  %v2121 = vadd.f32 %v2119, %v2120
  %v2122 = vsel %vm1986, %v1907, 0.0
  %v2123 = vadd.f32 %v2121, %v2122
  %v2124 = vsel %vm1986, %v1909, 0.0
  %v2125 = vadd.f32 %v2123, %v2124
  %v2126 = vsel %vm1986, %v1912, 0.0
  %v2127 = vadd.f32 %v2125, %v2126
  %v2128 = vsel %vm1986, %v1914, 0.0
  %v2129 = vadd.f32 %v2127, %v2128
  %v2130 = vsel %vm1986, %v1917, 0.0
  %v2131 = vadd.f32 %v2129, %v2130
  %v2132 = vsel %vm1986, %v1919, 0.0
  %v2133 = vadd.f32 %v2131, %v2132
  %v2134 = vsel %vm1986, %v1922, 0.0
  %v2135 = vadd.f32 %v2133, %v2134
  %v2136 = vsel %vm1986, %v1924, 0.0
  %v2137 = vadd.f32 %v2135, %v2136
  %v2138 = vsel %vm1986, %v1927, 0.0
  %v2139 = vadd.f32 %v2137, %v2138
  %v2140 = vsel %vm1986, %v1929, 0.0
  %v2141 = vadd.f32 %v2139, %v2140
  %v2142 = vsel %vm1986, %v1932, 0.0
  %v2143 = vadd.f32 %v2141, %v2142
  %v2144 = vsel %vm1986, %v1934, 0.0
  %v2145 = vadd.f32 %v2143, %v2144
  %v2146 = vsel %vm1986, %v1937, 0.0
  %v2147 = vadd.f32 %v2145, %v2146
  %v2148 = vsel %vm1986, %v1939, 0.0
  %v2149 = vadd.f32 %v2147, %v2148
  %v2150 = vsel %vm1986, %v1942, 0.0
  %v2151 = vadd.f32 %v2149, %v2150
  %v2152 = vsel %vm1986, %v1944, 0.0
  %v2153 = vadd.f32 %v2151, %v2152
  %v2154 = vsel %vm1986, %v1947, 0.0
  %v2155 = vadd.f32 %v2153, %v2154
  %v2156 = vsel %vm1986, %v1949, 0.0
  %v2157 = vadd.f32 %v2155, %v2156
  %v2158 = vsel %vm1986, %v1952, 0.0
  %v2159 = vadd.f32 %v2157, %v2158
  %v2160 = vsel %vm1986, %v1954, 0.0
  %v2161 = vadd.f32 %v2159, %v2160
  %v2162 = vsel %vm1986, %v1957, 0.0
  %v2163 = vadd.f32 %v2161, %v2162
  %v2164 = vsel %vm1986, %v1959, 0.0
  %v2165 = vadd.f32 %v2163, %v2164
  %v2166 = vsel %vm1986, %v1962, 0.0
  %v2167 = vadd.f32 %v2165, %v2166
  %v2168 = vsel %vm1986, %v1964, 0.0
  %v2169 = vadd.f32 %v2167, %v2168
  %v2170 = vsel %vm1986, %v1967, 0.0
  %v2171 = vadd.f32 %v2169, %v2170
  %v2172 = vsel %vm1986, %v1969, 0.0
  %v2173 = vadd.f32 %v2171, %v2172
  %v2174 = vsel %vm1986, %v1972, 0.0
  %v2175 = vadd.f32 %v2173, %v2174
  %v2176 = vsel %vm1986, %v1974, 0.0
  %v2177 = vadd.f32 %v2175, %v2176
  %v2178 = vsel %vm1986, %v1977, 0.0
  %v2179 = vadd.f32 %v2177, %v2178
  %v2180 = vsel %vm1986, %v1979, 0.0
  %v2181 = vadd.f32 %v2179, %v2180
  %v2182 = vsel %vm1986, %v1982, 0.0
  %v2183 = vadd.f32 %v2181, %v2182
  %v2184 = vsel %vm1986, %v1984, 0.0
  %v2185 = vadd.f32 %v2183, %v2184
  %v2186 = vrot.slane %v2185, 4
  %v2187 = vadd.f32 %v2185, %v2186
  %v2188 = vrot.slane %v2187, 2
  %v2189 = vadd.f32 %v2187, %v2188
  %v2190 = vrot.slane %v2189, 1
  %v2191 = vadd.f32 %v2189, %v2190
  %v2192 = vmul.f32 %v1737, %v1737
  %v2193 = vmul.f32 %v1739, %v1739
  %v2194 = vmul.f32 %v1742, %v1742
  %v2195 = vmul.f32 %v1744, %v1744
  %v2196 = vmul.f32 %v1747, %v1747
  %v2197 = vmul.f32 %v1749, %v1749
  %v2198 = vmul.f32 %v1752, %v1752
  %v2199 = vmul.f32 %v1754, %v1754
  %v2200 = vmul.f32 %v1757, %v1757
  %v2201 = vmul.f32 %v1759, %v1759
  %v2202 = vmul.f32 %v1762, %v1762
  %v2203 = vmul.f32 %v1764, %v1764
  %v2204 = vmul.f32 %v1767, %v1767
  %v2205 = vmul.f32 %v1769, %v1769
  %v2206 = vmul.f32 %v1772, %v1772
  %v2207 = vmul.f32 %v1774, %v1774
  %v2208 = vmul.f32 %v1777, %v1777
  %v2209 = vmul.f32 %v1779, %v1779
  %v2210 = vmul.f32 %v1782, %v1782
  %v2211 = vmul.f32 %v1784, %v1784
  %v2212 = vmul.f32 %v1787, %v1787
  %v2213 = vmul.f32 %v1789, %v1789
  %v2214 = vmul.f32 %v1792, %v1792
  %v2215 = vmul.f32 %v1794, %v1794
  %v2216 = vmul.f32 %v1797, %v1797
  %v2217 = vmul.f32 %v1799, %v1799
  %v2218 = vmul.f32 %v1802, %v1802
  %v2219 = vmul.f32 %v1804, %v1804
  %v2220 = vmul.f32 %v1807, %v1807
  %v2221 = vmul.f32 %v1809, %v1809
  %v2222 = vmul.f32 %v1812, %v1812
  %v2223 = vmul.f32 %v1814, %v1814
  %v2224 = vmul.f32 %v1817, %v1817
  %v2225 = vmul.f32 %v1819, %v1819
  %v2226 = vmul.f32 %v1822, %v1822
  %v2227 = vmul.f32 %v1824, %v1824
  %v2228 = vmul.f32 %v1827, %v1827
  %v2229 = vmul.f32 %v1829, %v1829
  %v2230 = vmul.f32 %v1832, %v1832
  %v2231 = vmul.f32 %v1834, %v1834
  %v2232 = vmul.f32 %v1837, %v1837
  %v2233 = vmul.f32 %v1839, %v1839
  %v2234 = vmul.f32 %v1842, %v1842
  %v2235 = vmul.f32 %v1844, %v1844
  %v2236 = vmul.f32 %v1847, %v1847
  %v2237 = vmul.f32 %v1849, %v1849
  %v2238 = vmul.f32 %v1852, %v1852
  %v2239 = vmul.f32 %v1854, %v1854
  %v2240 = vmul.f32 %v1857, %v1857
  %v2241 = vmul.f32 %v1859, %v1859
  %v2242 = vmul.f32 %v1862, %v1862
  %v2243 = vmul.f32 %v1864, %v1864
  %v2244 = vmul.f32 %v1867, %v1867
  %v2245 = vmul.f32 %v1869, %v1869
  %v2246 = vmul.f32 %v1872, %v1872
  %v2247 = vmul.f32 %v1874, %v1874
  %v2248 = vmul.f32 %v1877, %v1877
  %v2249 = vmul.f32 %v1879, %v1879
  %v2250 = vmul.f32 %v1882, %v1882
  %v2251 = vmul.f32 %v1884, %v1884
  %v2252 = vmul.f32 %v1887, %v1887
  %v2253 = vmul.f32 %v1889, %v1889
  %v2254 = vmul.f32 %v1892, %v1892
  %v2255 = vmul.f32 %v1894, %v1894
  %v2256 = vmul.f32 %v1897, %v1897
  %v2257 = vmul.f32 %v1899, %v1899
  %v2258 = vmul.f32 %v1902, %v1902
  %v2259 = vmul.f32 %v1904, %v1904
  %v2260 = vmul.f32 %v1907, %v1907
  %v2261 = vmul.f32 %v1909, %v1909
  %v2262 = vmul.f32 %v1912, %v1912
  %v2263 = vmul.f32 %v1914, %v1914
  %v2264 = vmul.f32 %v1917, %v1917
  %v2265 = vmul.f32 %v1919, %v1919
  %v2266 = vmul.f32 %v1922, %v1922
  %v2267 = vmul.f32 %v1924, %v1924
  %v2268 = vmul.f32 %v1927, %v1927
  %v2269 = vmul.f32 %v1929, %v1929
  %v2270 = vmul.f32 %v1932, %v1932
  %v2271 = vmul.f32 %v1934, %v1934
  %v2272 = vmul.f32 %v1937, %v1937
  %v2273 = vmul.f32 %v1939, %v1939
  %v2274 = vmul.f32 %v1942, %v1942
  %v2275 = vmul.f32 %v1944, %v1944
  %v2276 = vmul.f32 %v1947, %v1947
  %v2277 = vmul.f32 %v1949, %v1949
  %v2278 = vmul.f32 %v1952, %v1952
  %v2279 = vmul.f32 %v1954, %v1954
  %v2280 = vmul.f32 %v1957, %v1957
  %v2281 = vmul.f32 %v1959, %v1959
  %v2282 = vmul.f32 %v1962, %v1962
  %v2283 = vmul.f32 %v1964, %v1964
  %v2284 = vmul.f32 %v1967, %v1967
  %v2285 = vmul.f32 %v1969, %v1969
  %v2286 = vmul.f32 %v1972, %v1972
  %v2287 = vmul.f32 %v1974, %v1974
  %v2288 = vmul.f32 %v1977, %v1977
  %v2289 = vmul.f32 %v1979, %v1979
  %v2290 = vmul.f32 %v1982, %v1982
  %v2291 = vmul.f32 %v1984, %v1984
  %v2292 = vsel %vm1986, %v2192, 0.0
  %v2293 = vsel %vm1986, %v2193, 0.0
  %v2294 = vadd.f32 %v2292, %v2293
  %v2295 = vsel %vm1986, %v2194, 0.0
  %v2296 = vadd.f32 %v2294, %v2295
  %v2297 = vsel %vm1986, %v2195, 0.0
  %v2298 = vadd.f32 %v2296, %v2297
  %v2299 = vsel %vm1986, %v2196, 0.0
  %v2300 = vadd.f32 %v2298, %v2299
  %v2301 = vsel %vm1986, %v2197, 0.0
  %v2302 = vadd.f32 %v2300, %v2301
  %v2303 = vsel %vm1986, %v2198, 0.0
  %v2304 = vadd.f32 %v2302, %v2303
  %v2305 = vsel %vm1986, %v2199, 0.0
  %v2306 = vadd.f32 %v2304, %v2305
  %v2307 = vsel %vm1986, %v2200, 0.0
  %v2308 = vadd.f32 %v2306, %v2307
  %v2309 = vsel %vm1986, %v2201, 0.0
  %v2310 = vadd.f32 %v2308, %v2309
  %v2311 = vsel %vm1986, %v2202, 0.0
  %v2312 = vadd.f32 %v2310, %v2311
  %v2313 = vsel %vm1986, %v2203, 0.0
  %v2314 = vadd.f32 %v2312, %v2313
  %v2315 = vsel %vm1986, %v2204, 0.0
  %v2316 = vadd.f32 %v2314, %v2315
  %v2317 = vsel %vm1986, %v2205, 0.0
  %v2318 = vadd.f32 %v2316, %v2317
  %v2319 = vsel %vm1986, %v2206, 0.0
  %v2320 = vadd.f32 %v2318, %v2319
  %v2321 = vsel %vm1986, %v2207, 0.0
  %v2322 = vadd.f32 %v2320, %v2321
  %v2323 = vsel %vm1986, %v2208, 0.0
  %v2324 = vadd.f32 %v2322, %v2323
  %v2325 = vsel %vm1986, %v2209, 0.0
  %v2326 = vadd.f32 %v2324, %v2325
  %v2327 = vsel %vm1986, %v2210, 0.0
  %v2328 = vadd.f32 %v2326, %v2327
  %v2329 = vsel %vm1986, %v2211, 0.0
  %v2330 = vadd.f32 %v2328, %v2329
  %v2331 = vsel %vm1986, %v2212, 0.0
  %v2332 = vadd.f32 %v2330, %v2331
  %v2333 = vsel %vm1986, %v2213, 0.0
  %v2334 = vadd.f32 %v2332, %v2333
  %v2335 = vsel %vm1986, %v2214, 0.0
  %v2336 = vadd.f32 %v2334, %v2335
  %v2337 = vsel %vm1986, %v2215, 0.0
  %v2338 = vadd.f32 %v2336, %v2337
  %v2339 = vsel %vm1986, %v2216, 0.0
  %v2340 = vadd.f32 %v2338, %v2339
  %v2341 = vsel %vm1986, %v2217, 0.0
  %v2342 = vadd.f32 %v2340, %v2341
  %v2343 = vsel %vm1986, %v2218, 0.0
  %v2344 = vadd.f32 %v2342, %v2343
  %v2345 = vsel %vm1986, %v2219, 0.0
  %v2346 = vadd.f32 %v2344, %v2345
  %v2347 = vsel %vm1986, %v2220, 0.0
  %v2348 = vadd.f32 %v2346, %v2347
  %v2349 = vsel %vm1986, %v2221, 0.0
  %v2350 = vadd.f32 %v2348, %v2349
  %v2351 = vsel %vm1986, %v2222, 0.0
  %v2352 = vadd.f32 %v2350, %v2351
  %v2353 = vsel %vm1986, %v2223, 0.0
  %v2354 = vadd.f32 %v2352, %v2353
  %v2355 = vsel %vm1986, %v2224, 0.0
  %v2356 = vadd.f32 %v2354, %v2355
  %v2357 = vsel %vm1986, %v2225, 0.0
  %v2358 = vadd.f32 %v2356, %v2357
  %v2359 = vsel %vm1986, %v2226, 0.0
  %v2360 = vadd.f32 %v2358, %v2359
  %v2361 = vsel %vm1986, %v2227, 0.0
  %v2362 = vadd.f32 %v2360, %v2361
  %v2363 = vsel %vm1986, %v2228, 0.0
  %v2364 = vadd.f32 %v2362, %v2363
  %v2365 = vsel %vm1986, %v2229, 0.0
  %v2366 = vadd.f32 %v2364, %v2365
  %v2367 = vsel %vm1986, %v2230, 0.0
  %v2368 = vadd.f32 %v2366, %v2367
  %v2369 = vsel %vm1986, %v2231, 0.0
  %v2370 = vadd.f32 %v2368, %v2369
  %v2371 = vsel %vm1986, %v2232, 0.0
  %v2372 = vadd.f32 %v2370, %v2371
  %v2373 = vsel %vm1986, %v2233, 0.0
  %v2374 = vadd.f32 %v2372, %v2373
  %v2375 = vsel %vm1986, %v2234, 0.0
  %v2376 = vadd.f32 %v2374, %v2375
  %v2377 = vsel %vm1986, %v2235, 0.0
  %v2378 = vadd.f32 %v2376, %v2377
  %v2379 = vsel %vm1986, %v2236, 0.0
  %v2380 = vadd.f32 %v2378, %v2379
  %v2381 = vsel %vm1986, %v2237, 0.0
  %v2382 = vadd.f32 %v2380, %v2381
  %v2383 = vsel %vm1986, %v2238, 0.0
  %v2384 = vadd.f32 %v2382, %v2383
  %v2385 = vsel %vm1986, %v2239, 0.0
  %v2386 = vadd.f32 %v2384, %v2385
  %v2387 = vsel %vm1986, %v2240, 0.0
  %v2388 = vadd.f32 %v2386, %v2387
  %v2389 = vsel %vm1986, %v2241, 0.0
  %v2390 = vadd.f32 %v2388, %v2389
  %v2391 = vsel %vm1986, %v2242, 0.0
  %v2392 = vadd.f32 %v2390, %v2391
  %v2393 = vsel %vm1986, %v2243, 0.0
  %v2394 = vadd.f32 %v2392, %v2393
  %v2395 = vsel %vm1986, %v2244, 0.0
  %v2396 = vadd.f32 %v2394, %v2395
  %v2397 = vsel %vm1986, %v2245, 0.0
  %v2398 = vadd.f32 %v2396, %v2397
  %v2399 = vsel %vm1986, %v2246, 0.0
  %v2400 = vadd.f32 %v2398, %v2399
  %v2401 = vsel %vm1986, %v2247, 0.0
  %v2402 = vadd.f32 %v2400, %v2401
  %v2403 = vsel %vm1986, %v2248, 0.0
  %v2404 = vadd.f32 %v2402, %v2403
  %v2405 = vsel %vm1986, %v2249, 0.0
  %v2406 = vadd.f32 %v2404, %v2405
  %v2407 = vsel %vm1986, %v2250, 0.0
  %v2408 = vadd.f32 %v2406, %v2407
  %v2409 = vsel %vm1986, %v2251, 0.0
  %v2410 = vadd.f32 %v2408, %v2409
  %v2411 = vsel %vm1986, %v2252, 0.0
  %v2412 = vadd.f32 %v2410, %v2411
  %v2413 = vsel %vm1986, %v2253, 0.0
  %v2414 = vadd.f32 %v2412, %v2413
  %v2415 = vsel %vm1986, %v2254, 0.0
  %v2416 = vadd.f32 %v2414, %v2415
  %v2417 = vsel %vm1986, %v2255, 0.0
  %v2418 = vadd.f32 %v2416, %v2417
  %v2419 = vsel %vm1986, %v2256, 0.0
  %v2420 = vadd.f32 %v2418, %v2419
  %v2421 = vsel %vm1986, %v2257, 0.0
  %v2422 = vadd.f32 %v2420, %v2421
  %v2423 = vsel %vm1986, %v2258, 0.0
  %v2424 = vadd.f32 %v2422, %v2423
  %v2425 = vsel %vm1986, %v2259, 0.0
  %v2426 = vadd.f32 %v2424, %v2425
  %v2427 = vsel %vm1986, %v2260, 0.0
  %v2428 = vadd.f32 %v2426, %v2427
  %v2429 = vsel %vm1986, %v2261, 0.0
  %v2430 = vadd.f32 %v2428, %v2429
  %v2431 = vsel %vm1986, %v2262, 0.0
  %v2432 = vadd.f32 %v2430, %v2431
  %v2433 = vsel %vm1986, %v2263, 0.0
  %v2434 = vadd.f32 %v2432, %v2433
  %v2435 = vsel %vm1986, %v2264, 0.0
  %v2436 = vadd.f32 %v2434, %v2435
  %v2437 = vsel %vm1986, %v2265, 0.0
  %v2438 = vadd.f32 %v2436, %v2437
  %v2439 = vsel %vm1986, %v2266, 0.0
  %v2440 = vadd.f32 %v2438, %v2439
  %v2441 = vsel %vm1986, %v2267, 0.0
  %v2442 = vadd.f32 %v2440, %v2441
  %v2443 = vsel %vm1986, %v2268, 0.0
  %v2444 = vadd.f32 %v2442, %v2443
  %v2445 = vsel %vm1986, %v2269, 0.0
  %v2446 = vadd.f32 %v2444, %v2445
  %v2447 = vsel %vm1986, %v2270, 0.0
  %v2448 = vadd.f32 %v2446, %v2447
  %v2449 = vsel %vm1986, %v2271, 0.0
  %v2450 = vadd.f32 %v2448, %v2449
  %v2451 = vsel %vm1986, %v2272, 0.0
  %v2452 = vadd.f32 %v2450, %v2451
  %v2453 = vsel %vm1986, %v2273, 0.0
  %v2454 = vadd.f32 %v2452, %v2453
  %v2455 = vsel %vm1986, %v2274, 0.0
  %v2456 = vadd.f32 %v2454, %v2455
  %v2457 = vsel %vm1986, %v2275, 0.0
  %v2458 = vadd.f32 %v2456, %v2457
  %v2459 = vsel %vm1986, %v2276, 0.0
  %v2460 = vadd.f32 %v2458, %v2459
  %v2461 = vsel %vm1986, %v2277, 0.0
  %v2462 = vadd.f32 %v2460, %v2461
  %v2463 = vsel %vm1986, %v2278, 0.0
  %v2464 = vadd.f32 %v2462, %v2463
  %v2465 = vsel %vm1986, %v2279, 0.0
  %v2466 = vadd.f32 %v2464, %v2465
  %v2467 = vsel %vm1986, %v2280, 0.0
  %v2468 = vadd.f32 %v2466, %v2467
  %v2469 = vsel %vm1986, %v2281, 0.0
  %v2470 = vadd.f32 %v2468, %v2469
  %v2471 = vsel %vm1986, %v2282, 0.0
  %v2472 = vadd.f32 %v2470, %v2471
  %v2473 = vsel %vm1986, %v2283, 0.0
  %v2474 = vadd.f32 %v2472, %v2473
  %v2475 = vsel %vm1986, %v2284, 0.0
  %v2476 = vadd.f32 %v2474, %v2475
  %v2477 = vsel %vm1986, %v2285, 0.0
  %v2478 = vadd.f32 %v2476, %v2477
  %v2479 = vsel %vm1986, %v2286, 0.0
  %v2480 = vadd.f32 %v2478, %v2479
  %v2481 = vsel %vm1986, %v2287, 0.0
  %v2482 = vadd.f32 %v2480, %v2481
  %v2483 = vsel %vm1986, %v2288, 0.0
  %v2484 = vadd.f32 %v2482, %v2483
  %v2485 = vsel %vm1986, %v2289, 0.0
  %v2486 = vadd.f32 %v2484, %v2485
  %v2487 = vsel %vm1986, %v2290, 0.0
  %v2488 = vadd.f32 %v2486, %v2487
  %v2489 = vsel %vm1986, %v2291, 0.0
  %v2490 = vadd.f32 %v2488, %v2489
  %v2491 = vrot.slane %v2490, 4
  %v2492 = vadd.f32 %v2490, %v2491
  %v2493 = vrot.slane %v2492, 2
  %v2494 = vadd.f32 %v2492, %v2493
  %v2495 = vrot.slane %v2494, 1
  %v2496 = vadd.f32 %v2494, %v2495
  %v2497 = vrcp.pop 800.0
  %v2498 = vmul.f32 800.0, %v2497
  %v2499 = vsub.f32 1.0, %v2498
  %v2500 = vmul.f32 %v2497, %v2499
  %v2501 = vadd.f32 %v2497, %v2500
  %vm2502 = vweird.f32 %v2497
  %v2503 = vsel %vm2502, %v2497, %v2501
  %v2504 = vmul.f32 %v2191, %v2503
  %v2505 = vmul.f32 %v2496, %v2503
  %v2506 = vmul.f32 %v2504, %v2504
  %v2507 = vsub.f32 %v2505, %v2506
  %v2508 = vld [vmem:[%s2] sm:$0x1]
  %v2509 = vadd.f32 %v2507, 1e-05
  %v2510 = vrsqrt.pop %v2509
  %v2511 = vmul.f32 %v2510, %v2509
  %v2512 = vmul.f32 %v2511, %v2510
  %v2513 = vmul.f32 0.5, %v2512
  %v2514 = vsub.f32 1.5, %v2513
  %v2515 = vmul.f32 %v2510, %v2514
  %vm2516 = vweird.f32 %v2509
  %vm2517 = vweird.f32 %v2510
  %vm2518 = vmor %vm2516, %vm2517
  %v2519 = vsel %vm2518, %v2510, %v2515
  %v2520 = vmul.f32 %v2508, %v2519
  %v2521 = vld [vmem:[%s3] sm:$0x1]
  %v2522 = vmul.f32 %v2504, %v2520
  %v2523 = vsub.f32 %v2521, %v2522
  %v2525 = vperm.slane %v2520, 0
  %v2527 = vmul.f32 %v1737, %v2525
  %v2528 = vmul.f32 %v1739, %v2525
  %v2529 = vmul.f32 %v1742, %v2525
  %v2530 = vmul.f32 %v1744, %v2525
  %v2531 = vmul.f32 %v1747, %v2525
  %v2532 = vmul.f32 %v1749, %v2525
  %v2533 = vmul.f32 %v1752, %v2525
  %v2534 = vmul.f32 %v1754, %v2525
  %v2535 = vmul.f32 %v1757, %v2525
  %v2536 = vmul.f32 %v1759, %v2525
  %v2537 = vmul.f32 %v1762, %v2525
  %v2538 = vmul.f32 %v1764, %v2525
  %v2539 = vmul.f32 %v1767, %v2525
  %v2540 = vmul.f32 %v1769, %v2525
  %v2541 = vmul.f32 %v1772, %v2525
  %v2542 = vmul.f32 %v1774, %v2525
  %v2543 = vmul.f32 %v1777, %v2525
  %v2544 = vmul.f32 %v1779, %v2525
  %v2545 = vmul.f32 %v1782, %v2525
  %v2546 = vmul.f32 %v1784, %v2525
  %v2547 = vmul.f32 %v1787, %v2525
  %v2548 = vmul.f32 %v1789, %v2525
  %v2549 = vmul.f32 %v1792, %v2525
  %v2550 = vmul.f32 %v1794, %v2525
  %v2551 = vmul.f32 %v1797, %v2525
  %v2552 = vmul.f32 %v1799, %v2525
  %v2553 = vmul.f32 %v1802, %v2525
  %v2554 = vmul.f32 %v1804, %v2525
  %v2555 = vmul.f32 %v1807, %v2525
  %v2556 = vmul.f32 %v1809, %v2525
  %v2557 = vmul.f32 %v1812, %v2525
  %v2558 = vmul.f32 %v1814, %v2525
  %v2559 = vmul.f32 %v1817, %v2525
  %v2560 = vmul.f32 %v1819, %v2525
  %v2561 = vmul.f32 %v1822, %v2525
  %v2562 = vmul.f32 %v1824, %v2525
  %v2563 = vmul.f32 %v1827, %v2525
  %v2564 = vmul.f32 %v1829, %v2525
  %v2565 = vmul.f32 %v1832, %v2525
  %v2566 = vmul.f32 %v1834, %v2525
  %v2567 = vmul.f32 %v1837, %v2525
  %v2568 = vmul.f32 %v1839, %v2525
  %v2569 = vmul.f32 %v1842, %v2525
  %v2570 = vmul.f32 %v1844, %v2525
  %v2571 = vmul.f32 %v1847, %v2525
  %v2572 = vmul.f32 %v1849, %v2525
  %v2573 = vmul.f32 %v1852, %v2525
  %v2574 = vmul.f32 %v1854, %v2525
  %v2575 = vmul.f32 %v1857, %v2525
  %v2576 = vmul.f32 %v1859, %v2525
  %v2577 = vmul.f32 %v1862, %v2525
  %v2578 = vmul.f32 %v1864, %v2525
  %v2579 = vmul.f32 %v1867, %v2525
  %v2580 = vmul.f32 %v1869, %v2525
  %v2581 = vmul.f32 %v1872, %v2525
  %v2582 = vmul.f32 %v1874, %v2525
  %v2583 = vmul.f32 %v1877, %v2525
  %v2584 = vmul.f32 %v1879, %v2525
  %v2585 = vmul.f32 %v1882, %v2525
  %v2586 = vmul.f32 %v1884, %v2525
  %v2587 = vmul.f32 %v1887, %v2525
  %v2588 = vmul.f32 %v1889, %v2525
  %v2589 = vmul.f32 %v1892, %v2525
  %v2590 = vmul.f32 %v1894, %v2525
  %v2591 = vmul.f32 %v1897, %v2525
  %v2592 = vmul.f32 %v1899, %v2525
  %v2593 = vmul.f32 %v1902, %v2525
  %v2594 = vmul.f32 %v1904, %v2525
  %v2595 = vmul.f32 %v1907, %v2525
  %v2596 = vmul.f32 %v1909, %v2525
  %v2597 = vmul.f32 %v1912, %v2525
  %v2598 = vmul.f32 %v1914, %v2525
  %v2599 = vmul.f32 %v1917, %v2525
  %v2600 = vmul.f32 %v1919, %v2525
  %v2601 = vmul.f32 %v1922, %v2525
  %v2602 = vmul.f32 %v1924, %v2525
  %v2603 = vmul.f32 %v1927, %v2525
  %v2604 = vmul.f32 %v1929, %v2525
  %v2605 = vmul.f32 %v1932, %v2525
  %v2606 = vmul.f32 %v1934, %v2525
  %v2607 = vmul.f32 %v1937, %v2525
  %v2608 = vmul.f32 %v1939, %v2525
  %v2609 = vmul.f32 %v1942, %v2525
  %v2610 = vmul.f32 %v1944, %v2525
  %v2611 = vmul.f32 %v1947, %v2525
  %v2612 = vmul.f32 %v1949, %v2525
  %v2613 = vmul.f32 %v1952, %v2525
  %v2614 = vmul.f32 %v1954, %v2525
  %v2615 = vmul.f32 %v1957, %v2525
  %v2616 = vmul.f32 %v1959, %v2525
  %v2617 = vmul.f32 %v1962, %v2525
  %v2618 = vmul.f32 %v1964, %v2525
  %v2619 = vmul.f32 %v1967, %v2525
  %v2620 = vmul.f32 %v1969, %v2525
  %v2621 = vmul.f32 %v1972, %v2525
  %v2622 = vmul.f32 %v1974, %v2525
  %v2623 = vmul.f32 %v1977, %v2525
  %v2624 = vmul.f32 %v1979, %v2525
  %v2625 = vmul.f32 %v1982, %v2525
  %v2626 = vmul.f32 %v1984, %v2525
  %v2628 = vperm.slane %v2523, 0
  %v2630 = vadd.f32 %v2527, %v2628
  %v2631 = vadd.f32 %v2528, %v2628
  %v2632 = vadd.f32 %v2529, %v2628
  %v2633 = vadd.f32 %v2530, %v2628
  %v2634 = vadd.f32 %v2531, %v2628
  %v2635 = vadd.f32 %v2532, %v2628
  %v2636 = vadd.f32 %v2533, %v2628
  %v2637 = vadd.f32 %v2534, %v2628
  %v2638 = vadd.f32 %v2535, %v2628
  %v2639 = vadd.f32 %v2536, %v2628
  %v2640 = vadd.f32 %v2537, %v2628
  %v2641 = vadd.f32 %v2538, %v2628
  %v2642 = vadd.f32 %v2539, %v2628
  %v2643 = vadd.f32 %v2540, %v2628
  %v2644 = vadd.f32 %v2541, %v2628
  %v2645 = vadd.f32 %v2542, %v2628
  %v2646 = vadd.f32 %v2543, %v2628
  %v2647 = vadd.f32 %v2544, %v2628
  %v2648 = vadd.f32 %v2545, %v2628
  %v2649 = vadd.f32 %v2546, %v2628
  %v2650 = vadd.f32 %v2547, %v2628
  %v2651 = vadd.f32 %v2548, %v2628
  %v2652 = vadd.f32 %v2549, %v2628
  %v2653 = vadd.f32 %v2550, %v2628
  %v2654 = vadd.f32 %v2551, %v2628
  %v2655 = vadd.f32 %v2552, %v2628
  %v2656 = vadd.f32 %v2553, %v2628
  %v2657 = vadd.f32 %v2554, %v2628
  %v2658 = vadd.f32 %v2555, %v2628
  %v2659 = vadd.f32 %v2556, %v2628
  %v2660 = vadd.f32 %v2557, %v2628
  %v2661 = vadd.f32 %v2558, %v2628
  %v2662 = vadd.f32 %v2559, %v2628
  %v2663 = vadd.f32 %v2560, %v2628
  %v2664 = vadd.f32 %v2561, %v2628
  %v2665 = vadd.f32 %v2562, %v2628
  %v2666 = vadd.f32 %v2563, %v2628
  %v2667 = vadd.f32 %v2564, %v2628
  %v2668 = vadd.f32 %v2565, %v2628
  %v2669 = vadd.f32 %v2566, %v2628
  %v2670 = vadd.f32 %v2567, %v2628
  %v2671 = vadd.f32 %v2568, %v2628
  %v2672 = vadd.f32 %v2569, %v2628
  %v2673 = vadd.f32 %v2570, %v2628
  %v2674 = vadd.f32 %v2571, %v2628
  %v2675 = vadd.f32 %v2572, %v2628
  %v2676 = vadd.f32 %v2573, %v2628
  %v2677 = vadd.f32 %v2574, %v2628
  %v2678 = vadd.f32 %v2575, %v2628
  %v2679 = vadd.f32 %v2576, %v2628
  %v2680 = vadd.f32 %v2577, %v2628
  %v2681 = vadd.f32 %v2578, %v2628
  %v2682 = vadd.f32 %v2579, %v2628
  %v2683 = vadd.f32 %v2580, %v2628
  %v2684 = vadd.f32 %v2581, %v2628
  %v2685 = vadd.f32 %v2582, %v2628
  %v2686 = vadd.f32 %v2583, %v2628
  %v2687 = vadd.f32 %v2584, %v2628
  %v2688 = vadd.f32 %v2585, %v2628
  %v2689 = vadd.f32 %v2586, %v2628
  %v2690 = vadd.f32 %v2587, %v2628
  %v2691 = vadd.f32 %v2588, %v2628
  %v2692 = vadd.f32 %v2589, %v2628
  %v2693 = vadd.f32 %v2590, %v2628
  %v2694 = vadd.f32 %v2591, %v2628
  %v2695 = vadd.f32 %v2592, %v2628
  %v2696 = vadd.f32 %v2593, %v2628
  %v2697 = vadd.f32 %v2594, %v2628
  %v2698 = vadd.f32 %v2595, %v2628
  %v2699 = vadd.f32 %v2596, %v2628
  %v2700 = vadd.f32 %v2597, %v2628
  %v2701 = vadd.f32 %v2598, %v2628
  %v2702 = vadd.f32 %v2599, %v2628
  %v2703 = vadd.f32 %v2600, %v2628
  %v2704 = vadd.f32 %v2601, %v2628
  %v2705 = vadd.f32 %v2602, %v2628
  %v2706 = vadd.f32 %v2603, %v2628
  %v2707 = vadd.f32 %v2604, %v2628
  %v2708 = vadd.f32 %v2605, %v2628
  %v2709 = vadd.f32 %v2606, %v2628
  %v2710 = vadd.f32 %v2607, %v2628
  %v2711 = vadd.f32 %v2608, %v2628
  %v2712 = vadd.f32 %v2609, %v2628
  %v2713 = vadd.f32 %v2610, %v2628
  %v2714 = vadd.f32 %v2611, %v2628
  %v2715 = vadd.f32 %v2612, %v2628
  %v2716 = vadd.f32 %v2613, %v2628
  %v2717 = vadd.f32 %v2614, %v2628
  %v2718 = vadd.f32 %v2615, %v2628
  %v2719 = vadd.f32 %v2616, %v2628
  %v2720 = vadd.f32 %v2617, %v2628
  %v2721 = vadd.f32 %v2618, %v2628
  %v2722 = vadd.f32 %v2619, %v2628
  %v2723 = vadd.f32 %v2620, %v2628
  %v2724 = vadd.f32 %v2621, %v2628
  %v2725 = vadd.f32 %v2622, %v2628
  %v2726 = vadd.f32 %v2623, %v2628
  %v2727 = vadd.f32 %v2624, %v2628
  %v2728 = vadd.f32 %v2625, %v2628
  %v2729 = vadd.f32 %v2626, %v2628
  %vm2730 = vcmp.gt.f32.partialorder %v2630, 0.0
  %vm2731 = vcmp.gt.f32.partialorder %v2631, 0.0
  %vm2732 = vcmp.gt.f32.partialorder %v2632, 0.0
  %vm2733 = vcmp.gt.f32.partialorder %v2633, 0.0
  %vm2734 = vcmp.gt.f32.partialorder %v2634, 0.0
  %vm2735 = vcmp.gt.f32.partialorder %v2635, 0.0
  %vm2736 = vcmp.gt.f32.partialorder %v2636, 0.0
  %vm2737 = vcmp.gt.f32.partialorder %v2637, 0.0
  %vm2738 = vcmp.gt.f32.partialorder %v2638, 0.0
  %vm2739 = vcmp.gt.f32.partialorder %v2639, 0.0
  %vm2740 = vcmp.gt.f32.partialorder %v2640, 0.0
  %vm2741 = vcmp.gt.f32.partialorder %v2641, 0.0
  %vm2742 = vcmp.gt.f32.partialorder %v2642, 0.0
  %vm2743 = vcmp.gt.f32.partialorder %v2643, 0.0
  %vm2744 = vcmp.gt.f32.partialorder %v2644, 0.0
  %vm2745 = vcmp.gt.f32.partialorder %v2645, 0.0
  %vm2746 = vcmp.gt.f32.partialorder %v2646, 0.0
  %vm2747 = vcmp.gt.f32.partialorder %v2647, 0.0
  %vm2748 = vcmp.gt.f32.partialorder %v2648, 0.0
  %vm2749 = vcmp.gt.f32.partialorder %v2649, 0.0
  %vm2750 = vcmp.gt.f32.partialorder %v2650, 0.0
  %vm2751 = vcmp.gt.f32.partialorder %v2651, 0.0
  %vm2752 = vcmp.gt.f32.partialorder %v2652, 0.0
  %vm2753 = vcmp.gt.f32.partialorder %v2653, 0.0
  %vm2754 = vcmp.gt.f32.partialorder %v2654, 0.0
  %vm2755 = vcmp.gt.f32.partialorder %v2655, 0.0
  %vm2756 = vcmp.gt.f32.partialorder %v2656, 0.0
  %vm2757 = vcmp.gt.f32.partialorder %v2657, 0.0
  %vm2758 = vcmp.gt.f32.partialorder %v2658, 0.0
  %vm2759 = vcmp.gt.f32.partialorder %v2659, 0.0
  %vm2760 = vcmp.gt.f32.partialorder %v2660, 0.0
  %vm2761 = vcmp.gt.f32.partialorder %v2661, 0.0
  %vm2762 = vcmp.gt.f32.partialorder %v2662, 0.0
  %vm2763 = vcmp.gt.f32.partialorder %v2663, 0.0
  %vm2764 = vcmp.gt.f32.partialorder %v2664, 0.0
  %vm2765 = vcmp.gt.f32.partialorder %v2665, 0.0
  %vm2766 = vcmp.gt.f32.partialorder %v2666, 0.0
  %vm2767 = vcmp.gt.f32.partialorder %v2667, 0.0
  %vm2768 = vcmp.gt.f32.partialorder %v2668, 0.0
  %vm2769 = vcmp.gt.f32.partialorder %v2669, 0.0
  %vm2770 = vcmp.gt.f32.partialorder %v2670, 0.0
  %vm2771 = vcmp.gt.f32.partialorder %v2671, 0.0
  %vm2772 = vcmp.gt.f32.partialorder %v2672, 0.0
  %vm2773 = vcmp.gt.f32.partialorder %v2673, 0.0
  %vm2774 = vcmp.gt.f32.partialorder %v2674, 0.0
  %vm2775 = vcmp.gt.f32.partialorder %v2675, 0.0
  %vm2776 = vcmp.gt.f32.partialorder %v2676, 0.0
  %vm2777 = vcmp.gt.f32.partialorder %v2677, 0.0
  %vm2778 = vcmp.gt.f32.partialorder %v2678, 0.0
  %vm2779 = vcmp.gt.f32.partialorder %v2679, 0.0
  %vm2780 = vcmp.gt.f32.partialorder %v2680, 0.0
  %vm2781 = vcmp.gt.f32.partialorder %v2681, 0.0
  %vm2782 = vcmp.gt.f32.partialorder %v2682, 0.0
  %vm2783 = vcmp.gt.f32.partialorder %v2683, 0.0
  %vm2784 = vcmp.gt.f32.partialorder %v2684, 0.0
  %vm2785 = vcmp.gt.f32.partialorder %v2685, 0.0
  %vm2786 = vcmp.gt.f32.partialorder %v2686, 0.0
  %vm2787 = vcmp.gt.f32.partialorder %v2687, 0.0
  %vm2788 = vcmp.gt.f32.partialorder %v2688, 0.0
  %vm2789 = vcmp.gt.f32.partialorder %v2689, 0.0
  %vm2790 = vcmp.gt.f32.partialorder %v2690, 0.0
  %vm2791 = vcmp.gt.f32.partialorder %v2691, 0.0
  %vm2792 = vcmp.gt.f32.partialorder %v2692, 0.0
  %vm2793 = vcmp.gt.f32.partialorder %v2693, 0.0
  %vm2794 = vcmp.gt.f32.partialorder %v2694, 0.0
  %vm2795 = vcmp.gt.f32.partialorder %v2695, 0.0
  %vm2796 = vcmp.gt.f32.partialorder %v2696, 0.0
  %vm2797 = vcmp.gt.f32.partialorder %v2697, 0.0
  %vm2798 = vcmp.gt.f32.partialorder %v2698, 0.0
  %vm2799 = vcmp.gt.f32.partialorder %v2699, 0.0
  %vm2800 = vcmp.gt.f32.partialorder %v2700, 0.0
  %vm2801 = vcmp.gt.f32.partialorder %v2701, 0.0
  %vm2802 = vcmp.gt.f32.partialorder %v2702, 0.0
  %vm2803 = vcmp.gt.f32.partialorder %v2703, 0.0
  %vm2804 = vcmp.gt.f32.partialorder %v2704, 0.0
  %vm2805 = vcmp.gt.f32.partialorder %v2705, 0.0
  %vm2806 = vcmp.gt.f32.partialorder %v2706, 0.0
  %vm2807 = vcmp.gt.f32.partialorder %v2707, 0.0
  %vm2808 = vcmp.gt.f32.partialorder %v2708, 0.0
  %vm2809 = vcmp.gt.f32.partialorder %v2709, 0.0
  %vm2810 = vcmp.gt.f32.partialorder %v2710, 0.0
  %vm2811 = vcmp.gt.f32.partialorder %v2711, 0.0
  %vm2812 = vcmp.gt.f32.partialorder %v2712, 0.0
  %vm2813 = vcmp.gt.f32.partialorder %v2713, 0.0
  %vm2814 = vcmp.gt.f32.partialorder %v2714, 0.0
  %vm2815 = vcmp.gt.f32.partialorder %v2715, 0.0
  %vm2816 = vcmp.gt.f32.partialorder %v2716, 0.0
  %vm2817 = vcmp.gt.f32.partialorder %v2717, 0.0
  %vm2818 = vcmp.gt.f32.partialorder %v2718, 0.0
  %vm2819 = vcmp.gt.f32.partialorder %v2719, 0.0
  %vm2820 = vcmp.gt.f32.partialorder %v2720, 0.0
  %vm2821 = vcmp.gt.f32.partialorder %v2721, 0.0
  %vm2822 = vcmp.gt.f32.partialorder %v2722, 0.0
  %vm2823 = vcmp.gt.f32.partialorder %v2723, 0.0
  %vm2824 = vcmp.gt.f32.partialorder %v2724, 0.0
  %vm2825 = vcmp.gt.f32.partialorder %v2725, 0.0
  %vm2826 = vcmp.gt.f32.partialorder %v2726, 0.0
  %vm2827 = vcmp.gt.f32.partialorder %v2727, 0.0
  %vm2828 = vcmp.gt.f32.partialorder %v2728, 0.0
  %vm2829 = vcmp.gt.f32.partialorder %v2729, 0.0
  %v2830 = vmul.f32 %v2630, 0.2
  %v2831 = vmul.f32 %v2631, 0.2
  %v2832 = vmul.f32 %v2632, 0.2
  %v2833 = vmul.f32 %v2633, 0.2
  %v2834 = vmul.f32 %v2634, 0.2
  %v2835 = vmul.f32 %v2635, 0.2
  %v2836 = vmul.f32 %v2636, 0.2
  %v2837 = vmul.f32 %v2637, 0.2
  %v2838 = vmul.f32 %v2638, 0.2
  %v2839 = vmul.f32 %v2639, 0.2
  %v2840 = vmul.f32 %v2640, 0.2
  %v2841 = vmul.f32 %v2641, 0.2
  %v2842 = vmul.f32 %v2642, 0.2
  %v2843 = vmul.f32 %v2643, 0.2
  %v2844 = vmul.f32 %v2644, 0.2
  %v2845 = vmul.f32 %v2645, 0.2
  %v2846 = vmul.f32 %v2646, 0.2
  %v2847 = vmul.f32 %v2647, 0.2
  %v2848 = vmul.f32 %v2648, 0.2
  %v2849 = vmul.f32 %v2649, 0.2
  %v2850 = vmul.f32 %v2650, 0.2
  %v2851 = vmul.f32 %v2651, 0.2
  %v2852 = vmul.f32 %v2652, 0.2
  %v2853 = vmul.f32 %v2653, 0.2
  %v2854 = vmul.f32 %v2654, 0.2
  %v2855 = vmul.f32 %v2655, 0.2
  %v2856 = vmul.f32 %v2656, 0.2
  %v2857 = vmul.f32 %v2657, 0.2
  %v2858 = vmul.f32 %v2658, 0.2
  %v2859 = vmul.f32 %v2659, 0.2
  %v2860 = vmul.f32 %v2660, 0.2
  %v2861 = vmul.f32 %v2661, 0.2
  %v2862 = vmul.f32 %v2662, 0.2
  %v2863 = vmul.f32 %v2663, 0.2
  %v2864 = vmul.f32 %v2664, 0.2
  %v2865 = vmul.f32 %v2665, 0.2
  %v2866 = vmul.f32 %v2666, 0.2
  %v2867 = vmul.f32 %v2667, 0.2
  %v2868 = vmul.f32 %v2668, 0.2
  %v2869 = vmul.f32 %v2669, 0.2
  %v2870 = vmul.f32 %v2670, 0.2
  %v2871 = vmul.f32 %v2671, 0.2
  %v2872 = vmul.f32 %v2672, 0.2
  %v2873 = vmul.f32 %v2673, 0.2
  %v2874 = vmul.f32 %v2674, 0.2
  %v2875 = vmul.f32 %v2675, 0.2
  %v2876 = vmul.f32 %v2676, 0.2
  %v2877 = vmul.f32 %v2677, 0.2
  %v2878 = vmul.f32 %v2678, 0.2
  %v2879 = vmul.f32 %v2679, 0.2
  %v2880 = vmul.f32 %v2680, 0.2
  %v2881 = vmul.f32 %v2681, 0.2
  %v2882 = vmul.f32 %v2682, 0.2
  %v2883 = vmul.f32 %v2683, 0.2
  %v2884 = vmul.f32 %v2684, 0.2
  %v2885 = vmul.f32 %v2685, 0.2
  %v2886 = vmul.f32 %v2686, 0.2
  %v2887 = vmul.f32 %v2687, 0.2
  %v2888 = vmul.f32 %v2688, 0.2
  %v2889 = vmul.f32 %v2689, 0.2
  %v2890 = vmul.f32 %v2690, 0.2
  %v2891 = vmul.f32 %v2691, 0.2
  %v2892 = vmul.f32 %v2692, 0.2
  %v2893 = vmul.f32 %v2693, 0.2
  %v2894 = vmul.f32 %v2694, 0.2
  %v2895 = vmul.f32 %v2695, 0.2
  %v2896 = vmul.f32 %v2696, 0.2
  %v2897 = vmul.f32 %v2697, 0.2
  %v2898 = vmul.f32 %v2698, 0.2
  %v2899 = vmul.f32 %v2699, 0.2
  %v2900 = vmul.f32 %v2700, 0.2
  %v2901 = vmul.f32 %v2701, 0.2
  %v2902 = vmul.f32 %v2702, 0.2
  %v2903 = vmul.f32 %v2703, 0.2
  %v2904 = vmul.f32 %v2704, 0.2
  %v2905 = vmul.f32 %v2705, 0.2
  %v2906 = vmul.f32 %v2706, 0.2
  %v2907 = vmul.f32 %v2707, 0.2
  %v2908 = vmul.f32 %v2708, 0.2
  %v2909 = vmul.f32 %v2709, 0.2
  %v2910 = vmul.f32 %v2710, 0.2
  %v2911 = vmul.f32 %v2711, 0.2
  %v2912 = vmul.f32 %v2712, 0.2
  %v2913 = vmul.f32 %v2713, 0.2
  %v2914 = vmul.f32 %v2714, 0.2
  %v2915 = vmul.f32 %v2715, 0.2
  %v2916 = vmul.f32 %v2716, 0.2
  %v2917 = vmul.f32 %v2717, 0.2
  %v2918 = vmul.f32 %v2718, 0.2
  %v2919 = vmul.f32 %v2719, 0.2
  %v2920 = vmul.f32 %v2720, 0.2
  %v2921 = vmul.f32 %v2721, 0.2
  %v2922 = vmul.f32 %v2722, 0.2
  %v2923 = vmul.f32 %v2723, 0.2
  %v2924 = vmul.f32 %v2724, 0.2
  %v2925 = vmul.f32 %v2725, 0.2
  %v2926 = vmul.f32 %v2726, 0.2
  %v2927 = vmul.f32 %v2727, 0.2
  %v2928 = vmul.f32 %v2728, 0.2
  %v2929 = vmul.f32 %v2729, 0.2
  %v2930 = vsel %vm2730, %v2630, %v2830
  %v2931 = vsel %vm2731, %v2631, %v2831
  %v2932 = vsel %vm2732, %v2632, %v2832
  %v2933 = vsel %vm2733, %v2633, %v2833
  %v2934 = vsel %vm2734, %v2634, %v2834
  %v2935 = vsel %vm2735, %v2635, %v2835
  %v2936 = vsel %vm2736, %v2636, %v2836
  %v2937 = vsel %vm2737, %v2637, %v2837
  %v2938 = vsel %vm2738, %v2638, %v2838
  %v2939 = vsel %vm2739, %v2639, %v2839
  %v2940 = vsel %vm2740, %v2640, %v2840
  %v2941 = vsel %vm2741, %v2641, %v2841
  %v2942 = vsel %vm2742, %v2642, %v2842
  %v2943 = vsel %vm2743, %v2643, %v2843
  %v2944 = vsel %vm2744, %v2644, %v2844
  %v2945 = vsel %vm2745, %v2645, %v2845
  %v2946 = vsel %vm2746, %v2646, %v2846
  %v2947 = vsel %vm2747, %v2647, %v2847
  %v2948 = vsel %vm2748, %v2648, %v2848
  %v2949 = vsel %vm2749, %v2649, %v2849
  %v2950 = vsel %vm2750, %v2650, %v2850
  %v2951 = vsel %vm2751, %v2651, %v2851
  %v2952 = vsel %vm2752, %v2652, %v2852
  %v2953 = vsel %vm2753, %v2653, %v2853
  %v2954 = vsel %vm2754, %v2654, %v2854
  %v2955 = vsel %vm2755, %v2655, %v2855
  %v2956 = vsel %vm2756, %v2656, %v2856
  %v2957 = vsel %vm2757, %v2657, %v2857
  %v2958 = vsel %vm2758, %v2658, %v2858
  %v2959 = vsel %vm2759, %v2659, %v2859
  %v2960 = vsel %vm2760, %v2660, %v2860
  %v2961 = vsel %vm2761, %v2661, %v2861
  %v2962 = vsel %vm2762, %v2662, %v2862
  %v2963 = vsel %vm2763, %v2663, %v2863
  %v2964 = vsel %vm2764, %v2664, %v2864
  %v2965 = vsel %vm2765, %v2665, %v2865
  %v2966 = vsel %vm2766, %v2666, %v2866
  %v2967 = vsel %vm2767, %v2667, %v2867
  %v2968 = vsel %vm2768, %v2668, %v2868
  %v2969 = vsel %vm2769, %v2669, %v2869
  %v2970 = vsel %vm2770, %v2670, %v2870
  %v2971 = vsel %vm2771, %v2671, %v2871
  %v2972 = vsel %vm2772, %v2672, %v2872
  %v2973 = vsel %vm2773, %v2673, %v2873
  %v2974 = vsel %vm2774, %v2674, %v2874
  %v2975 = vsel %vm2775, %v2675, %v2875
  %v2976 = vsel %vm2776, %v2676, %v2876
  %v2977 = vsel %vm2777, %v2677, %v2877
  %v2978 = vsel %vm2778, %v2678, %v2878
  %v2979 = vsel %vm2779, %v2679, %v2879
  %v2980 = vsel %vm2780, %v2680, %v2880
  %v2981 = vsel %vm2781, %v2681, %v2881
  %v2982 = vsel %vm2782, %v2682, %v2882
  %v2983 = vsel %vm2783, %v2683, %v2883
  %v2984 = vsel %vm2784, %v2684, %v2884
  %v2985 = vsel %vm2785, %v2685, %v2885
  %v2986 = vsel %vm2786, %v2686, %v2886
  %v2987 = vsel %vm2787, %v2687, %v2887
  %v2988 = vsel %vm2788, %v2688, %v2888
  %v2989 = vsel %vm2789, %v2689, %v2889
  %v2990 = vsel %vm2790, %v2690, %v2890
  %v2991 = vsel %vm2791, %v2691, %v2891
  %v2992 = vsel %vm2792, %v2692, %v2892
  %v2993 = vsel %vm2793, %v2693, %v2893
  %v2994 = vsel %vm2794, %v2694, %v2894
  %v2995 = vsel %vm2795, %v2695, %v2895
  %v2996 = vsel %vm2796, %v2696, %v2896
  %v2997 = vsel %vm2797, %v2697, %v2897
  %v2998 = vsel %vm2798, %v2698, %v2898
  %v2999 = vsel %vm2799, %v2699, %v2899
  %v3000 = vsel %vm2800, %v2700, %v2900
  %v3001 = vsel %vm2801, %v2701, %v2901
  %v3002 = vsel %vm2802, %v2702, %v2902
  %v3003 = vsel %vm2803, %v2703, %v2903
  %v3004 = vsel %vm2804, %v2704, %v2904
  %v3005 = vsel %vm2805, %v2705, %v2905
  %v3006 = vsel %vm2806, %v2706, %v2906
  %v3007 = vsel %vm2807, %v2707, %v2907
  %v3008 = vsel %vm2808, %v2708, %v2908
  %v3009 = vsel %vm2809, %v2709, %v2909
  %v3010 = vsel %vm2810, %v2710, %v2910
  %v3011 = vsel %vm2811, %v2711, %v2911
  %v3012 = vsel %vm2812, %v2712, %v2912
  %v3013 = vsel %vm2813, %v2713, %v2913
  %v3014 = vsel %vm2814, %v2714, %v2914
  %v3015 = vsel %vm2815, %v2715, %v2915
  %v3016 = vsel %vm2816, %v2716, %v2916
  %v3017 = vsel %vm2817, %v2717, %v2917
  %v3018 = vsel %vm2818, %v2718, %v2918
  %v3019 = vsel %vm2819, %v2719, %v2919
  %v3020 = vsel %vm2820, %v2720, %v2920
  %v3021 = vsel %vm2821, %v2721, %v2921
  %v3022 = vsel %vm2822, %v2722, %v2922
  %v3023 = vsel %vm2823, %v2723, %v2923
  %v3024 = vsel %vm2824, %v2724, %v2924
  %v3025 = vsel %vm2825, %v2725, %v2925
  %v3026 = vsel %vm2826, %v2726, %v2926
  %v3027 = vsel %vm2827, %v2727, %v2927
  %v3028 = vsel %vm2828, %v2728, %v2928
  %v3029 = vsel %vm2829, %v2729, %v2929
  %v3030 = vpack.c.bf16 %v2930, %v2930
  %v3031 = vpack.c.bf16 %v2931, %v2931
  %v3032 = vpack.c.bf16 %v2932, %v2932
  %v3033 = vpack.c.bf16 %v2933, %v2933
  %v3034 = vpack.c.bf16 %v2934, %v2934
  %v3035 = vpack.c.bf16 %v2935, %v2935
  %v3036 = vpack.c.bf16 %v2936, %v2936
  %v3037 = vpack.c.bf16 %v2937, %v2937
  %v3038 = vpack.c.bf16 %v2938, %v2938
  %v3039 = vpack.c.bf16 %v2939, %v2939
  %v3040 = vpack.c.bf16 %v2940, %v2940
  %v3041 = vpack.c.bf16 %v2941, %v2941
  %v3042 = vpack.c.bf16 %v2942, %v2942
  %v3043 = vpack.c.bf16 %v2943, %v2943
  %v3044 = vpack.c.bf16 %v2944, %v2944
  %v3045 = vpack.c.bf16 %v2945, %v2945
  %v3046 = vpack.c.bf16 %v2946, %v2946
  %v3047 = vpack.c.bf16 %v2947, %v2947
  %v3048 = vpack.c.bf16 %v2948, %v2948
  %v3049 = vpack.c.bf16 %v2949, %v2949
  %v3050 = vpack.c.bf16 %v2950, %v2950
  %v3051 = vpack.c.bf16 %v2951, %v2951
  %v3052 = vpack.c.bf16 %v2952, %v2952
  %v3053 = vpack.c.bf16 %v2953, %v2953
  %v3054 = vpack.c.bf16 %v2954, %v2954
  %v3055 = vpack.c.bf16 %v2955, %v2955
  %v3056 = vpack.c.bf16 %v2956, %v2956
  %v3057 = vpack.c.bf16 %v2957, %v2957
  %v3058 = vpack.c.bf16 %v2958, %v2958
  %v3059 = vpack.c.bf16 %v2959, %v2959
  %v3060 = vpack.c.bf16 %v2960, %v2960
  %v3061 = vpack.c.bf16 %v2961, %v2961
  %v3062 = vpack.c.bf16 %v2962, %v2962
  %v3063 = vpack.c.bf16 %v2963, %v2963
  %v3064 = vpack.c.bf16 %v2964, %v2964
  %v3065 = vpack.c.bf16 %v2965, %v2965
  %v3066 = vpack.c.bf16 %v2966, %v2966
  %v3067 = vpack.c.bf16 %v2967, %v2967
  %v3068 = vpack.c.bf16 %v2968, %v2968
  %v3069 = vpack.c.bf16 %v2969, %v2969
  %v3070 = vpack.c.bf16 %v2970, %v2970
  %v3071 = vpack.c.bf16 %v2971, %v2971
  %v3072 = vpack.c.bf16 %v2972, %v2972
  %v3073 = vpack.c.bf16 %v2973, %v2973
  %v3074 = vpack.c.bf16 %v2974, %v2974
  %v3075 = vpack.c.bf16 %v2975, %v2975
  %v3076 = vpack.c.bf16 %v2976, %v2976
  %v3077 = vpack.c.bf16 %v2977, %v2977
  %v3078 = vpack.c.bf16 %v2978, %v2978
  %v3079 = vpack.c.bf16 %v2979, %v2979
  %v3080 = vpack.c.bf16 %v2980, %v2980
  %v3081 = vpack.c.bf16 %v2981, %v2981
  %v3082 = vpack.c.bf16 %v2982, %v2982
  %v3083 = vpack.c.bf16 %v2983, %v2983
  %v3084 = vpack.c.bf16 %v2984, %v2984
  %v3085 = vpack.c.bf16 %v2985, %v2985
  %v3086 = vpack.c.bf16 %v2986, %v2986
  %v3087 = vpack.c.bf16 %v2987, %v2987
  %v3088 = vpack.c.bf16 %v2988, %v2988
  %v3089 = vpack.c.bf16 %v2989, %v2989
  %v3090 = vpack.c.bf16 %v2990, %v2990
  %v3091 = vpack.c.bf16 %v2991, %v2991
  %v3092 = vpack.c.bf16 %v2992, %v2992
  %v3093 = vpack.c.bf16 %v2993, %v2993
  %v3094 = vpack.c.bf16 %v2994, %v2994
  %v3095 = vpack.c.bf16 %v2995, %v2995
  %v3096 = vpack.c.bf16 %v2996, %v2996
  %v3097 = vpack.c.bf16 %v2997, %v2997
  %v3098 = vpack.c.bf16 %v2998, %v2998
  %v3099 = vpack.c.bf16 %v2999, %v2999
  %v3100 = vpack.c.bf16 %v3000, %v3000
  %v3101 = vpack.c.bf16 %v3001, %v3001
  %v3102 = vpack.c.bf16 %v3002, %v3002
  %v3103 = vpack.c.bf16 %v3003, %v3003
  %v3104 = vpack.c.bf16 %v3004, %v3004
  %v3105 = vpack.c.bf16 %v3005, %v3005
  %v3106 = vpack.c.bf16 %v3006, %v3006
  %v3107 = vpack.c.bf16 %v3007, %v3007
  %v3108 = vpack.c.bf16 %v3008, %v3008
  %v3109 = vpack.c.bf16 %v3009, %v3009
  %v3110 = vpack.c.bf16 %v3010, %v3010
  %v3111 = vpack.c.bf16 %v3011, %v3011
  %v3112 = vpack.c.bf16 %v3012, %v3012
  %v3113 = vpack.c.bf16 %v3013, %v3013
  %v3114 = vpack.c.bf16 %v3014, %v3014
  %v3115 = vpack.c.bf16 %v3015, %v3015
  %v3116 = vpack.c.bf16 %v3016, %v3016
  %v3117 = vpack.c.bf16 %v3017, %v3017
  %v3118 = vpack.c.bf16 %v3018, %v3018
  %v3119 = vpack.c.bf16 %v3019, %v3019
  %v3120 = vpack.c.bf16 %v3020, %v3020
  %v3121 = vpack.c.bf16 %v3021, %v3021
  %v3122 = vpack.c.bf16 %v3022, %v3022
  %v3123 = vpack.c.bf16 %v3023, %v3023
  %v3124 = vpack.c.bf16 %v3024, %v3024
  %v3125 = vpack.c.bf16 %v3025, %v3025
  %v3126 = vpack.c.bf16 %v3026, %v3026
  %v3127 = vpack.c.bf16 %v3027, %v3027
  %v3128 = vpack.c.bf16 %v3028, %v3028
  %v3129 = vpack.c.bf16 %v3029, %v3029
  %vm3130 = vcmask 519168
  %3131 = vst.msk [vmem:[%s4] sm:$0xf] %vm3130, %v3030
  %3132 = vst.msk [vmem:[%s4 + $0x4] sm:$0xf] %vm3130, %v3031
  %3133 = vst.msk [vmem:[%s4 + $0x8] sm:$0xf] %vm3130, %v3032
  %3134 = vst.msk [vmem:[%s4 + $0xc] sm:$0xf] %vm3130, %v3033
  %3135 = vst.msk [vmem:[%s4 + $0x10] sm:$0xf] %vm3130, %v3034
  %3136 = vst.msk [vmem:[%s4 + $0x14] sm:$0xf] %vm3130, %v3035
  %3137 = vst.msk [vmem:[%s4 + $0x18] sm:$0xf] %vm3130, %v3036
  %3138 = vst.msk [vmem:[%s4 + $0x1c] sm:$0xf] %vm3130, %v3037
  %3139 = vst.msk [vmem:[%s4 + $0x20] sm:$0xf] %vm3130, %v3038
  %3140 = vst.msk [vmem:[%s4 + $0x24] sm:$0xf] %vm3130, %v3039
  %3141 = vst.msk [vmem:[%s4 + $0x28] sm:$0xf] %vm3130, %v3040
  %3142 = vst.msk [vmem:[%s4 + $0x2c] sm:$0xf] %vm3130, %v3041
  %3143 = vst.msk [vmem:[%s4 + $0x30] sm:$0xf] %vm3130, %v3042
  %3144 = vst.msk [vmem:[%s4 + $0x34] sm:$0xf] %vm3130, %v3043
  %3145 = vst.msk [vmem:[%s4 + $0x38] sm:$0xf] %vm3130, %v3044
  %3146 = vst.msk [vmem:[%s4 + $0x3c] sm:$0xf] %vm3130, %v3045
  %3147 = vst.msk [vmem:[%s4 + $0x40] sm:$0xf] %vm3130, %v3046
  %3148 = vst.msk [vmem:[%s4 + $0x44] sm:$0xf] %vm3130, %v3047
  %3149 = vst.msk [vmem:[%s4 + $0x48] sm:$0xf] %vm3130, %v3048
  %3150 = vst.msk [vmem:[%s4 + $0x4c] sm:$0xf] %vm3130, %v3049
  %3151 = vst.msk [vmem:[%s4 + $0x50] sm:$0xf] %vm3130, %v3050
  %3152 = vst.msk [vmem:[%s4 + $0x54] sm:$0xf] %vm3130, %v3051
  %3153 = vst.msk [vmem:[%s4 + $0x58] sm:$0xf] %vm3130, %v3052
  %3154 = vst.msk [vmem:[%s4 + $0x5c] sm:$0xf] %vm3130, %v3053
  %3155 = vst.msk [vmem:[%s4 + $0x60] sm:$0xf] %vm3130, %v3054
  %3156 = vst.msk [vmem:[%s4 + $0x64] sm:$0xf] %vm3130, %v3055
  %3157 = vst.msk [vmem:[%s4 + $0x68] sm:$0xf] %vm3130, %v3056
  %3158 = vst.msk [vmem:[%s4 + $0x6c] sm:$0xf] %vm3130, %v3057
  %3159 = vst.msk [vmem:[%s4 + $0x70] sm:$0xf] %vm3130, %v3058
  %3160 = vst.msk [vmem:[%s4 + $0x74] sm:$0xf] %vm3130, %v3059
  %3161 = vst.msk [vmem:[%s4 + $0x78] sm:$0xf] %vm3130, %v3060
  %3162 = vst.msk [vmem:[%s4 + $0x7c] sm:$0xf] %vm3130, %v3061
  %3163 = vst.msk [vmem:[%s4 + $0x80] sm:$0xf] %vm3130, %v3062
  %3164 = vst.msk [vmem:[%s4 + $0x84] sm:$0xf] %vm3130, %v3063
  %3165 = vst.msk [vmem:[%s4 + $0x88] sm:$0xf] %vm3130, %v3064
  %3166 = vst.msk [vmem:[%s4 + $0x8c] sm:$0xf] %vm3130, %v3065
  %3167 = vst.msk [vmem:[%s4 + $0x90] sm:$0xf] %vm3130, %v3066
  %3168 = vst.msk [vmem:[%s4 + $0x94] sm:$0xf] %vm3130, %v3067
  %3169 = vst.msk [vmem:[%s4 + $0x98] sm:$0xf] %vm3130, %v3068
  %3170 = vst.msk [vmem:[%s4 + $0x9c] sm:$0xf] %vm3130, %v3069
  %3171 = vst.msk [vmem:[%s4 + $0xa0] sm:$0xf] %vm3130, %v3070
  %3172 = vst.msk [vmem:[%s4 + $0xa4] sm:$0xf] %vm3130, %v3071
  %3173 = vst.msk [vmem:[%s4 + $0xa8] sm:$0xf] %vm3130, %v3072
  %3174 = vst.msk [vmem:[%s4 + $0xac] sm:$0xf] %vm3130, %v3073
  %3175 = vst.msk [vmem:[%s4 + $0xb0] sm:$0xf] %vm3130, %v3074
  %3176 = vst.msk [vmem:[%s4 + $0xb4] sm:$0xf] %vm3130, %v3075
  %3177 = vst.msk [vmem:[%s4 + $0xb8] sm:$0xf] %vm3130, %v3076
  %3178 = vst.msk [vmem:[%s4 + $0xbc] sm:$0xf] %vm3130, %v3077
  %3179 = vst.msk [vmem:[%s4 + $0xc0] sm:$0xf] %vm3130, %v3078
  %3180 = vst.msk [vmem:[%s4 + $0xc4] sm:$0xf] %vm3130, %v3079
  %3181 = vst.msk [vmem:[%s4 + $0xc8] sm:$0xf] %vm3130, %v3080
  %3182 = vst.msk [vmem:[%s4 + $0xcc] sm:$0xf] %vm3130, %v3081
  %3183 = vst.msk [vmem:[%s4 + $0xd0] sm:$0xf] %vm3130, %v3082
  %3184 = vst.msk [vmem:[%s4 + $0xd4] sm:$0xf] %vm3130, %v3083
  %3185 = vst.msk [vmem:[%s4 + $0xd8] sm:$0xf] %vm3130, %v3084
  %3186 = vst.msk [vmem:[%s4 + $0xdc] sm:$0xf] %vm3130, %v3085
  %3187 = vst.msk [vmem:[%s4 + $0xe0] sm:$0xf] %vm3130, %v3086
  %3188 = vst.msk [vmem:[%s4 + $0xe4] sm:$0xf] %vm3130, %v3087
  %3189 = vst.msk [vmem:[%s4 + $0xe8] sm:$0xf] %vm3130, %v3088
  %3190 = vst.msk [vmem:[%s4 + $0xec] sm:$0xf] %vm3130, %v3089
  %3191 = vst.msk [vmem:[%s4 + $0xf0] sm:$0xf] %vm3130, %v3090
  %3192 = vst.msk [vmem:[%s4 + $0xf4] sm:$0xf] %vm3130, %v3091
  %3193 = vst.msk [vmem:[%s4 + $0xf8] sm:$0xf] %vm3130, %v3092
  %3194 = vst.msk [vmem:[%s4 + $0xfc] sm:$0xf] %vm3130, %v3093
  %3195 = vst.msk [vmem:[%s4 + $0x100] sm:$0xf] %vm3130, %v3094
  %3196 = vst.msk [vmem:[%s4 + $0x104] sm:$0xf] %vm3130, %v3095
  %3197 = vst.msk [vmem:[%s4 + $0x108] sm:$0xf] %vm3130, %v3096
  %3198 = vst.msk [vmem:[%s4 + $0x10c] sm:$0xf] %vm3130, %v3097
  %3199 = vst.msk [vmem:[%s4 + $0x110] sm:$0xf] %vm3130, %v3098
  %3200 = vst.msk [vmem:[%s4 + $0x114] sm:$0xf] %vm3130, %v3099
  %3201 = vst.msk [vmem:[%s4 + $0x118] sm:$0xf] %vm3130, %v3100
  %3202 = vst.msk [vmem:[%s4 + $0x11c] sm:$0xf] %vm3130, %v3101
  %3203 = vst.msk [vmem:[%s4 + $0x120] sm:$0xf] %vm3130, %v3102
  %3204 = vst.msk [vmem:[%s4 + $0x124] sm:$0xf] %vm3130, %v3103
  %3205 = vst.msk [vmem:[%s4 + $0x128] sm:$0xf] %vm3130, %v3104
  %3206 = vst.msk [vmem:[%s4 + $0x12c] sm:$0xf] %vm3130, %v3105
  %3207 = vst.msk [vmem:[%s4 + $0x130] sm:$0xf] %vm3130, %v3106
  %3208 = vst.msk [vmem:[%s4 + $0x134] sm:$0xf] %vm3130, %v3107
  %3209 = vst.msk [vmem:[%s4 + $0x138] sm:$0xf] %vm3130, %v3108
  %3210 = vst.msk [vmem:[%s4 + $0x13c] sm:$0xf] %vm3130, %v3109
  %3211 = vst.msk [vmem:[%s4 + $0x140] sm:$0xf] %vm3130, %v3110
  %3212 = vst.msk [vmem:[%s4 + $0x144] sm:$0xf] %vm3130, %v3111
  %3213 = vst.msk [vmem:[%s4 + $0x148] sm:$0xf] %vm3130, %v3112
  %3214 = vst.msk [vmem:[%s4 + $0x14c] sm:$0xf] %vm3130, %v3113
  %3215 = vst.msk [vmem:[%s4 + $0x150] sm:$0xf] %vm3130, %v3114
  %3216 = vst.msk [vmem:[%s4 + $0x154] sm:$0xf] %vm3130, %v3115
  %3217 = vst.msk [vmem:[%s4 + $0x158] sm:$0xf] %vm3130, %v3116
  %3218 = vst.msk [vmem:[%s4 + $0x15c] sm:$0xf] %vm3130, %v3117
  %3219 = vst.msk [vmem:[%s4 + $0x160] sm:$0xf] %vm3130, %v3118
  %3220 = vst.msk [vmem:[%s4 + $0x164] sm:$0xf] %vm3130, %v3119
  %3221 = vst.msk [vmem:[%s4 + $0x168] sm:$0xf] %vm3130, %v3120
  %3222 = vst.msk [vmem:[%s4 + $0x16c] sm:$0xf] %vm3130, %v3121
  %3223 = vst.msk [vmem:[%s4 + $0x170] sm:$0xf] %vm3130, %v3122
  %3224 = vst.msk [vmem:[%s4 + $0x174] sm:$0xf] %vm3130, %v3123
  %3225 = vst.msk [vmem:[%s4 + $0x178] sm:$0xf] %vm3130, %v3124
  %3226 = vst.msk [vmem:[%s4 + $0x17c] sm:$0xf] %vm3130, %v3125
  %3227 = vst.msk [vmem:[%s4 + $0x180] sm:$0xf] %vm3130, %v3126
  %3228 = vst.msk [vmem:[%s4 + $0x184] sm:$0xf] %vm3130, %v3127
  %3229 = vst.msk [vmem:[%s4 + $0x188] sm:$0xf] %vm3130, %v3128
  %3230 = vst.msk [vmem:[%s4 + $0x18c] sm:$0xf] %vm3130, %v3129
  // Predicated region
  $region18: #{netD_forward.5} parent=0 // pred_check
    _
  $region19: #{netD_forward.5} parent=0 // pred_check_branch
    %3232 = sbr.rel (0) target = $region21
  $region20: #{netD_forward.5} parent=0 // pred_region
    _
  $region21: #{netD_forward.5} parent=0 // pred_fallthru
    _
  // Predicated region
  $region22: #{netD_forward.5} parent=0 // pred_check
    _
  $region23: #{netD_forward.5} parent=0 // pred_check_branch
    %3234 = sbr.rel (0) target = $region25
  $region24: #{netD_forward.5} parent=0 // pred_region
    _
  $region25: #{netD_forward.5} parent=0 // pred_fallthru
    _

// kernel: netD_forward.6
$region0: #{netD_forward.6}
  #allocation0 [shape = 'u32[]', space=smem, size = 0x4, offset = 0x4, fixed_abs, tag = 'smem constant byte address 0x4 - core index']
  #allocation1 [shape = 'u32[72,128]{1,0:T(1,128)}', space=vmem, size = 0x9000, scoped, tag = 'internal scratch']
  %s0 = inlined_call_operand.vmem [shape: bf16[200,1024], index: 0, kind: input, shape index: {}]
  %s1 = inlined_call_operand.vmem [shape: bf16[1024,128], index: 1, kind: input, shape index: {}]
  %s2 = inlined_call_operand.vmem [shape: f32[1,128], index: 2, kind: input, shape index: {}]
  %s3 = inlined_call_operand.vmem [shape: f32[1,128], index: 3, kind: input, shape index: {}]
  %s4 = inlined_call_operand.vmem [shape: bf16[200,128], index: 4, kind: output, shape index: {}]
  %s5 = sld [smem:[#allocation0]]
  $region26: #{netD_forward.6} parent=0
    _
  %s7 = ssub.s32 1, %s5
  %s8 = scalar_select 0, %s7, %s5
  // Predicated region
  $region2: #{netD_forward.6} parent=0 // pred_check
    _
  $region3: #{netD_forward.6} parent=0 // pred_check_branch
    %10 = sbr.rel (0) target = $region5
  $region4: #{netD_forward.6} parent=0 // pred_region
    _
  $region5: #{netD_forward.6} parent=0 // pred_fallthru
    _
  // Predicated region
  $region6: #{netD_forward.6} parent=0 // pred_check
    _
  $region7: #{netD_forward.6} parent=0 // pred_check_branch
    %12 = sbr.rel (0) target = $region9
  $region8: #{netD_forward.6} parent=0 // pred_region
    _
  $region9: #{netD_forward.6} parent=0 // pred_fallthru
    _
  // Predicated region
  $region10: #{netD_forward.6} parent=0 // pred_check
    _
  $region11: #{netD_forward.6} parent=0 // pred_check_branch
    %14 = sbr.rel (0) target = $region13
  $region12: #{netD_forward.6} parent=0 // pred_region
    _
  $region13: #{netD_forward.6} parent=0 // pred_fallthru
    _
  // Predicated region
  $region14: #{netD_forward.6} parent=0 // pred_check
    _
  $region15: #{netD_forward.6} parent=0 // pred_check_branch
    %16 = sbr.rel (0) target = $region17
  $region16: #{netD_forward.6} parent=0 // pred_region
    _
  $region17: #{netD_forward.6} parent=0 // pred_fallthru
    _
  %v17 = vld [vmem:[%s0] sm:$0xff]
  %v18 = vld [vmem:[%s0 + $0x8] sm:$0xff]
  %v19 = vld [vmem:[%s0 + $0x10] sm:$0xff]
  %v20 = vld [vmem:[%s0 + $0x18] sm:$0xff]
  %v21 = vld [vmem:[%s0 + $0x20] sm:$0xff]
  %v22 = vld [vmem:[%s0 + $0x28] sm:$0xff]
  %v23 = vld [vmem:[%s0 + $0x30] sm:$0xff]
  %v24 = vld [vmem:[%s0 + $0x38] sm:$0xff]
  %v25 = vld [vmem:[%s0 + $0x40] sm:$0xff]
  %v26 = vld [vmem:[%s0 + $0x48] sm:$0xff]
  %v27 = vld [vmem:[%s0 + $0x50] sm:$0xff]
  %v28 = vld [vmem:[%s0 + $0x58] sm:$0xff]
  %v29 = vld [vmem:[%s0 + $0x60] sm:$0xff]
  %v30 = vld [vmem:[%s0 + $0x68] sm:$0xff]
  %v31 = vld [vmem:[%s0 + $0x70] sm:$0xff]
  %v32 = vld [vmem:[%s0 + $0x78] sm:$0xff]
  %v33 = vld [vmem:[%s0 + $0x80] sm:$0xff]
  %v34 = vld [vmem:[%s0 + $0x88] sm:$0xff]
  %v35 = vld [vmem:[%s0 + $0x90] sm:$0xff]
  %v36 = vld [vmem:[%s0 + $0x98] sm:$0xff]
  %v37 = vld [vmem:[%s0 + $0xa0] sm:$0xff]
  %v38 = vld [vmem:[%s0 + $0xa8] sm:$0xff]
  %v39 = vld [vmem:[%s0 + $0xb0] sm:$0xff]
  %v40 = vld [vmem:[%s0 + $0xb8] sm:$0xff]
  %v41 = vld [vmem:[%s0 + $0xc0] sm:$0xff]
  %v42 = vld [vmem:[%s0 + $0xc8] sm:$0xff]
  %v43 = vld [vmem:[%s0 + $0xd0] sm:$0xff]
  %v44 = vld [vmem:[%s0 + $0xd8] sm:$0xff]
  %v45 = vld [vmem:[%s0 + $0xe0] sm:$0xff]
  %v46 = vld [vmem:[%s0 + $0xe8] sm:$0xff]
  %v47 = vld [vmem:[%s0 + $0xf0] sm:$0xff]
  %v48 = vld [vmem:[%s0 + $0xf8] sm:$0xff]
  %v49 = vld [vmem:[%s0 + $0x100] sm:$0xff]
  %v50 = vld [vmem:[%s0 + $0x108] sm:$0xff]
  %v51 = vld [vmem:[%s0 + $0x110] sm:$0xff]
  %v52 = vld [vmem:[%s0 + $0x118] sm:$0xff]
  %v53 = vld [vmem:[%s0 + $0x120] sm:$0xff]
  %v54 = vld [vmem:[%s0 + $0x128] sm:$0xff]
  %v55 = vld [vmem:[%s0 + $0x130] sm:$0xff]
  %v56 = vld [vmem:[%s0 + $0x138] sm:$0xff]
  %v57 = vld [vmem:[%s0 + $0x140] sm:$0xff]
  %v58 = vld [vmem:[%s0 + $0x148] sm:$0xff]
  %v59 = vld [vmem:[%s0 + $0x150] sm:$0xff]
  %v60 = vld [vmem:[%s0 + $0x158] sm:$0xff]
  %v61 = vld [vmem:[%s0 + $0x160] sm:$0xff]
  %v62 = vld [vmem:[%s0 + $0x168] sm:$0xff]
  %v63 = vld [vmem:[%s0 + $0x170] sm:$0xff]
  %v64 = vld [vmem:[%s0 + $0x178] sm:$0xff]
  %v65 = vld [vmem:[%s0 + $0x180] sm:$0xff]
  %v66 = vld [vmem:[%s0 + $0x188] sm:$0xff]
  %v67 = vld [vmem:[%s0 + $0x190] sm:$0xff]
  %v68 = vld [vmem:[%s0 + $0x198] sm:$0xff]
  %v69 = vld [vmem:[%s0 + $0x1a0] sm:$0xff]
  %v70 = vld [vmem:[%s0 + $0x1a8] sm:$0xff]
  %v71 = vld [vmem:[%s0 + $0x1b0] sm:$0xff]
  %v72 = vld [vmem:[%s0 + $0x1b8] sm:$0xff]
  %v73 = vld [vmem:[%s0 + $0x1c0] sm:$0xff]
  %v74 = vld [vmem:[%s0 + $0x1c8] sm:$0xff]
  %v75 = vld [vmem:[%s0 + $0x1d0] sm:$0xff]
  %v76 = vld [vmem:[%s0 + $0x1d8] sm:$0xff]
  %v77 = vld [vmem:[%s0 + $0x1e0] sm:$0xff]
  %v78 = vld [vmem:[%s0 + $0x1e8] sm:$0xff]
  %v79 = vld [vmem:[%s0 + $0x1f0] sm:$0xff]
  %v80 = vld [vmem:[%s0 + $0x1f8] sm:$0xff]
  %v81 = vld [vmem:[%s0 + $0x200] sm:$0xff]
  %v82 = vld [vmem:[%s0 + $0x208] sm:$0xff]
  %v83 = vld [vmem:[%s0 + $0x210] sm:$0xff]
  %v84 = vld [vmem:[%s0 + $0x218] sm:$0xff]
  %v85 = vld [vmem:[%s0 + $0x220] sm:$0xff]
  %v86 = vld [vmem:[%s0 + $0x228] sm:$0xff]
  %v87 = vld [vmem:[%s0 + $0x230] sm:$0xff]
  %v88 = vld [vmem:[%s0 + $0x238] sm:$0xff]
  %v89 = vld [vmem:[%s0 + $0x240] sm:$0xff]
  %v90 = vld [vmem:[%s0 + $0x248] sm:$0xff]
  %v91 = vld [vmem:[%s0 + $0x250] sm:$0xff]
  %v92 = vld [vmem:[%s0 + $0x258] sm:$0xff]
  %v93 = vld [vmem:[%s0 + $0x260] sm:$0xff]
  %v94 = vld [vmem:[%s0 + $0x268] sm:$0xff]
  %v95 = vld [vmem:[%s0 + $0x270] sm:$0xff]
  %v96 = vld [vmem:[%s0 + $0x278] sm:$0xff]
  %v97 = vld [vmem:[%s0 + $0x280] sm:$0xff]
  %v98 = vld [vmem:[%s0 + $0x288] sm:$0xff]
  %v99 = vld [vmem:[%s0 + $0x290] sm:$0xff]
  %v100 = vld [vmem:[%s0 + $0x298] sm:$0xff]
  %v101 = vld [vmem:[%s0 + $0x2a0] sm:$0xff]
  %v102 = vld [vmem:[%s0 + $0x2a8] sm:$0xff]
  %v103 = vld [vmem:[%s0 + $0x2b0] sm:$0xff]
  %v104 = vld [vmem:[%s0 + $0x2b8] sm:$0xff]
  %v105 = vld [vmem:[%s0 + $0x2c0] sm:$0xff]
  %v106 = vld [vmem:[%s0 + $0x2c8] sm:$0xff]
  %v107 = vld [vmem:[%s0 + $0x2d0] sm:$0xff]
  %v108 = vld [vmem:[%s0 + $0x2d8] sm:$0xff]
  %v109 = vld [vmem:[%s0 + $0x2e0] sm:$0xff]
  %v110 = vld [vmem:[%s0 + $0x2e8] sm:$0xff]
  %v111 = vld [vmem:[%s0 + $0x2f0] sm:$0xff]
  %v112 = vld [vmem:[%s0 + $0x2f8] sm:$0xff]
  %v113 = vld [vmem:[%s0 + $0x300] sm:$0xff]
  %v114 = vld [vmem:[%s0 + $0x308] sm:$0xff]
  %v115 = vld [vmem:[%s0 + $0x310] sm:$0xff]
  %v116 = vld [vmem:[%s0 + $0x318] sm:$0xff]
  %v117 = vld [vmem:[%s1] sm:$0xf]
  %v118 = vld [vmem:[%s1 + $0x4] sm:$0xf]
  %v119 = vld [vmem:[%s1 + $0x8] sm:$0xf]
  %v120 = vld [vmem:[%s1 + $0xc] sm:$0xf]
  %v121 = vld [vmem:[%s1 + $0x10] sm:$0xf]
  %v122 = vld [vmem:[%s1 + $0x14] sm:$0xf]
  %v123 = vld [vmem:[%s1 + $0x18] sm:$0xf]
  %v124 = vld [vmem:[%s1 + $0x1c] sm:$0xf]
  %v125 = vld [vmem:[%s1 + $0x20] sm:$0xf]
  %v126 = vld [vmem:[%s1 + $0x24] sm:$0xf]
  %v127 = vld [vmem:[%s1 + $0x28] sm:$0xf]
  %v128 = vld [vmem:[%s1 + $0x2c] sm:$0xf]
  %v129 = vld [vmem:[%s1 + $0x30] sm:$0xf]
  %v130 = vld [vmem:[%s1 + $0x34] sm:$0xf]
  %v131 = vld [vmem:[%s1 + $0x38] sm:$0xf]
  %v132 = vld [vmem:[%s1 + $0x3c] sm:$0xf]
  %v133 = vld [vmem:[%s1 + $0x40] sm:$0xf]
  %v134 = vld [vmem:[%s1 + $0x44] sm:$0xf]
  %v135 = vld [vmem:[%s1 + $0x48] sm:$0xf]
  %v136 = vld [vmem:[%s1 + $0x4c] sm:$0xf]
  %v137 = vld [vmem:[%s1 + $0x50] sm:$0xf]
  %v138 = vld [vmem:[%s1 + $0x54] sm:$0xf]
  %v139 = vld [vmem:[%s1 + $0x58] sm:$0xf]
  %v140 = vld [vmem:[%s1 + $0x5c] sm:$0xf]
  %v141 = vld [vmem:[%s1 + $0x60] sm:$0xf]
  %v142 = vld [vmem:[%s1 + $0x64] sm:$0xf]
  %v143 = vld [vmem:[%s1 + $0x68] sm:$0xf]
  %v144 = vld [vmem:[%s1 + $0x6c] sm:$0xf]
  %v145 = vld [vmem:[%s1 + $0x70] sm:$0xf]
  %v146 = vld [vmem:[%s1 + $0x74] sm:$0xf]
  %v147 = vld [vmem:[%s1 + $0x78] sm:$0xf]
  %v148 = vld [vmem:[%s1 + $0x7c] sm:$0xf]
  %v149 = vld [vmem:[%s1 + $0x80] sm:$0xf]
  %v150 = vld [vmem:[%s1 + $0x84] sm:$0xf]
  %v151 = vld [vmem:[%s1 + $0x88] sm:$0xf]
  %v152 = vld [vmem:[%s1 + $0x8c] sm:$0xf]
  %v153 = vld [vmem:[%s1 + $0x90] sm:$0xf]
  %v154 = vld [vmem:[%s1 + $0x94] sm:$0xf]
  %v155 = vld [vmem:[%s1 + $0x98] sm:$0xf]
  %v156 = vld [vmem:[%s1 + $0x9c] sm:$0xf]
  %v157 = vld [vmem:[%s1 + $0xa0] sm:$0xf]
  %v158 = vld [vmem:[%s1 + $0xa4] sm:$0xf]
  %v159 = vld [vmem:[%s1 + $0xa8] sm:$0xf]
  %v160 = vld [vmem:[%s1 + $0xac] sm:$0xf]
  %v161 = vld [vmem:[%s1 + $0xb0] sm:$0xf]
  %v162 = vld [vmem:[%s1 + $0xb4] sm:$0xf]
  %v163 = vld [vmem:[%s1 + $0xb8] sm:$0xf]
  %v164 = vld [vmem:[%s1 + $0xbc] sm:$0xf]
  %v165 = vld [vmem:[%s1 + $0xc0] sm:$0xf]
  %v166 = vld [vmem:[%s1 + $0xc4] sm:$0xf]
  %v167 = vld [vmem:[%s1 + $0xc8] sm:$0xf]
  %v168 = vld [vmem:[%s1 + $0xcc] sm:$0xf]
  %v169 = vld [vmem:[%s1 + $0xd0] sm:$0xf]
  %v170 = vld [vmem:[%s1 + $0xd4] sm:$0xf]
  %v171 = vld [vmem:[%s1 + $0xd8] sm:$0xf]
  %v172 = vld [vmem:[%s1 + $0xdc] sm:$0xf]
  %v173 = vld [vmem:[%s1 + $0xe0] sm:$0xf]
  %v174 = vld [vmem:[%s1 + $0xe4] sm:$0xf]
  %v175 = vld [vmem:[%s1 + $0xe8] sm:$0xf]
  %v176 = vld [vmem:[%s1 + $0xec] sm:$0xf]
  %v177 = vld [vmem:[%s1 + $0xf0] sm:$0xf]
  %v178 = vld [vmem:[%s1 + $0xf4] sm:$0xf]
  %v179 = vld [vmem:[%s1 + $0xf8] sm:$0xf]
  %v180 = vld [vmem:[%s1 + $0xfc] sm:$0xf]
  %v181 = vld [vmem:[%s1 + $0x100] sm:$0xf]
  %v182 = vld [vmem:[%s1 + $0x104] sm:$0xf]
  %v183 = vld [vmem:[%s1 + $0x108] sm:$0xf]
  %v184 = vld [vmem:[%s1 + $0x10c] sm:$0xf]
  %v185 = vld [vmem:[%s1 + $0x110] sm:$0xf]
  %v186 = vld [vmem:[%s1 + $0x114] sm:$0xf]
  %v187 = vld [vmem:[%s1 + $0x118] sm:$0xf]
  %v188 = vld [vmem:[%s1 + $0x11c] sm:$0xf]
  %v189 = vld [vmem:[%s1 + $0x120] sm:$0xf]
  %v190 = vld [vmem:[%s1 + $0x124] sm:$0xf]
  %v191 = vld [vmem:[%s1 + $0x128] sm:$0xf]
  %v192 = vld [vmem:[%s1 + $0x12c] sm:$0xf]
  %v193 = vld [vmem:[%s1 + $0x130] sm:$0xf]
  %v194 = vld [vmem:[%s1 + $0x134] sm:$0xf]
  %v195 = vld [vmem:[%s1 + $0x138] sm:$0xf]
  %v196 = vld [vmem:[%s1 + $0x13c] sm:$0xf]
  %v197 = vld [vmem:[%s1 + $0x140] sm:$0xf]
  %v198 = vld [vmem:[%s1 + $0x144] sm:$0xf]
  %v199 = vld [vmem:[%s1 + $0x148] sm:$0xf]
  %v200 = vld [vmem:[%s1 + $0x14c] sm:$0xf]
  %v201 = vld [vmem:[%s1 + $0x150] sm:$0xf]
  %v202 = vld [vmem:[%s1 + $0x154] sm:$0xf]
  %v203 = vld [vmem:[%s1 + $0x158] sm:$0xf]
  %v204 = vld [vmem:[%s1 + $0x15c] sm:$0xf]
  %v205 = vld [vmem:[%s1 + $0x160] sm:$0xf]
  %v206 = vld [vmem:[%s1 + $0x164] sm:$0xf]
  %v207 = vld [vmem:[%s1 + $0x168] sm:$0xf]
  %v208 = vld [vmem:[%s1 + $0x16c] sm:$0xf]
  %v209 = vld [vmem:[%s1 + $0x170] sm:$0xf]
  %v210 = vld [vmem:[%s1 + $0x174] sm:$0xf]
  %v211 = vld [vmem:[%s1 + $0x178] sm:$0xf]
  %v212 = vld [vmem:[%s1 + $0x17c] sm:$0xf]
  %v213 = vld [vmem:[%s1 + $0x180] sm:$0xf]
  %v214 = vld [vmem:[%s1 + $0x184] sm:$0xf]
  %v215 = vld [vmem:[%s1 + $0x188] sm:$0xf]
  %v216 = vld [vmem:[%s1 + $0x18c] sm:$0xf]
  %v217 = vld [vmem:[%s1 + $0x190] sm:$0xf]
  %v218 = vld [vmem:[%s1 + $0x194] sm:$0xf]
  %v219 = vld [vmem:[%s1 + $0x198] sm:$0xf]
  %v220 = vld [vmem:[%s1 + $0x19c] sm:$0xf]
  %v221 = vld [vmem:[%s1 + $0x1a0] sm:$0xf]
  %v222 = vld [vmem:[%s1 + $0x1a4] sm:$0xf]
  %v223 = vld [vmem:[%s1 + $0x1a8] sm:$0xf]
  %v224 = vld [vmem:[%s1 + $0x1ac] sm:$0xf]
  %v225 = vld [vmem:[%s1 + $0x1b0] sm:$0xf]
  %v226 = vld [vmem:[%s1 + $0x1b4] sm:$0xf]
  %v227 = vld [vmem:[%s1 + $0x1b8] sm:$0xf]
  %v228 = vld [vmem:[%s1 + $0x1bc] sm:$0xf]
  %v229 = vld [vmem:[%s1 + $0x1c0] sm:$0xf]
  %v230 = vld [vmem:[%s1 + $0x1c4] sm:$0xf]
  %v231 = vld [vmem:[%s1 + $0x1c8] sm:$0xf]
  %v232 = vld [vmem:[%s1 + $0x1cc] sm:$0xf]
  %v233 = vld [vmem:[%s1 + $0x1d0] sm:$0xf]
  %v234 = vld [vmem:[%s1 + $0x1d4] sm:$0xf]
  %v235 = vld [vmem:[%s1 + $0x1d8] sm:$0xf]
  %v236 = vld [vmem:[%s1 + $0x1dc] sm:$0xf]
  %v237 = vld [vmem:[%s1 + $0x1e0] sm:$0xf]
  %v238 = vld [vmem:[%s1 + $0x1e4] sm:$0xf]
  %v239 = vld [vmem:[%s1 + $0x1e8] sm:$0xf]
  %v240 = vld [vmem:[%s1 + $0x1ec] sm:$0xf]
  %v241 = vld [vmem:[%s1 + $0x1f0] sm:$0xf]
  %v242 = vld [vmem:[%s1 + $0x1f4] sm:$0xf]
  %v243 = vld [vmem:[%s1 + $0x1f8] sm:$0xf]
  %v244 = vld [vmem:[%s1 + $0x1fc] sm:$0xf]
  %v345 = vunpack.c.l.b16 %v17
  %v346 = vunpack.c.h.b16 %v17
  %v347 = vunpack.c.l.b16 %v18
  %v348 = vunpack.c.h.b16 %v18
  %v349 = vunpack.c.l.b16 %v19
  %v350 = vunpack.c.h.b16 %v19
  %v351 = vunpack.c.l.b16 %v20
  %v352 = vunpack.c.h.b16 %v20
  %v353 = vunpack.c.l.b16 %v21
  %v354 = vunpack.c.h.b16 %v21
  %v355 = vunpack.c.l.b16 %v22
  %v356 = vunpack.c.h.b16 %v22
  %v357 = vunpack.c.l.b16 %v23
  %v358 = vunpack.c.h.b16 %v23
  %v359 = vunpack.c.l.b16 %v24
  %v360 = vunpack.c.h.b16 %v24
  %v361 = vunpack.c.l.b16 %v25
  %v362 = vunpack.c.h.b16 %v25
  %v363 = vunpack.c.l.b16 %v26
  %v364 = vunpack.c.h.b16 %v26
  %v365 = vunpack.c.l.b16 %v27
  %v366 = vunpack.c.h.b16 %v27
  %v367 = vunpack.c.l.b16 %v28
  %v368 = vunpack.c.h.b16 %v28
  %v369 = vunpack.c.l.b16 %v29
  %v370 = vunpack.c.h.b16 %v29
  %v371 = vunpack.c.l.b16 %v30
  %v372 = vunpack.c.h.b16 %v30
  %v373 = vunpack.c.l.b16 %v31
  %v374 = vunpack.c.h.b16 %v31
  %v375 = vunpack.c.l.b16 %v32
  %v376 = vunpack.c.h.b16 %v32
  %v377 = vunpack.c.l.b16 %v33
  %v378 = vunpack.c.h.b16 %v33
  %v379 = vunpack.c.l.b16 %v34
  %v380 = vunpack.c.h.b16 %v34
  %v381 = vunpack.c.l.b16 %v35
  %v382 = vunpack.c.h.b16 %v35
  %v383 = vunpack.c.l.b16 %v36
  %v384 = vunpack.c.h.b16 %v36
  %v385 = vunpack.c.l.b16 %v37
  %v386 = vunpack.c.h.b16 %v37
  %v387 = vunpack.c.l.b16 %v38
  %v388 = vunpack.c.h.b16 %v38
  %v389 = vunpack.c.l.b16 %v39
  %v390 = vunpack.c.h.b16 %v39
  %v391 = vunpack.c.l.b16 %v40
  %v392 = vunpack.c.h.b16 %v40
  %v393 = vunpack.c.l.b16 %v41
  %v394 = vunpack.c.h.b16 %v41
  %v395 = vunpack.c.l.b16 %v42
  %v396 = vunpack.c.h.b16 %v42
  %v397 = vunpack.c.l.b16 %v43
  %v398 = vunpack.c.h.b16 %v43
  %v399 = vunpack.c.l.b16 %v44
  %v400 = vunpack.c.h.b16 %v44
  %v401 = vunpack.c.l.b16 %v45
  %v402 = vunpack.c.h.b16 %v45
  %v403 = vunpack.c.l.b16 %v46
  %v404 = vunpack.c.h.b16 %v46
  %v405 = vunpack.c.l.b16 %v47
  %v406 = vunpack.c.h.b16 %v47
  %v407 = vunpack.c.l.b16 %v48
  %v408 = vunpack.c.h.b16 %v48
  %v409 = vunpack.c.l.b16 %v49
  %v410 = vunpack.c.h.b16 %v49
  %v411 = vunpack.c.l.b16 %v50
  %v412 = vunpack.c.h.b16 %v50
  %v413 = vunpack.c.l.b16 %v51
  %v414 = vunpack.c.h.b16 %v51
  %v415 = vunpack.c.l.b16 %v52
  %v416 = vunpack.c.h.b16 %v52
  %v417 = vunpack.c.l.b16 %v53
  %v418 = vunpack.c.h.b16 %v53
  %v419 = vunpack.c.l.b16 %v54
  %v420 = vunpack.c.h.b16 %v54
  %v421 = vunpack.c.l.b16 %v55
  %v422 = vunpack.c.h.b16 %v55
  %v423 = vunpack.c.l.b16 %v56
  %v424 = vunpack.c.h.b16 %v56
  %v425 = vunpack.c.l.b16 %v57
  %v426 = vunpack.c.h.b16 %v57
  %v427 = vunpack.c.l.b16 %v58
  %v428 = vunpack.c.h.b16 %v58
  %v429 = vunpack.c.l.b16 %v59
  %v430 = vunpack.c.h.b16 %v59
  %v431 = vunpack.c.l.b16 %v60
  %v432 = vunpack.c.h.b16 %v60
  %v433 = vunpack.c.l.b16 %v61
  %v434 = vunpack.c.h.b16 %v61
  %v435 = vunpack.c.l.b16 %v62
  %v436 = vunpack.c.h.b16 %v62
  %v437 = vunpack.c.l.b16 %v63
  %v438 = vunpack.c.h.b16 %v63
  %v439 = vunpack.c.l.b16 %v64
  %v440 = vunpack.c.h.b16 %v64
  %v441 = vunpack.c.l.b16 %v65
  %v442 = vunpack.c.h.b16 %v65
  %v443 = vunpack.c.l.b16 %v66
  %v444 = vunpack.c.h.b16 %v66
  %v445 = vunpack.c.l.b16 %v67
  %v446 = vunpack.c.h.b16 %v67
  %v447 = vunpack.c.l.b16 %v68
  %v448 = vunpack.c.h.b16 %v68
  %v449 = vunpack.c.l.b16 %v69
  %v450 = vunpack.c.h.b16 %v69
  %v451 = vunpack.c.l.b16 %v70
  %v452 = vunpack.c.h.b16 %v70
  %v453 = vunpack.c.l.b16 %v71
  %v454 = vunpack.c.h.b16 %v71
  %v455 = vunpack.c.l.b16 %v72
  %v456 = vunpack.c.h.b16 %v72
  %v457 = vunpack.c.l.b16 %v73
  %v458 = vunpack.c.h.b16 %v73
  %v459 = vunpack.c.l.b16 %v74
  %v460 = vunpack.c.h.b16 %v74
  %v461 = vunpack.c.l.b16 %v75
  %v462 = vunpack.c.h.b16 %v75
  %v463 = vunpack.c.l.b16 %v76
  %v464 = vunpack.c.h.b16 %v76
  %v465 = vunpack.c.l.b16 %v77
  %v466 = vunpack.c.h.b16 %v77
  %v467 = vunpack.c.l.b16 %v78
  %v468 = vunpack.c.h.b16 %v78
  %v469 = vunpack.c.l.b16 %v79
  %v470 = vunpack.c.h.b16 %v79
  %v471 = vunpack.c.l.b16 %v80
  %v472 = vunpack.c.h.b16 %v80
  %v473 = vunpack.c.l.b16 %v81
  %v474 = vunpack.c.h.b16 %v81
  %v475 = vunpack.c.l.b16 %v82
  %v476 = vunpack.c.h.b16 %v82
  %v477 = vunpack.c.l.b16 %v83
  %v478 = vunpack.c.h.b16 %v83
  %v479 = vunpack.c.l.b16 %v84
  %v480 = vunpack.c.h.b16 %v84
  %v481 = vunpack.c.l.b16 %v85
  %v482 = vunpack.c.h.b16 %v85
  %v483 = vunpack.c.l.b16 %v86
  %v484 = vunpack.c.h.b16 %v86
  %v485 = vunpack.c.l.b16 %v87
  %v486 = vunpack.c.h.b16 %v87
  %v487 = vunpack.c.l.b16 %v88
  %v488 = vunpack.c.h.b16 %v88
  %v489 = vunpack.c.l.b16 %v89
  %v490 = vunpack.c.h.b16 %v89
  %v491 = vunpack.c.l.b16 %v90
  %v492 = vunpack.c.h.b16 %v90
  %v493 = vunpack.c.l.b16 %v91
  %v494 = vunpack.c.h.b16 %v91
  %v495 = vunpack.c.l.b16 %v92
  %v496 = vunpack.c.h.b16 %v92
  %v497 = vunpack.c.l.b16 %v93
  %v498 = vunpack.c.h.b16 %v93
  %v499 = vunpack.c.l.b16 %v94
  %v500 = vunpack.c.h.b16 %v94
  %v501 = vunpack.c.l.b16 %v95
  %v502 = vunpack.c.h.b16 %v95
  %v503 = vunpack.c.l.b16 %v96
  %v504 = vunpack.c.h.b16 %v96
  %v505 = vunpack.c.l.b16 %v97
  %v506 = vunpack.c.h.b16 %v97
  %v507 = vunpack.c.l.b16 %v98
  %v508 = vunpack.c.h.b16 %v98
  %v509 = vunpack.c.l.b16 %v99
  %v510 = vunpack.c.h.b16 %v99
  %v511 = vunpack.c.l.b16 %v100
  %v512 = vunpack.c.h.b16 %v100
  %v513 = vunpack.c.l.b16 %v101
  %v514 = vunpack.c.h.b16 %v101
  %v515 = vunpack.c.l.b16 %v102
  %v516 = vunpack.c.h.b16 %v102
  %v517 = vunpack.c.l.b16 %v103
  %v518 = vunpack.c.h.b16 %v103
  %v519 = vunpack.c.l.b16 %v104
  %v520 = vunpack.c.h.b16 %v104
  %v521 = vunpack.c.l.b16 %v105
  %v522 = vunpack.c.h.b16 %v105
  %v523 = vunpack.c.l.b16 %v106
  %v524 = vunpack.c.h.b16 %v106
  %v525 = vunpack.c.l.b16 %v107
  %v526 = vunpack.c.h.b16 %v107
  %v527 = vunpack.c.l.b16 %v108
  %v528 = vunpack.c.h.b16 %v108
  %v529 = vunpack.c.l.b16 %v109
  %v530 = vunpack.c.h.b16 %v109
  %v531 = vunpack.c.l.b16 %v110
  %v532 = vunpack.c.h.b16 %v110
  %v533 = vunpack.c.l.b16 %v111
  %v534 = vunpack.c.h.b16 %v111
  %v535 = vunpack.c.l.b16 %v112
  %v536 = vunpack.c.h.b16 %v112
  %v537 = vunpack.c.l.b16 %v113
  %v538 = vunpack.c.h.b16 %v113
  %v539 = vunpack.c.l.b16 %v114
  %v540 = vunpack.c.h.b16 %v114
  %v541 = vunpack.c.l.b16 %v115
  %v542 = vunpack.c.h.b16 %v115
  %v543 = vunpack.c.l.b16 %v116
  %v544 = vunpack.c.h.b16 %v116
  %v545 = vpack.c.b16 %v353, %v345
  %v546 = vpack.c.b16 %v354, %v346
  %v547 = vpack.c.b16 %v355, %v347
  %v548 = vpack.c.b16 %v356, %v348
  %v549 = vpack.c.b16 %v357, %v349
  %v550 = vpack.c.b16 %v358, %v350
  %v551 = vpack.c.b16 %v359, %v351
  %v552 = vpack.c.b16 %v360, %v352
  %v553 = vpack.c.b16 %v369, %v361
  %v554 = vpack.c.b16 %v370, %v362
  %v555 = vpack.c.b16 %v371, %v363
  %v556 = vpack.c.b16 %v372, %v364
  %v557 = vpack.c.b16 %v373, %v365
  %v558 = vpack.c.b16 %v374, %v366
  %v559 = vpack.c.b16 %v375, %v367
  %v560 = vpack.c.b16 %v376, %v368
  %v561 = vpack.c.b16 %v385, %v377
  %v562 = vpack.c.b16 %v386, %v378
  %v563 = vpack.c.b16 %v387, %v379
  %v564 = vpack.c.b16 %v388, %v380
  %v565 = vpack.c.b16 %v389, %v381
  %v566 = vpack.c.b16 %v390, %v382
  %v567 = vpack.c.b16 %v391, %v383
  %v568 = vpack.c.b16 %v392, %v384
  %v569 = vpack.c.b16 %v401, %v393
  %v570 = vpack.c.b16 %v402, %v394
  %v571 = vpack.c.b16 %v403, %v395
  %v572 = vpack.c.b16 %v404, %v396
  %v573 = vpack.c.b16 %v405, %v397
  %v574 = vpack.c.b16 %v406, %v398
  %v575 = vpack.c.b16 %v407, %v399
  %v576 = vpack.c.b16 %v408, %v400
  %v577 = vpack.c.b16 %v417, %v409
  %v578 = vpack.c.b16 %v418, %v410
  %v579 = vpack.c.b16 %v419, %v411
  %v580 = vpack.c.b16 %v420, %v412
  %v581 = vpack.c.b16 %v421, %v413
  %v582 = vpack.c.b16 %v422, %v414
  %v583 = vpack.c.b16 %v423, %v415
  %v584 = vpack.c.b16 %v424, %v416
  %v585 = vpack.c.b16 %v433, %v425
  %v586 = vpack.c.b16 %v434, %v426
  %v587 = vpack.c.b16 %v435, %v427
  %v588 = vpack.c.b16 %v436, %v428
  %v589 = vpack.c.b16 %v437, %v429
  %v590 = vpack.c.b16 %v438, %v430
  %v591 = vpack.c.b16 %v439, %v431
  %v592 = vpack.c.b16 %v440, %v432
  %v593 = vpack.c.b16 %v449, %v441
  %v594 = vpack.c.b16 %v450, %v442
  %v595 = vpack.c.b16 %v451, %v443
  %v596 = vpack.c.b16 %v452, %v444
  %v597 = vpack.c.b16 %v453, %v445
  %v598 = vpack.c.b16 %v454, %v446
  %v599 = vpack.c.b16 %v455, %v447
  %v600 = vpack.c.b16 %v456, %v448
  %v601 = vpack.c.b16 %v465, %v457
  %v602 = vpack.c.b16 %v466, %v458
  %v603 = vpack.c.b16 %v467, %v459
  %v604 = vpack.c.b16 %v468, %v460
  %v605 = vpack.c.b16 %v469, %v461
  %v606 = vpack.c.b16 %v470, %v462
  %v607 = vpack.c.b16 %v471, %v463
  %v608 = vpack.c.b16 %v472, %v464
  %v609 = vpack.c.b16 %v481, %v473
  %v610 = vpack.c.b16 %v482, %v474
  %v611 = vpack.c.b16 %v483, %v475
  %v612 = vpack.c.b16 %v484, %v476
  %v613 = vpack.c.b16 %v485, %v477
  %v614 = vpack.c.b16 %v486, %v478
  %v615 = vpack.c.b16 %v487, %v479
  %v616 = vpack.c.b16 %v488, %v480
  %v617 = vpack.c.b16 %v497, %v489
  %v618 = vpack.c.b16 %v498, %v490
  %v619 = vpack.c.b16 %v499, %v491
  %v620 = vpack.c.b16 %v500, %v492
  %v621 = vpack.c.b16 %v501, %v493
  %v622 = vpack.c.b16 %v502, %v494
  %v623 = vpack.c.b16 %v503, %v495
  %v624 = vpack.c.b16 %v504, %v496
  %v625 = vpack.c.b16 %v513, %v505
  %v626 = vpack.c.b16 %v514, %v506
  %v627 = vpack.c.b16 %v515, %v507
  %v628 = vpack.c.b16 %v516, %v508
  %v629 = vpack.c.b16 %v517, %v509
  %v630 = vpack.c.b16 %v518, %v510
  %v631 = vpack.c.b16 %v519, %v511
  %v632 = vpack.c.b16 %v520, %v512
  %v633 = vpack.c.b16 %v529, %v521
  %v634 = vpack.c.b16 %v530, %v522
  %v635 = vpack.c.b16 %v531, %v523
  %v636 = vpack.c.b16 %v532, %v524
  %v637 = vpack.c.b16 %v533, %v525
  %v638 = vpack.c.b16 %v534, %v526
  %v639 = vpack.c.b16 %v535, %v527
  %v640 = vpack.c.b16 %v536, %v528
  %v641 = vpack.c.b16 %v537, %v537
  %v642 = vpack.c.b16 %v538, %v538
  %v643 = vpack.c.b16 %v539, %v539
  %v644 = vpack.c.b16 %v540, %v540
  %v645 = vpack.c.b16 %v541, %v541
  %v646 = vpack.c.b16 %v542, %v542
  %v647 = vpack.c.b16 %v543, %v543
  %v648 = vpack.c.b16 %v544, %v544
  %v881 = vunpack.c.l.b16 %v117
  %v882 = vunpack.c.l.b16 %v118
  %v883 = vunpack.c.l.b16 %v119
  %v884 = vunpack.c.l.b16 %v120
  %v885 = vunpack.c.l.b16 %v121
  %v886 = vunpack.c.l.b16 %v122
  %v887 = vunpack.c.l.b16 %v123
  %v888 = vunpack.c.l.b16 %v124
  %v889 = vunpack.c.l.b16 %v125
  %v890 = vunpack.c.l.b16 %v126
  %v891 = vunpack.c.l.b16 %v127
  %v892 = vunpack.c.l.b16 %v128
  %v893 = vunpack.c.l.b16 %v129
  %v894 = vunpack.c.l.b16 %v130
  %v895 = vunpack.c.l.b16 %v131
  %v896 = vunpack.c.l.b16 %v132
  %v897 = vunpack.c.l.b16 %v133
  %v898 = vunpack.c.l.b16 %v134
  %v899 = vunpack.c.l.b16 %v135
  %v900 = vunpack.c.l.b16 %v136
  %v901 = vunpack.c.l.b16 %v137
  %v902 = vunpack.c.l.b16 %v138
  %v903 = vunpack.c.l.b16 %v139
  %v904 = vunpack.c.l.b16 %v140
  %v905 = vunpack.c.l.b16 %v141
  %v906 = vunpack.c.l.b16 %v142
  %v907 = vunpack.c.l.b16 %v143
  %v908 = vunpack.c.l.b16 %v144
  %v909 = vunpack.c.l.b16 %v145
  %v910 = vunpack.c.l.b16 %v146
  %v911 = vunpack.c.l.b16 %v147
  %v912 = vunpack.c.l.b16 %v148
  %v913 = vunpack.c.l.b16 %v149
  %v914 = vunpack.c.l.b16 %v150
  %v915 = vunpack.c.l.b16 %v151
  %v916 = vunpack.c.l.b16 %v152
  %v917 = vunpack.c.l.b16 %v153
  %v918 = vunpack.c.l.b16 %v154
  %v919 = vunpack.c.l.b16 %v155
  %v920 = vunpack.c.l.b16 %v156
  %v921 = vunpack.c.l.b16 %v157
  %v922 = vunpack.c.l.b16 %v158
  %v923 = vunpack.c.l.b16 %v159
  %v924 = vunpack.c.l.b16 %v160
  %v925 = vunpack.c.l.b16 %v161
  %v926 = vunpack.c.l.b16 %v162
  %v927 = vunpack.c.l.b16 %v163
  %v928 = vunpack.c.l.b16 %v164
  %v929 = vunpack.c.l.b16 %v165
  %v930 = vunpack.c.l.b16 %v166
  %v931 = vunpack.c.l.b16 %v167
  %v932 = vunpack.c.l.b16 %v168
  %v933 = vunpack.c.l.b16 %v169
  %v934 = vunpack.c.l.b16 %v170
  %v935 = vunpack.c.l.b16 %v171
  %v936 = vunpack.c.l.b16 %v172
  %v937 = vunpack.c.l.b16 %v173
  %v938 = vunpack.c.l.b16 %v174
  %v939 = vunpack.c.l.b16 %v175
  %v940 = vunpack.c.l.b16 %v176
  %v941 = vunpack.c.l.b16 %v177
  %v942 = vunpack.c.l.b16 %v178
  %v943 = vunpack.c.l.b16 %v179
  %v944 = vunpack.c.l.b16 %v180
  %v945 = vunpack.c.l.b16 %v181
  %v946 = vunpack.c.l.b16 %v182
  %v947 = vunpack.c.l.b16 %v183
  %v948 = vunpack.c.l.b16 %v184
  %v949 = vunpack.c.l.b16 %v185
  %v950 = vunpack.c.l.b16 %v186
  %v951 = vunpack.c.l.b16 %v187
  %v952 = vunpack.c.l.b16 %v188
  %v953 = vunpack.c.l.b16 %v189
  %v954 = vunpack.c.l.b16 %v190
  %v955 = vunpack.c.l.b16 %v191
  %v956 = vunpack.c.l.b16 %v192
  %v957 = vunpack.c.l.b16 %v193
  %v958 = vunpack.c.l.b16 %v194
  %v959 = vunpack.c.l.b16 %v195
  %v960 = vunpack.c.l.b16 %v196
  %v961 = vunpack.c.l.b16 %v197
  %v962 = vunpack.c.l.b16 %v198
  %v963 = vunpack.c.l.b16 %v199
  %v964 = vunpack.c.l.b16 %v200
  %v965 = vunpack.c.l.b16 %v201
  %v966 = vunpack.c.l.b16 %v202
  %v967 = vunpack.c.l.b16 %v203
  %v968 = vunpack.c.l.b16 %v204
  %v969 = vunpack.c.l.b16 %v205
  %v970 = vunpack.c.l.b16 %v206
  %v971 = vunpack.c.l.b16 %v207
  %v972 = vunpack.c.l.b16 %v208
  %v973 = vunpack.c.l.b16 %v209
  %v974 = vunpack.c.l.b16 %v210
  %v975 = vunpack.c.l.b16 %v211
  %v976 = vunpack.c.l.b16 %v212
  %v977 = vunpack.c.l.b16 %v213
  %v978 = vunpack.c.l.b16 %v214
  %v979 = vunpack.c.l.b16 %v215
  %v980 = vunpack.c.l.b16 %v216
  %v981 = vunpack.c.l.b16 %v217
  %v982 = vunpack.c.l.b16 %v218
  %v983 = vunpack.c.l.b16 %v219
  %v984 = vunpack.c.l.b16 %v220
  %v985 = vunpack.c.l.b16 %v221
  %v986 = vunpack.c.l.b16 %v222
  %v987 = vunpack.c.l.b16 %v223
  %v988 = vunpack.c.l.b16 %v224
  %v989 = vunpack.c.l.b16 %v225
  %v990 = vunpack.c.l.b16 %v226
  %v991 = vunpack.c.l.b16 %v227
  %v992 = vunpack.c.l.b16 %v228
  %v993 = vunpack.c.l.b16 %v229
  %v994 = vunpack.c.l.b16 %v230
  %v995 = vunpack.c.l.b16 %v231
  %v996 = vunpack.c.l.b16 %v232
  %v997 = vunpack.c.l.b16 %v233
  %v998 = vunpack.c.l.b16 %v234
  %v999 = vunpack.c.l.b16 %v235
  %v1000 = vunpack.c.l.b16 %v236
  %v1001 = vunpack.c.l.b16 %v237
  %v1002 = vunpack.c.l.b16 %v238
  %v1003 = vunpack.c.l.b16 %v239
  %v1004 = vunpack.c.l.b16 %v240
  %v1005 = vunpack.c.l.b16 %v241
  %v1006 = vunpack.c.l.b16 %v242
  %v1007 = vunpack.c.l.b16 %v243
  %v1008 = vunpack.c.l.b16 %v244
  %v1009 = vpack.c.b16 %v882, %v881
  %v1010 = vpack.c.b16 %v884, %v883
  %v1011 = vpack.c.b16 %v886, %v885
  %v1012 = vpack.c.b16 %v888, %v887
  %v1013 = vpack.c.b16 %v890, %v889
  %v1014 = vpack.c.b16 %v892, %v891
  %v1015 = vpack.c.b16 %v894, %v893
  %v1016 = vpack.c.b16 %v896, %v895
  %v1017 = vpack.c.b16 %v898, %v897
  %v1018 = vpack.c.b16 %v900, %v899
  %v1019 = vpack.c.b16 %v902, %v901
  %v1020 = vpack.c.b16 %v904, %v903
  %v1021 = vpack.c.b16 %v906, %v905
  %v1022 = vpack.c.b16 %v908, %v907
  %v1023 = vpack.c.b16 %v910, %v909
  %v1024 = vpack.c.b16 %v912, %v911
  %v1025 = vpack.c.b16 %v914, %v913
  %v1026 = vpack.c.b16 %v916, %v915
  %v1027 = vpack.c.b16 %v918, %v917
  %v1028 = vpack.c.b16 %v920, %v919
  %v1029 = vpack.c.b16 %v922, %v921
  %v1030 = vpack.c.b16 %v924, %v923
  %v1031 = vpack.c.b16 %v926, %v925
  %v1032 = vpack.c.b16 %v928, %v927
  %v1033 = vpack.c.b16 %v930, %v929
  %v1034 = vpack.c.b16 %v932, %v931
  %v1035 = vpack.c.b16 %v934, %v933
  %v1036 = vpack.c.b16 %v936, %v935
  %v1037 = vpack.c.b16 %v938, %v937
  %v1038 = vpack.c.b16 %v940, %v939
  %v1039 = vpack.c.b16 %v942, %v941
  %v1040 = vpack.c.b16 %v944, %v943
  %v1041 = vpack.c.b16 %v946, %v945
  %v1042 = vpack.c.b16 %v948, %v947
  %v1043 = vpack.c.b16 %v950, %v949
  %v1044 = vpack.c.b16 %v952, %v951
  %v1045 = vpack.c.b16 %v954, %v953
  %v1046 = vpack.c.b16 %v956, %v955
  %v1047 = vpack.c.b16 %v958, %v957
  %v1048 = vpack.c.b16 %v960, %v959
  %v1049 = vpack.c.b16 %v962, %v961
  %v1050 = vpack.c.b16 %v964, %v963
  %v1051 = vpack.c.b16 %v966, %v965
  %v1052 = vpack.c.b16 %v968, %v967
  %v1053 = vpack.c.b16 %v970, %v969
  %v1054 = vpack.c.b16 %v972, %v971
  %v1055 = vpack.c.b16 %v974, %v973
  %v1056 = vpack.c.b16 %v976, %v975
  %v1057 = vpack.c.b16 %v978, %v977
  %v1058 = vpack.c.b16 %v980, %v979
  %v1059 = vpack.c.b16 %v982, %v981
  %v1060 = vpack.c.b16 %v984, %v983
  %v1061 = vpack.c.b16 %v986, %v985
  %v1062 = vpack.c.b16 %v988, %v987
  %v1063 = vpack.c.b16 %v990, %v989
  %v1064 = vpack.c.b16 %v992, %v991
  %v1065 = vpack.c.b16 %v994, %v993
  %v1066 = vpack.c.b16 %v996, %v995
  %v1067 = vpack.c.b16 %v998, %v997
  %v1068 = vpack.c.b16 %v1000, %v999
  %v1069 = vpack.c.b16 %v1002, %v1001
  %v1070 = vpack.c.b16 %v1004, %v1003
  %v1071 = vpack.c.b16 %v1006, %v1005
  %v1072 = vpack.c.b16 %v1008, %v1007
  %1137 = vmatpush.bf16.msra.mxu0 %v1016
  %1138 = vmatpush.bf16.msra.mxu0 %v1015
  %1139 = vmatpush.bf16.msra.mxu0 %v1014
  %1140 = vmatpush.bf16.msra.mxu0 %v1013
  %1141 = vmatpush.bf16.msra.mxu0 %v1012
  %1142 = vmatpush.bf16.msra.mxu0 %v1011
  %1143 = vmatpush.bf16.msra.mxu0 %v1010
  %1144 = vmatpush.bf16.msra.mxu0 %v1009
  %1145 = vmatmul.bf16.gmra.mxu0 %v545
  %v1146 = vpop.f32.mrf.mxu0
  %v1147 = vadd.f32 0.0, %v1146
  %v1148 = vpop.f32.mrf.mxu0
  %v1149 = vadd.f32 0.0, %v1148
  %1150 = vmatmul.bf16.gmra.mxu0 %v553
  %v1151 = vpop.f32.mrf.mxu0
  %v1152 = vadd.f32 0.0, %v1151
  %v1153 = vpop.f32.mrf.mxu0
  %v1154 = vadd.f32 0.0, %v1153
  %1155 = vmatmul.bf16.gmra.mxu0 %v561
  %v1156 = vpop.f32.mrf.mxu0
  %v1157 = vadd.f32 0.0, %v1156
  %v1158 = vpop.f32.mrf.mxu0
  %v1159 = vadd.f32 0.0, %v1158
  %1160 = vmatmul.bf16.gmra.mxu0 %v569
  %v1161 = vpop.f32.mrf.mxu0
  %v1162 = vadd.f32 0.0, %v1161
  %v1163 = vpop.f32.mrf.mxu0
  %v1164 = vadd.f32 0.0, %v1163
  %1165 = vmatmul.bf16.gmra.mxu0 %v577
  %v1166 = vpop.f32.mrf.mxu0
  %v1167 = vadd.f32 0.0, %v1166
  %v1168 = vpop.f32.mrf.mxu0
  %v1169 = vadd.f32 0.0, %v1168
  %1170 = vmatmul.bf16.gmra.mxu0 %v585
  %v1171 = vpop.f32.mrf.mxu0
  %v1172 = vadd.f32 0.0, %v1171
  %v1173 = vpop.f32.mrf.mxu0
  %v1174 = vadd.f32 0.0, %v1173
  %1175 = vmatmul.bf16.gmra.mxu0 %v593
  %v1176 = vpop.f32.mrf.mxu0
  %v1177 = vadd.f32 0.0, %v1176
  %v1178 = vpop.f32.mrf.mxu0
  %v1179 = vadd.f32 0.0, %v1178
  %1180 = vmatmul.bf16.gmra.mxu0 %v601
  %v1181 = vpop.f32.mrf.mxu0
  %v1182 = vadd.f32 0.0, %v1181
  %v1183 = vpop.f32.mrf.mxu0
  %v1184 = vadd.f32 0.0, %v1183
  %1185 = vmatmul.bf16.gmra.mxu0 %v609
  %v1186 = vpop.f32.mrf.mxu0
  %v1187 = vadd.f32 0.0, %v1186
  %v1188 = vpop.f32.mrf.mxu0
  %v1189 = vadd.f32 0.0, %v1188
  %1190 = vmatmul.bf16.gmra.mxu0 %v617
  %v1191 = vpop.f32.mrf.mxu0
  %v1192 = vadd.f32 0.0, %v1191
  %v1193 = vpop.f32.mrf.mxu0
  %v1194 = vadd.f32 0.0, %v1193
  %1195 = vmatmul.bf16.gmra.mxu0 %v625
  %v1196 = vpop.f32.mrf.mxu0
  %v1197 = vadd.f32 0.0, %v1196
  %v1198 = vpop.f32.mrf.mxu0
  %v1199 = vadd.f32 0.0, %v1198
  %1200 = vmatmul.bf16.gmra.mxu0 %v633
  %v1201 = vpop.f32.mrf.mxu0
  %v1202 = vadd.f32 0.0, %v1201
  %v1203 = vpop.f32.mrf.mxu0
  %v1204 = vadd.f32 0.0, %v1203
  %1205 = vmatmul.bf16.gmra.mxu0 %v641
  %v1206 = vpop.f32.mrf.mxu0
  %v1207 = vadd.f32 0.0, %v1206
  %v1208 = vpop.f32.mrf.mxu0
  %1209 = vdwg.mxu0
  %1210 = vmatpush.bf16.msra.mxu0 %v1024
  %1211 = vmatpush.bf16.msra.mxu0 %v1023
  %1212 = vmatpush.bf16.msra.mxu0 %v1022
  %1213 = vmatpush.bf16.msra.mxu0 %v1021
  %1214 = vmatpush.bf16.msra.mxu0 %v1020
  %1215 = vmatpush.bf16.msra.mxu0 %v1019
  %1216 = vmatpush.bf16.msra.mxu0 %v1018
  %1217 = vmatpush.bf16.msra.mxu0 %v1017
  %1218 = vmatmul.bf16.gmra.mxu0 %v546
  %v1219 = vpop.f32.mrf.mxu0
  %v1220 = vadd.f32 %v1147, %v1219
  %v1221 = vpop.f32.mrf.mxu0
  %v1222 = vadd.f32 %v1149, %v1221
  %1223 = vmatmul.bf16.gmra.mxu0 %v554
  %v1224 = vpop.f32.mrf.mxu0
  %v1225 = vadd.f32 %v1152, %v1224
  %v1226 = vpop.f32.mrf.mxu0
  %v1227 = vadd.f32 %v1154, %v1226
  %1228 = vmatmul.bf16.gmra.mxu0 %v562
  %v1229 = vpop.f32.mrf.mxu0
  %v1230 = vadd.f32 %v1157, %v1229
  %v1231 = vpop.f32.mrf.mxu0
  %v1232 = vadd.f32 %v1159, %v1231
  %1233 = vmatmul.bf16.gmra.mxu0 %v570
  %v1234 = vpop.f32.mrf.mxu0
  %v1235 = vadd.f32 %v1162, %v1234
  %v1236 = vpop.f32.mrf.mxu0
  %v1237 = vadd.f32 %v1164, %v1236
  %1238 = vmatmul.bf16.gmra.mxu0 %v578
  %v1239 = vpop.f32.mrf.mxu0
  %v1240 = vadd.f32 %v1167, %v1239
  %v1241 = vpop.f32.mrf.mxu0
  %v1242 = vadd.f32 %v1169, %v1241
  %1243 = vmatmul.bf16.gmra.mxu0 %v586
  %v1244 = vpop.f32.mrf.mxu0
  %v1245 = vadd.f32 %v1172, %v1244
  %v1246 = vpop.f32.mrf.mxu0
  %v1247 = vadd.f32 %v1174, %v1246
  %1248 = vmatmul.bf16.gmra.mxu0 %v594
  %v1249 = vpop.f32.mrf.mxu0
  %v1250 = vadd.f32 %v1177, %v1249
  %v1251 = vpop.f32.mrf.mxu0
  %v1252 = vadd.f32 %v1179, %v1251
  %1253 = vmatmul.bf16.gmra.mxu0 %v602
  %v1254 = vpop.f32.mrf.mxu0
  %v1255 = vadd.f32 %v1182, %v1254
  %v1256 = vpop.f32.mrf.mxu0
  %v1257 = vadd.f32 %v1184, %v1256
  %1258 = vmatmul.bf16.gmra.mxu0 %v610
  %v1259 = vpop.f32.mrf.mxu0
  %v1260 = vadd.f32 %v1187, %v1259
  %v1261 = vpop.f32.mrf.mxu0
  %v1262 = vadd.f32 %v1189, %v1261
  %1263 = vmatmul.bf16.gmra.mxu0 %v618
  %v1264 = vpop.f32.mrf.mxu0
  %v1265 = vadd.f32 %v1192, %v1264
  %v1266 = vpop.f32.mrf.mxu0
  %v1267 = vadd.f32 %v1194, %v1266
  %1268 = vmatmul.bf16.gmra.mxu0 %v626
  %v1269 = vpop.f32.mrf.mxu0
  %v1270 = vadd.f32 %v1197, %v1269
  %v1271 = vpop.f32.mrf.mxu0
  %v1272 = vadd.f32 %v1199, %v1271
  %1273 = vmatmul.bf16.gmra.mxu0 %v634
  %v1274 = vpop.f32.mrf.mxu0
  %v1275 = vadd.f32 %v1202, %v1274
  %v1276 = vpop.f32.mrf.mxu0
  %v1277 = vadd.f32 %v1204, %v1276
  %1278 = vmatmul.bf16.gmra.mxu0 %v642
  %v1279 = vpop.f32.mrf.mxu0
  %v1280 = vadd.f32 %v1207, %v1279
  %v1281 = vpop.f32.mrf.mxu0
  %1282 = vdwg.mxu0
  %1283 = vmatpush.bf16.msra.mxu0 %v1032
  %1284 = vmatpush.bf16.msra.mxu0 %v1031
  %1285 = vmatpush.bf16.msra.mxu0 %v1030
  %1286 = vmatpush.bf16.msra.mxu0 %v1029
  %1287 = vmatpush.bf16.msra.mxu0 %v1028
  %1288 = vmatpush.bf16.msra.mxu0 %v1027
  %1289 = vmatpush.bf16.msra.mxu0 %v1026
  %1290 = vmatpush.bf16.msra.mxu0 %v1025
  %1291 = vmatmul.bf16.gmra.mxu0 %v547
  %v1292 = vpop.f32.mrf.mxu0
  %v1293 = vadd.f32 %v1220, %v1292
  %v1294 = vpop.f32.mrf.mxu0
  %v1295 = vadd.f32 %v1222, %v1294
  %1296 = vmatmul.bf16.gmra.mxu0 %v555
  %v1297 = vpop.f32.mrf.mxu0
  %v1298 = vadd.f32 %v1225, %v1297
  %v1299 = vpop.f32.mrf.mxu0
  %v1300 = vadd.f32 %v1227, %v1299
  %1301 = vmatmul.bf16.gmra.mxu0 %v563
  %v1302 = vpop.f32.mrf.mxu0
  %v1303 = vadd.f32 %v1230, %v1302
  %v1304 = vpop.f32.mrf.mxu0
  %v1305 = vadd.f32 %v1232, %v1304
  %1306 = vmatmul.bf16.gmra.mxu0 %v571
  %v1307 = vpop.f32.mrf.mxu0
  %v1308 = vadd.f32 %v1235, %v1307
  %v1309 = vpop.f32.mrf.mxu0
  %v1310 = vadd.f32 %v1237, %v1309
  %1311 = vmatmul.bf16.gmra.mxu0 %v579
  %v1312 = vpop.f32.mrf.mxu0
  %v1313 = vadd.f32 %v1240, %v1312
  %v1314 = vpop.f32.mrf.mxu0
  %v1315 = vadd.f32 %v1242, %v1314
  %1316 = vmatmul.bf16.gmra.mxu0 %v587
  %v1317 = vpop.f32.mrf.mxu0
  %v1318 = vadd.f32 %v1245, %v1317
  %v1319 = vpop.f32.mrf.mxu0
  %v1320 = vadd.f32 %v1247, %v1319
  %1321 = vmatmul.bf16.gmra.mxu0 %v595
  %v1322 = vpop.f32.mrf.mxu0
  %v1323 = vadd.f32 %v1250, %v1322
  %v1324 = vpop.f32.mrf.mxu0
  %v1325 = vadd.f32 %v1252, %v1324
  %1326 = vmatmul.bf16.gmra.mxu0 %v603
  %v1327 = vpop.f32.mrf.mxu0
  %v1328 = vadd.f32 %v1255, %v1327
  %v1329 = vpop.f32.mrf.mxu0
  %v1330 = vadd.f32 %v1257, %v1329
  %1331 = vmatmul.bf16.gmra.mxu0 %v611
  %v1332 = vpop.f32.mrf.mxu0
  %v1333 = vadd.f32 %v1260, %v1332
  %v1334 = vpop.f32.mrf.mxu0
  %v1335 = vadd.f32 %v1262, %v1334
  %1336 = vmatmul.bf16.gmra.mxu0 %v619
  %v1337 = vpop.f32.mrf.mxu0
  %v1338 = vadd.f32 %v1265, %v1337
  %v1339 = vpop.f32.mrf.mxu0
  %v1340 = vadd.f32 %v1267, %v1339
  %1341 = vmatmul.bf16.gmra.mxu0 %v627
  %v1342 = vpop.f32.mrf.mxu0
  %v1343 = vadd.f32 %v1270, %v1342
  %v1344 = vpop.f32.mrf.mxu0
  %v1345 = vadd.f32 %v1272, %v1344
  %1346 = vmatmul.bf16.gmra.mxu0 %v635
  %v1347 = vpop.f32.mrf.mxu0
  %v1348 = vadd.f32 %v1275, %v1347
  %v1349 = vpop.f32.mrf.mxu0
  %v1350 = vadd.f32 %v1277, %v1349
  %1351 = vmatmul.bf16.gmra.mxu0 %v643
  %v1352 = vpop.f32.mrf.mxu0
  %v1353 = vadd.f32 %v1280, %v1352
  %v1354 = vpop.f32.mrf.mxu0
  %1355 = vdwg.mxu0
  %1356 = vmatpush.bf16.msra.mxu0 %v1040
  %1357 = vmatpush.bf16.msra.mxu0 %v1039
  %1358 = vmatpush.bf16.msra.mxu0 %v1038
  %1359 = vmatpush.bf16.msra.mxu0 %v1037
  %1360 = vmatpush.bf16.msra.mxu0 %v1036
  %1361 = vmatpush.bf16.msra.mxu0 %v1035
  %1362 = vmatpush.bf16.msra.mxu0 %v1034
  %1363 = vmatpush.bf16.msra.mxu0 %v1033
  %1364 = vmatmul.bf16.gmra.mxu0 %v548
  %v1365 = vpop.f32.mrf.mxu0
  %v1366 = vadd.f32 %v1293, %v1365
  %v1367 = vpop.f32.mrf.mxu0
  %v1368 = vadd.f32 %v1295, %v1367
  %1369 = vmatmul.bf16.gmra.mxu0 %v556
  %v1370 = vpop.f32.mrf.mxu0
  %v1371 = vadd.f32 %v1298, %v1370
  %v1372 = vpop.f32.mrf.mxu0
  %v1373 = vadd.f32 %v1300, %v1372
  %1374 = vmatmul.bf16.gmra.mxu0 %v564
  %v1375 = vpop.f32.mrf.mxu0
  %v1376 = vadd.f32 %v1303, %v1375
  %v1377 = vpop.f32.mrf.mxu0
  %v1378 = vadd.f32 %v1305, %v1377
  %1379 = vmatmul.bf16.gmra.mxu0 %v572
  %v1380 = vpop.f32.mrf.mxu0
  %v1381 = vadd.f32 %v1308, %v1380
  %v1382 = vpop.f32.mrf.mxu0
  %v1383 = vadd.f32 %v1310, %v1382
  %1384 = vmatmul.bf16.gmra.mxu0 %v580
  %v1385 = vpop.f32.mrf.mxu0
  %v1386 = vadd.f32 %v1313, %v1385
  %v1387 = vpop.f32.mrf.mxu0
  %v1388 = vadd.f32 %v1315, %v1387
  %1389 = vmatmul.bf16.gmra.mxu0 %v588
  %v1390 = vpop.f32.mrf.mxu0
  %v1391 = vadd.f32 %v1318, %v1390
  %v1392 = vpop.f32.mrf.mxu0
  %v1393 = vadd.f32 %v1320, %v1392
  %1394 = vmatmul.bf16.gmra.mxu0 %v596
  %v1395 = vpop.f32.mrf.mxu0
  %v1396 = vadd.f32 %v1323, %v1395
  %v1397 = vpop.f32.mrf.mxu0
  %v1398 = vadd.f32 %v1325, %v1397
  %1399 = vmatmul.bf16.gmra.mxu0 %v604
  %v1400 = vpop.f32.mrf.mxu0
  %v1401 = vadd.f32 %v1328, %v1400
  %v1402 = vpop.f32.mrf.mxu0
  %v1403 = vadd.f32 %v1330, %v1402
  %1404 = vmatmul.bf16.gmra.mxu0 %v612
  %v1405 = vpop.f32.mrf.mxu0
  %v1406 = vadd.f32 %v1333, %v1405
  %v1407 = vpop.f32.mrf.mxu0
  %v1408 = vadd.f32 %v1335, %v1407
  %1409 = vmatmul.bf16.gmra.mxu0 %v620
  %v1410 = vpop.f32.mrf.mxu0
  %v1411 = vadd.f32 %v1338, %v1410
  %v1412 = vpop.f32.mrf.mxu0
  %v1413 = vadd.f32 %v1340, %v1412
  %1414 = vmatmul.bf16.gmra.mxu0 %v628
  %v1415 = vpop.f32.mrf.mxu0
  %v1416 = vadd.f32 %v1343, %v1415
  %v1417 = vpop.f32.mrf.mxu0
  %v1418 = vadd.f32 %v1345, %v1417
  %1419 = vmatmul.bf16.gmra.mxu0 %v636
  %v1420 = vpop.f32.mrf.mxu0
  %v1421 = vadd.f32 %v1348, %v1420
  %v1422 = vpop.f32.mrf.mxu0
  %v1423 = vadd.f32 %v1350, %v1422
  %1424 = vmatmul.bf16.gmra.mxu0 %v644
  %v1425 = vpop.f32.mrf.mxu0
  %v1426 = vadd.f32 %v1353, %v1425
  %v1427 = vpop.f32.mrf.mxu0
  %1428 = vdwg.mxu0
  %1429 = vmatpush.bf16.msra.mxu0 %v1048
  %1430 = vmatpush.bf16.msra.mxu0 %v1047
  %1431 = vmatpush.bf16.msra.mxu0 %v1046
  %1432 = vmatpush.bf16.msra.mxu0 %v1045
  %1433 = vmatpush.bf16.msra.mxu0 %v1044
  %1434 = vmatpush.bf16.msra.mxu0 %v1043
  %1435 = vmatpush.bf16.msra.mxu0 %v1042
  %1436 = vmatpush.bf16.msra.mxu0 %v1041
  %1437 = vmatmul.bf16.gmra.mxu0 %v549
  %v1438 = vpop.f32.mrf.mxu0
  %v1439 = vadd.f32 %v1366, %v1438
  %v1440 = vpop.f32.mrf.mxu0
  %v1441 = vadd.f32 %v1368, %v1440
  %1442 = vmatmul.bf16.gmra.mxu0 %v557
  %v1443 = vpop.f32.mrf.mxu0
  %v1444 = vadd.f32 %v1371, %v1443
  %v1445 = vpop.f32.mrf.mxu0
  %v1446 = vadd.f32 %v1373, %v1445
  %1447 = vmatmul.bf16.gmra.mxu0 %v565
  %v1448 = vpop.f32.mrf.mxu0
  %v1449 = vadd.f32 %v1376, %v1448
  %v1450 = vpop.f32.mrf.mxu0
  %v1451 = vadd.f32 %v1378, %v1450
  %1452 = vmatmul.bf16.gmra.mxu0 %v573
  %v1453 = vpop.f32.mrf.mxu0
  %v1454 = vadd.f32 %v1381, %v1453
  %v1455 = vpop.f32.mrf.mxu0
  %v1456 = vadd.f32 %v1383, %v1455
  %1457 = vmatmul.bf16.gmra.mxu0 %v581
  %v1458 = vpop.f32.mrf.mxu0
  %v1459 = vadd.f32 %v1386, %v1458
  %v1460 = vpop.f32.mrf.mxu0
  %v1461 = vadd.f32 %v1388, %v1460
  %1462 = vmatmul.bf16.gmra.mxu0 %v589
  %v1463 = vpop.f32.mrf.mxu0
  %v1464 = vadd.f32 %v1391, %v1463
  %v1465 = vpop.f32.mrf.mxu0
  %v1466 = vadd.f32 %v1393, %v1465
  %1467 = vmatmul.bf16.gmra.mxu0 %v597
  %v1468 = vpop.f32.mrf.mxu0
  %v1469 = vadd.f32 %v1396, %v1468
  %v1470 = vpop.f32.mrf.mxu0
  %v1471 = vadd.f32 %v1398, %v1470
  %1472 = vmatmul.bf16.gmra.mxu0 %v605
  %v1473 = vpop.f32.mrf.mxu0
  %v1474 = vadd.f32 %v1401, %v1473
  %v1475 = vpop.f32.mrf.mxu0
  %v1476 = vadd.f32 %v1403, %v1475
  %1477 = vmatmul.bf16.gmra.mxu0 %v613
  %v1478 = vpop.f32.mrf.mxu0
  %v1479 = vadd.f32 %v1406, %v1478
  %v1480 = vpop.f32.mrf.mxu0
  %v1481 = vadd.f32 %v1408, %v1480
  %1482 = vmatmul.bf16.gmra.mxu0 %v621
  %v1483 = vpop.f32.mrf.mxu0
  %v1484 = vadd.f32 %v1411, %v1483
  %v1485 = vpop.f32.mrf.mxu0
  %v1486 = vadd.f32 %v1413, %v1485
  %1487 = vmatmul.bf16.gmra.mxu0 %v629
  %v1488 = vpop.f32.mrf.mxu0
  %v1489 = vadd.f32 %v1416, %v1488
  %v1490 = vpop.f32.mrf.mxu0
  %v1491 = vadd.f32 %v1418, %v1490
  %1492 = vmatmul.bf16.gmra.mxu0 %v637
  %v1493 = vpop.f32.mrf.mxu0
  %v1494 = vadd.f32 %v1421, %v1493
  %v1495 = vpop.f32.mrf.mxu0
  %v1496 = vadd.f32 %v1423, %v1495
  %1497 = vmatmul.bf16.gmra.mxu0 %v645
  %v1498 = vpop.f32.mrf.mxu0
  %v1499 = vadd.f32 %v1426, %v1498
  %v1500 = vpop.f32.mrf.mxu0
  %1501 = vdwg.mxu0
  %1502 = vmatpush.bf16.msra.mxu0 %v1056
  %1503 = vmatpush.bf16.msra.mxu0 %v1055
  %1504 = vmatpush.bf16.msra.mxu0 %v1054
  %1505 = vmatpush.bf16.msra.mxu0 %v1053
  %1506 = vmatpush.bf16.msra.mxu0 %v1052
  %1507 = vmatpush.bf16.msra.mxu0 %v1051
  %1508 = vmatpush.bf16.msra.mxu0 %v1050
  %1509 = vmatpush.bf16.msra.mxu0 %v1049
  %1510 = vmatmul.bf16.gmra.mxu0 %v550
  %v1511 = vpop.f32.mrf.mxu0
  %v1512 = vadd.f32 %v1439, %v1511
  %v1513 = vpop.f32.mrf.mxu0
  %v1514 = vadd.f32 %v1441, %v1513
  %1515 = vmatmul.bf16.gmra.mxu0 %v558
  %v1516 = vpop.f32.mrf.mxu0
  %v1517 = vadd.f32 %v1444, %v1516
  %v1518 = vpop.f32.mrf.mxu0
  %v1519 = vadd.f32 %v1446, %v1518
  %1520 = vmatmul.bf16.gmra.mxu0 %v566
  %v1521 = vpop.f32.mrf.mxu0
  %v1522 = vadd.f32 %v1449, %v1521
  %v1523 = vpop.f32.mrf.mxu0
  %v1524 = vadd.f32 %v1451, %v1523
  %1525 = vmatmul.bf16.gmra.mxu0 %v574
  %v1526 = vpop.f32.mrf.mxu0
  %v1527 = vadd.f32 %v1454, %v1526
  %v1528 = vpop.f32.mrf.mxu0
  %v1529 = vadd.f32 %v1456, %v1528
  %1530 = vmatmul.bf16.gmra.mxu0 %v582
  %v1531 = vpop.f32.mrf.mxu0
  %v1532 = vadd.f32 %v1459, %v1531
  %v1533 = vpop.f32.mrf.mxu0
  %v1534 = vadd.f32 %v1461, %v1533
  %1535 = vmatmul.bf16.gmra.mxu0 %v590
  %v1536 = vpop.f32.mrf.mxu0
  %v1537 = vadd.f32 %v1464, %v1536
  %v1538 = vpop.f32.mrf.mxu0
  %v1539 = vadd.f32 %v1466, %v1538
  %1540 = vmatmul.bf16.gmra.mxu0 %v598
  %v1541 = vpop.f32.mrf.mxu0
  %v1542 = vadd.f32 %v1469, %v1541
  %v1543 = vpop.f32.mrf.mxu0
  %v1544 = vadd.f32 %v1471, %v1543
  %1545 = vmatmul.bf16.gmra.mxu0 %v606
  %v1546 = vpop.f32.mrf.mxu0
  %v1547 = vadd.f32 %v1474, %v1546
  %v1548 = vpop.f32.mrf.mxu0
  %v1549 = vadd.f32 %v1476, %v1548
  %1550 = vmatmul.bf16.gmra.mxu0 %v614
  %v1551 = vpop.f32.mrf.mxu0
  %v1552 = vadd.f32 %v1479, %v1551
  %v1553 = vpop.f32.mrf.mxu0
  %v1554 = vadd.f32 %v1481, %v1553
  %1555 = vmatmul.bf16.gmra.mxu0 %v622
  %v1556 = vpop.f32.mrf.mxu0
  %v1557 = vadd.f32 %v1484, %v1556
  %v1558 = vpop.f32.mrf.mxu0
  %v1559 = vadd.f32 %v1486, %v1558
  %1560 = vmatmul.bf16.gmra.mxu0 %v630
  %v1561 = vpop.f32.mrf.mxu0
  %v1562 = vadd.f32 %v1489, %v1561
  %v1563 = vpop.f32.mrf.mxu0
  %v1564 = vadd.f32 %v1491, %v1563
  %1565 = vmatmul.bf16.gmra.mxu0 %v638
  %v1566 = vpop.f32.mrf.mxu0
  %v1567 = vadd.f32 %v1494, %v1566
  %v1568 = vpop.f32.mrf.mxu0
  %v1569 = vadd.f32 %v1496, %v1568
  %1570 = vmatmul.bf16.gmra.mxu0 %v646
  %v1571 = vpop.f32.mrf.mxu0
  %v1572 = vadd.f32 %v1499, %v1571
  %v1573 = vpop.f32.mrf.mxu0
  %1574 = vdwg.mxu0
  %1575 = vmatpush.bf16.msra.mxu0 %v1064
  %1576 = vmatpush.bf16.msra.mxu0 %v1063
  %1577 = vmatpush.bf16.msra.mxu0 %v1062
  %1578 = vmatpush.bf16.msra.mxu0 %v1061
  %1579 = vmatpush.bf16.msra.mxu0 %v1060
  %1580 = vmatpush.bf16.msra.mxu0 %v1059
  %1581 = vmatpush.bf16.msra.mxu0 %v1058
  %1582 = vmatpush.bf16.msra.mxu0 %v1057
  %1583 = vmatmul.bf16.gmra.mxu0 %v551
  %v1584 = vpop.f32.mrf.mxu0
  %v1585 = vadd.f32 %v1512, %v1584
  %v1586 = vpop.f32.mrf.mxu0
  %v1587 = vadd.f32 %v1514, %v1586
  %1588 = vmatmul.bf16.gmra.mxu0 %v559
  %v1589 = vpop.f32.mrf.mxu0
  %v1590 = vadd.f32 %v1517, %v1589
  %v1591 = vpop.f32.mrf.mxu0
  %v1592 = vadd.f32 %v1519, %v1591
  %1593 = vmatmul.bf16.gmra.mxu0 %v567
  %v1594 = vpop.f32.mrf.mxu0
  %v1595 = vadd.f32 %v1522, %v1594
  %v1596 = vpop.f32.mrf.mxu0
  %v1597 = vadd.f32 %v1524, %v1596
  %1598 = vmatmul.bf16.gmra.mxu0 %v575
  %v1599 = vpop.f32.mrf.mxu0
  %v1600 = vadd.f32 %v1527, %v1599
  %v1601 = vpop.f32.mrf.mxu0
  %v1602 = vadd.f32 %v1529, %v1601
  %1603 = vmatmul.bf16.gmra.mxu0 %v583
  %v1604 = vpop.f32.mrf.mxu0
  %v1605 = vadd.f32 %v1532, %v1604
  %v1606 = vpop.f32.mrf.mxu0
  %v1607 = vadd.f32 %v1534, %v1606
  %1608 = vmatmul.bf16.gmra.mxu0 %v591
  %v1609 = vpop.f32.mrf.mxu0
  %v1610 = vadd.f32 %v1537, %v1609
  %v1611 = vpop.f32.mrf.mxu0
  %v1612 = vadd.f32 %v1539, %v1611
  %1613 = vmatmul.bf16.gmra.mxu0 %v599
  %v1614 = vpop.f32.mrf.mxu0
  %v1615 = vadd.f32 %v1542, %v1614
  %v1616 = vpop.f32.mrf.mxu0
  %v1617 = vadd.f32 %v1544, %v1616
  %1618 = vmatmul.bf16.gmra.mxu0 %v607
  %v1619 = vpop.f32.mrf.mxu0
  %v1620 = vadd.f32 %v1547, %v1619
  %v1621 = vpop.f32.mrf.mxu0
  %v1622 = vadd.f32 %v1549, %v1621
  %1623 = vmatmul.bf16.gmra.mxu0 %v615
  %v1624 = vpop.f32.mrf.mxu0
  %v1625 = vadd.f32 %v1552, %v1624
  %v1626 = vpop.f32.mrf.mxu0
  %v1627 = vadd.f32 %v1554, %v1626
  %1628 = vmatmul.bf16.gmra.mxu0 %v623
  %v1629 = vpop.f32.mrf.mxu0
  %v1630 = vadd.f32 %v1557, %v1629
  %v1631 = vpop.f32.mrf.mxu0
  %v1632 = vadd.f32 %v1559, %v1631
  %1633 = vmatmul.bf16.gmra.mxu0 %v631
  %v1634 = vpop.f32.mrf.mxu0
  %v1635 = vadd.f32 %v1562, %v1634
  %v1636 = vpop.f32.mrf.mxu0
  %v1637 = vadd.f32 %v1564, %v1636
  %1638 = vmatmul.bf16.gmra.mxu0 %v639
  %v1639 = vpop.f32.mrf.mxu0
  %v1640 = vadd.f32 %v1567, %v1639
  %v1641 = vpop.f32.mrf.mxu0
  %v1642 = vadd.f32 %v1569, %v1641
  %1643 = vmatmul.bf16.gmra.mxu0 %v647
  %v1644 = vpop.f32.mrf.mxu0
  %v1645 = vadd.f32 %v1572, %v1644
  %v1646 = vpop.f32.mrf.mxu0
  %1647 = vdwg.mxu0
  %1648 = vmatpush.bf16.msra.mxu0 %v1072
  %1649 = vmatpush.bf16.msra.mxu0 %v1071
  %1650 = vmatpush.bf16.msra.mxu0 %v1070
  %1651 = vmatpush.bf16.msra.mxu0 %v1069
  %1652 = vmatpush.bf16.msra.mxu0 %v1068
  %1653 = vmatpush.bf16.msra.mxu0 %v1067
  %1654 = vmatpush.bf16.msra.mxu0 %v1066
  %1655 = vmatpush.bf16.msra.mxu0 %v1065
  %1656 = vmatmul.bf16.gmra.mxu0 %v552
  %v1657 = vpop.f32.mrf.mxu0
  %v1658 = vadd.f32 %v1585, %v1657
  %v1659 = vpop.f32.mrf.mxu0
  %v1660 = vadd.f32 %v1587, %v1659
  %1661 = vmatmul.bf16.gmra.mxu0 %v560
  %v1662 = vpop.f32.mrf.mxu0
  %v1663 = vadd.f32 %v1590, %v1662
  %v1664 = vpop.f32.mrf.mxu0
  %v1665 = vadd.f32 %v1592, %v1664
  %1666 = vmatmul.bf16.gmra.mxu0 %v568
  %v1667 = vpop.f32.mrf.mxu0
  %v1668 = vadd.f32 %v1595, %v1667
  %v1669 = vpop.f32.mrf.mxu0
  %v1670 = vadd.f32 %v1597, %v1669
  %1671 = vmatmul.bf16.gmra.mxu0 %v576
  %v1672 = vpop.f32.mrf.mxu0
  %v1673 = vadd.f32 %v1600, %v1672
  %v1674 = vpop.f32.mrf.mxu0
  %v1675 = vadd.f32 %v1602, %v1674
  %1676 = vmatmul.bf16.gmra.mxu0 %v584
  %v1677 = vpop.f32.mrf.mxu0
  %v1678 = vadd.f32 %v1605, %v1677
  %v1679 = vpop.f32.mrf.mxu0
  %v1680 = vadd.f32 %v1607, %v1679
  %1681 = vmatmul.bf16.gmra.mxu0 %v592
  %v1682 = vpop.f32.mrf.mxu0
  %v1683 = vadd.f32 %v1610, %v1682
  %v1684 = vpop.f32.mrf.mxu0
  %v1685 = vadd.f32 %v1612, %v1684
  %1686 = vmatmul.bf16.gmra.mxu0 %v600
  %v1687 = vpop.f32.mrf.mxu0
  %v1688 = vadd.f32 %v1615, %v1687
  %v1689 = vpop.f32.mrf.mxu0
  %v1690 = vadd.f32 %v1617, %v1689
  %1691 = vmatmul.bf16.gmra.mxu0 %v608
  %v1692 = vpop.f32.mrf.mxu0
  %v1693 = vadd.f32 %v1620, %v1692
  %v1694 = vpop.f32.mrf.mxu0
  %v1695 = vadd.f32 %v1622, %v1694
  %1696 = vmatmul.bf16.gmra.mxu0 %v616
  %v1697 = vpop.f32.mrf.mxu0
  %v1698 = vadd.f32 %v1625, %v1697
  %v1699 = vpop.f32.mrf.mxu0
  %v1700 = vadd.f32 %v1627, %v1699
  %1701 = vmatmul.bf16.gmra.mxu0 %v624
  %v1702 = vpop.f32.mrf.mxu0
  %v1703 = vadd.f32 %v1630, %v1702
  %v1704 = vpop.f32.mrf.mxu0
  %v1705 = vadd.f32 %v1632, %v1704
  %1706 = vmatmul.bf16.gmra.mxu0 %v632
  %v1707 = vpop.f32.mrf.mxu0
  %v1708 = vadd.f32 %v1635, %v1707
  %v1709 = vpop.f32.mrf.mxu0
  %v1710 = vadd.f32 %v1637, %v1709
  %1711 = vmatmul.bf16.gmra.mxu0 %v640
  %v1712 = vpop.f32.mrf.mxu0
  %v1713 = vadd.f32 %v1640, %v1712
  %v1714 = vpop.f32.mrf.mxu0
  %v1715 = vadd.f32 %v1642, %v1714
  %1716 = vmatmul.bf16.gmra.mxu0 %v648
  %v1717 = vpop.f32.mrf.mxu0
  %v1718 = vadd.f32 %v1645, %v1717
  %v1719 = vpop.f32.mrf.mxu0
  %1720 = vdwg.mxu0
  %v1721 = vadd.f32 %v1658, %v1660
  %v1722 = vadd.f32 %v1721, %v1663
  %v1723 = vadd.f32 %v1722, %v1665
  %v1724 = vadd.f32 %v1723, %v1668
  %v1725 = vadd.f32 %v1724, %v1670
  %v1726 = vadd.f32 %v1725, %v1673
  %v1727 = vadd.f32 %v1726, %v1675
  %v1728 = vadd.f32 %v1727, %v1678
  %v1729 = vadd.f32 %v1728, %v1680
  %v1730 = vadd.f32 %v1729, %v1683
  %v1731 = vadd.f32 %v1730, %v1685
  %v1732 = vadd.f32 %v1731, %v1688
  %v1733 = vadd.f32 %v1732, %v1690
  %v1734 = vadd.f32 %v1733, %v1693
  %v1735 = vadd.f32 %v1734, %v1695
  %v1736 = vadd.f32 %v1735, %v1698
  %v1737 = vadd.f32 %v1736, %v1700
  %v1738 = vadd.f32 %v1737, %v1703
  %v1739 = vadd.f32 %v1738, %v1705
  %v1740 = vadd.f32 %v1739, %v1708
  %v1741 = vadd.f32 %v1740, %v1710
  %v1742 = vadd.f32 %v1741, %v1713
  %v1743 = vadd.f32 %v1742, %v1715
  %v1744 = vadd.f32 %v1743, %v1718
  %v1745 = vrot.slane %v1744, 4
  %v1746 = vadd.f32 %v1744, %v1745
  %v1747 = vrot.slane %v1746, 2
  %v1748 = vadd.f32 %v1746, %v1747
  %v1749 = vrot.slane %v1748, 1
  %v1750 = vadd.f32 %v1748, %v1749
  %v1751 = vmul.f32 %v1658, %v1658
  %v1752 = vmul.f32 %v1660, %v1660
  %v1753 = vmul.f32 %v1663, %v1663
  %v1754 = vmul.f32 %v1665, %v1665
  %v1755 = vmul.f32 %v1668, %v1668
  %v1756 = vmul.f32 %v1670, %v1670
  %v1757 = vmul.f32 %v1673, %v1673
  %v1758 = vmul.f32 %v1675, %v1675
  %v1759 = vmul.f32 %v1678, %v1678
  %v1760 = vmul.f32 %v1680, %v1680
  %v1761 = vmul.f32 %v1683, %v1683
  %v1762 = vmul.f32 %v1685, %v1685
  %v1763 = vmul.f32 %v1688, %v1688
  %v1764 = vmul.f32 %v1690, %v1690
  %v1765 = vmul.f32 %v1693, %v1693
  %v1766 = vmul.f32 %v1695, %v1695
  %v1767 = vmul.f32 %v1698, %v1698
  %v1768 = vmul.f32 %v1700, %v1700
  %v1769 = vmul.f32 %v1703, %v1703
  %v1770 = vmul.f32 %v1705, %v1705
  %v1771 = vmul.f32 %v1708, %v1708
  %v1772 = vmul.f32 %v1710, %v1710
  %v1773 = vmul.f32 %v1713, %v1713
  %v1774 = vmul.f32 %v1715, %v1715
  %v1775 = vmul.f32 %v1718, %v1718
  %v1776 = vadd.f32 %v1751, %v1752
  %v1777 = vadd.f32 %v1776, %v1753
  %v1778 = vadd.f32 %v1777, %v1754
  %v1779 = vadd.f32 %v1778, %v1755
  %v1780 = vadd.f32 %v1779, %v1756
  %v1781 = vadd.f32 %v1780, %v1757
  %v1782 = vadd.f32 %v1781, %v1758
  %v1783 = vadd.f32 %v1782, %v1759
  %v1784 = vadd.f32 %v1783, %v1760
  %v1785 = vadd.f32 %v1784, %v1761
  %v1786 = vadd.f32 %v1785, %v1762
  %v1787 = vadd.f32 %v1786, %v1763
  %v1788 = vadd.f32 %v1787, %v1764
  %v1789 = vadd.f32 %v1788, %v1765
  %v1790 = vadd.f32 %v1789, %v1766
  %v1791 = vadd.f32 %v1790, %v1767
  %v1792 = vadd.f32 %v1791, %v1768
  %v1793 = vadd.f32 %v1792, %v1769
  %v1794 = vadd.f32 %v1793, %v1770
  %v1795 = vadd.f32 %v1794, %v1771
  %v1796 = vadd.f32 %v1795, %v1772
  %v1797 = vadd.f32 %v1796, %v1773
  %v1798 = vadd.f32 %v1797, %v1774
  %v1799 = vadd.f32 %v1798, %v1775
  %v1800 = vrot.slane %v1799, 4
  %v1801 = vadd.f32 %v1799, %v1800
  %v1802 = vrot.slane %v1801, 2
  %v1803 = vadd.f32 %v1801, %v1802
  %v1804 = vrot.slane %v1803, 1
  %v1805 = vadd.f32 %v1803, %v1804
  %v1806 = vrcp.pop 200.0
  %v1807 = vmul.f32 200.0, %v1806
  %v1808 = vsub.f32 1.0, %v1807
  %v1809 = vmul.f32 %v1806, %v1808
  %v1810 = vadd.f32 %v1806, %v1809
  %vm1811 = vweird.f32 %v1806
  %v1812 = vsel %vm1811, %v1806, %v1810
  %v1813 = vmul.f32 %v1750, %v1812
  %v1814 = vmul.f32 %v1805, %v1812
  %v1815 = vmul.f32 %v1813, %v1813
  %v1816 = vsub.f32 %v1814, %v1815
  %v1817 = vld [vmem:[%s2] sm:$0x1]
  %v1818 = vadd.f32 %v1816, 1e-05
  %v1819 = vrsqrt.pop %v1818
  %v1820 = vmul.f32 %v1819, %v1818
  %v1821 = vmul.f32 %v1820, %v1819
  %v1822 = vmul.f32 0.5, %v1821
  %v1823 = vsub.f32 1.5, %v1822
  %v1824 = vmul.f32 %v1819, %v1823
  %vm1825 = vweird.f32 %v1818
  %vm1826 = vweird.f32 %v1819
  %vm1827 = vmor %vm1825, %vm1826
  %v1828 = vsel %vm1827, %v1819, %v1824
  %v1829 = vmul.f32 %v1817, %v1828
  %v1830 = vld [vmem:[%s3] sm:$0x1]
  %v1831 = vmul.f32 %v1813, %v1829
  %v1832 = vsub.f32 %v1830, %v1831
  %v1834 = vperm.slane %v1829, 0
  %v1836 = vmul.f32 %v1658, %v1834
  %v1837 = vmul.f32 %v1660, %v1834
  %v1838 = vmul.f32 %v1663, %v1834
  %v1839 = vmul.f32 %v1665, %v1834
  %v1840 = vmul.f32 %v1668, %v1834
  %v1841 = vmul.f32 %v1670, %v1834
  %v1842 = vmul.f32 %v1673, %v1834
  %v1843 = vmul.f32 %v1675, %v1834
  %v1844 = vmul.f32 %v1678, %v1834
  %v1845 = vmul.f32 %v1680, %v1834
  %v1846 = vmul.f32 %v1683, %v1834
  %v1847 = vmul.f32 %v1685, %v1834
  %v1848 = vmul.f32 %v1688, %v1834
  %v1849 = vmul.f32 %v1690, %v1834
  %v1850 = vmul.f32 %v1693, %v1834
  %v1851 = vmul.f32 %v1695, %v1834
  %v1852 = vmul.f32 %v1698, %v1834
  %v1853 = vmul.f32 %v1700, %v1834
  %v1854 = vmul.f32 %v1703, %v1834
  %v1855 = vmul.f32 %v1705, %v1834
  %v1856 = vmul.f32 %v1708, %v1834
  %v1857 = vmul.f32 %v1710, %v1834
  %v1858 = vmul.f32 %v1713, %v1834
  %v1859 = vmul.f32 %v1715, %v1834
  %v1860 = vmul.f32 %v1718, %v1834
  %v1862 = vperm.slane %v1832, 0
  %v1864 = vadd.f32 %v1836, %v1862
  %v1865 = vadd.f32 %v1837, %v1862
  %v1866 = vadd.f32 %v1838, %v1862
  %v1867 = vadd.f32 %v1839, %v1862
  %v1868 = vadd.f32 %v1840, %v1862
  %v1869 = vadd.f32 %v1841, %v1862
  %v1870 = vadd.f32 %v1842, %v1862
  %v1871 = vadd.f32 %v1843, %v1862
  %v1872 = vadd.f32 %v1844, %v1862
  %v1873 = vadd.f32 %v1845, %v1862
  %v1874 = vadd.f32 %v1846, %v1862
  %v1875 = vadd.f32 %v1847, %v1862
  %v1876 = vadd.f32 %v1848, %v1862
  %v1877 = vadd.f32 %v1849, %v1862
  %v1878 = vadd.f32 %v1850, %v1862
  %v1879 = vadd.f32 %v1851, %v1862
  %v1880 = vadd.f32 %v1852, %v1862
  %v1881 = vadd.f32 %v1853, %v1862
  %v1882 = vadd.f32 %v1854, %v1862
  %v1883 = vadd.f32 %v1855, %v1862
  %v1884 = vadd.f32 %v1856, %v1862
  %v1885 = vadd.f32 %v1857, %v1862
  %v1886 = vadd.f32 %v1858, %v1862
  %v1887 = vadd.f32 %v1859, %v1862
  %v1888 = vadd.f32 %v1860, %v1862
  %vm1889 = vcmp.gt.f32.partialorder %v1864, 0.0
  %vm1890 = vcmp.gt.f32.partialorder %v1865, 0.0
  %vm1891 = vcmp.gt.f32.partialorder %v1866, 0.0
  %vm1892 = vcmp.gt.f32.partialorder %v1867, 0.0
  %vm1893 = vcmp.gt.f32.partialorder %v1868, 0.0
  %vm1894 = vcmp.gt.f32.partialorder %v1869, 0.0
  %vm1895 = vcmp.gt.f32.partialorder %v1870, 0.0
  %vm1896 = vcmp.gt.f32.partialorder %v1871, 0.0
  %vm1897 = vcmp.gt.f32.partialorder %v1872, 0.0
  %vm1898 = vcmp.gt.f32.partialorder %v1873, 0.0
  %vm1899 = vcmp.gt.f32.partialorder %v1874, 0.0
  %vm1900 = vcmp.gt.f32.partialorder %v1875, 0.0
  %vm1901 = vcmp.gt.f32.partialorder %v1876, 0.0
  %vm1902 = vcmp.gt.f32.partialorder %v1877, 0.0
  %vm1903 = vcmp.gt.f32.partialorder %v1878, 0.0
  %vm1904 = vcmp.gt.f32.partialorder %v1879, 0.0
  %vm1905 = vcmp.gt.f32.partialorder %v1880, 0.0
  %vm1906 = vcmp.gt.f32.partialorder %v1881, 0.0
  %vm1907 = vcmp.gt.f32.partialorder %v1882, 0.0
  %vm1908 = vcmp.gt.f32.partialorder %v1883, 0.0
  %vm1909 = vcmp.gt.f32.partialorder %v1884, 0.0
  %vm1910 = vcmp.gt.f32.partialorder %v1885, 0.0
  %vm1911 = vcmp.gt.f32.partialorder %v1886, 0.0
  %vm1912 = vcmp.gt.f32.partialorder %v1887, 0.0
  %vm1913 = vcmp.gt.f32.partialorder %v1888, 0.0
  %v1914 = vmul.f32 %v1864, 0.2
  %v1915 = vmul.f32 %v1865, 0.2
  %v1916 = vmul.f32 %v1866, 0.2
  %v1917 = vmul.f32 %v1867, 0.2
  %v1918 = vmul.f32 %v1868, 0.2
  %v1919 = vmul.f32 %v1869, 0.2
  %v1920 = vmul.f32 %v1870, 0.2
  %v1921 = vmul.f32 %v1871, 0.2
  %v1922 = vmul.f32 %v1872, 0.2
  %v1923 = vmul.f32 %v1873, 0.2
  %v1924 = vmul.f32 %v1874, 0.2
  %v1925 = vmul.f32 %v1875, 0.2
  %v1926 = vmul.f32 %v1876, 0.2
  %v1927 = vmul.f32 %v1877, 0.2
  %v1928 = vmul.f32 %v1878, 0.2
  %v1929 = vmul.f32 %v1879, 0.2
  %v1930 = vmul.f32 %v1880, 0.2
  %v1931 = vmul.f32 %v1881, 0.2
  %v1932 = vmul.f32 %v1882, 0.2
  %v1933 = vmul.f32 %v1883, 0.2
  %v1934 = vmul.f32 %v1884, 0.2
  %v1935 = vmul.f32 %v1885, 0.2
  %v1936 = vmul.f32 %v1886, 0.2
  %v1937 = vmul.f32 %v1887, 0.2
  %v1938 = vmul.f32 %v1888, 0.2
  %v1939 = vsel %vm1889, %v1864, %v1914
  %v1940 = vsel %vm1890, %v1865, %v1915
  %v1941 = vsel %vm1891, %v1866, %v1916
  %v1942 = vsel %vm1892, %v1867, %v1917
  %v1943 = vsel %vm1893, %v1868, %v1918
  %v1944 = vsel %vm1894, %v1869, %v1919
  %v1945 = vsel %vm1895, %v1870, %v1920
  %v1946 = vsel %vm1896, %v1871, %v1921
  %v1947 = vsel %vm1897, %v1872, %v1922
  %v1948 = vsel %vm1898, %v1873, %v1923
  %v1949 = vsel %vm1899, %v1874, %v1924
  %v1950 = vsel %vm1900, %v1875, %v1925
  %v1951 = vsel %vm1901, %v1876, %v1926
  %v1952 = vsel %vm1902, %v1877, %v1927
  %v1953 = vsel %vm1903, %v1878, %v1928
  %v1954 = vsel %vm1904, %v1879, %v1929
  %v1955 = vsel %vm1905, %v1880, %v1930
  %v1956 = vsel %vm1906, %v1881, %v1931
  %v1957 = vsel %vm1907, %v1882, %v1932
  %v1958 = vsel %vm1908, %v1883, %v1933
  %v1959 = vsel %vm1909, %v1884, %v1934
  %v1960 = vsel %vm1910, %v1885, %v1935
  %v1961 = vsel %vm1911, %v1886, %v1936
  %v1962 = vsel %vm1912, %v1887, %v1937
  %v1963 = vsel %vm1913, %v1888, %v1938
  %v1964 = vpack.c.bf16 %v1939, %v1939
  %v1965 = vpack.c.bf16 %v1940, %v1940
  %v1966 = vpack.c.bf16 %v1941, %v1941
  %v1967 = vpack.c.bf16 %v1942, %v1942
  %v1968 = vpack.c.bf16 %v1943, %v1943
  %v1969 = vpack.c.bf16 %v1944, %v1944
  %v1970 = vpack.c.bf16 %v1945, %v1945
  %v1971 = vpack.c.bf16 %v1946, %v1946
  %v1972 = vpack.c.bf16 %v1947, %v1947
  %v1973 = vpack.c.bf16 %v1948, %v1948
  %v1974 = vpack.c.bf16 %v1949, %v1949
  %v1975 = vpack.c.bf16 %v1950, %v1950
  %v1976 = vpack.c.bf16 %v1951, %v1951
  %v1977 = vpack.c.bf16 %v1952, %v1952
  %v1978 = vpack.c.bf16 %v1953, %v1953
  %v1979 = vpack.c.bf16 %v1954, %v1954
  %v1980 = vpack.c.bf16 %v1955, %v1955
  %v1981 = vpack.c.bf16 %v1956, %v1956
  %v1982 = vpack.c.bf16 %v1957, %v1957
  %v1983 = vpack.c.bf16 %v1958, %v1958
  %v1984 = vpack.c.bf16 %v1959, %v1959
  %v1985 = vpack.c.bf16 %v1960, %v1960
  %v1986 = vpack.c.bf16 %v1961, %v1961
  %v1987 = vpack.c.bf16 %v1962, %v1962
  %v1988 = vpack.c.bf16 %v1963, %v1963
  %1989 = vst [vmem:[%s4] sm:$0xf] %v1964
  %1990 = vst [vmem:[%s4 + $0x4] sm:$0xf] %v1965
  %1991 = vst [vmem:[%s4 + $0x8] sm:$0xf] %v1966
  %1992 = vst [vmem:[%s4 + $0xc] sm:$0xf] %v1967
  %1993 = vst [vmem:[%s4 + $0x10] sm:$0xf] %v1968
  %1994 = vst [vmem:[%s4 + $0x14] sm:$0xf] %v1969
  %1995 = vst [vmem:[%s4 + $0x18] sm:$0xf] %v1970
  %1996 = vst [vmem:[%s4 + $0x1c] sm:$0xf] %v1971
  %1997 = vst [vmem:[%s4 + $0x20] sm:$0xf] %v1972
  %1998 = vst [vmem:[%s4 + $0x24] sm:$0xf] %v1973
  %1999 = vst [vmem:[%s4 + $0x28] sm:$0xf] %v1974
  %2000 = vst [vmem:[%s4 + $0x2c] sm:$0xf] %v1975
  %2001 = vst [vmem:[%s4 + $0x30] sm:$0xf] %v1976
  %2002 = vst [vmem:[%s4 + $0x34] sm:$0xf] %v1977
  %2003 = vst [vmem:[%s4 + $0x38] sm:$0xf] %v1978
  %2004 = vst [vmem:[%s4 + $0x3c] sm:$0xf] %v1979
  %2005 = vst [vmem:[%s4 + $0x40] sm:$0xf] %v1980
  %2006 = vst [vmem:[%s4 + $0x44] sm:$0xf] %v1981
  %2007 = vst [vmem:[%s4 + $0x48] sm:$0xf] %v1982
  %2008 = vst [vmem:[%s4 + $0x4c] sm:$0xf] %v1983
  %2009 = vst [vmem:[%s4 + $0x50] sm:$0xf] %v1984
  %2010 = vst [vmem:[%s4 + $0x54] sm:$0xf] %v1985
  %2011 = vst [vmem:[%s4 + $0x58] sm:$0xf] %v1986
  %2012 = vst [vmem:[%s4 + $0x5c] sm:$0xf] %v1987
  %2013 = vst [vmem:[%s4 + $0x60] sm:$0xf] %v1988
  // Predicated region
  $region18: #{netD_forward.6} parent=0 // pred_check
    _
  $region19: #{netD_forward.6} parent=0 // pred_check_branch
    %2015 = sbr.rel (0) target = $region21
  $region20: #{netD_forward.6} parent=0 // pred_region
    _
  $region21: #{netD_forward.6} parent=0 // pred_fallthru
    _
  // Predicated region
  $region22: #{netD_forward.6} parent=0 // pred_check
    _
  $region23: #{netD_forward.6} parent=0 // pred_check_branch
    %2017 = sbr.rel (0) target = $region25
  $region24: #{netD_forward.6} parent=0 // pred_region
    _
  $region25: #{netD_forward.6} parent=0 // pred_fallthru
    _

// kernel: netD_forward.7
$region0: #{netD_forward.7}
  #allocation0 [shape = 'u32[]', space=smem, size = 0x4, offset = 0x4, fixed_abs, tag = 'smem constant byte address 0x4 - core index']
  #allocation1 [shape = 'u32[72,128]{1,0:T(1,128)}', space=vmem, size = 0x9000, scoped, tag = 'internal scratch']
  %s0 = inlined_call_operand.vmem [shape: bf16[50,2048], index: 0, kind: input, shape index: {}]
  %s1 = inlined_call_operand.vmem [shape: bf16[2048,256], index: 1, kind: input, shape index: {}]
  %s2 = inlined_call_operand.vmem [shape: f32[1,256], index: 2, kind: input, shape index: {}]
  %s3 = inlined_call_operand.vmem [shape: f32[1,256], index: 3, kind: input, shape index: {}]
  %s4 = inlined_call_operand.vmem [shape: bf16[50,256], index: 4, kind: output, shape index: {}]
  %s5 = sld [smem:[#allocation0]]
  $region26: #{netD_forward.7} parent=0
    _
  %s7 = ssub.s32 1, %s5
  %s8 = scalar_select 0, %s7, %s5
  // Predicated region
  $region2: #{netD_forward.7} parent=0 // pred_check
    _
  $region3: #{netD_forward.7} parent=0 // pred_check_branch
    %10 = sbr.rel (0) target = $region5
  $region4: #{netD_forward.7} parent=0 // pred_region
    _
  $region5: #{netD_forward.7} parent=0 // pred_fallthru
    _
  // Predicated region
  $region6: #{netD_forward.7} parent=0 // pred_check
    _
  $region7: #{netD_forward.7} parent=0 // pred_check_branch
    %12 = sbr.rel (0) target = $region9
  $region8: #{netD_forward.7} parent=0 // pred_region
    _
  $region9: #{netD_forward.7} parent=0 // pred_fallthru
    _
  // Predicated region
  $region10: #{netD_forward.7} parent=0 // pred_check
    _
  $region11: #{netD_forward.7} parent=0 // pred_check_branch
    %14 = sbr.rel (0) target = $region13
  $region12: #{netD_forward.7} parent=0 // pred_region
    _
  $region13: #{netD_forward.7} parent=0 // pred_fallthru
    _
  // Predicated region
  $region14: #{netD_forward.7} parent=0 // pred_check
    _
  $region15: #{netD_forward.7} parent=0 // pred_check_branch
    %16 = sbr.rel (0) target = $region17
  $region16: #{netD_forward.7} parent=0 // pred_region
    _
  $region17: #{netD_forward.7} parent=0 // pred_fallthru
    _
  %v17 = vld [vmem:[%s0] sm:$0xff]
  %v18 = vld [vmem:[%s0 + $0x8] sm:$0xff]
  %v19 = vld [vmem:[%s0 + $0x10] sm:$0xff]
  %v20 = vld [vmem:[%s0 + $0x18] sm:$0xff]
  %v21 = vld [vmem:[%s0 + $0x20] sm:$0xff]
  %v22 = vld [vmem:[%s0 + $0x28] sm:$0xff]
  %v23 = vld [vmem:[%s0 + $0x30] sm:$0xff]
  %v24 = vld [vmem:[%s0 + $0x38] sm:$0xff]
  %v25 = vld [vmem:[%s0 + $0x40] sm:$0xff]
  %v26 = vld [vmem:[%s0 + $0x48] sm:$0xff]
  %v27 = vld [vmem:[%s0 + $0x50] sm:$0xff]
  %v28 = vld [vmem:[%s0 + $0x58] sm:$0xff]
  %v29 = vld [vmem:[%s0 + $0x60] sm:$0xff]
  %v30 = vld [vmem:[%s0 + $0x68] sm:$0xff]
  %v31 = vld [vmem:[%s0 + $0x70] sm:$0xff]
  %v32 = vld [vmem:[%s0 + $0x78] sm:$0xff]
  %v33 = vld [vmem:[%s0 + $0x80] sm:$0xff]
  %v34 = vld [vmem:[%s0 + $0x88] sm:$0xff]
  %v35 = vld [vmem:[%s0 + $0x90] sm:$0xff]
  %v36 = vld [vmem:[%s0 + $0x98] sm:$0xff]
  %v37 = vld [vmem:[%s0 + $0xa0] sm:$0xff]
  %v38 = vld [vmem:[%s0 + $0xa8] sm:$0xff]
  %v39 = vld [vmem:[%s0 + $0xb0] sm:$0xff]
  %v40 = vld [vmem:[%s0 + $0xb8] sm:$0xff]
  %v41 = vld [vmem:[%s0 + $0xc0] sm:$0xff]
  %v42 = vld [vmem:[%s0 + $0xc8] sm:$0xff]
  %v43 = vld [vmem:[%s0 + $0xd0] sm:$0xff]
  %v44 = vld [vmem:[%s0 + $0xd8] sm:$0xff]
  %v45 = vld [vmem:[%s0 + $0xe0] sm:$0xff]
  %v46 = vld [vmem:[%s0 + $0xe8] sm:$0xff]
  %v47 = vld [vmem:[%s0 + $0xf0] sm:$0xff]
  %v48 = vld [vmem:[%s0 + $0xf8] sm:$0xff]
  %v49 = vld [vmem:[%s0 + $0x100] sm:$0xff]
  %v50 = vld [vmem:[%s0 + $0x108] sm:$0xff]
  %v51 = vld [vmem:[%s0 + $0x110] sm:$0xff]
  %v52 = vld [vmem:[%s0 + $0x118] sm:$0xff]
  %v53 = vld [vmem:[%s0 + $0x120] sm:$0xff]
  %v54 = vld [vmem:[%s0 + $0x128] sm:$0xff]
  %v55 = vld [vmem:[%s0 + $0x130] sm:$0xff]
  %v56 = vld [vmem:[%s0 + $0x138] sm:$0xff]
  %v57 = vld [vmem:[%s0 + $0x140] sm:$0xff]
  %v58 = vld [vmem:[%s0 + $0x148] sm:$0xff]
  %v59 = vld [vmem:[%s0 + $0x150] sm:$0xff]
  %v60 = vld [vmem:[%s0 + $0x158] sm:$0xff]
  %v61 = vld [vmem:[%s0 + $0x160] sm:$0xff]
  %v62 = vld [vmem:[%s0 + $0x168] sm:$0xff]
  %v63 = vld [vmem:[%s0 + $0x170] sm:$0xff]
  %v64 = vld [vmem:[%s0 + $0x178] sm:$0xff]
  %v65 = vld [vmem:[%s0 + $0x180] sm:$0x11]
  %v66 = vld [vmem:[%s0 + $0x188] sm:$0x11]
  %v67 = vld [vmem:[%s0 + $0x190] sm:$0x11]
  %v68 = vld [vmem:[%s0 + $0x198] sm:$0x11]
  %v69 = vld [vmem:[%s0 + $0x1a0] sm:$0x11]
  %v70 = vld [vmem:[%s0 + $0x1a8] sm:$0x11]
  %v71 = vld [vmem:[%s0 + $0x1b0] sm:$0x11]
  %v72 = vld [vmem:[%s0 + $0x1b8] sm:$0x11]
  %v73 = vld [vmem:[%s1] sm:$0xff]
  %v74 = vld [vmem:[%s1 + $0x8] sm:$0xff]
  %v75 = vld [vmem:[%s1 + $0x10] sm:$0xff]
  %v76 = vld [vmem:[%s1 + $0x18] sm:$0xff]
  %v77 = vld [vmem:[%s1 + $0x20] sm:$0xff]
  %v78 = vld [vmem:[%s1 + $0x28] sm:$0xff]
  %v79 = vld [vmem:[%s1 + $0x30] sm:$0xff]
  %v80 = vld [vmem:[%s1 + $0x38] sm:$0xff]
  %v81 = vld [vmem:[%s1 + $0x40] sm:$0xff]
  %v82 = vld [vmem:[%s1 + $0x48] sm:$0xff]
  %v83 = vld [vmem:[%s1 + $0x50] sm:$0xff]
  %v84 = vld [vmem:[%s1 + $0x58] sm:$0xff]
  %v85 = vld [vmem:[%s1 + $0x60] sm:$0xff]
  %v86 = vld [vmem:[%s1 + $0x68] sm:$0xff]
  %v87 = vld [vmem:[%s1 + $0x70] sm:$0xff]
  %v88 = vld [vmem:[%s1 + $0x78] sm:$0xff]
  %v89 = vld [vmem:[%s1 + $0x80] sm:$0xff]
  %v90 = vld [vmem:[%s1 + $0x88] sm:$0xff]
  %v91 = vld [vmem:[%s1 + $0x90] sm:$0xff]
  %v92 = vld [vmem:[%s1 + $0x98] sm:$0xff]
  %v93 = vld [vmem:[%s1 + $0xa0] sm:$0xff]
  %v94 = vld [vmem:[%s1 + $0xa8] sm:$0xff]
  %v95 = vld [vmem:[%s1 + $0xb0] sm:$0xff]
  %v96 = vld [vmem:[%s1 + $0xb8] sm:$0xff]
  %v97 = vld [vmem:[%s1 + $0xc0] sm:$0xff]
  %v98 = vld [vmem:[%s1 + $0xc8] sm:$0xff]
  %v99 = vld [vmem:[%s1 + $0xd0] sm:$0xff]
  %v100 = vld [vmem:[%s1 + $0xd8] sm:$0xff]
  %v101 = vld [vmem:[%s1 + $0xe0] sm:$0xff]
  %v102 = vld [vmem:[%s1 + $0xe8] sm:$0xff]
  %v103 = vld [vmem:[%s1 + $0xf0] sm:$0xff]
  %v104 = vld [vmem:[%s1 + $0xf8] sm:$0xff]
  %v105 = vld [vmem:[%s1 + $0x100] sm:$0xff]
  %v106 = vld [vmem:[%s1 + $0x108] sm:$0xff]
  %v107 = vld [vmem:[%s1 + $0x110] sm:$0xff]
  %v108 = vld [vmem:[%s1 + $0x118] sm:$0xff]
  %v109 = vld [vmem:[%s1 + $0x120] sm:$0xff]
  %v110 = vld [vmem:[%s1 + $0x128] sm:$0xff]
  %v111 = vld [vmem:[%s1 + $0x130] sm:$0xff]
  %v112 = vld [vmem:[%s1 + $0x138] sm:$0xff]
  %v113 = vld [vmem:[%s1 + $0x140] sm:$0xff]
  %v114 = vld [vmem:[%s1 + $0x148] sm:$0xff]
  %v115 = vld [vmem:[%s1 + $0x150] sm:$0xff]
  %v116 = vld [vmem:[%s1 + $0x158] sm:$0xff]
  %v117 = vld [vmem:[%s1 + $0x160] sm:$0xff]
  %v118 = vld [vmem:[%s1 + $0x168] sm:$0xff]
  %v119 = vld [vmem:[%s1 + $0x170] sm:$0xff]
  %v120 = vld [vmem:[%s1 + $0x178] sm:$0xff]
  %v121 = vld [vmem:[%s1 + $0x180] sm:$0xff]
  %v122 = vld [vmem:[%s1 + $0x188] sm:$0xff]
  %v123 = vld [vmem:[%s1 + $0x190] sm:$0xff]
  %v124 = vld [vmem:[%s1 + $0x198] sm:$0xff]
  %v125 = vld [vmem:[%s1 + $0x1a0] sm:$0xff]
  %v126 = vld [vmem:[%s1 + $0x1a8] sm:$0xff]
  %v127 = vld [vmem:[%s1 + $0x1b0] sm:$0xff]
  %v128 = vld [vmem:[%s1 + $0x1b8] sm:$0xff]
  %v129 = vld [vmem:[%s1 + $0x1c0] sm:$0xff]
  %v130 = vld [vmem:[%s1 + $0x1c8] sm:$0xff]
  %v131 = vld [vmem:[%s1 + $0x1d0] sm:$0xff]
  %v132 = vld [vmem:[%s1 + $0x1d8] sm:$0xff]
  %v133 = vld [vmem:[%s1 + $0x1e0] sm:$0xff]
  %v134 = vld [vmem:[%s1 + $0x1e8] sm:$0xff]
  %v135 = vld [vmem:[%s1 + $0x1f0] sm:$0xff]
  %v136 = vld [vmem:[%s1 + $0x1f8] sm:$0xff]
  %v137 = vld [vmem:[%s1 + $0x200] sm:$0xff]
  %v138 = vld [vmem:[%s1 + $0x208] sm:$0xff]
  %v139 = vld [vmem:[%s1 + $0x210] sm:$0xff]
  %v140 = vld [vmem:[%s1 + $0x218] sm:$0xff]
  %v141 = vld [vmem:[%s1 + $0x220] sm:$0xff]
  %v142 = vld [vmem:[%s1 + $0x228] sm:$0xff]
  %v143 = vld [vmem:[%s1 + $0x230] sm:$0xff]
  %v144 = vld [vmem:[%s1 + $0x238] sm:$0xff]
  %v145 = vld [vmem:[%s1 + $0x240] sm:$0xff]
  %v146 = vld [vmem:[%s1 + $0x248] sm:$0xff]
  %v147 = vld [vmem:[%s1 + $0x250] sm:$0xff]
  %v148 = vld [vmem:[%s1 + $0x258] sm:$0xff]
  %v149 = vld [vmem:[%s1 + $0x260] sm:$0xff]
  %v150 = vld [vmem:[%s1 + $0x268] sm:$0xff]
  %v151 = vld [vmem:[%s1 + $0x270] sm:$0xff]
  %v152 = vld [vmem:[%s1 + $0x278] sm:$0xff]
  %v153 = vld [vmem:[%s1 + $0x280] sm:$0xff]
  %v154 = vld [vmem:[%s1 + $0x288] sm:$0xff]
  %v155 = vld [vmem:[%s1 + $0x290] sm:$0xff]
  %v156 = vld [vmem:[%s1 + $0x298] sm:$0xff]
  %v157 = vld [vmem:[%s1 + $0x2a0] sm:$0xff]
  %v158 = vld [vmem:[%s1 + $0x2a8] sm:$0xff]
  %v159 = vld [vmem:[%s1 + $0x2b0] sm:$0xff]
  %v160 = vld [vmem:[%s1 + $0x2b8] sm:$0xff]
  %v161 = vld [vmem:[%s1 + $0x2c0] sm:$0xff]
  %v162 = vld [vmem:[%s1 + $0x2c8] sm:$0xff]
  %v163 = vld [vmem:[%s1 + $0x2d0] sm:$0xff]
  %v164 = vld [vmem:[%s1 + $0x2d8] sm:$0xff]
  %v165 = vld [vmem:[%s1 + $0x2e0] sm:$0xff]
  %v166 = vld [vmem:[%s1 + $0x2e8] sm:$0xff]
  %v167 = vld [vmem:[%s1 + $0x2f0] sm:$0xff]
  %v168 = vld [vmem:[%s1 + $0x2f8] sm:$0xff]
  %v169 = vld [vmem:[%s1 + $0x300] sm:$0xff]
  %v170 = vld [vmem:[%s1 + $0x308] sm:$0xff]
  %v171 = vld [vmem:[%s1 + $0x310] sm:$0xff]
  %v172 = vld [vmem:[%s1 + $0x318] sm:$0xff]
  %v173 = vld [vmem:[%s1 + $0x320] sm:$0xff]
  %v174 = vld [vmem:[%s1 + $0x328] sm:$0xff]
  %v175 = vld [vmem:[%s1 + $0x330] sm:$0xff]
  %v176 = vld [vmem:[%s1 + $0x338] sm:$0xff]
  %v177 = vld [vmem:[%s1 + $0x340] sm:$0xff]
  %v178 = vld [vmem:[%s1 + $0x348] sm:$0xff]
  %v179 = vld [vmem:[%s1 + $0x350] sm:$0xff]
  %v180 = vld [vmem:[%s1 + $0x358] sm:$0xff]
  %v181 = vld [vmem:[%s1 + $0x360] sm:$0xff]
  %v182 = vld [vmem:[%s1 + $0x368] sm:$0xff]
  %v183 = vld [vmem:[%s1 + $0x370] sm:$0xff]
  %v184 = vld [vmem:[%s1 + $0x378] sm:$0xff]
  %v185 = vld [vmem:[%s1 + $0x380] sm:$0xff]
  %v186 = vld [vmem:[%s1 + $0x388] sm:$0xff]
  %v187 = vld [vmem:[%s1 + $0x390] sm:$0xff]
  %v188 = vld [vmem:[%s1 + $0x398] sm:$0xff]
  %v189 = vld [vmem:[%s1 + $0x3a0] sm:$0xff]
  %v190 = vld [vmem:[%s1 + $0x3a8] sm:$0xff]
  %v191 = vld [vmem:[%s1 + $0x3b0] sm:$0xff]
  %v192 = vld [vmem:[%s1 + $0x3b8] sm:$0xff]
  %v193 = vld [vmem:[%s1 + $0x3c0] sm:$0xff]
  %v194 = vld [vmem:[%s1 + $0x3c8] sm:$0xff]
  %v195 = vld [vmem:[%s1 + $0x3d0] sm:$0xff]
  %v196 = vld [vmem:[%s1 + $0x3d8] sm:$0xff]
  %v197 = vld [vmem:[%s1 + $0x3e0] sm:$0xff]
  %v198 = vld [vmem:[%s1 + $0x3e8] sm:$0xff]
  %v199 = vld [vmem:[%s1 + $0x3f0] sm:$0xff]
  %v200 = vld [vmem:[%s1 + $0x3f8] sm:$0xff]
  %v201 = vld [vmem:[%s1 + $0x400] sm:$0xff]
  %v202 = vld [vmem:[%s1 + $0x408] sm:$0xff]
  %v203 = vld [vmem:[%s1 + $0x410] sm:$0xff]
  %v204 = vld [vmem:[%s1 + $0x418] sm:$0xff]
  %v205 = vld [vmem:[%s1 + $0x420] sm:$0xff]
  %v206 = vld [vmem:[%s1 + $0x428] sm:$0xff]
  %v207 = vld [vmem:[%s1 + $0x430] sm:$0xff]
  %v208 = vld [vmem:[%s1 + $0x438] sm:$0xff]
  %v209 = vld [vmem:[%s1 + $0x440] sm:$0xff]
  %v210 = vld [vmem:[%s1 + $0x448] sm:$0xff]
  %v211 = vld [vmem:[%s1 + $0x450] sm:$0xff]
  %v212 = vld [vmem:[%s1 + $0x458] sm:$0xff]
  %v213 = vld [vmem:[%s1 + $0x460] sm:$0xff]
  %v214 = vld [vmem:[%s1 + $0x468] sm:$0xff]
  %v215 = vld [vmem:[%s1 + $0x470] sm:$0xff]
  %v216 = vld [vmem:[%s1 + $0x478] sm:$0xff]
  %v217 = vld [vmem:[%s1 + $0x480] sm:$0xff]
  %v218 = vld [vmem:[%s1 + $0x488] sm:$0xff]
  %v219 = vld [vmem:[%s1 + $0x490] sm:$0xff]
  %v220 = vld [vmem:[%s1 + $0x498] sm:$0xff]
  %v221 = vld [vmem:[%s1 + $0x4a0] sm:$0xff]
  %v222 = vld [vmem:[%s1 + $0x4a8] sm:$0xff]
  %v223 = vld [vmem:[%s1 + $0x4b0] sm:$0xff]
  %v224 = vld [vmem:[%s1 + $0x4b8] sm:$0xff]
  %v225 = vld [vmem:[%s1 + $0x4c0] sm:$0xff]
  %v226 = vld [vmem:[%s1 + $0x4c8] sm:$0xff]
  %v227 = vld [vmem:[%s1 + $0x4d0] sm:$0xff]
  %v228 = vld [vmem:[%s1 + $0x4d8] sm:$0xff]
  %v229 = vld [vmem:[%s1 + $0x4e0] sm:$0xff]
  %v230 = vld [vmem:[%s1 + $0x4e8] sm:$0xff]
  %v231 = vld [vmem:[%s1 + $0x4f0] sm:$0xff]
  %v232 = vld [vmem:[%s1 + $0x4f8] sm:$0xff]
  %v233 = vld [vmem:[%s1 + $0x500] sm:$0xff]
  %v234 = vld [vmem:[%s1 + $0x508] sm:$0xff]
  %v235 = vld [vmem:[%s1 + $0x510] sm:$0xff]
  %v236 = vld [vmem:[%s1 + $0x518] sm:$0xff]
  %v237 = vld [vmem:[%s1 + $0x520] sm:$0xff]
  %v238 = vld [vmem:[%s1 + $0x528] sm:$0xff]
  %v239 = vld [vmem:[%s1 + $0x530] sm:$0xff]
  %v240 = vld [vmem:[%s1 + $0x538] sm:$0xff]
  %v241 = vld [vmem:[%s1 + $0x540] sm:$0xff]
  %v242 = vld [vmem:[%s1 + $0x548] sm:$0xff]
  %v243 = vld [vmem:[%s1 + $0x550] sm:$0xff]
  %v244 = vld [vmem:[%s1 + $0x558] sm:$0xff]
  %v245 = vld [vmem:[%s1 + $0x560] sm:$0xff]
  %v246 = vld [vmem:[%s1 + $0x568] sm:$0xff]
  %v247 = vld [vmem:[%s1 + $0x570] sm:$0xff]
  %v248 = vld [vmem:[%s1 + $0x578] sm:$0xff]
  %v249 = vld [vmem:[%s1 + $0x580] sm:$0xff]
  %v250 = vld [vmem:[%s1 + $0x588] sm:$0xff]
  %v251 = vld [vmem:[%s1 + $0x590] sm:$0xff]
  %v252 = vld [vmem:[%s1 + $0x598] sm:$0xff]
  %v253 = vld [vmem:[%s1 + $0x5a0] sm:$0xff]
  %v254 = vld [vmem:[%s1 + $0x5a8] sm:$0xff]
  %v255 = vld [vmem:[%s1 + $0x5b0] sm:$0xff]
  %v256 = vld [vmem:[%s1 + $0x5b8] sm:$0xff]
  %v257 = vld [vmem:[%s1 + $0x5c0] sm:$0xff]
  %v258 = vld [vmem:[%s1 + $0x5c8] sm:$0xff]
  %v259 = vld [vmem:[%s1 + $0x5d0] sm:$0xff]
  %v260 = vld [vmem:[%s1 + $0x5d8] sm:$0xff]
  %v261 = vld [vmem:[%s1 + $0x5e0] sm:$0xff]
  %v262 = vld [vmem:[%s1 + $0x5e8] sm:$0xff]
  %v263 = vld [vmem:[%s1 + $0x5f0] sm:$0xff]
  %v264 = vld [vmem:[%s1 + $0x5f8] sm:$0xff]
  %v265 = vld [vmem:[%s1 + $0x600] sm:$0xff]
  %v266 = vld [vmem:[%s1 + $0x608] sm:$0xff]
  %v267 = vld [vmem:[%s1 + $0x610] sm:$0xff]
  %v268 = vld [vmem:[%s1 + $0x618] sm:$0xff]
  %v269 = vld [vmem:[%s1 + $0x620] sm:$0xff]
  %v270 = vld [vmem:[%s1 + $0x628] sm:$0xff]
  %v271 = vld [vmem:[%s1 + $0x630] sm:$0xff]
  %v272 = vld [vmem:[%s1 + $0x638] sm:$0xff]
  %v273 = vld [vmem:[%s1 + $0x640] sm:$0xff]
  %v274 = vld [vmem:[%s1 + $0x648] sm:$0xff]
  %v275 = vld [vmem:[%s1 + $0x650] sm:$0xff]
  %v276 = vld [vmem:[%s1 + $0x658] sm:$0xff]
  %v277 = vld [vmem:[%s1 + $0x660] sm:$0xff]
  %v278 = vld [vmem:[%s1 + $0x668] sm:$0xff]
  %v279 = vld [vmem:[%s1 + $0x670] sm:$0xff]
  %v280 = vld [vmem:[%s1 + $0x678] sm:$0xff]
  %v281 = vld [vmem:[%s1 + $0x680] sm:$0xff]
  %v282 = vld [vmem:[%s1 + $0x688] sm:$0xff]
  %v283 = vld [vmem:[%s1 + $0x690] sm:$0xff]
  %v284 = vld [vmem:[%s1 + $0x698] sm:$0xff]
  %v285 = vld [vmem:[%s1 + $0x6a0] sm:$0xff]
  %v286 = vld [vmem:[%s1 + $0x6a8] sm:$0xff]
  %v287 = vld [vmem:[%s1 + $0x6b0] sm:$0xff]
  %v288 = vld [vmem:[%s1 + $0x6b8] sm:$0xff]
  %v289 = vld [vmem:[%s1 + $0x6c0] sm:$0xff]
  %v290 = vld [vmem:[%s1 + $0x6c8] sm:$0xff]
  %v291 = vld [vmem:[%s1 + $0x6d0] sm:$0xff]
  %v292 = vld [vmem:[%s1 + $0x6d8] sm:$0xff]
  %v293 = vld [vmem:[%s1 + $0x6e0] sm:$0xff]
  %v294 = vld [vmem:[%s1 + $0x6e8] sm:$0xff]
  %v295 = vld [vmem:[%s1 + $0x6f0] sm:$0xff]
  %v296 = vld [vmem:[%s1 + $0x6f8] sm:$0xff]
  %v297 = vld [vmem:[%s1 + $0x700] sm:$0xff]
  %v298 = vld [vmem:[%s1 + $0x708] sm:$0xff]
  %v299 = vld [vmem:[%s1 + $0x710] sm:$0xff]
  %v300 = vld [vmem:[%s1 + $0x718] sm:$0xff]
  %v301 = vld [vmem:[%s1 + $0x720] sm:$0xff]
  %v302 = vld [vmem:[%s1 + $0x728] sm:$0xff]
  %v303 = vld [vmem:[%s1 + $0x730] sm:$0xff]
  %v304 = vld [vmem:[%s1 + $0x738] sm:$0xff]
  %v305 = vld [vmem:[%s1 + $0x740] sm:$0xff]
  %v306 = vld [vmem:[%s1 + $0x748] sm:$0xff]
  %v307 = vld [vmem:[%s1 + $0x750] sm:$0xff]
  %v308 = vld [vmem:[%s1 + $0x758] sm:$0xff]
  %v309 = vld [vmem:[%s1 + $0x760] sm:$0xff]
  %v310 = vld [vmem:[%s1 + $0x768] sm:$0xff]
  %v311 = vld [vmem:[%s1 + $0x770] sm:$0xff]
  %v312 = vld [vmem:[%s1 + $0x778] sm:$0xff]
  %v313 = vld [vmem:[%s1 + $0x780] sm:$0xff]
  %v314 = vld [vmem:[%s1 + $0x788] sm:$0xff]
  %v315 = vld [vmem:[%s1 + $0x790] sm:$0xff]
  %v316 = vld [vmem:[%s1 + $0x798] sm:$0xff]
  %v317 = vld [vmem:[%s1 + $0x7a0] sm:$0xff]
  %v318 = vld [vmem:[%s1 + $0x7a8] sm:$0xff]
  %v319 = vld [vmem:[%s1 + $0x7b0] sm:$0xff]
  %v320 = vld [vmem:[%s1 + $0x7b8] sm:$0xff]
  %v321 = vld [vmem:[%s1 + $0x7c0] sm:$0xff]
  %v322 = vld [vmem:[%s1 + $0x7c8] sm:$0xff]
  %v323 = vld [vmem:[%s1 + $0x7d0] sm:$0xff]
  %v324 = vld [vmem:[%s1 + $0x7d8] sm:$0xff]
  %v325 = vld [vmem:[%s1 + $0x7e0] sm:$0xff]
  %v326 = vld [vmem:[%s1 + $0x7e8] sm:$0xff]
  %v327 = vld [vmem:[%s1 + $0x7f0] sm:$0xff]
  %v328 = vld [vmem:[%s1 + $0x7f8] sm:$0xff]
  %v385 = vunpack.c.l.b16 %v17
  %v386 = vunpack.c.h.b16 %v17
  %v387 = vunpack.c.l.b16 %v18
  %v388 = vunpack.c.h.b16 %v18
  %v389 = vunpack.c.l.b16 %v19
  %v390 = vunpack.c.h.b16 %v19
  %v391 = vunpack.c.l.b16 %v20
  %v392 = vunpack.c.h.b16 %v20
  %v393 = vunpack.c.l.b16 %v21
  %v394 = vunpack.c.h.b16 %v21
  %v395 = vunpack.c.l.b16 %v22
  %v396 = vunpack.c.h.b16 %v22
  %v397 = vunpack.c.l.b16 %v23
  %v398 = vunpack.c.h.b16 %v23
  %v399 = vunpack.c.l.b16 %v24
  %v400 = vunpack.c.h.b16 %v24
  %v401 = vunpack.c.l.b16 %v25
  %v402 = vunpack.c.h.b16 %v25
  %v403 = vunpack.c.l.b16 %v26
  %v404 = vunpack.c.h.b16 %v26
  %v405 = vunpack.c.l.b16 %v27
  %v406 = vunpack.c.h.b16 %v27
  %v407 = vunpack.c.l.b16 %v28
  %v408 = vunpack.c.h.b16 %v28
  %v409 = vunpack.c.l.b16 %v29
  %v410 = vunpack.c.h.b16 %v29
  %v411 = vunpack.c.l.b16 %v30
  %v412 = vunpack.c.h.b16 %v30
  %v413 = vunpack.c.l.b16 %v31
  %v414 = vunpack.c.h.b16 %v31
  %v415 = vunpack.c.l.b16 %v32
  %v416 = vunpack.c.h.b16 %v32
  %v417 = vunpack.c.l.b16 %v33
  %v418 = vunpack.c.h.b16 %v33
  %v419 = vunpack.c.l.b16 %v34
  %v420 = vunpack.c.h.b16 %v34
  %v421 = vunpack.c.l.b16 %v35
  %v422 = vunpack.c.h.b16 %v35
  %v423 = vunpack.c.l.b16 %v36
  %v424 = vunpack.c.h.b16 %v36
  %v425 = vunpack.c.l.b16 %v37
  %v426 = vunpack.c.h.b16 %v37
  %v427 = vunpack.c.l.b16 %v38
  %v428 = vunpack.c.h.b16 %v38
  %v429 = vunpack.c.l.b16 %v39
  %v430 = vunpack.c.h.b16 %v39
  %v431 = vunpack.c.l.b16 %v40
  %v432 = vunpack.c.h.b16 %v40
  %v433 = vunpack.c.l.b16 %v41
  %v434 = vunpack.c.h.b16 %v41
  %v435 = vunpack.c.l.b16 %v42
  %v436 = vunpack.c.h.b16 %v42
  %v437 = vunpack.c.l.b16 %v43
  %v438 = vunpack.c.h.b16 %v43
  %v439 = vunpack.c.l.b16 %v44
  %v440 = vunpack.c.h.b16 %v44
  %v441 = vunpack.c.l.b16 %v45
  %v442 = vunpack.c.h.b16 %v45
  %v443 = vunpack.c.l.b16 %v46
  %v444 = vunpack.c.h.b16 %v46
  %v445 = vunpack.c.l.b16 %v47
  %v446 = vunpack.c.h.b16 %v47
  %v447 = vunpack.c.l.b16 %v48
  %v448 = vunpack.c.h.b16 %v48
  %v449 = vunpack.c.l.b16 %v49
  %v450 = vunpack.c.h.b16 %v49
  %v451 = vunpack.c.l.b16 %v50
  %v452 = vunpack.c.h.b16 %v50
  %v453 = vunpack.c.l.b16 %v51
  %v454 = vunpack.c.h.b16 %v51
  %v455 = vunpack.c.l.b16 %v52
  %v456 = vunpack.c.h.b16 %v52
  %v457 = vunpack.c.l.b16 %v53
  %v458 = vunpack.c.h.b16 %v53
  %v459 = vunpack.c.l.b16 %v54
  %v460 = vunpack.c.h.b16 %v54
  %v461 = vunpack.c.l.b16 %v55
  %v462 = vunpack.c.h.b16 %v55
  %v463 = vunpack.c.l.b16 %v56
  %v464 = vunpack.c.h.b16 %v56
  %v465 = vunpack.c.l.b16 %v57
  %v466 = vunpack.c.h.b16 %v57
  %v467 = vunpack.c.l.b16 %v58
  %v468 = vunpack.c.h.b16 %v58
  %v469 = vunpack.c.l.b16 %v59
  %v470 = vunpack.c.h.b16 %v59
  %v471 = vunpack.c.l.b16 %v60
  %v472 = vunpack.c.h.b16 %v60
  %v473 = vunpack.c.l.b16 %v61
  %v474 = vunpack.c.h.b16 %v61
  %v475 = vunpack.c.l.b16 %v62
  %v476 = vunpack.c.h.b16 %v62
  %v477 = vunpack.c.l.b16 %v63
  %v478 = vunpack.c.h.b16 %v63
  %v479 = vunpack.c.l.b16 %v64
  %v480 = vunpack.c.h.b16 %v64
  %v481 = vunpack.c.l.b16 %v65
  %v482 = vunpack.c.h.b16 %v65
  %v483 = vunpack.c.l.b16 %v66
  %v484 = vunpack.c.h.b16 %v66
  %v485 = vunpack.c.l.b16 %v67
  %v486 = vunpack.c.h.b16 %v67
  %v487 = vunpack.c.l.b16 %v68
  %v488 = vunpack.c.h.b16 %v68
  %v489 = vunpack.c.l.b16 %v69
  %v490 = vunpack.c.h.b16 %v69
  %v491 = vunpack.c.l.b16 %v70
  %v492 = vunpack.c.h.b16 %v70
  %v493 = vunpack.c.l.b16 %v71
  %v494 = vunpack.c.h.b16 %v71
  %v495 = vunpack.c.l.b16 %v72
  %v496 = vunpack.c.h.b16 %v72
  %v497 = vpack.c.b16 %v401, %v385
  %v498 = vpack.c.b16 %v402, %v386
  %v499 = vpack.c.b16 %v403, %v387
  %v500 = vpack.c.b16 %v404, %v388
  %v501 = vpack.c.b16 %v405, %v389
  %v502 = vpack.c.b16 %v406, %v390
  %v503 = vpack.c.b16 %v407, %v391
  %v504 = vpack.c.b16 %v408, %v392
  %v505 = vpack.c.b16 %v409, %v393
  %v506 = vpack.c.b16 %v410, %v394
  %v507 = vpack.c.b16 %v411, %v395
  %v508 = vpack.c.b16 %v412, %v396
  %v509 = vpack.c.b16 %v413, %v397
  %v510 = vpack.c.b16 %v414, %v398
  %v511 = vpack.c.b16 %v415, %v399
  %v512 = vpack.c.b16 %v416, %v400
  %v513 = vpack.c.b16 %v433, %v417
  %v514 = vpack.c.b16 %v434, %v418
  %v515 = vpack.c.b16 %v435, %v419
  %v516 = vpack.c.b16 %v436, %v420
  %v517 = vpack.c.b16 %v437, %v421
  %v518 = vpack.c.b16 %v438, %v422
  %v519 = vpack.c.b16 %v439, %v423
  %v520 = vpack.c.b16 %v440, %v424
  %v521 = vpack.c.b16 %v441, %v425
  %v522 = vpack.c.b16 %v442, %v426
  %v523 = vpack.c.b16 %v443, %v427
  %v524 = vpack.c.b16 %v444, %v428
  %v525 = vpack.c.b16 %v445, %v429
  %v526 = vpack.c.b16 %v446, %v430
  %v527 = vpack.c.b16 %v447, %v431
  %v528 = vpack.c.b16 %v448, %v432
  %v529 = vpack.c.b16 %v465, %v449
  %v530 = vpack.c.b16 %v466, %v450
  %v531 = vpack.c.b16 %v467, %v451
  %v532 = vpack.c.b16 %v468, %v452
  %v533 = vpack.c.b16 %v469, %v453
  %v534 = vpack.c.b16 %v470, %v454
  %v535 = vpack.c.b16 %v471, %v455
  %v536 = vpack.c.b16 %v472, %v456
  %v537 = vpack.c.b16 %v473, %v457
  %v538 = vpack.c.b16 %v474, %v458
  %v539 = vpack.c.b16 %v475, %v459
  %v540 = vpack.c.b16 %v476, %v460
  %v541 = vpack.c.b16 %v477, %v461
  %v542 = vpack.c.b16 %v478, %v462
  %v543 = vpack.c.b16 %v479, %v463
  %v544 = vpack.c.b16 %v480, %v464
  %v545 = vpack.c.b16 %v481, %v481
  %v546 = vpack.c.b16 %v482, %v482
  %v547 = vpack.c.b16 %v483, %v483
  %v548 = vpack.c.b16 %v484, %v484
  %v549 = vpack.c.b16 %v485, %v485
  %v550 = vpack.c.b16 %v486, %v486
  %v551 = vpack.c.b16 %v487, %v487
  %v552 = vpack.c.b16 %v488, %v488
  %v553 = vpack.c.b16 %v489, %v489
  %v554 = vpack.c.b16 %v490, %v490
  %v555 = vpack.c.b16 %v491, %v491
  %v556 = vpack.c.b16 %v492, %v492
  %v557 = vpack.c.b16 %v493, %v493
  %v558 = vpack.c.b16 %v494, %v494
  %v559 = vpack.c.b16 %v495, %v495
  %v560 = vpack.c.b16 %v496, %v496
  %v881 = vunpack.c.l.b16 %v73
  %v882 = vunpack.c.h.b16 %v73
  %v883 = vunpack.c.l.b16 %v74
  %v884 = vunpack.c.h.b16 %v74
  %v885 = vunpack.c.l.b16 %v75
  %v886 = vunpack.c.h.b16 %v75
  %v887 = vunpack.c.l.b16 %v76
  %v888 = vunpack.c.h.b16 %v76
  %v889 = vunpack.c.l.b16 %v77
  %v890 = vunpack.c.h.b16 %v77
  %v891 = vunpack.c.l.b16 %v78
  %v892 = vunpack.c.h.b16 %v78
  %v893 = vunpack.c.l.b16 %v79
  %v894 = vunpack.c.h.b16 %v79
  %v895 = vunpack.c.l.b16 %v80
  %v896 = vunpack.c.h.b16 %v80
  %v897 = vunpack.c.l.b16 %v81
  %v898 = vunpack.c.h.b16 %v81
  %v899 = vunpack.c.l.b16 %v82
  %v900 = vunpack.c.h.b16 %v82
  %v901 = vunpack.c.l.b16 %v83
  %v902 = vunpack.c.h.b16 %v83
  %v903 = vunpack.c.l.b16 %v84
  %v904 = vunpack.c.h.b16 %v84
  %v905 = vunpack.c.l.b16 %v85
  %v906 = vunpack.c.h.b16 %v85
  %v907 = vunpack.c.l.b16 %v86
  %v908 = vunpack.c.h.b16 %v86
  %v909 = vunpack.c.l.b16 %v87
  %v910 = vunpack.c.h.b16 %v87
  %v911 = vunpack.c.l.b16 %v88
  %v912 = vunpack.c.h.b16 %v88
  %v913 = vunpack.c.l.b16 %v89
  %v914 = vunpack.c.h.b16 %v89
  %v915 = vunpack.c.l.b16 %v90
  %v916 = vunpack.c.h.b16 %v90
  %v917 = vunpack.c.l.b16 %v91
  %v918 = vunpack.c.h.b16 %v91
  %v919 = vunpack.c.l.b16 %v92
  %v920 = vunpack.c.h.b16 %v92
  %v921 = vunpack.c.l.b16 %v93
  %v922 = vunpack.c.h.b16 %v93
  %v923 = vunpack.c.l.b16 %v94
  %v924 = vunpack.c.h.b16 %v94
  %v925 = vunpack.c.l.b16 %v95
  %v926 = vunpack.c.h.b16 %v95
  %v927 = vunpack.c.l.b16 %v96
  %v928 = vunpack.c.h.b16 %v96
  %v929 = vunpack.c.l.b16 %v97
  %v930 = vunpack.c.h.b16 %v97
  %v931 = vunpack.c.l.b16 %v98
  %v932 = vunpack.c.h.b16 %v98
  %v933 = vunpack.c.l.b16 %v99
  %v934 = vunpack.c.h.b16 %v99
  %v935 = vunpack.c.l.b16 %v100
  %v936 = vunpack.c.h.b16 %v100
  %v937 = vunpack.c.l.b16 %v101
  %v938 = vunpack.c.h.b16 %v101
  %v939 = vunpack.c.l.b16 %v102
  %v940 = vunpack.c.h.b16 %v102
  %v941 = vunpack.c.l.b16 %v103
  %v942 = vunpack.c.h.b16 %v103
  %v943 = vunpack.c.l.b16 %v104
  %v944 = vunpack.c.h.b16 %v104
  %v945 = vunpack.c.l.b16 %v105
  %v946 = vunpack.c.h.b16 %v105
  %v947 = vunpack.c.l.b16 %v106
  %v948 = vunpack.c.h.b16 %v106
  %v949 = vunpack.c.l.b16 %v107
  %v950 = vunpack.c.h.b16 %v107
  %v951 = vunpack.c.l.b16 %v108
  %v952 = vunpack.c.h.b16 %v108
  %v953 = vunpack.c.l.b16 %v109
  %v954 = vunpack.c.h.b16 %v109
  %v955 = vunpack.c.l.b16 %v110
  %v956 = vunpack.c.h.b16 %v110
  %v957 = vunpack.c.l.b16 %v111
  %v958 = vunpack.c.h.b16 %v111
  %v959 = vunpack.c.l.b16 %v112
  %v960 = vunpack.c.h.b16 %v112
  %v961 = vunpack.c.l.b16 %v113
  %v962 = vunpack.c.h.b16 %v113
  %v963 = vunpack.c.l.b16 %v114
  %v964 = vunpack.c.h.b16 %v114
  %v965 = vunpack.c.l.b16 %v115
  %v966 = vunpack.c.h.b16 %v115
  %v967 = vunpack.c.l.b16 %v116
  %v968 = vunpack.c.h.b16 %v116
  %v969 = vunpack.c.l.b16 %v117
  %v970 = vunpack.c.h.b16 %v117
  %v971 = vunpack.c.l.b16 %v118
  %v972 = vunpack.c.h.b16 %v118
  %v973 = vunpack.c.l.b16 %v119
  %v974 = vunpack.c.h.b16 %v119
  %v975 = vunpack.c.l.b16 %v120
  %v976 = vunpack.c.h.b16 %v120
  %v977 = vunpack.c.l.b16 %v121
  %v978 = vunpack.c.h.b16 %v121
  %v979 = vunpack.c.l.b16 %v122
  %v980 = vunpack.c.h.b16 %v122
  %v981 = vunpack.c.l.b16 %v123
  %v982 = vunpack.c.h.b16 %v123
  %v983 = vunpack.c.l.b16 %v124
  %v984 = vunpack.c.h.b16 %v124
  %v985 = vunpack.c.l.b16 %v125
  %v986 = vunpack.c.h.b16 %v125
  %v987 = vunpack.c.l.b16 %v126
  %v988 = vunpack.c.h.b16 %v126
  %v989 = vunpack.c.l.b16 %v127
  %v990 = vunpack.c.h.b16 %v127
  %v991 = vunpack.c.l.b16 %v128
  %v992 = vunpack.c.h.b16 %v128
  %v993 = vunpack.c.l.b16 %v129
  %v994 = vunpack.c.h.b16 %v129
  %v995 = vunpack.c.l.b16 %v130
  %v996 = vunpack.c.h.b16 %v130
  %v997 = vunpack.c.l.b16 %v131
  %v998 = vunpack.c.h.b16 %v131
  %v999 = vunpack.c.l.b16 %v132
  %v1000 = vunpack.c.h.b16 %v132
  %v1001 = vunpack.c.l.b16 %v133
  %v1002 = vunpack.c.h.b16 %v133
  %v1003 = vunpack.c.l.b16 %v134
  %v1004 = vunpack.c.h.b16 %v134
  %v1005 = vunpack.c.l.b16 %v135
  %v1006 = vunpack.c.h.b16 %v135
  %v1007 = vunpack.c.l.b16 %v136
  %v1008 = vunpack.c.h.b16 %v136
  %v1009 = vunpack.c.l.b16 %v137
  %v1010 = vunpack.c.h.b16 %v137
  %v1011 = vunpack.c.l.b16 %v138
  %v1012 = vunpack.c.h.b16 %v138
  %v1013 = vunpack.c.l.b16 %v139
  %v1014 = vunpack.c.h.b16 %v139
  %v1015 = vunpack.c.l.b16 %v140
  %v1016 = vunpack.c.h.b16 %v140
  %v1017 = vunpack.c.l.b16 %v141
  %v1018 = vunpack.c.h.b16 %v141
  %v1019 = vunpack.c.l.b16 %v142
  %v1020 = vunpack.c.h.b16 %v142
  %v1021 = vunpack.c.l.b16 %v143
  %v1022 = vunpack.c.h.b16 %v143
  %v1023 = vunpack.c.l.b16 %v144
  %v1024 = vunpack.c.h.b16 %v144
  %v1025 = vunpack.c.l.b16 %v145
  %v1026 = vunpack.c.h.b16 %v145
  %v1027 = vunpack.c.l.b16 %v146
  %v1028 = vunpack.c.h.b16 %v146
  %v1029 = vunpack.c.l.b16 %v147
  %v1030 = vunpack.c.h.b16 %v147
  %v1031 = vunpack.c.l.b16 %v148
  %v1032 = vunpack.c.h.b16 %v148
  %v1033 = vunpack.c.l.b16 %v149
  %v1034 = vunpack.c.h.b16 %v149
  %v1035 = vunpack.c.l.b16 %v150
  %v1036 = vunpack.c.h.b16 %v150
  %v1037 = vunpack.c.l.b16 %v151
  %v1038 = vunpack.c.h.b16 %v151
  %v1039 = vunpack.c.l.b16 %v152
  %v1040 = vunpack.c.h.b16 %v152
  %v1041 = vunpack.c.l.b16 %v153
  %v1042 = vunpack.c.h.b16 %v153
  %v1043 = vunpack.c.l.b16 %v154
  %v1044 = vunpack.c.h.b16 %v154
  %v1045 = vunpack.c.l.b16 %v155
  %v1046 = vunpack.c.h.b16 %v155
  %v1047 = vunpack.c.l.b16 %v156
  %v1048 = vunpack.c.h.b16 %v156
  %v1049 = vunpack.c.l.b16 %v157
  %v1050 = vunpack.c.h.b16 %v157
  %v1051 = vunpack.c.l.b16 %v158
  %v1052 = vunpack.c.h.b16 %v158
  %v1053 = vunpack.c.l.b16 %v159
  %v1054 = vunpack.c.h.b16 %v159
  %v1055 = vunpack.c.l.b16 %v160
  %v1056 = vunpack.c.h.b16 %v160
  %v1057 = vunpack.c.l.b16 %v161
  %v1058 = vunpack.c.h.b16 %v161
  %v1059 = vunpack.c.l.b16 %v162
  %v1060 = vunpack.c.h.b16 %v162
  %v1061 = vunpack.c.l.b16 %v163
  %v1062 = vunpack.c.h.b16 %v163
  %v1063 = vunpack.c.l.b16 %v164
  %v1064 = vunpack.c.h.b16 %v164
  %v1065 = vunpack.c.l.b16 %v165
  %v1066 = vunpack.c.h.b16 %v165
  %v1067 = vunpack.c.l.b16 %v166
  %v1068 = vunpack.c.h.b16 %v166
  %v1069 = vunpack.c.l.b16 %v167
  %v1070 = vunpack.c.h.b16 %v167
  %v1071 = vunpack.c.l.b16 %v168
  %v1072 = vunpack.c.h.b16 %v168
  %v1073 = vunpack.c.l.b16 %v169
  %v1074 = vunpack.c.h.b16 %v169
  %v1075 = vunpack.c.l.b16 %v170
  %v1076 = vunpack.c.h.b16 %v170
  %v1077 = vunpack.c.l.b16 %v171
  %v1078 = vunpack.c.h.b16 %v171
  %v1079 = vunpack.c.l.b16 %v172
  %v1080 = vunpack.c.h.b16 %v172
  %v1081 = vunpack.c.l.b16 %v173
  %v1082 = vunpack.c.h.b16 %v173
  %v1083 = vunpack.c.l.b16 %v174
  %v1084 = vunpack.c.h.b16 %v174
  %v1085 = vunpack.c.l.b16 %v175
  %v1086 = vunpack.c.h.b16 %v175
  %v1087 = vunpack.c.l.b16 %v176
  %v1088 = vunpack.c.h.b16 %v176
  %v1089 = vunpack.c.l.b16 %v177
  %v1090 = vunpack.c.h.b16 %v177
  %v1091 = vunpack.c.l.b16 %v178
  %v1092 = vunpack.c.h.b16 %v178
  %v1093 = vunpack.c.l.b16 %v179
  %v1094 = vunpack.c.h.b16 %v179
  %v1095 = vunpack.c.l.b16 %v180
  %v1096 = vunpack.c.h.b16 %v180
  %v1097 = vunpack.c.l.b16 %v181
  %v1098 = vunpack.c.h.b16 %v181
  %v1099 = vunpack.c.l.b16 %v182
  %v1100 = vunpack.c.h.b16 %v182
  %v1101 = vunpack.c.l.b16 %v183
  %v1102 = vunpack.c.h.b16 %v183
  %v1103 = vunpack.c.l.b16 %v184
  %v1104 = vunpack.c.h.b16 %v184
  %v1105 = vunpack.c.l.b16 %v185
  %v1106 = vunpack.c.h.b16 %v185
  %v1107 = vunpack.c.l.b16 %v186
  %v1108 = vunpack.c.h.b16 %v186
  %v1109 = vunpack.c.l.b16 %v187
  %v1110 = vunpack.c.h.b16 %v187
  %v1111 = vunpack.c.l.b16 %v188
  %v1112 = vunpack.c.h.b16 %v188
  %v1113 = vunpack.c.l.b16 %v189
  %v1114 = vunpack.c.h.b16 %v189
  %v1115 = vunpack.c.l.b16 %v190
  %v1116 = vunpack.c.h.b16 %v190
  %v1117 = vunpack.c.l.b16 %v191
  %v1118 = vunpack.c.h.b16 %v191
  %v1119 = vunpack.c.l.b16 %v192
  %v1120 = vunpack.c.h.b16 %v192
  %v1121 = vunpack.c.l.b16 %v193
  %v1122 = vunpack.c.h.b16 %v193
  %v1123 = vunpack.c.l.b16 %v194
  %v1124 = vunpack.c.h.b16 %v194
  %v1125 = vunpack.c.l.b16 %v195
  %v1126 = vunpack.c.h.b16 %v195
  %v1127 = vunpack.c.l.b16 %v196
  %v1128 = vunpack.c.h.b16 %v196
  %v1129 = vunpack.c.l.b16 %v197
  %v1130 = vunpack.c.h.b16 %v197
  %v1131 = vunpack.c.l.b16 %v198
  %v1132 = vunpack.c.h.b16 %v198
  %v1133 = vunpack.c.l.b16 %v199
  %v1134 = vunpack.c.h.b16 %v199
  %v1135 = vunpack.c.l.b16 %v200
  %v1136 = vunpack.c.h.b16 %v200
  %v1137 = vunpack.c.l.b16 %v201
  %v1138 = vunpack.c.h.b16 %v201
  %v1139 = vunpack.c.l.b16 %v202
  %v1140 = vunpack.c.h.b16 %v202
  %v1141 = vunpack.c.l.b16 %v203
  %v1142 = vunpack.c.h.b16 %v203
  %v1143 = vunpack.c.l.b16 %v204
  %v1144 = vunpack.c.h.b16 %v204
  %v1145 = vunpack.c.l.b16 %v205
  %v1146 = vunpack.c.h.b16 %v205
  %v1147 = vunpack.c.l.b16 %v206
  %v1148 = vunpack.c.h.b16 %v206
  %v1149 = vunpack.c.l.b16 %v207
  %v1150 = vunpack.c.h.b16 %v207
  %v1151 = vunpack.c.l.b16 %v208
  %v1152 = vunpack.c.h.b16 %v208
  %v1153 = vunpack.c.l.b16 %v209
  %v1154 = vunpack.c.h.b16 %v209
  %v1155 = vunpack.c.l.b16 %v210
  %v1156 = vunpack.c.h.b16 %v210
  %v1157 = vunpack.c.l.b16 %v211
  %v1158 = vunpack.c.h.b16 %v211
  %v1159 = vunpack.c.l.b16 %v212
  %v1160 = vunpack.c.h.b16 %v212
  %v1161 = vunpack.c.l.b16 %v213
  %v1162 = vunpack.c.h.b16 %v213
  %v1163 = vunpack.c.l.b16 %v214
  %v1164 = vunpack.c.h.b16 %v214
  %v1165 = vunpack.c.l.b16 %v215
  %v1166 = vunpack.c.h.b16 %v215
  %v1167 = vunpack.c.l.b16 %v216
  %v1168 = vunpack.c.h.b16 %v216
  %v1169 = vunpack.c.l.b16 %v217
  %v1170 = vunpack.c.h.b16 %v217
  %v1171 = vunpack.c.l.b16 %v218
  %v1172 = vunpack.c.h.b16 %v218
  %v1173 = vunpack.c.l.b16 %v219
  %v1174 = vunpack.c.h.b16 %v219
  %v1175 = vunpack.c.l.b16 %v220
  %v1176 = vunpack.c.h.b16 %v220
  %v1177 = vunpack.c.l.b16 %v221
  %v1178 = vunpack.c.h.b16 %v221
  %v1179 = vunpack.c.l.b16 %v222
  %v1180 = vunpack.c.h.b16 %v222
  %v1181 = vunpack.c.l.b16 %v223
  %v1182 = vunpack.c.h.b16 %v223
  %v1183 = vunpack.c.l.b16 %v224
  %v1184 = vunpack.c.h.b16 %v224
  %v1185 = vunpack.c.l.b16 %v225
  %v1186 = vunpack.c.h.b16 %v225
  %v1187 = vunpack.c.l.b16 %v226
  %v1188 = vunpack.c.h.b16 %v226
  %v1189 = vunpack.c.l.b16 %v227
  %v1190 = vunpack.c.h.b16 %v227
  %v1191 = vunpack.c.l.b16 %v228
  %v1192 = vunpack.c.h.b16 %v228
  %v1193 = vunpack.c.l.b16 %v229
  %v1194 = vunpack.c.h.b16 %v229
  %v1195 = vunpack.c.l.b16 %v230
  %v1196 = vunpack.c.h.b16 %v230
  %v1197 = vunpack.c.l.b16 %v231
  %v1198 = vunpack.c.h.b16 %v231
  %v1199 = vunpack.c.l.b16 %v232
  %v1200 = vunpack.c.h.b16 %v232
  %v1201 = vunpack.c.l.b16 %v233
  %v1202 = vunpack.c.h.b16 %v233
  %v1203 = vunpack.c.l.b16 %v234
  %v1204 = vunpack.c.h.b16 %v234
  %v1205 = vunpack.c.l.b16 %v235
  %v1206 = vunpack.c.h.b16 %v235
  %v1207 = vunpack.c.l.b16 %v236
  %v1208 = vunpack.c.h.b16 %v236
  %v1209 = vunpack.c.l.b16 %v237
  %v1210 = vunpack.c.h.b16 %v237
  %v1211 = vunpack.c.l.b16 %v238
  %v1212 = vunpack.c.h.b16 %v238
  %v1213 = vunpack.c.l.b16 %v239
  %v1214 = vunpack.c.h.b16 %v239
  %v1215 = vunpack.c.l.b16 %v240
  %v1216 = vunpack.c.h.b16 %v240
  %v1217 = vunpack.c.l.b16 %v241
  %v1218 = vunpack.c.h.b16 %v241
  %v1219 = vunpack.c.l.b16 %v242
  %v1220 = vunpack.c.h.b16 %v242
  %v1221 = vunpack.c.l.b16 %v243
  %v1222 = vunpack.c.h.b16 %v243
  %v1223 = vunpack.c.l.b16 %v244
  %v1224 = vunpack.c.h.b16 %v244
  %v1225 = vunpack.c.l.b16 %v245
  %v1226 = vunpack.c.h.b16 %v245
  %v1227 = vunpack.c.l.b16 %v246
  %v1228 = vunpack.c.h.b16 %v246
  %v1229 = vunpack.c.l.b16 %v247
  %v1230 = vunpack.c.h.b16 %v247
  %v1231 = vunpack.c.l.b16 %v248
  %v1232 = vunpack.c.h.b16 %v248
  %v1233 = vunpack.c.l.b16 %v249
  %v1234 = vunpack.c.h.b16 %v249
  %v1235 = vunpack.c.l.b16 %v250
  %v1236 = vunpack.c.h.b16 %v250
  %v1237 = vunpack.c.l.b16 %v251
  %v1238 = vunpack.c.h.b16 %v251
  %v1239 = vunpack.c.l.b16 %v252
  %v1240 = vunpack.c.h.b16 %v252
  %v1241 = vunpack.c.l.b16 %v253
  %v1242 = vunpack.c.h.b16 %v253
  %v1243 = vunpack.c.l.b16 %v254
  %v1244 = vunpack.c.h.b16 %v254
  %v1245 = vunpack.c.l.b16 %v255
  %v1246 = vunpack.c.h.b16 %v255
  %v1247 = vunpack.c.l.b16 %v256
  %v1248 = vunpack.c.h.b16 %v256
  %v1249 = vunpack.c.l.b16 %v257
  %v1250 = vunpack.c.h.b16 %v257
  %v1251 = vunpack.c.l.b16 %v258
  %v1252 = vunpack.c.h.b16 %v258
  %v1253 = vunpack.c.l.b16 %v259
  %v1254 = vunpack.c.h.b16 %v259
  %v1255 = vunpack.c.l.b16 %v260
  %v1256 = vunpack.c.h.b16 %v260
  %v1257 = vunpack.c.l.b16 %v261
  %v1258 = vunpack.c.h.b16 %v261
  %v1259 = vunpack.c.l.b16 %v262
  %v1260 = vunpack.c.h.b16 %v262
  %v1261 = vunpack.c.l.b16 %v263
  %v1262 = vunpack.c.h.b16 %v263
  %v1263 = vunpack.c.l.b16 %v264
  %v1264 = vunpack.c.h.b16 %v264
  %v1265 = vunpack.c.l.b16 %v265
  %v1266 = vunpack.c.h.b16 %v265
  %v1267 = vunpack.c.l.b16 %v266
  %v1268 = vunpack.c.h.b16 %v266
  %v1269 = vunpack.c.l.b16 %v267
  %v1270 = vunpack.c.h.b16 %v267
  %v1271 = vunpack.c.l.b16 %v268
  %v1272 = vunpack.c.h.b16 %v268
  %v1273 = vunpack.c.l.b16 %v269
  %v1274 = vunpack.c.h.b16 %v269
  %v1275 = vunpack.c.l.b16 %v270
  %v1276 = vunpack.c.h.b16 %v270
  %v1277 = vunpack.c.l.b16 %v271
  %v1278 = vunpack.c.h.b16 %v271
  %v1279 = vunpack.c.l.b16 %v272
  %v1280 = vunpack.c.h.b16 %v272
  %v1281 = vunpack.c.l.b16 %v273
  %v1282 = vunpack.c.h.b16 %v273
  %v1283 = vunpack.c.l.b16 %v274
  %v1284 = vunpack.c.h.b16 %v274
  %v1285 = vunpack.c.l.b16 %v275
  %v1286 = vunpack.c.h.b16 %v275
  %v1287 = vunpack.c.l.b16 %v276
  %v1288 = vunpack.c.h.b16 %v276
  %v1289 = vunpack.c.l.b16 %v277
  %v1290 = vunpack.c.h.b16 %v277
  %v1291 = vunpack.c.l.b16 %v278
  %v1292 = vunpack.c.h.b16 %v278
  %v1293 = vunpack.c.l.b16 %v279
  %v1294 = vunpack.c.h.b16 %v279
  %v1295 = vunpack.c.l.b16 %v280
  %v1296 = vunpack.c.h.b16 %v280
  %v1297 = vunpack.c.l.b16 %v281
  %v1298 = vunpack.c.h.b16 %v281
  %v1299 = vunpack.c.l.b16 %v282
  %v1300 = vunpack.c.h.b16 %v282
  %v1301 = vunpack.c.l.b16 %v283
  %v1302 = vunpack.c.h.b16 %v283
  %v1303 = vunpack.c.l.b16 %v284
  %v1304 = vunpack.c.h.b16 %v284
  %v1305 = vunpack.c.l.b16 %v285
  %v1306 = vunpack.c.h.b16 %v285
  %v1307 = vunpack.c.l.b16 %v286
  %v1308 = vunpack.c.h.b16 %v286
  %v1309 = vunpack.c.l.b16 %v287
  %v1310 = vunpack.c.h.b16 %v287
  %v1311 = vunpack.c.l.b16 %v288
  %v1312 = vunpack.c.h.b16 %v288
  %v1313 = vunpack.c.l.b16 %v289
  %v1314 = vunpack.c.h.b16 %v289
  %v1315 = vunpack.c.l.b16 %v290
  %v1316 = vunpack.c.h.b16 %v290
  %v1317 = vunpack.c.l.b16 %v291
  %v1318 = vunpack.c.h.b16 %v291
  %v1319 = vunpack.c.l.b16 %v292
  %v1320 = vunpack.c.h.b16 %v292
  %v1321 = vunpack.c.l.b16 %v293
  %v1322 = vunpack.c.h.b16 %v293
  %v1323 = vunpack.c.l.b16 %v294
  %v1324 = vunpack.c.h.b16 %v294
  %v1325 = vunpack.c.l.b16 %v295
  %v1326 = vunpack.c.h.b16 %v295
  %v1327 = vunpack.c.l.b16 %v296
  %v1328 = vunpack.c.h.b16 %v296
  %v1329 = vunpack.c.l.b16 %v297
  %v1330 = vunpack.c.h.b16 %v297
  %v1331 = vunpack.c.l.b16 %v298
  %v1332 = vunpack.c.h.b16 %v298
  %v1333 = vunpack.c.l.b16 %v299
  %v1334 = vunpack.c.h.b16 %v299
  %v1335 = vunpack.c.l.b16 %v300
  %v1336 = vunpack.c.h.b16 %v300
  %v1337 = vunpack.c.l.b16 %v301
  %v1338 = vunpack.c.h.b16 %v301
  %v1339 = vunpack.c.l.b16 %v302
  %v1340 = vunpack.c.h.b16 %v302
  %v1341 = vunpack.c.l.b16 %v303
  %v1342 = vunpack.c.h.b16 %v303
  %v1343 = vunpack.c.l.b16 %v304
  %v1344 = vunpack.c.h.b16 %v304
  %v1345 = vunpack.c.l.b16 %v305
  %v1346 = vunpack.c.h.b16 %v305
  %v1347 = vunpack.c.l.b16 %v306
  %v1348 = vunpack.c.h.b16 %v306
  %v1349 = vunpack.c.l.b16 %v307
  %v1350 = vunpack.c.h.b16 %v307
  %v1351 = vunpack.c.l.b16 %v308
  %v1352 = vunpack.c.h.b16 %v308
  %v1353 = vunpack.c.l.b16 %v309
  %v1354 = vunpack.c.h.b16 %v309
  %v1355 = vunpack.c.l.b16 %v310
  %v1356 = vunpack.c.h.b16 %v310
  %v1357 = vunpack.c.l.b16 %v311
  %v1358 = vunpack.c.h.b16 %v311
  %v1359 = vunpack.c.l.b16 %v312
  %v1360 = vunpack.c.h.b16 %v312
  %v1361 = vunpack.c.l.b16 %v313
  %v1362 = vunpack.c.h.b16 %v313
  %v1363 = vunpack.c.l.b16 %v314
  %v1364 = vunpack.c.h.b16 %v314
  %v1365 = vunpack.c.l.b16 %v315
  %v1366 = vunpack.c.h.b16 %v315
  %v1367 = vunpack.c.l.b16 %v316
  %v1368 = vunpack.c.h.b16 %v316
  %v1369 = vunpack.c.l.b16 %v317
  %v1370 = vunpack.c.h.b16 %v317
  %v1371 = vunpack.c.l.b16 %v318
  %v1372 = vunpack.c.h.b16 %v318
  %v1373 = vunpack.c.l.b16 %v319
  %v1374 = vunpack.c.h.b16 %v319
  %v1375 = vunpack.c.l.b16 %v320
  %v1376 = vunpack.c.h.b16 %v320
  %v1377 = vunpack.c.l.b16 %v321
  %v1378 = vunpack.c.h.b16 %v321
  %v1379 = vunpack.c.l.b16 %v322
  %v1380 = vunpack.c.h.b16 %v322
  %v1381 = vunpack.c.l.b16 %v323
  %v1382 = vunpack.c.h.b16 %v323
  %v1383 = vunpack.c.l.b16 %v324
  %v1384 = vunpack.c.h.b16 %v324
  %v1385 = vunpack.c.l.b16 %v325
  %v1386 = vunpack.c.h.b16 %v325
  %v1387 = vunpack.c.l.b16 %v326
  %v1388 = vunpack.c.h.b16 %v326
  %v1389 = vunpack.c.l.b16 %v327
  %v1390 = vunpack.c.h.b16 %v327
  %v1391 = vunpack.c.l.b16 %v328
  %v1392 = vunpack.c.h.b16 %v328
  %v1393 = vpack.c.b16 %v883, %v881
  %v1394 = vpack.c.b16 %v884, %v882
  %v1395 = vpack.c.b16 %v887, %v885
  %v1396 = vpack.c.b16 %v888, %v886
  %v1397 = vpack.c.b16 %v891, %v889
  %v1398 = vpack.c.b16 %v892, %v890
  %v1399 = vpack.c.b16 %v895, %v893
  %v1400 = vpack.c.b16 %v896, %v894
  %v1401 = vpack.c.b16 %v899, %v897
  %v1402 = vpack.c.b16 %v900, %v898
  %v1403 = vpack.c.b16 %v903, %v901
  %v1404 = vpack.c.b16 %v904, %v902
  %v1405 = vpack.c.b16 %v907, %v905
  %v1406 = vpack.c.b16 %v908, %v906
  %v1407 = vpack.c.b16 %v911, %v909
  %v1408 = vpack.c.b16 %v912, %v910
  %v1409 = vpack.c.b16 %v915, %v913
  %v1410 = vpack.c.b16 %v916, %v914
  %v1411 = vpack.c.b16 %v919, %v917
  %v1412 = vpack.c.b16 %v920, %v918
  %v1413 = vpack.c.b16 %v923, %v921
  %v1414 = vpack.c.b16 %v924, %v922
  %v1415 = vpack.c.b16 %v927, %v925
  %v1416 = vpack.c.b16 %v928, %v926
  %v1417 = vpack.c.b16 %v931, %v929
  %v1418 = vpack.c.b16 %v932, %v930
  %v1419 = vpack.c.b16 %v935, %v933
  %v1420 = vpack.c.b16 %v936, %v934
  %v1421 = vpack.c.b16 %v939, %v937
  %v1422 = vpack.c.b16 %v940, %v938
  %v1423 = vpack.c.b16 %v943, %v941
  %v1424 = vpack.c.b16 %v944, %v942
  %v1425 = vpack.c.b16 %v947, %v945
  %v1426 = vpack.c.b16 %v948, %v946
  %v1427 = vpack.c.b16 %v951, %v949
  %v1428 = vpack.c.b16 %v952, %v950
  %v1429 = vpack.c.b16 %v955, %v953
  %v1430 = vpack.c.b16 %v956, %v954
  %v1431 = vpack.c.b16 %v959, %v957
  %v1432 = vpack.c.b16 %v960, %v958
  %v1433 = vpack.c.b16 %v963, %v961
  %v1434 = vpack.c.b16 %v964, %v962
  %v1435 = vpack.c.b16 %v967, %v965
  %v1436 = vpack.c.b16 %v968, %v966
  %v1437 = vpack.c.b16 %v971, %v969
  %v1438 = vpack.c.b16 %v972, %v970
  %v1439 = vpack.c.b16 %v975, %v973
  %v1440 = vpack.c.b16 %v976, %v974
  %v1441 = vpack.c.b16 %v979, %v977
  %v1442 = vpack.c.b16 %v980, %v978
  %v1443 = vpack.c.b16 %v983, %v981
  %v1444 = vpack.c.b16 %v984, %v982
  %v1445 = vpack.c.b16 %v987, %v985
  %v1446 = vpack.c.b16 %v988, %v986
  %v1447 = vpack.c.b16 %v991, %v989
  %v1448 = vpack.c.b16 %v992, %v990
  %v1449 = vpack.c.b16 %v995, %v993
  %v1450 = vpack.c.b16 %v996, %v994
  %v1451 = vpack.c.b16 %v999, %v997
  %v1452 = vpack.c.b16 %v1000, %v998
  %v1453 = vpack.c.b16 %v1003, %v1001
  %v1454 = vpack.c.b16 %v1004, %v1002
  %v1455 = vpack.c.b16 %v1007, %v1005
  %v1456 = vpack.c.b16 %v1008, %v1006
  %v1457 = vpack.c.b16 %v1011, %v1009
  %v1458 = vpack.c.b16 %v1012, %v1010
  %v1459 = vpack.c.b16 %v1015, %v1013
  %v1460 = vpack.c.b16 %v1016, %v1014
  %v1461 = vpack.c.b16 %v1019, %v1017
  %v1462 = vpack.c.b16 %v1020, %v1018
  %v1463 = vpack.c.b16 %v1023, %v1021
  %v1464 = vpack.c.b16 %v1024, %v1022
  %v1465 = vpack.c.b16 %v1027, %v1025
  %v1466 = vpack.c.b16 %v1028, %v1026
  %v1467 = vpack.c.b16 %v1031, %v1029
  %v1468 = vpack.c.b16 %v1032, %v1030
  %v1469 = vpack.c.b16 %v1035, %v1033
  %v1470 = vpack.c.b16 %v1036, %v1034
  %v1471 = vpack.c.b16 %v1039, %v1037
  %v1472 = vpack.c.b16 %v1040, %v1038
  %v1473 = vpack.c.b16 %v1043, %v1041
  %v1474 = vpack.c.b16 %v1044, %v1042
  %v1475 = vpack.c.b16 %v1047, %v1045
  %v1476 = vpack.c.b16 %v1048, %v1046
  %v1477 = vpack.c.b16 %v1051, %v1049
  %v1478 = vpack.c.b16 %v1052, %v1050
  %v1479 = vpack.c.b16 %v1055, %v1053
  %v1480 = vpack.c.b16 %v1056, %v1054
  %v1481 = vpack.c.b16 %v1059, %v1057
  %v1482 = vpack.c.b16 %v1060, %v1058
  %v1483 = vpack.c.b16 %v1063, %v1061
  %v1484 = vpack.c.b16 %v1064, %v1062
  %v1485 = vpack.c.b16 %v1067, %v1065
  %v1486 = vpack.c.b16 %v1068, %v1066
  %v1487 = vpack.c.b16 %v1071, %v1069
  %v1488 = vpack.c.b16 %v1072, %v1070
  %v1489 = vpack.c.b16 %v1075, %v1073
  %v1490 = vpack.c.b16 %v1076, %v1074
  %v1491 = vpack.c.b16 %v1079, %v1077
  %v1492 = vpack.c.b16 %v1080, %v1078
  %v1493 = vpack.c.b16 %v1083, %v1081
  %v1494 = vpack.c.b16 %v1084, %v1082
  %v1495 = vpack.c.b16 %v1087, %v1085
  %v1496 = vpack.c.b16 %v1088, %v1086
  %v1497 = vpack.c.b16 %v1091, %v1089
  %v1498 = vpack.c.b16 %v1092, %v1090
  %v1499 = vpack.c.b16 %v1095, %v1093
  %v1500 = vpack.c.b16 %v1096, %v1094
  %v1501 = vpack.c.b16 %v1099, %v1097
  %v1502 = vpack.c.b16 %v1100, %v1098
  %v1503 = vpack.c.b16 %v1103, %v1101
  %v1504 = vpack.c.b16 %v1104, %v1102
  %v1505 = vpack.c.b16 %v1107, %v1105
  %v1506 = vpack.c.b16 %v1108, %v1106
  %v1507 = vpack.c.b16 %v1111, %v1109
  %v1508 = vpack.c.b16 %v1112, %v1110
  %v1509 = vpack.c.b16 %v1115, %v1113
  %v1510 = vpack.c.b16 %v1116, %v1114
  %v1511 = vpack.c.b16 %v1119, %v1117
  %v1512 = vpack.c.b16 %v1120, %v1118
  %v1513 = vpack.c.b16 %v1123, %v1121
  %v1514 = vpack.c.b16 %v1124, %v1122
  %v1515 = vpack.c.b16 %v1127, %v1125
  %v1516 = vpack.c.b16 %v1128, %v1126
  %v1517 = vpack.c.b16 %v1131, %v1129
  %v1518 = vpack.c.b16 %v1132, %v1130
  %v1519 = vpack.c.b16 %v1135, %v1133
  %v1520 = vpack.c.b16 %v1136, %v1134
  %v1521 = vpack.c.b16 %v1139, %v1137
  %v1522 = vpack.c.b16 %v1140, %v1138
  %v1523 = vpack.c.b16 %v1143, %v1141
  %v1524 = vpack.c.b16 %v1144, %v1142
  %v1525 = vpack.c.b16 %v1147, %v1145
  %v1526 = vpack.c.b16 %v1148, %v1146
  %v1527 = vpack.c.b16 %v1151, %v1149
  %v1528 = vpack.c.b16 %v1152, %v1150
  %v1529 = vpack.c.b16 %v1155, %v1153
  %v1530 = vpack.c.b16 %v1156, %v1154
  %v1531 = vpack.c.b16 %v1159, %v1157
  %v1532 = vpack.c.b16 %v1160, %v1158
  %v1533 = vpack.c.b16 %v1163, %v1161
  %v1534 = vpack.c.b16 %v1164, %v1162
  %v1535 = vpack.c.b16 %v1167, %v1165
  %v1536 = vpack.c.b16 %v1168, %v1166
  %v1537 = vpack.c.b16 %v1171, %v1169
  %v1538 = vpack.c.b16 %v1172, %v1170
  %v1539 = vpack.c.b16 %v1175, %v1173
  %v1540 = vpack.c.b16 %v1176, %v1174
  %v1541 = vpack.c.b16 %v1179, %v1177
  %v1542 = vpack.c.b16 %v1180, %v1178
  %v1543 = vpack.c.b16 %v1183, %v1181
  %v1544 = vpack.c.b16 %v1184, %v1182
  %v1545 = vpack.c.b16 %v1187, %v1185
  %v1546 = vpack.c.b16 %v1188, %v1186
  %v1547 = vpack.c.b16 %v1191, %v1189
  %v1548 = vpack.c.b16 %v1192, %v1190
  %v1549 = vpack.c.b16 %v1195, %v1193
  %v1550 = vpack.c.b16 %v1196, %v1194
  %v1551 = vpack.c.b16 %v1199, %v1197
  %v1552 = vpack.c.b16 %v1200, %v1198
  %v1553 = vpack.c.b16 %v1203, %v1201
  %v1554 = vpack.c.b16 %v1204, %v1202
  %v1555 = vpack.c.b16 %v1207, %v1205
  %v1556 = vpack.c.b16 %v1208, %v1206
  %v1557 = vpack.c.b16 %v1211, %v1209
  %v1558 = vpack.c.b16 %v1212, %v1210
  %v1559 = vpack.c.b16 %v1215, %v1213
  %v1560 = vpack.c.b16 %v1216, %v1214
  %v1561 = vpack.c.b16 %v1219, %v1217
  %v1562 = vpack.c.b16 %v1220, %v1218
  %v1563 = vpack.c.b16 %v1223, %v1221
  %v1564 = vpack.c.b16 %v1224, %v1222
  %v1565 = vpack.c.b16 %v1227, %v1225
  %v1566 = vpack.c.b16 %v1228, %v1226
  %v1567 = vpack.c.b16 %v1231, %v1229
  %v1568 = vpack.c.b16 %v1232, %v1230
  %v1569 = vpack.c.b16 %v1235, %v1233
  %v1570 = vpack.c.b16 %v1236, %v1234
  %v1571 = vpack.c.b16 %v1239, %v1237
  %v1572 = vpack.c.b16 %v1240, %v1238
  %v1573 = vpack.c.b16 %v1243, %v1241
  %v1574 = vpack.c.b16 %v1244, %v1242
  %v1575 = vpack.c.b16 %v1247, %v1245
  %v1576 = vpack.c.b16 %v1248, %v1246
  %v1577 = vpack.c.b16 %v1251, %v1249
  %v1578 = vpack.c.b16 %v1252, %v1250
  %v1579 = vpack.c.b16 %v1255, %v1253
  %v1580 = vpack.c.b16 %v1256, %v1254
  %v1581 = vpack.c.b16 %v1259, %v1257
  %v1582 = vpack.c.b16 %v1260, %v1258
  %v1583 = vpack.c.b16 %v1263, %v1261
  %v1584 = vpack.c.b16 %v1264, %v1262
  %v1585 = vpack.c.b16 %v1267, %v1265
  %v1586 = vpack.c.b16 %v1268, %v1266
  %v1587 = vpack.c.b16 %v1271, %v1269
  %v1588 = vpack.c.b16 %v1272, %v1270
  %v1589 = vpack.c.b16 %v1275, %v1273
  %v1590 = vpack.c.b16 %v1276, %v1274
  %v1591 = vpack.c.b16 %v1279, %v1277
  %v1592 = vpack.c.b16 %v1280, %v1278
  %v1593 = vpack.c.b16 %v1283, %v1281
  %v1594 = vpack.c.b16 %v1284, %v1282
  %v1595 = vpack.c.b16 %v1287, %v1285
  %v1596 = vpack.c.b16 %v1288, %v1286
  %v1597 = vpack.c.b16 %v1291, %v1289
  %v1598 = vpack.c.b16 %v1292, %v1290
  %v1599 = vpack.c.b16 %v1295, %v1293
  %v1600 = vpack.c.b16 %v1296, %v1294
  %v1601 = vpack.c.b16 %v1299, %v1297
  %v1602 = vpack.c.b16 %v1300, %v1298
  %v1603 = vpack.c.b16 %v1303, %v1301
  %v1604 = vpack.c.b16 %v1304, %v1302
  %v1605 = vpack.c.b16 %v1307, %v1305
  %v1606 = vpack.c.b16 %v1308, %v1306
  %v1607 = vpack.c.b16 %v1311, %v1309
  %v1608 = vpack.c.b16 %v1312, %v1310
  %v1609 = vpack.c.b16 %v1315, %v1313
  %v1610 = vpack.c.b16 %v1316, %v1314
  %v1611 = vpack.c.b16 %v1319, %v1317
  %v1612 = vpack.c.b16 %v1320, %v1318
  %v1613 = vpack.c.b16 %v1323, %v1321
  %v1614 = vpack.c.b16 %v1324, %v1322
  %v1615 = vpack.c.b16 %v1327, %v1325
  %v1616 = vpack.c.b16 %v1328, %v1326
  %v1617 = vpack.c.b16 %v1331, %v1329
  %v1618 = vpack.c.b16 %v1332, %v1330
  %v1619 = vpack.c.b16 %v1335, %v1333
  %v1620 = vpack.c.b16 %v1336, %v1334
  %v1621 = vpack.c.b16 %v1339, %v1337
  %v1622 = vpack.c.b16 %v1340, %v1338
  %v1623 = vpack.c.b16 %v1343, %v1341
  %v1624 = vpack.c.b16 %v1344, %v1342
  %v1625 = vpack.c.b16 %v1347, %v1345
  %v1626 = vpack.c.b16 %v1348, %v1346
  %v1627 = vpack.c.b16 %v1351, %v1349
  %v1628 = vpack.c.b16 %v1352, %v1350
  %v1629 = vpack.c.b16 %v1355, %v1353
  %v1630 = vpack.c.b16 %v1356, %v1354
  %v1631 = vpack.c.b16 %v1359, %v1357
  %v1632 = vpack.c.b16 %v1360, %v1358
  %v1633 = vpack.c.b16 %v1363, %v1361
  %v1634 = vpack.c.b16 %v1364, %v1362
  %v1635 = vpack.c.b16 %v1367, %v1365
  %v1636 = vpack.c.b16 %v1368, %v1366
  %v1637 = vpack.c.b16 %v1371, %v1369
  %v1638 = vpack.c.b16 %v1372, %v1370
  %v1639 = vpack.c.b16 %v1375, %v1373
  %v1640 = vpack.c.b16 %v1376, %v1374
  %v1641 = vpack.c.b16 %v1379, %v1377
  %v1642 = vpack.c.b16 %v1380, %v1378
  %v1643 = vpack.c.b16 %v1383, %v1381
  %v1644 = vpack.c.b16 %v1384, %v1382
  %v1645 = vpack.c.b16 %v1387, %v1385
  %v1646 = vpack.c.b16 %v1388, %v1386
  %v1647 = vpack.c.b16 %v1391, %v1389
  %v1648 = vpack.c.b16 %v1392, %v1390
  %1905 = vmatpush.bf16.msra.mxu0 %v1407
  %1906 = vmatpush.bf16.msra.mxu0 %v1405
  %1907 = vmatpush.bf16.msra.mxu0 %v1403
  %1908 = vmatpush.bf16.msra.mxu0 %v1401
  %1909 = vmatpush.bf16.msra.mxu0 %v1399
  %1910 = vmatpush.bf16.msra.mxu0 %v1397
  %1911 = vmatpush.bf16.msra.mxu0 %v1395
  %1912 = vmatpush.bf16.msra.mxu0 %v1393
  %1913 = vmatmul.bf16.gmra.mxu0 %v497
  %v1914 = vpop.f32.mrf.mxu0
  %v1915 = vadd.f32 0.0, %v1914
  %v1916 = vpop.f32.mrf.mxu0
  %v1917 = vadd.f32 0.0, %v1916
  %1918 = vmatmul.bf16.gmra.mxu0 %v513
  %v1919 = vpop.f32.mrf.mxu0
  %v1920 = vadd.f32 0.0, %v1919
  %v1921 = vpop.f32.mrf.mxu0
  %v1922 = vadd.f32 0.0, %v1921
  %1923 = vmatmul.bf16.gmra.mxu0 %v529
  %v1924 = vpop.f32.mrf.mxu0
  %v1925 = vadd.f32 0.0, %v1924
  %v1926 = vpop.f32.mrf.mxu0
  %v1927 = vadd.f32 0.0, %v1926
  %1928 = vmatmul.bf16.gmra.mxu0 %v545
  %v1929 = vpop.f32.mrf.mxu0
  %v1930 = vadd.f32 0.0, %v1929
  %v1931 = vpop.f32.mrf.mxu0
  %1932 = vdwg.mxu0
  %1933 = vmatpush.bf16.msra.mxu0 %v1423
  %1934 = vmatpush.bf16.msra.mxu0 %v1421
  %1935 = vmatpush.bf16.msra.mxu0 %v1419
  %1936 = vmatpush.bf16.msra.mxu0 %v1417
  %1937 = vmatpush.bf16.msra.mxu0 %v1415
  %1938 = vmatpush.bf16.msra.mxu0 %v1413
  %1939 = vmatpush.bf16.msra.mxu0 %v1411
  %1940 = vmatpush.bf16.msra.mxu0 %v1409
  %1941 = vmatmul.bf16.gmra.mxu0 %v498
  %v1942 = vpop.f32.mrf.mxu0
  %v1943 = vadd.f32 %v1915, %v1942
  %v1944 = vpop.f32.mrf.mxu0
  %v1945 = vadd.f32 %v1917, %v1944
  %1946 = vmatmul.bf16.gmra.mxu0 %v514
  %v1947 = vpop.f32.mrf.mxu0
  %v1948 = vadd.f32 %v1920, %v1947
  %v1949 = vpop.f32.mrf.mxu0
  %v1950 = vadd.f32 %v1922, %v1949
  %1951 = vmatmul.bf16.gmra.mxu0 %v530
  %v1952 = vpop.f32.mrf.mxu0
  %v1953 = vadd.f32 %v1925, %v1952
  %v1954 = vpop.f32.mrf.mxu0
  %v1955 = vadd.f32 %v1927, %v1954
  %1956 = vmatmul.bf16.gmra.mxu0 %v546
  %v1957 = vpop.f32.mrf.mxu0
  %v1958 = vadd.f32 %v1930, %v1957
  %v1959 = vpop.f32.mrf.mxu0
  %1960 = vdwg.mxu0
  %1961 = vmatpush.bf16.msra.mxu0 %v1439
  %1962 = vmatpush.bf16.msra.mxu0 %v1437
  %1963 = vmatpush.bf16.msra.mxu0 %v1435
  %1964 = vmatpush.bf16.msra.mxu0 %v1433
  %1965 = vmatpush.bf16.msra.mxu0 %v1431
  %1966 = vmatpush.bf16.msra.mxu0 %v1429
  %1967 = vmatpush.bf16.msra.mxu0 %v1427
  %1968 = vmatpush.bf16.msra.mxu0 %v1425
  %1969 = vmatmul.bf16.gmra.mxu0 %v499
  %v1970 = vpop.f32.mrf.mxu0
  %v1971 = vadd.f32 %v1943, %v1970
  %v1972 = vpop.f32.mrf.mxu0
  %v1973 = vadd.f32 %v1945, %v1972
  %1974 = vmatmul.bf16.gmra.mxu0 %v515
  %v1975 = vpop.f32.mrf.mxu0
  %v1976 = vadd.f32 %v1948, %v1975
  %v1977 = vpop.f32.mrf.mxu0
  %v1978 = vadd.f32 %v1950, %v1977
  %1979 = vmatmul.bf16.gmra.mxu0 %v531
  %v1980 = vpop.f32.mrf.mxu0
  %v1981 = vadd.f32 %v1953, %v1980
  %v1982 = vpop.f32.mrf.mxu0
  %v1983 = vadd.f32 %v1955, %v1982
  %1984 = vmatmul.bf16.gmra.mxu0 %v547
  %v1985 = vpop.f32.mrf.mxu0
  %v1986 = vadd.f32 %v1958, %v1985
  %v1987 = vpop.f32.mrf.mxu0
  %1988 = vdwg.mxu0
  %1989 = vmatpush.bf16.msra.mxu0 %v1455
  %1990 = vmatpush.bf16.msra.mxu0 %v1453
  %1991 = vmatpush.bf16.msra.mxu0 %v1451
  %1992 = vmatpush.bf16.msra.mxu0 %v1449
  %1993 = vmatpush.bf16.msra.mxu0 %v1447
  %1994 = vmatpush.bf16.msra.mxu0 %v1445
  %1995 = vmatpush.bf16.msra.mxu0 %v1443
  %1996 = vmatpush.bf16.msra.mxu0 %v1441
  %1997 = vmatmul.bf16.gmra.mxu0 %v500
  %v1998 = vpop.f32.mrf.mxu0
  %v1999 = vadd.f32 %v1971, %v1998
  %v2000 = vpop.f32.mrf.mxu0
  %v2001 = vadd.f32 %v1973, %v2000
  %2002 = vmatmul.bf16.gmra.mxu0 %v516
  %v2003 = vpop.f32.mrf.mxu0
  %v2004 = vadd.f32 %v1976, %v2003
  %v2005 = vpop.f32.mrf.mxu0
  %v2006 = vadd.f32 %v1978, %v2005
  %2007 = vmatmul.bf16.gmra.mxu0 %v532
  %v2008 = vpop.f32.mrf.mxu0
  %v2009 = vadd.f32 %v1981, %v2008
  %v2010 = vpop.f32.mrf.mxu0
  %v2011 = vadd.f32 %v1983, %v2010
  %2012 = vmatmul.bf16.gmra.mxu0 %v548
  %v2013 = vpop.f32.mrf.mxu0
  %v2014 = vadd.f32 %v1986, %v2013
  %v2015 = vpop.f32.mrf.mxu0
  %2016 = vdwg.mxu0
  %2017 = vmatpush.bf16.msra.mxu0 %v1471
  %2018 = vmatpush.bf16.msra.mxu0 %v1469
  %2019 = vmatpush.bf16.msra.mxu0 %v1467
  %2020 = vmatpush.bf16.msra.mxu0 %v1465
  %2021 = vmatpush.bf16.msra.mxu0 %v1463
  %2022 = vmatpush.bf16.msra.mxu0 %v1461
  %2023 = vmatpush.bf16.msra.mxu0 %v1459
  %2024 = vmatpush.bf16.msra.mxu0 %v1457
  %2025 = vmatmul.bf16.gmra.mxu0 %v501
  %v2026 = vpop.f32.mrf.mxu0
  %v2027 = vadd.f32 %v1999, %v2026
  %v2028 = vpop.f32.mrf.mxu0
  %v2029 = vadd.f32 %v2001, %v2028
  %2030 = vmatmul.bf16.gmra.mxu0 %v517
  %v2031 = vpop.f32.mrf.mxu0
  %v2032 = vadd.f32 %v2004, %v2031
  %v2033 = vpop.f32.mrf.mxu0
  %v2034 = vadd.f32 %v2006, %v2033
  %2035 = vmatmul.bf16.gmra.mxu0 %v533
  %v2036 = vpop.f32.mrf.mxu0
  %v2037 = vadd.f32 %v2009, %v2036
  %v2038 = vpop.f32.mrf.mxu0
  %v2039 = vadd.f32 %v2011, %v2038
  %2040 = vmatmul.bf16.gmra.mxu0 %v549
  %v2041 = vpop.f32.mrf.mxu0
  %v2042 = vadd.f32 %v2014, %v2041
  %v2043 = vpop.f32.mrf.mxu0
  %2044 = vdwg.mxu0
  %2045 = vmatpush.bf16.msra.mxu0 %v1487
  %2046 = vmatpush.bf16.msra.mxu0 %v1485
  %2047 = vmatpush.bf16.msra.mxu0 %v1483
  %2048 = vmatpush.bf16.msra.mxu0 %v1481
  %2049 = vmatpush.bf16.msra.mxu0 %v1479
  %2050 = vmatpush.bf16.msra.mxu0 %v1477
  %2051 = vmatpush.bf16.msra.mxu0 %v1475
  %2052 = vmatpush.bf16.msra.mxu0 %v1473
  %2053 = vmatmul.bf16.gmra.mxu0 %v502
  %v2054 = vpop.f32.mrf.mxu0
  %v2055 = vadd.f32 %v2027, %v2054
  %v2056 = vpop.f32.mrf.mxu0
  %v2057 = vadd.f32 %v2029, %v2056
  %2058 = vmatmul.bf16.gmra.mxu0 %v518
  %v2059 = vpop.f32.mrf.mxu0
  %v2060 = vadd.f32 %v2032, %v2059
  %v2061 = vpop.f32.mrf.mxu0
  %v2062 = vadd.f32 %v2034, %v2061
  %2063 = vmatmul.bf16.gmra.mxu0 %v534
  %v2064 = vpop.f32.mrf.mxu0
  %v2065 = vadd.f32 %v2037, %v2064
  %v2066 = vpop.f32.mrf.mxu0
  %v2067 = vadd.f32 %v2039, %v2066
  %2068 = vmatmul.bf16.gmra.mxu0 %v550
  %v2069 = vpop.f32.mrf.mxu0
  %v2070 = vadd.f32 %v2042, %v2069
  %v2071 = vpop.f32.mrf.mxu0
  %2072 = vdwg.mxu0
  %2073 = vmatpush.bf16.msra.mxu0 %v1503
  %2074 = vmatpush.bf16.msra.mxu0 %v1501
  %2075 = vmatpush.bf16.msra.mxu0 %v1499
  %2076 = vmatpush.bf16.msra.mxu0 %v1497
  %2077 = vmatpush.bf16.msra.mxu0 %v1495
  %2078 = vmatpush.bf16.msra.mxu0 %v1493
  %2079 = vmatpush.bf16.msra.mxu0 %v1491
  %2080 = vmatpush.bf16.msra.mxu0 %v1489
  %2081 = vmatmul.bf16.gmra.mxu0 %v503
  %v2082 = vpop.f32.mrf.mxu0
  %v2083 = vadd.f32 %v2055, %v2082
  %v2084 = vpop.f32.mrf.mxu0
  %v2085 = vadd.f32 %v2057, %v2084
  %2086 = vmatmul.bf16.gmra.mxu0 %v519
  %v2087 = vpop.f32.mrf.mxu0
  %v2088 = vadd.f32 %v2060, %v2087
  %v2089 = vpop.f32.mrf.mxu0
  %v2090 = vadd.f32 %v2062, %v2089
  %2091 = vmatmul.bf16.gmra.mxu0 %v535
  %v2092 = vpop.f32.mrf.mxu0
  %v2093 = vadd.f32 %v2065, %v2092
  %v2094 = vpop.f32.mrf.mxu0
  %v2095 = vadd.f32 %v2067, %v2094
  %2096 = vmatmul.bf16.gmra.mxu0 %v551
  %v2097 = vpop.f32.mrf.mxu0
  %v2098 = vadd.f32 %v2070, %v2097
  %v2099 = vpop.f32.mrf.mxu0
  %2100 = vdwg.mxu0
  %2101 = vmatpush.bf16.msra.mxu0 %v1519
  %2102 = vmatpush.bf16.msra.mxu0 %v1517
  %2103 = vmatpush.bf16.msra.mxu0 %v1515
  %2104 = vmatpush.bf16.msra.mxu0 %v1513
  %2105 = vmatpush.bf16.msra.mxu0 %v1511
  %2106 = vmatpush.bf16.msra.mxu0 %v1509
  %2107 = vmatpush.bf16.msra.mxu0 %v1507
  %2108 = vmatpush.bf16.msra.mxu0 %v1505
  %2109 = vmatmul.bf16.gmra.mxu0 %v504
  %v2110 = vpop.f32.mrf.mxu0
  %v2111 = vadd.f32 %v2083, %v2110
  %v2112 = vpop.f32.mrf.mxu0
  %v2113 = vadd.f32 %v2085, %v2112
  %2114 = vmatmul.bf16.gmra.mxu0 %v520
  %v2115 = vpop.f32.mrf.mxu0
  %v2116 = vadd.f32 %v2088, %v2115
  %v2117 = vpop.f32.mrf.mxu0
  %v2118 = vadd.f32 %v2090, %v2117
  %2119 = vmatmul.bf16.gmra.mxu0 %v536
  %v2120 = vpop.f32.mrf.mxu0
  %v2121 = vadd.f32 %v2093, %v2120
  %v2122 = vpop.f32.mrf.mxu0
  %v2123 = vadd.f32 %v2095, %v2122
  %2124 = vmatmul.bf16.gmra.mxu0 %v552
  %v2125 = vpop.f32.mrf.mxu0
  %v2126 = vadd.f32 %v2098, %v2125
  %v2127 = vpop.f32.mrf.mxu0
  %2128 = vdwg.mxu0
  %2129 = vmatpush.bf16.msra.mxu0 %v1535
  %2130 = vmatpush.bf16.msra.mxu0 %v1533
  %2131 = vmatpush.bf16.msra.mxu0 %v1531
  %2132 = vmatpush.bf16.msra.mxu0 %v1529
  %2133 = vmatpush.bf16.msra.mxu0 %v1527
  %2134 = vmatpush.bf16.msra.mxu0 %v1525
  %2135 = vmatpush.bf16.msra.mxu0 %v1523
  %2136 = vmatpush.bf16.msra.mxu0 %v1521
  %2137 = vmatmul.bf16.gmra.mxu0 %v505
  %v2138 = vpop.f32.mrf.mxu0
  %v2139 = vadd.f32 %v2111, %v2138
  %v2140 = vpop.f32.mrf.mxu0
  %v2141 = vadd.f32 %v2113, %v2140
  %2142 = vmatmul.bf16.gmra.mxu0 %v521
  %v2143 = vpop.f32.mrf.mxu0
  %v2144 = vadd.f32 %v2116, %v2143
  %v2145 = vpop.f32.mrf.mxu0
  %v2146 = vadd.f32 %v2118, %v2145
  %2147 = vmatmul.bf16.gmra.mxu0 %v537
  %v2148 = vpop.f32.mrf.mxu0
  %v2149 = vadd.f32 %v2121, %v2148
  %v2150 = vpop.f32.mrf.mxu0
  %v2151 = vadd.f32 %v2123, %v2150
  %2152 = vmatmul.bf16.gmra.mxu0 %v553
  %v2153 = vpop.f32.mrf.mxu0
  %v2154 = vadd.f32 %v2126, %v2153
  %v2155 = vpop.f32.mrf.mxu0
  %2156 = vdwg.mxu0
  %2157 = vmatpush.bf16.msra.mxu0 %v1551
  %2158 = vmatpush.bf16.msra.mxu0 %v1549
  %2159 = vmatpush.bf16.msra.mxu0 %v1547
  %2160 = vmatpush.bf16.msra.mxu0 %v1545
  %2161 = vmatpush.bf16.msra.mxu0 %v1543
  %2162 = vmatpush.bf16.msra.mxu0 %v1541
  %2163 = vmatpush.bf16.msra.mxu0 %v1539
  %2164 = vmatpush.bf16.msra.mxu0 %v1537
  %2165 = vmatmul.bf16.gmra.mxu0 %v506
  %v2166 = vpop.f32.mrf.mxu0
  %v2167 = vadd.f32 %v2139, %v2166
  %v2168 = vpop.f32.mrf.mxu0
  %v2169 = vadd.f32 %v2141, %v2168
  %2170 = vmatmul.bf16.gmra.mxu0 %v522
  %v2171 = vpop.f32.mrf.mxu0
  %v2172 = vadd.f32 %v2144, %v2171
  %v2173 = vpop.f32.mrf.mxu0
  %v2174 = vadd.f32 %v2146, %v2173
  %2175 = vmatmul.bf16.gmra.mxu0 %v538
  %v2176 = vpop.f32.mrf.mxu0
  %v2177 = vadd.f32 %v2149, %v2176
  %v2178 = vpop.f32.mrf.mxu0
  %v2179 = vadd.f32 %v2151, %v2178
  %2180 = vmatmul.bf16.gmra.mxu0 %v554
  %v2181 = vpop.f32.mrf.mxu0
  %v2182 = vadd.f32 %v2154, %v2181
  %v2183 = vpop.f32.mrf.mxu0
  %2184 = vdwg.mxu0
  %2185 = vmatpush.bf16.msra.mxu0 %v1567
  %2186 = vmatpush.bf16.msra.mxu0 %v1565
  %2187 = vmatpush.bf16.msra.mxu0 %v1563
  %2188 = vmatpush.bf16.msra.mxu0 %v1561
  %2189 = vmatpush.bf16.msra.mxu0 %v1559
  %2190 = vmatpush.bf16.msra.mxu0 %v1557
  %2191 = vmatpush.bf16.msra.mxu0 %v1555
  %2192 = vmatpush.bf16.msra.mxu0 %v1553
  %2193 = vmatmul.bf16.gmra.mxu0 %v507
  %v2194 = vpop.f32.mrf.mxu0
  %v2195 = vadd.f32 %v2167, %v2194
  %v2196 = vpop.f32.mrf.mxu0
  %v2197 = vadd.f32 %v2169, %v2196
  %2198 = vmatmul.bf16.gmra.mxu0 %v523
  %v2199 = vpop.f32.mrf.mxu0
  %v2200 = vadd.f32 %v2172, %v2199
  %v2201 = vpop.f32.mrf.mxu0
  %v2202 = vadd.f32 %v2174, %v2201
  %2203 = vmatmul.bf16.gmra.mxu0 %v539
  %v2204 = vpop.f32.mrf.mxu0
  %v2205 = vadd.f32 %v2177, %v2204
  %v2206 = vpop.f32.mrf.mxu0
  %v2207 = vadd.f32 %v2179, %v2206
  %2208 = vmatmul.bf16.gmra.mxu0 %v555
  %v2209 = vpop.f32.mrf.mxu0
  %v2210 = vadd.f32 %v2182, %v2209
  %v2211 = vpop.f32.mrf.mxu0
  %2212 = vdwg.mxu0
  %2213 = vmatpush.bf16.msra.mxu0 %v1583
  %2214 = vmatpush.bf16.msra.mxu0 %v1581
  %2215 = vmatpush.bf16.msra.mxu0 %v1579
  %2216 = vmatpush.bf16.msra.mxu0 %v1577
  %2217 = vmatpush.bf16.msra.mxu0 %v1575
  %2218 = vmatpush.bf16.msra.mxu0 %v1573
  %2219 = vmatpush.bf16.msra.mxu0 %v1571
  %2220 = vmatpush.bf16.msra.mxu0 %v1569
  %2221 = vmatmul.bf16.gmra.mxu0 %v508
  %v2222 = vpop.f32.mrf.mxu0
  %v2223 = vadd.f32 %v2195, %v2222
  %v2224 = vpop.f32.mrf.mxu0
  %v2225 = vadd.f32 %v2197, %v2224
  %2226 = vmatmul.bf16.gmra.mxu0 %v524
  %v2227 = vpop.f32.mrf.mxu0
  %v2228 = vadd.f32 %v2200, %v2227
  %v2229 = vpop.f32.mrf.mxu0
  %v2230 = vadd.f32 %v2202, %v2229
  %2231 = vmatmul.bf16.gmra.mxu0 %v540
  %v2232 = vpop.f32.mrf.mxu0
  %v2233 = vadd.f32 %v2205, %v2232
  %v2234 = vpop.f32.mrf.mxu0
  %v2235 = vadd.f32 %v2207, %v2234
  %2236 = vmatmul.bf16.gmra.mxu0 %v556
  %v2237 = vpop.f32.mrf.mxu0
  %v2238 = vadd.f32 %v2210, %v2237
  %v2239 = vpop.f32.mrf.mxu0
  %2240 = vdwg.mxu0
  %2241 = vmatpush.bf16.msra.mxu0 %v1599
  %2242 = vmatpush.bf16.msra.mxu0 %v1597
  %2243 = vmatpush.bf16.msra.mxu0 %v1595
  %2244 = vmatpush.bf16.msra.mxu0 %v1593
  %2245 = vmatpush.bf16.msra.mxu0 %v1591
  %2246 = vmatpush.bf16.msra.mxu0 %v1589
  %2247 = vmatpush.bf16.msra.mxu0 %v1587
  %2248 = vmatpush.bf16.msra.mxu0 %v1585
  %2249 = vmatmul.bf16.gmra.mxu0 %v509
  %v2250 = vpop.f32.mrf.mxu0
  %v2251 = vadd.f32 %v2223, %v2250
  %v2252 = vpop.f32.mrf.mxu0
  %v2253 = vadd.f32 %v2225, %v2252
  %2254 = vmatmul.bf16.gmra.mxu0 %v525
  %v2255 = vpop.f32.mrf.mxu0
  %v2256 = vadd.f32 %v2228, %v2255
  %v2257 = vpop.f32.mrf.mxu0
  %v2258 = vadd.f32 %v2230, %v2257
  %2259 = vmatmul.bf16.gmra.mxu0 %v541
  %v2260 = vpop.f32.mrf.mxu0
  %v2261 = vadd.f32 %v2233, %v2260
  %v2262 = vpop.f32.mrf.mxu0
  %v2263 = vadd.f32 %v2235, %v2262
  %2264 = vmatmul.bf16.gmra.mxu0 %v557
  %v2265 = vpop.f32.mrf.mxu0
  %v2266 = vadd.f32 %v2238, %v2265
  %v2267 = vpop.f32.mrf.mxu0
  %2268 = vdwg.mxu0
  %2269 = vmatpush.bf16.msra.mxu0 %v1615
  %2270 = vmatpush.bf16.msra.mxu0 %v1613
  %2271 = vmatpush.bf16.msra.mxu0 %v1611
  %2272 = vmatpush.bf16.msra.mxu0 %v1609
  %2273 = vmatpush.bf16.msra.mxu0 %v1607
  %2274 = vmatpush.bf16.msra.mxu0 %v1605
  %2275 = vmatpush.bf16.msra.mxu0 %v1603
  %2276 = vmatpush.bf16.msra.mxu0 %v1601
  %2277 = vmatmul.bf16.gmra.mxu0 %v510
  %v2278 = vpop.f32.mrf.mxu0
  %v2279 = vadd.f32 %v2251, %v2278
  %v2280 = vpop.f32.mrf.mxu0
  %v2281 = vadd.f32 %v2253, %v2280
  %2282 = vmatmul.bf16.gmra.mxu0 %v526
  %v2283 = vpop.f32.mrf.mxu0
  %v2284 = vadd.f32 %v2256, %v2283
  %v2285 = vpop.f32.mrf.mxu0
  %v2286 = vadd.f32 %v2258, %v2285
  %2287 = vmatmul.bf16.gmra.mxu0 %v542
  %v2288 = vpop.f32.mrf.mxu0
  %v2289 = vadd.f32 %v2261, %v2288
  %v2290 = vpop.f32.mrf.mxu0
  %v2291 = vadd.f32 %v2263, %v2290
  %2292 = vmatmul.bf16.gmra.mxu0 %v558
  %v2293 = vpop.f32.mrf.mxu0
  %v2294 = vadd.f32 %v2266, %v2293
  %v2295 = vpop.f32.mrf.mxu0
  %2296 = vdwg.mxu0
  %2297 = vmatpush.bf16.msra.mxu0 %v1631
  %2298 = vmatpush.bf16.msra.mxu0 %v1629
  %2299 = vmatpush.bf16.msra.mxu0 %v1627
  %2300 = vmatpush.bf16.msra.mxu0 %v1625
  %2301 = vmatpush.bf16.msra.mxu0 %v1623
  %2302 = vmatpush.bf16.msra.mxu0 %v1621
  %2303 = vmatpush.bf16.msra.mxu0 %v1619
  %2304 = vmatpush.bf16.msra.mxu0 %v1617
  %2305 = vmatmul.bf16.gmra.mxu0 %v511
  %v2306 = vpop.f32.mrf.mxu0
  %v2307 = vadd.f32 %v2279, %v2306
  %v2308 = vpop.f32.mrf.mxu0
  %v2309 = vadd.f32 %v2281, %v2308
  %2310 = vmatmul.bf16.gmra.mxu0 %v527
  %v2311 = vpop.f32.mrf.mxu0
  %v2312 = vadd.f32 %v2284, %v2311
  %v2313 = vpop.f32.mrf.mxu0
  %v2314 = vadd.f32 %v2286, %v2313
  %2315 = vmatmul.bf16.gmra.mxu0 %v543
  %v2316 = vpop.f32.mrf.mxu0
  %v2317 = vadd.f32 %v2289, %v2316
  %v2318 = vpop.f32.mrf.mxu0
  %v2319 = vadd.f32 %v2291, %v2318
  %2320 = vmatmul.bf16.gmra.mxu0 %v559
  %v2321 = vpop.f32.mrf.mxu0
  %v2322 = vadd.f32 %v2294, %v2321
  %v2323 = vpop.f32.mrf.mxu0
  %2324 = vdwg.mxu0
  %2325 = vmatpush.bf16.msra.mxu0 %v1647
  %2326 = vmatpush.bf16.msra.mxu0 %v1645
  %2327 = vmatpush.bf16.msra.mxu0 %v1643
  %2328 = vmatpush.bf16.msra.mxu0 %v1641
  %2329 = vmatpush.bf16.msra.mxu0 %v1639
  %2330 = vmatpush.bf16.msra.mxu0 %v1637
  %2331 = vmatpush.bf16.msra.mxu0 %v1635
  %2332 = vmatpush.bf16.msra.mxu0 %v1633
  %2333 = vmatmul.bf16.gmra.mxu0 %v512
  %v2334 = vpop.f32.mrf.mxu0
  %v2335 = vadd.f32 %v2307, %v2334
  %v2336 = vpop.f32.mrf.mxu0
  %v2337 = vadd.f32 %v2309, %v2336
  %2338 = vmatmul.bf16.gmra.mxu0 %v528
  %v2339 = vpop.f32.mrf.mxu0
  %v2340 = vadd.f32 %v2312, %v2339
  %v2341 = vpop.f32.mrf.mxu0
  %v2342 = vadd.f32 %v2314, %v2341
  %2343 = vmatmul.bf16.gmra.mxu0 %v544
  %v2344 = vpop.f32.mrf.mxu0
  %v2345 = vadd.f32 %v2317, %v2344
  %v2346 = vpop.f32.mrf.mxu0
  %v2347 = vadd.f32 %v2319, %v2346
  %2348 = vmatmul.bf16.gmra.mxu0 %v560
  %v2349 = vpop.f32.mrf.mxu0
  %v2350 = vadd.f32 %v2322, %v2349
  %v2351 = vpop.f32.mrf.mxu0
  %2352 = vdwg.mxu0
  %2353 = vmatpush.bf16.msra.mxu0 %v1408
  %2354 = vmatpush.bf16.msra.mxu0 %v1406
  %2355 = vmatpush.bf16.msra.mxu0 %v1404
  %2356 = vmatpush.bf16.msra.mxu0 %v1402
  %2357 = vmatpush.bf16.msra.mxu0 %v1400
  %2358 = vmatpush.bf16.msra.mxu0 %v1398
  %2359 = vmatpush.bf16.msra.mxu0 %v1396
  %2360 = vmatpush.bf16.msra.mxu0 %v1394
  %2361 = vmatmul.bf16.gmra.mxu0 %v497
  %v2362 = vpop.f32.mrf.mxu0
  %v2363 = vadd.f32 0.0, %v2362
  %v2364 = vpop.f32.mrf.mxu0
  %v2365 = vadd.f32 0.0, %v2364
  %2366 = vmatmul.bf16.gmra.mxu0 %v513
  %v2367 = vpop.f32.mrf.mxu0
  %v2368 = vadd.f32 0.0, %v2367
  %v2369 = vpop.f32.mrf.mxu0
  %v2370 = vadd.f32 0.0, %v2369
  %2371 = vmatmul.bf16.gmra.mxu0 %v529
  %v2372 = vpop.f32.mrf.mxu0
  %v2373 = vadd.f32 0.0, %v2372
  %v2374 = vpop.f32.mrf.mxu0
  %v2375 = vadd.f32 0.0, %v2374
  %2376 = vmatmul.bf16.gmra.mxu0 %v545
  %v2377 = vpop.f32.mrf.mxu0
  %v2378 = vadd.f32 0.0, %v2377
  %v2379 = vpop.f32.mrf.mxu0
  %2380 = vdwg.mxu0
  %2381 = vmatpush.bf16.msra.mxu0 %v1424
  %2382 = vmatpush.bf16.msra.mxu0 %v1422
  %2383 = vmatpush.bf16.msra.mxu0 %v1420
  %2384 = vmatpush.bf16.msra.mxu0 %v1418
  %2385 = vmatpush.bf16.msra.mxu0 %v1416
  %2386 = vmatpush.bf16.msra.mxu0 %v1414
  %2387 = vmatpush.bf16.msra.mxu0 %v1412
  %2388 = vmatpush.bf16.msra.mxu0 %v1410
  %2389 = vmatmul.bf16.gmra.mxu0 %v498
  %v2390 = vpop.f32.mrf.mxu0
  %v2391 = vadd.f32 %v2363, %v2390
  %v2392 = vpop.f32.mrf.mxu0
  %v2393 = vadd.f32 %v2365, %v2392
  %2394 = vmatmul.bf16.gmra.mxu0 %v514
  %v2395 = vpop.f32.mrf.mxu0
  %v2396 = vadd.f32 %v2368, %v2395
  %v2397 = vpop.f32.mrf.mxu0
  %v2398 = vadd.f32 %v2370, %v2397
  %2399 = vmatmul.bf16.gmra.mxu0 %v530
  %v2400 = vpop.f32.mrf.mxu0
  %v2401 = vadd.f32 %v2373, %v2400
  %v2402 = vpop.f32.mrf.mxu0
  %v2403 = vadd.f32 %v2375, %v2402
  %2404 = vmatmul.bf16.gmra.mxu0 %v546
  %v2405 = vpop.f32.mrf.mxu0
  %v2406 = vadd.f32 %v2378, %v2405
  %v2407 = vpop.f32.mrf.mxu0
  %2408 = vdwg.mxu0
  %2409 = vmatpush.bf16.msra.mxu0 %v1440
  %2410 = vmatpush.bf16.msra.mxu0 %v1438
  %2411 = vmatpush.bf16.msra.mxu0 %v1436
  %2412 = vmatpush.bf16.msra.mxu0 %v1434
  %2413 = vmatpush.bf16.msra.mxu0 %v1432
  %2414 = vmatpush.bf16.msra.mxu0 %v1430
  %2415 = vmatpush.bf16.msra.mxu0 %v1428
  %2416 = vmatpush.bf16.msra.mxu0 %v1426
  %2417 = vmatmul.bf16.gmra.mxu0 %v499
  %v2418 = vpop.f32.mrf.mxu0
  %v2419 = vadd.f32 %v2391, %v2418
  %v2420 = vpop.f32.mrf.mxu0
  %v2421 = vadd.f32 %v2393, %v2420
  %2422 = vmatmul.bf16.gmra.mxu0 %v515
  %v2423 = vpop.f32.mrf.mxu0
  %v2424 = vadd.f32 %v2396, %v2423
  %v2425 = vpop.f32.mrf.mxu0
  %v2426 = vadd.f32 %v2398, %v2425
  %2427 = vmatmul.bf16.gmra.mxu0 %v531
  %v2428 = vpop.f32.mrf.mxu0
  %v2429 = vadd.f32 %v2401, %v2428
  %v2430 = vpop.f32.mrf.mxu0
  %v2431 = vadd.f32 %v2403, %v2430
  %2432 = vmatmul.bf16.gmra.mxu0 %v547
  %v2433 = vpop.f32.mrf.mxu0
  %v2434 = vadd.f32 %v2406, %v2433
  %v2435 = vpop.f32.mrf.mxu0
  %2436 = vdwg.mxu0
  %2437 = vmatpush.bf16.msra.mxu0 %v1456
  %2438 = vmatpush.bf16.msra.mxu0 %v1454
  %2439 = vmatpush.bf16.msra.mxu0 %v1452
  %2440 = vmatpush.bf16.msra.mxu0 %v1450
  %2441 = vmatpush.bf16.msra.mxu0 %v1448
  %2442 = vmatpush.bf16.msra.mxu0 %v1446
  %2443 = vmatpush.bf16.msra.mxu0 %v1444
  %2444 = vmatpush.bf16.msra.mxu0 %v1442
  %2445 = vmatmul.bf16.gmra.mxu0 %v500
  %v2446 = vpop.f32.mrf.mxu0
  %v2447 = vadd.f32 %v2419, %v2446
  %v2448 = vpop.f32.mrf.mxu0
  %v2449 = vadd.f32 %v2421, %v2448
  %2450 = vmatmul.bf16.gmra.mxu0 %v516
  %v2451 = vpop.f32.mrf.mxu0
  %v2452 = vadd.f32 %v2424, %v2451
  %v2453 = vpop.f32.mrf.mxu0
  %v2454 = vadd.f32 %v2426, %v2453
  %2455 = vmatmul.bf16.gmra.mxu0 %v532
  %v2456 = vpop.f32.mrf.mxu0
  %v2457 = vadd.f32 %v2429, %v2456
  %v2458 = vpop.f32.mrf.mxu0
  %v2459 = vadd.f32 %v2431, %v2458
  %2460 = vmatmul.bf16.gmra.mxu0 %v548
  %v2461 = vpop.f32.mrf.mxu0
  %v2462 = vadd.f32 %v2434, %v2461
  %v2463 = vpop.f32.mrf.mxu0
  %2464 = vdwg.mxu0
  %2465 = vmatpush.bf16.msra.mxu0 %v1472
  %2466 = vmatpush.bf16.msra.mxu0 %v1470
  %2467 = vmatpush.bf16.msra.mxu0 %v1468
  %2468 = vmatpush.bf16.msra.mxu0 %v1466
  %2469 = vmatpush.bf16.msra.mxu0 %v1464
  %2470 = vmatpush.bf16.msra.mxu0 %v1462
  %2471 = vmatpush.bf16.msra.mxu0 %v1460
  %2472 = vmatpush.bf16.msra.mxu0 %v1458
  %2473 = vmatmul.bf16.gmra.mxu0 %v501
  %v2474 = vpop.f32.mrf.mxu0
  %v2475 = vadd.f32 %v2447, %v2474
  %v2476 = vpop.f32.mrf.mxu0
  %v2477 = vadd.f32 %v2449, %v2476
  %2478 = vmatmul.bf16.gmra.mxu0 %v517
  %v2479 = vpop.f32.mrf.mxu0
  %v2480 = vadd.f32 %v2452, %v2479
  %v2481 = vpop.f32.mrf.mxu0
  %v2482 = vadd.f32 %v2454, %v2481
  %2483 = vmatmul.bf16.gmra.mxu0 %v533
  %v2484 = vpop.f32.mrf.mxu0
  %v2485 = vadd.f32 %v2457, %v2484
  %v2486 = vpop.f32.mrf.mxu0
  %v2487 = vadd.f32 %v2459, %v2486
  %2488 = vmatmul.bf16.gmra.mxu0 %v549
  %v2489 = vpop.f32.mrf.mxu0
  %v2490 = vadd.f32 %v2462, %v2489
  %v2491 = vpop.f32.mrf.mxu0
  %2492 = vdwg.mxu0
  %2493 = vmatpush.bf16.msra.mxu0 %v1488
  %2494 = vmatpush.bf16.msra.mxu0 %v1486
  %2495 = vmatpush.bf16.msra.mxu0 %v1484
  %2496 = vmatpush.bf16.msra.mxu0 %v1482
  %2497 = vmatpush.bf16.msra.mxu0 %v1480
  %2498 = vmatpush.bf16.msra.mxu0 %v1478
  %2499 = vmatpush.bf16.msra.mxu0 %v1476
  %2500 = vmatpush.bf16.msra.mxu0 %v1474
  %2501 = vmatmul.bf16.gmra.mxu0 %v502
  %v2502 = vpop.f32.mrf.mxu0
  %v2503 = vadd.f32 %v2475, %v2502
  %v2504 = vpop.f32.mrf.mxu0
  %v2505 = vadd.f32 %v2477, %v2504
  %2506 = vmatmul.bf16.gmra.mxu0 %v518
  %v2507 = vpop.f32.mrf.mxu0
  %v2508 = vadd.f32 %v2480, %v2507
  %v2509 = vpop.f32.mrf.mxu0
  %v2510 = vadd.f32 %v2482, %v2509
  %2511 = vmatmul.bf16.gmra.mxu0 %v534
  %v2512 = vpop.f32.mrf.mxu0
  %v2513 = vadd.f32 %v2485, %v2512
  %v2514 = vpop.f32.mrf.mxu0
  %v2515 = vadd.f32 %v2487, %v2514
  %2516 = vmatmul.bf16.gmra.mxu0 %v550
  %v2517 = vpop.f32.mrf.mxu0
  %v2518 = vadd.f32 %v2490, %v2517
  %v2519 = vpop.f32.mrf.mxu0
  %2520 = vdwg.mxu0
  %2521 = vmatpush.bf16.msra.mxu0 %v1504
  %2522 = vmatpush.bf16.msra.mxu0 %v1502
  %2523 = vmatpush.bf16.msra.mxu0 %v1500
  %2524 = vmatpush.bf16.msra.mxu0 %v1498
  %2525 = vmatpush.bf16.msra.mxu0 %v1496
  %2526 = vmatpush.bf16.msra.mxu0 %v1494
  %2527 = vmatpush.bf16.msra.mxu0 %v1492
  %2528 = vmatpush.bf16.msra.mxu0 %v1490
  %2529 = vmatmul.bf16.gmra.mxu0 %v503
  %v2530 = vpop.f32.mrf.mxu0
  %v2531 = vadd.f32 %v2503, %v2530
  %v2532 = vpop.f32.mrf.mxu0
  %v2533 = vadd.f32 %v2505, %v2532
  %2534 = vmatmul.bf16.gmra.mxu0 %v519
  %v2535 = vpop.f32.mrf.mxu0
  %v2536 = vadd.f32 %v2508, %v2535
  %v2537 = vpop.f32.mrf.mxu0
  %v2538 = vadd.f32 %v2510, %v2537
  %2539 = vmatmul.bf16.gmra.mxu0 %v535
  %v2540 = vpop.f32.mrf.mxu0
  %v2541 = vadd.f32 %v2513, %v2540
  %v2542 = vpop.f32.mrf.mxu0
  %v2543 = vadd.f32 %v2515, %v2542
  %2544 = vmatmul.bf16.gmra.mxu0 %v551
  %v2545 = vpop.f32.mrf.mxu0
  %v2546 = vadd.f32 %v2518, %v2545
  %v2547 = vpop.f32.mrf.mxu0
  %2548 = vdwg.mxu0
  %2549 = vmatpush.bf16.msra.mxu0 %v1520
  %2550 = vmatpush.bf16.msra.mxu0 %v1518
  %2551 = vmatpush.bf16.msra.mxu0 %v1516
  %2552 = vmatpush.bf16.msra.mxu0 %v1514
  %2553 = vmatpush.bf16.msra.mxu0 %v1512
  %2554 = vmatpush.bf16.msra.mxu0 %v1510
  %2555 = vmatpush.bf16.msra.mxu0 %v1508
  %2556 = vmatpush.bf16.msra.mxu0 %v1506
  %2557 = vmatmul.bf16.gmra.mxu0 %v504
  %v2558 = vpop.f32.mrf.mxu0
  %v2559 = vadd.f32 %v2531, %v2558
  %v2560 = vpop.f32.mrf.mxu0
  %v2561 = vadd.f32 %v2533, %v2560
  %2562 = vmatmul.bf16.gmra.mxu0 %v520
  %v2563 = vpop.f32.mrf.mxu0
  %v2564 = vadd.f32 %v2536, %v2563
  %v2565 = vpop.f32.mrf.mxu0
  %v2566 = vadd.f32 %v2538, %v2565
  %2567 = vmatmul.bf16.gmra.mxu0 %v536
  %v2568 = vpop.f32.mrf.mxu0
  %v2569 = vadd.f32 %v2541, %v2568
  %v2570 = vpop.f32.mrf.mxu0
  %v2571 = vadd.f32 %v2543, %v2570
  %2572 = vmatmul.bf16.gmra.mxu0 %v552
  %v2573 = vpop.f32.mrf.mxu0
  %v2574 = vadd.f32 %v2546, %v2573
  %v2575 = vpop.f32.mrf.mxu0
  %2576 = vdwg.mxu0
  %2577 = vmatpush.bf16.msra.mxu0 %v1536
  %2578 = vmatpush.bf16.msra.mxu0 %v1534
  %2579 = vmatpush.bf16.msra.mxu0 %v1532
  %2580 = vmatpush.bf16.msra.mxu0 %v1530
  %2581 = vmatpush.bf16.msra.mxu0 %v1528
  %2582 = vmatpush.bf16.msra.mxu0 %v1526
  %2583 = vmatpush.bf16.msra.mxu0 %v1524
  %2584 = vmatpush.bf16.msra.mxu0 %v1522
  %2585 = vmatmul.bf16.gmra.mxu0 %v505
  %v2586 = vpop.f32.mrf.mxu0
  %v2587 = vadd.f32 %v2559, %v2586
  %v2588 = vpop.f32.mrf.mxu0
  %v2589 = vadd.f32 %v2561, %v2588
  %2590 = vmatmul.bf16.gmra.mxu0 %v521
  %v2591 = vpop.f32.mrf.mxu0
  %v2592 = vadd.f32 %v2564, %v2591
  %v2593 = vpop.f32.mrf.mxu0
  %v2594 = vadd.f32 %v2566, %v2593
  %2595 = vmatmul.bf16.gmra.mxu0 %v537
  %v2596 = vpop.f32.mrf.mxu0
  %v2597 = vadd.f32 %v2569, %v2596
  %v2598 = vpop.f32.mrf.mxu0
  %v2599 = vadd.f32 %v2571, %v2598
  %2600 = vmatmul.bf16.gmra.mxu0 %v553
  %v2601 = vpop.f32.mrf.mxu0
  %v2602 = vadd.f32 %v2574, %v2601
  %v2603 = vpop.f32.mrf.mxu0
  %2604 = vdwg.mxu0
  %2605 = vmatpush.bf16.msra.mxu0 %v1552
  %2606 = vmatpush.bf16.msra.mxu0 %v1550
  %2607 = vmatpush.bf16.msra.mxu0 %v1548
  %2608 = vmatpush.bf16.msra.mxu0 %v1546
  %2609 = vmatpush.bf16.msra.mxu0 %v1544
  %2610 = vmatpush.bf16.msra.mxu0 %v1542
  %2611 = vmatpush.bf16.msra.mxu0 %v1540
  %2612 = vmatpush.bf16.msra.mxu0 %v1538
  %2613 = vmatmul.bf16.gmra.mxu0 %v506
  %v2614 = vpop.f32.mrf.mxu0
  %v2615 = vadd.f32 %v2587, %v2614
  %v2616 = vpop.f32.mrf.mxu0
  %v2617 = vadd.f32 %v2589, %v2616
  %2618 = vmatmul.bf16.gmra.mxu0 %v522
  %v2619 = vpop.f32.mrf.mxu0
  %v2620 = vadd.f32 %v2592, %v2619
  %v2621 = vpop.f32.mrf.mxu0
  %v2622 = vadd.f32 %v2594, %v2621
  %2623 = vmatmul.bf16.gmra.mxu0 %v538
  %v2624 = vpop.f32.mrf.mxu0
  %v2625 = vadd.f32 %v2597, %v2624
  %v2626 = vpop.f32.mrf.mxu0
  %v2627 = vadd.f32 %v2599, %v2626
  %2628 = vmatmul.bf16.gmra.mxu0 %v554
  %v2629 = vpop.f32.mrf.mxu0
  %v2630 = vadd.f32 %v2602, %v2629
  %v2631 = vpop.f32.mrf.mxu0
  %2632 = vdwg.mxu0
  %2633 = vmatpush.bf16.msra.mxu0 %v1568
  %2634 = vmatpush.bf16.msra.mxu0 %v1566
  %2635 = vmatpush.bf16.msra.mxu0 %v1564
  %2636 = vmatpush.bf16.msra.mxu0 %v1562
  %2637 = vmatpush.bf16.msra.mxu0 %v1560
  %2638 = vmatpush.bf16.msra.mxu0 %v1558
  %2639 = vmatpush.bf16.msra.mxu0 %v1556
  %2640 = vmatpush.bf16.msra.mxu0 %v1554
  %2641 = vmatmul.bf16.gmra.mxu0 %v507
  %v2642 = vpop.f32.mrf.mxu0
  %v2643 = vadd.f32 %v2615, %v2642
  %v2644 = vpop.f32.mrf.mxu0
  %v2645 = vadd.f32 %v2617, %v2644
  %2646 = vmatmul.bf16.gmra.mxu0 %v523
  %v2647 = vpop.f32.mrf.mxu0
  %v2648 = vadd.f32 %v2620, %v2647
  %v2649 = vpop.f32.mrf.mxu0
  %v2650 = vadd.f32 %v2622, %v2649
  %2651 = vmatmul.bf16.gmra.mxu0 %v539
  %v2652 = vpop.f32.mrf.mxu0
  %v2653 = vadd.f32 %v2625, %v2652
  %v2654 = vpop.f32.mrf.mxu0
  %v2655 = vadd.f32 %v2627, %v2654
  %2656 = vmatmul.bf16.gmra.mxu0 %v555
  %v2657 = vpop.f32.mrf.mxu0
  %v2658 = vadd.f32 %v2630, %v2657
  %v2659 = vpop.f32.mrf.mxu0
  %2660 = vdwg.mxu0
  %2661 = vmatpush.bf16.msra.mxu0 %v1584
  %2662 = vmatpush.bf16.msra.mxu0 %v1582
  %2663 = vmatpush.bf16.msra.mxu0 %v1580
  %2664 = vmatpush.bf16.msra.mxu0 %v1578
  %2665 = vmatpush.bf16.msra.mxu0 %v1576
  %2666 = vmatpush.bf16.msra.mxu0 %v1574
  %2667 = vmatpush.bf16.msra.mxu0 %v1572
  %2668 = vmatpush.bf16.msra.mxu0 %v1570
  %2669 = vmatmul.bf16.gmra.mxu0 %v508
  %v2670 = vpop.f32.mrf.mxu0
  %v2671 = vadd.f32 %v2643, %v2670
  %v2672 = vpop.f32.mrf.mxu0
  %v2673 = vadd.f32 %v2645, %v2672
  %2674 = vmatmul.bf16.gmra.mxu0 %v524
  %v2675 = vpop.f32.mrf.mxu0
  %v2676 = vadd.f32 %v2648, %v2675
  %v2677 = vpop.f32.mrf.mxu0
  %v2678 = vadd.f32 %v2650, %v2677
  %2679 = vmatmul.bf16.gmra.mxu0 %v540
  %v2680 = vpop.f32.mrf.mxu0
  %v2681 = vadd.f32 %v2653, %v2680
  %v2682 = vpop.f32.mrf.mxu0
  %v2683 = vadd.f32 %v2655, %v2682
  %2684 = vmatmul.bf16.gmra.mxu0 %v556
  %v2685 = vpop.f32.mrf.mxu0
  %v2686 = vadd.f32 %v2658, %v2685
  %v2687 = vpop.f32.mrf.mxu0
  %2688 = vdwg.mxu0
  %2689 = vmatpush.bf16.msra.mxu0 %v1600
  %2690 = vmatpush.bf16.msra.mxu0 %v1598
  %2691 = vmatpush.bf16.msra.mxu0 %v1596
  %2692 = vmatpush.bf16.msra.mxu0 %v1594
  %2693 = vmatpush.bf16.msra.mxu0 %v1592
  %2694 = vmatpush.bf16.msra.mxu0 %v1590
  %2695 = vmatpush.bf16.msra.mxu0 %v1588
  %2696 = vmatpush.bf16.msra.mxu0 %v1586
  %2697 = vmatmul.bf16.gmra.mxu0 %v509
  %v2698 = vpop.f32.mrf.mxu0
  %v2699 = vadd.f32 %v2671, %v2698
  %v2700 = vpop.f32.mrf.mxu0
  %v2701 = vadd.f32 %v2673, %v2700
  %2702 = vmatmul.bf16.gmra.mxu0 %v525
  %v2703 = vpop.f32.mrf.mxu0
  %v2704 = vadd.f32 %v2676, %v2703
  %v2705 = vpop.f32.mrf.mxu0
  %v2706 = vadd.f32 %v2678, %v2705
  %2707 = vmatmul.bf16.gmra.mxu0 %v541
  %v2708 = vpop.f32.mrf.mxu0
  %v2709 = vadd.f32 %v2681, %v2708
  %v2710 = vpop.f32.mrf.mxu0
  %v2711 = vadd.f32 %v2683, %v2710
  %2712 = vmatmul.bf16.gmra.mxu0 %v557
  %v2713 = vpop.f32.mrf.mxu0
  %v2714 = vadd.f32 %v2686, %v2713
  %v2715 = vpop.f32.mrf.mxu0
  %2716 = vdwg.mxu0
  %2717 = vmatpush.bf16.msra.mxu0 %v1616
  %2718 = vmatpush.bf16.msra.mxu0 %v1614
  %2719 = vmatpush.bf16.msra.mxu0 %v1612
  %2720 = vmatpush.bf16.msra.mxu0 %v1610
  %2721 = vmatpush.bf16.msra.mxu0 %v1608
  %2722 = vmatpush.bf16.msra.mxu0 %v1606
  %2723 = vmatpush.bf16.msra.mxu0 %v1604
  %2724 = vmatpush.bf16.msra.mxu0 %v1602
  %2725 = vmatmul.bf16.gmra.mxu0 %v510
  %v2726 = vpop.f32.mrf.mxu0
  %v2727 = vadd.f32 %v2699, %v2726
  %v2728 = vpop.f32.mrf.mxu0
  %v2729 = vadd.f32 %v2701, %v2728
  %2730 = vmatmul.bf16.gmra.mxu0 %v526
  %v2731 = vpop.f32.mrf.mxu0
  %v2732 = vadd.f32 %v2704, %v2731
  %v2733 = vpop.f32.mrf.mxu0
  %v2734 = vadd.f32 %v2706, %v2733
  %2735 = vmatmul.bf16.gmra.mxu0 %v542
  %v2736 = vpop.f32.mrf.mxu0
  %v2737 = vadd.f32 %v2709, %v2736
  %v2738 = vpop.f32.mrf.mxu0
  %v2739 = vadd.f32 %v2711, %v2738
  %2740 = vmatmul.bf16.gmra.mxu0 %v558
  %v2741 = vpop.f32.mrf.mxu0
  %v2742 = vadd.f32 %v2714, %v2741
  %v2743 = vpop.f32.mrf.mxu0
  %2744 = vdwg.mxu0
  %2745 = vmatpush.bf16.msra.mxu0 %v1632
  %2746 = vmatpush.bf16.msra.mxu0 %v1630
  %2747 = vmatpush.bf16.msra.mxu0 %v1628
  %2748 = vmatpush.bf16.msra.mxu0 %v1626
  %2749 = vmatpush.bf16.msra.mxu0 %v1624
  %2750 = vmatpush.bf16.msra.mxu0 %v1622
  %2751 = vmatpush.bf16.msra.mxu0 %v1620
  %2752 = vmatpush.bf16.msra.mxu0 %v1618
  %2753 = vmatmul.bf16.gmra.mxu0 %v511
  %v2754 = vpop.f32.mrf.mxu0
  %v2755 = vadd.f32 %v2727, %v2754
  %v2756 = vpop.f32.mrf.mxu0
  %v2757 = vadd.f32 %v2729, %v2756
  %2758 = vmatmul.bf16.gmra.mxu0 %v527
  %v2759 = vpop.f32.mrf.mxu0
  %v2760 = vadd.f32 %v2732, %v2759
  %v2761 = vpop.f32.mrf.mxu0
  %v2762 = vadd.f32 %v2734, %v2761
  %2763 = vmatmul.bf16.gmra.mxu0 %v543
  %v2764 = vpop.f32.mrf.mxu0
  %v2765 = vadd.f32 %v2737, %v2764
  %v2766 = vpop.f32.mrf.mxu0
  %v2767 = vadd.f32 %v2739, %v2766
  %2768 = vmatmul.bf16.gmra.mxu0 %v559
  %v2769 = vpop.f32.mrf.mxu0
  %v2770 = vadd.f32 %v2742, %v2769
  %v2771 = vpop.f32.mrf.mxu0
  %2772 = vdwg.mxu0
  %2773 = vmatpush.bf16.msra.mxu0 %v1648
  %2774 = vmatpush.bf16.msra.mxu0 %v1646
  %2775 = vmatpush.bf16.msra.mxu0 %v1644
  %2776 = vmatpush.bf16.msra.mxu0 %v1642
  %2777 = vmatpush.bf16.msra.mxu0 %v1640
  %2778 = vmatpush.bf16.msra.mxu0 %v1638
  %2779 = vmatpush.bf16.msra.mxu0 %v1636
  %2780 = vmatpush.bf16.msra.mxu0 %v1634
  %2781 = vmatmul.bf16.gmra.mxu0 %v512
  %v2782 = vpop.f32.mrf.mxu0
  %v2783 = vadd.f32 %v2755, %v2782
  %v2784 = vpop.f32.mrf.mxu0
  %v2785 = vadd.f32 %v2757, %v2784
  %2786 = vmatmul.bf16.gmra.mxu0 %v528
  %v2787 = vpop.f32.mrf.mxu0
  %v2788 = vadd.f32 %v2760, %v2787
  %v2789 = vpop.f32.mrf.mxu0
  %v2790 = vadd.f32 %v2762, %v2789
  %2791 = vmatmul.bf16.gmra.mxu0 %v544
  %v2792 = vpop.f32.mrf.mxu0
  %v2793 = vadd.f32 %v2765, %v2792
  %v2794 = vpop.f32.mrf.mxu0
  %v2795 = vadd.f32 %v2767, %v2794
  %2796 = vmatmul.bf16.gmra.mxu0 %v560
  %v2797 = vpop.f32.mrf.mxu0
  %v2798 = vadd.f32 %v2770, %v2797
  %v2799 = vpop.f32.mrf.mxu0
  %2800 = vdwg.mxu0
  %v2801 = vadd.f32 %v2335, %v2337
  %v2802 = vadd.f32 %v2801, %v2340
  %v2803 = vadd.f32 %v2802, %v2342
  %v2804 = vadd.f32 %v2803, %v2345
  %v2805 = vadd.f32 %v2804, %v2347
  %vm2806 = vcmask 1041408
  %v2807 = vsel %vm2806, %v2350, 0.0
  %v2808 = vadd.f32 %v2805, %v2807
  %v2809 = vrot.slane %v2808, 4
  %v2810 = vadd.f32 %v2808, %v2809
  %v2811 = vrot.slane %v2810, 2
  %v2812 = vadd.f32 %v2810, %v2811
  %v2813 = vrot.slane %v2812, 1
  %v2814 = vadd.f32 %v2812, %v2813
  %v2815 = vadd.f32 %v2783, %v2785
  %v2816 = vadd.f32 %v2815, %v2788
  %v2817 = vadd.f32 %v2816, %v2790
  %v2818 = vadd.f32 %v2817, %v2793
  %v2819 = vadd.f32 %v2818, %v2795
  %v2820 = vsel %vm2806, %v2798, 0.0
  %v2821 = vadd.f32 %v2819, %v2820
  %v2822 = vrot.slane %v2821, 4
  %v2823 = vadd.f32 %v2821, %v2822
  %v2824 = vrot.slane %v2823, 2
  %v2825 = vadd.f32 %v2823, %v2824
  %v2826 = vrot.slane %v2825, 1
  %v2827 = vadd.f32 %v2825, %v2826
  %v2828 = vmul.f32 %v2335, %v2335
  %v2829 = vmul.f32 %v2783, %v2783
  %v2830 = vmul.f32 %v2337, %v2337
  %v2831 = vmul.f32 %v2785, %v2785
  %v2832 = vmul.f32 %v2340, %v2340
  %v2833 = vmul.f32 %v2788, %v2788
  %v2834 = vmul.f32 %v2342, %v2342
  %v2835 = vmul.f32 %v2790, %v2790
  %v2836 = vmul.f32 %v2345, %v2345
  %v2837 = vmul.f32 %v2793, %v2793
  %v2838 = vmul.f32 %v2347, %v2347
  %v2839 = vmul.f32 %v2795, %v2795
  %v2840 = vmul.f32 %v2350, %v2350
  %v2841 = vmul.f32 %v2798, %v2798
  %v2842 = vadd.f32 %v2828, %v2830
  %v2843 = vadd.f32 %v2842, %v2832
  %v2844 = vadd.f32 %v2843, %v2834
  %v2845 = vadd.f32 %v2844, %v2836
  %v2846 = vadd.f32 %v2845, %v2838
  %v2847 = vsel %vm2806, %v2840, 0.0
  %v2848 = vadd.f32 %v2846, %v2847
  %v2849 = vrot.slane %v2848, 4
  %v2850 = vadd.f32 %v2848, %v2849
  %v2851 = vrot.slane %v2850, 2
  %v2852 = vadd.f32 %v2850, %v2851
  %v2853 = vrot.slane %v2852, 1
  %v2854 = vadd.f32 %v2852, %v2853
  %v2855 = vadd.f32 %v2829, %v2831
  %v2856 = vadd.f32 %v2855, %v2833
  %v2857 = vadd.f32 %v2856, %v2835
  %v2858 = vadd.f32 %v2857, %v2837
  %v2859 = vadd.f32 %v2858, %v2839
  %v2860 = vsel %vm2806, %v2841, 0.0
  %v2861 = vadd.f32 %v2859, %v2860
  %v2862 = vrot.slane %v2861, 4
  %v2863 = vadd.f32 %v2861, %v2862
  %v2864 = vrot.slane %v2863, 2
  %v2865 = vadd.f32 %v2863, %v2864
  %v2866 = vrot.slane %v2865, 1
  %v2867 = vadd.f32 %v2865, %v2866
  %v2868 = vrcp.pop 50.0
  %v2869 = vmul.f32 50.0, %v2868
  %v2870 = vsub.f32 1.0, %v2869
  %v2871 = vmul.f32 %v2868, %v2870
  %v2872 = vadd.f32 %v2868, %v2871
  %vm2873 = vweird.f32 %v2868
  %v2874 = vsel %vm2873, %v2868, %v2872
  %v2875 = vmul.f32 %v2814, %v2874
  %v2876 = vmul.f32 %v2827, %v2874
  %v2877 = vmul.f32 %v2854, %v2874
  %v2878 = vmul.f32 %v2867, %v2874
  %v2879 = vmul.f32 %v2875, %v2875
  %v2880 = vmul.f32 %v2876, %v2876
  %v2881 = vsub.f32 %v2877, %v2879
  %v2882 = vsub.f32 %v2878, %v2880
  %v2883 = vld [vmem:[%s2] sm:$0x3]
  %v2884 = vadd.f32 %v2881, 1e-05
  %v2885 = vadd.f32 %v2882, 1e-05
  %v2886 = vrsqrt.pop %v2884
  %v2887 = vmul.f32 %v2886, %v2884
  %v2888 = vmul.f32 %v2887, %v2886
  %v2889 = vmul.f32 0.5, %v2888
  %v2890 = vsub.f32 1.5, %v2889
  %v2891 = vmul.f32 %v2886, %v2890
  %vm2892 = vweird.f32 %v2884
  %vm2893 = vweird.f32 %v2886
  %vm2894 = vmor %vm2892, %vm2893
  %v2895 = vsel %vm2894, %v2886, %v2891
  %v2896 = vrsqrt.pop %v2885
  %v2897 = vmul.f32 %v2896, %v2885
  %v2898 = vmul.f32 %v2897, %v2896
  %v2899 = vmul.f32 0.5, %v2898
  %v2900 = vsub.f32 1.5, %v2899
  %v2901 = vmul.f32 %v2896, %v2900
  %vm2902 = vweird.f32 %v2885
  %vm2903 = vweird.f32 %v2896
  %vm2904 = vmor %vm2902, %vm2903
  %v2905 = vsel %vm2904, %v2896, %v2901
  %v2908 = vrot.slane %v2905, 7
  %vm2909 = vcmask 1040384
  %v2910 = vsel %vm2909, %v2895, %v2908
  %v2912 = vmul.f32 %v2883, %v2910
  %v2913 = vld [vmem:[%s3] sm:$0x3]
  %v2915 = vperm.slane %v2912, 0
  %v2916 = vperm.slane %v2912, 1
  %v2919 = vmul.f32 %v2875, %v2915
  %v2920 = vmul.f32 %v2876, %v2916
  %v2923 = vrot.slane %v2920, 7
  %v2924 = vsel %vm2909, %v2919, %v2923
  %v2926 = vsub.f32 %v2913, %v2924
  %v2927 = vmul.f32 %v2335, %v2915
  %v2928 = vmul.f32 %v2783, %v2916
  %v2929 = vmul.f32 %v2337, %v2915
  %v2930 = vmul.f32 %v2785, %v2916
  %v2931 = vmul.f32 %v2340, %v2915
  %v2932 = vmul.f32 %v2788, %v2916
  %v2933 = vmul.f32 %v2342, %v2915
  %v2934 = vmul.f32 %v2790, %v2916
  %v2935 = vmul.f32 %v2345, %v2915
  %v2936 = vmul.f32 %v2793, %v2916
  %v2937 = vmul.f32 %v2347, %v2915
  %v2938 = vmul.f32 %v2795, %v2916
  %v2939 = vmul.f32 %v2350, %v2915
  %v2940 = vmul.f32 %v2798, %v2916
  %v2942 = vperm.slane %v2926, 0
  %v2943 = vperm.slane %v2926, 1
  %v2946 = vadd.f32 %v2927, %v2942
  %v2947 = vadd.f32 %v2928, %v2943
  %v2948 = vadd.f32 %v2929, %v2942
  %v2949 = vadd.f32 %v2930, %v2943
  %v2950 = vadd.f32 %v2931, %v2942
  %v2951 = vadd.f32 %v2932, %v2943
  %v2952 = vadd.f32 %v2933, %v2942
  %v2953 = vadd.f32 %v2934, %v2943
  %v2954 = vadd.f32 %v2935, %v2942
  %v2955 = vadd.f32 %v2936, %v2943
  %v2956 = vadd.f32 %v2937, %v2942
  %v2957 = vadd.f32 %v2938, %v2943
  %v2958 = vadd.f32 %v2939, %v2942
  %v2959 = vadd.f32 %v2940, %v2943
  %vm2960 = vcmp.gt.f32.partialorder %v2946, 0.0
  %vm2961 = vcmp.gt.f32.partialorder %v2947, 0.0
  %vm2962 = vcmp.gt.f32.partialorder %v2948, 0.0
  %vm2963 = vcmp.gt.f32.partialorder %v2949, 0.0
  %vm2964 = vcmp.gt.f32.partialorder %v2950, 0.0
  %vm2965 = vcmp.gt.f32.partialorder %v2951, 0.0
  %vm2966 = vcmp.gt.f32.partialorder %v2952, 0.0
  %vm2967 = vcmp.gt.f32.partialorder %v2953, 0.0
  %vm2968 = vcmp.gt.f32.partialorder %v2954, 0.0
  %vm2969 = vcmp.gt.f32.partialorder %v2955, 0.0
  %vm2970 = vcmp.gt.f32.partialorder %v2956, 0.0
  %vm2971 = vcmp.gt.f32.partialorder %v2957, 0.0
  %vm2972 = vcmp.gt.f32.partialorder %v2958, 0.0
  %vm2973 = vcmp.gt.f32.partialorder %v2959, 0.0
  %v2974 = vmul.f32 %v2946, 0.2
  %v2975 = vmul.f32 %v2947, 0.2
  %v2976 = vmul.f32 %v2948, 0.2
  %v2977 = vmul.f32 %v2949, 0.2
  %v2978 = vmul.f32 %v2950, 0.2
  %v2979 = vmul.f32 %v2951, 0.2
  %v2980 = vmul.f32 %v2952, 0.2
  %v2981 = vmul.f32 %v2953, 0.2
  %v2982 = vmul.f32 %v2954, 0.2
  %v2983 = vmul.f32 %v2955, 0.2
  %v2984 = vmul.f32 %v2956, 0.2
  %v2985 = vmul.f32 %v2957, 0.2
  %v2986 = vmul.f32 %v2958, 0.2
  %v2987 = vmul.f32 %v2959, 0.2
  %v2988 = vsel %vm2960, %v2946, %v2974
  %v2989 = vsel %vm2961, %v2947, %v2975
  %v2990 = vsel %vm2962, %v2948, %v2976
  %v2991 = vsel %vm2963, %v2949, %v2977
  %v2992 = vsel %vm2964, %v2950, %v2978
  %v2993 = vsel %vm2965, %v2951, %v2979
  %v2994 = vsel %vm2966, %v2952, %v2980
  %v2995 = vsel %vm2967, %v2953, %v2981
  %v2996 = vsel %vm2968, %v2954, %v2982
  %v2997 = vsel %vm2969, %v2955, %v2983
  %v2998 = vsel %vm2970, %v2956, %v2984
  %v2999 = vsel %vm2971, %v2957, %v2985
  %v3000 = vsel %vm2972, %v2958, %v2986
  %v3001 = vsel %vm2973, %v2959, %v2987
  %v3002 = vpack.c.bf16 %v2989, %v2988
  %v3003 = vpack.c.bf16 %v2991, %v2990
  %v3004 = vpack.c.bf16 %v2993, %v2992
  %v3005 = vpack.c.bf16 %v2995, %v2994
  %v3006 = vpack.c.bf16 %v2997, %v2996
  %v3007 = vpack.c.bf16 %v2999, %v2998
  %v3008 = vpack.c.bf16 %v3001, %v3000
  %3009 = vst [vmem:[%s4] sm:$0xff] %v3002
  %3010 = vst [vmem:[%s4 + $0x8] sm:$0xff] %v3003
  %3011 = vst [vmem:[%s4 + $0x10] sm:$0xff] %v3004
  %3012 = vst [vmem:[%s4 + $0x18] sm:$0xff] %v3005
  %3013 = vst [vmem:[%s4 + $0x20] sm:$0xff] %v3006
  %3014 = vst [vmem:[%s4 + $0x28] sm:$0xff] %v3007
  %3015 = vst [vmem:[%s4 + $0x30] sm:$0x11] %v3008
  // Predicated region
  $region18: #{netD_forward.7} parent=0 // pred_check
    _
  $region19: #{netD_forward.7} parent=0 // pred_check_branch
    %3017 = sbr.rel (0) target = $region21
  $region20: #{netD_forward.7} parent=0 // pred_region
    _
  $region21: #{netD_forward.7} parent=0 // pred_fallthru
    _
  // Predicated region
  $region22: #{netD_forward.7} parent=0 // pred_check
    _
  $region23: #{netD_forward.7} parent=0 // pred_check_branch
    %3019 = sbr.rel (0) target = $region25
  $region24: #{netD_forward.7} parent=0 // pred_region
    _
  $region25: #{netD_forward.7} parent=0 // pred_fallthru
    _

// kernel: netD_forward.9
$region0: #{netD_forward.9}
  #allocation0 [shape = 'u32[]', space=smem, size = 0x4, offset = 0x4, fixed_abs, tag = 'smem constant byte address 0x4 - core index']
  #allocation1 [shape = 'u32[72,128]{1,0:T(1,128)}', space=vmem, size = 0x9000, scoped, tag = 'internal scratch']
  #allocation2 [shape = 'f32[1,1]{1,0:T(1,128)S(1)}', space=vmem, size = 0x200, scoped, tag = 'scoped memory for netD_forward.9']
  %s0 = inlined_call_operand.vmem [shape: bf16[2,400], index: 0, kind: input, shape index: {}]
  %s1 = inlined_call_operand.vmem [shape: bf16[2,18], index: 1, kind: input, shape index: {}]
  %s2 = inlined_call_operand.vmem [shape: bf16[400,18], index: 2, kind: input, shape index: {}]
  %s3 = inlined_call_operand.vmem [shape: bf16[18,18], index: 3, kind: input, shape index: {}]
  %s4 = inlined_call_operand.vmem [shape: f32[1,18], index: 4, kind: input, shape index: {}]
  %s5 = inlined_call_operand.vmem [shape: bf16[18,1], index: 5, kind: input, shape index: {}]
  %s6 = inlined_call_operand.vmem [shape: bf16[18,1], index: 6, kind: input, shape index: {}]
  %s7 = inlined_call_operand.<no memory space> [shape: f32[1,1], index: 7, kind: input, shape index: {}]
  %s8 = inlined_call_operand.vmem [shape: f32[2,1], index: 8, kind: output, shape index: {}]
  %s9 = sld [smem:[#allocation0]]
  $region42: #{netD_forward.9} parent=0
    _
  %s11 = ssub.s32 1, %s9
  %s12 = scalar_select 0, %s11, %s9
  %v13 = vstv %s7
  %14 = vst [vmem:[#allocation2] sm:$0x1] %v13
  // Predicated region
  $region2: #{netD_forward.9} parent=0 // pred_check
    _
  $region3: #{netD_forward.9} parent=0 // pred_check_branch
    %16 = sbr.rel (0) target = $region5
  $region4: #{netD_forward.9} parent=0 // pred_region
    _
  $region5: #{netD_forward.9} parent=0 // pred_fallthru
    _
  // Predicated region
  $region6: #{netD_forward.9} parent=0 // pred_check
    _
  $region7: #{netD_forward.9} parent=0 // pred_check_branch
    %18 = sbr.rel (0) target = $region9
  $region8: #{netD_forward.9} parent=0 // pred_region
    _
  $region9: #{netD_forward.9} parent=0 // pred_fallthru
    _
  // Predicated region
  $region10: #{netD_forward.9} parent=0 // pred_check
    _
  $region11: #{netD_forward.9} parent=0 // pred_check_branch
    %20 = sbr.rel (0) target = $region13
  $region12: #{netD_forward.9} parent=0 // pred_region
    _
  $region13: #{netD_forward.9} parent=0 // pred_fallthru
    _
  // Predicated region
  $region14: #{netD_forward.9} parent=0 // pred_check
    _
  $region15: #{netD_forward.9} parent=0 // pred_check_branch
    %22 = sbr.rel (0) target = $region17
  $region16: #{netD_forward.9} parent=0 // pred_region
    _
  $region17: #{netD_forward.9} parent=0 // pred_fallthru
    _
  // Predicated region
  $region18: #{netD_forward.9} parent=0 // pred_check
    _
  $region19: #{netD_forward.9} parent=0 // pred_check_branch
    %24 = sbr.rel (0) target = $region21
  $region20: #{netD_forward.9} parent=0 // pred_region
    _
  $region21: #{netD_forward.9} parent=0 // pred_fallthru
    _
  // Predicated region
  $region22: #{netD_forward.9} parent=0 // pred_check
    _
  $region23: #{netD_forward.9} parent=0 // pred_check_branch
    %26 = sbr.rel (0) target = $region25
  $region24: #{netD_forward.9} parent=0 // pred_region
    _
  $region25: #{netD_forward.9} parent=0 // pred_fallthru
    _
  // Predicated region
  $region26: #{netD_forward.9} parent=0 // pred_check
    _
  $region27: #{netD_forward.9} parent=0 // pred_check_branch
    %28 = sbr.rel (0) target = $region29
  $region28: #{netD_forward.9} parent=0 // pred_region
    _
  $region29: #{netD_forward.9} parent=0 // pred_fallthru
    _
  // Predicated region
  $region30: #{netD_forward.9} parent=0 // pred_check
    _
  $region31: #{netD_forward.9} parent=0 // pred_check_branch
    %30 = sbr.rel (0) target = $region33
  $region32: #{netD_forward.9} parent=0 // pred_region
    _
  $region33: #{netD_forward.9} parent=0 // pred_fallthru
    _
  %v32 = vld [vmem:[%s0] sm:$0xf]
  %v33 = vld [vmem:[%s2] sm:$0xf]
  %v34 = vld [vmem:[%s2 + $0x4] sm:$0xf]
  %v35 = vld [vmem:[%s2 + $0x8] sm:$0xf]
  %v36 = vld [vmem:[%s2 + $0xc] sm:$0xf]
  %v37 = vld [vmem:[%s2 + $0x10] sm:$0xf]
  %v38 = vld [vmem:[%s2 + $0x14] sm:$0xf]
  %v39 = vld [vmem:[%s2 + $0x18] sm:$0xf]
  %v40 = vld [vmem:[%s2 + $0x1c] sm:$0xf]
  %v41 = vld [vmem:[%s2 + $0x20] sm:$0xf]
  %v42 = vld [vmem:[%s2 + $0x24] sm:$0xf]
  %v43 = vld [vmem:[%s2 + $0x28] sm:$0xf]
  %v44 = vld [vmem:[%s2 + $0x2c] sm:$0xf]
  %v45 = vld [vmem:[%s2 + $0x30] sm:$0xf]
  %v46 = vld [vmem:[%s2 + $0x34] sm:$0xf]
  %v47 = vld [vmem:[%s2 + $0x38] sm:$0xf]
  %v48 = vld [vmem:[%s2 + $0x3c] sm:$0xf]
  %v49 = vld [vmem:[%s2 + $0x40] sm:$0xf]
  %v50 = vld [vmem:[%s2 + $0x44] sm:$0xf]
  %v51 = vld [vmem:[%s2 + $0x48] sm:$0xf]
  %v52 = vld [vmem:[%s2 + $0x4c] sm:$0xf]
  %v53 = vld [vmem:[%s2 + $0x50] sm:$0xf]
  %v54 = vld [vmem:[%s2 + $0x54] sm:$0xf]
  %v55 = vld [vmem:[%s2 + $0x58] sm:$0xf]
  %v56 = vld [vmem:[%s2 + $0x5c] sm:$0xf]
  %v57 = vld [vmem:[%s2 + $0x60] sm:$0xf]
  %v58 = vld [vmem:[%s2 + $0x64] sm:$0xf]
  %v59 = vld [vmem:[%s2 + $0x68] sm:$0xf]
  %v60 = vld [vmem:[%s2 + $0x6c] sm:$0xf]
  %v61 = vld [vmem:[%s2 + $0x70] sm:$0xf]
  %v62 = vld [vmem:[%s2 + $0x74] sm:$0xf]
  %v63 = vld [vmem:[%s2 + $0x78] sm:$0xf]
  %v64 = vld [vmem:[%s2 + $0x7c] sm:$0xf]
  %v65 = vld [vmem:[%s2 + $0x80] sm:$0xf]
  %v66 = vld [vmem:[%s2 + $0x84] sm:$0xf]
  %v67 = vld [vmem:[%s2 + $0x88] sm:$0xf]
  %v68 = vld [vmem:[%s2 + $0x8c] sm:$0xf]
  %v69 = vld [vmem:[%s2 + $0x90] sm:$0xf]
  %v70 = vld [vmem:[%s2 + $0x94] sm:$0xf]
  %v71 = vld [vmem:[%s2 + $0x98] sm:$0xf]
  %v72 = vld [vmem:[%s2 + $0x9c] sm:$0xf]
  %v73 = vld [vmem:[%s2 + $0xa0] sm:$0xf]
  %v74 = vld [vmem:[%s2 + $0xa4] sm:$0xf]
  %v75 = vld [vmem:[%s2 + $0xa8] sm:$0xf]
  %v76 = vld [vmem:[%s2 + $0xac] sm:$0xf]
  %v77 = vld [vmem:[%s2 + $0xb0] sm:$0xf]
  %v78 = vld [vmem:[%s2 + $0xb4] sm:$0xf]
  %v79 = vld [vmem:[%s2 + $0xb8] sm:$0xf]
  %v80 = vld [vmem:[%s2 + $0xbc] sm:$0xf]
  %v81 = vld [vmem:[%s2 + $0xc0] sm:$0xf]
  %v82 = vld [vmem:[%s2 + $0xc4] sm:$0xf]
  %v83 = vld [vmem:[%s1] sm:$0x1]
  %v84 = vld [vmem:[%s3] sm:$0xf]
  %v85 = vld [vmem:[%s3 + $0x4] sm:$0xf]
  %v86 = vld [vmem:[%s3 + $0x8] sm:$0x1]
  %v90 = vunpack.c.l.b16 %v84
  %v91 = vunpack.c.l.b16 %v85
  %v92 = vunpack.c.l.b16 %v86
  %v93 = vpack.c.b16 %v91, %v90
  %v94 = vpack.c.b16 %v92, %v92
  %vm96 = vcmask 146432
  %v98 = vsel %vm96, %v83, 0
  %vm100 = vcmask 1040384
  %v102 = vsel %vm100, %v94, 0
  %104 = vmatpush.bf16.msra.mxu0 0
  %105 = vmatpush.bf16.msra.mxu0 0
  %106 = vmatpush.bf16.msra.mxu0 0
  %107 = vmatpush.bf16.msra.mxu0 0
  %108 = vmatpush.bf16.msra.mxu0 0
  %109 = vmatpush.bf16.msra.mxu0 0
  %110 = vmatpush.bf16.msra.mxu0 %v102
  %111 = vmatpush.bf16.msra.mxu0 %v93
  %112 = vmatmul.bf16.gmra.mxu0 %v98
  %v113 = vpop.f32.mrf.mxu0
  %v114 = vadd.f32 0.0, %v113
  %v115 = vpop.f32.mrf.mxu0
  %116 = vdwg.mxu0
  %118 = vst [vmem:[#allocation1] ss:$9 sm:$0xff] %v32
  %v119 = vld [vmem:[#allocation1] sm:$0xff]
  %v120 = vld [vmem:[#allocation1 + $0x9] sm:$0xff]
  %v121 = vld [vmem:[#allocation1 + $0x12] sm:$0xff]
  %v122 = vld [vmem:[#allocation1 + $0x1b] sm:$0xff]
  %v176 = vunpack.c.l.b16 %v33
  %v177 = vunpack.c.l.b16 %v34
  %v178 = vunpack.c.l.b16 %v35
  %v179 = vunpack.c.l.b16 %v36
  %v180 = vunpack.c.l.b16 %v37
  %v181 = vunpack.c.l.b16 %v38
  %v182 = vunpack.c.l.b16 %v39
  %v183 = vunpack.c.l.b16 %v40
  %v184 = vunpack.c.l.b16 %v41
  %v185 = vunpack.c.l.b16 %v42
  %v186 = vunpack.c.l.b16 %v43
  %v187 = vunpack.c.l.b16 %v44
  %v188 = vunpack.c.l.b16 %v45
  %v189 = vunpack.c.l.b16 %v46
  %v190 = vunpack.c.l.b16 %v47
  %v191 = vunpack.c.l.b16 %v48
  %v192 = vunpack.c.l.b16 %v49
  %v193 = vunpack.c.l.b16 %v50
  %v194 = vunpack.c.l.b16 %v51
  %v195 = vunpack.c.l.b16 %v52
  %v196 = vunpack.c.l.b16 %v53
  %v197 = vunpack.c.l.b16 %v54
  %v198 = vunpack.c.l.b16 %v55
  %v199 = vunpack.c.l.b16 %v56
  %v200 = vunpack.c.l.b16 %v57
  %v201 = vunpack.c.l.b16 %v58
  %v202 = vunpack.c.l.b16 %v59
  %v203 = vunpack.c.l.b16 %v60
  %v204 = vunpack.c.l.b16 %v61
  %v205 = vunpack.c.l.b16 %v62
  %v206 = vunpack.c.l.b16 %v63
  %v207 = vunpack.c.l.b16 %v64
  %v208 = vunpack.c.l.b16 %v65
  %v209 = vunpack.c.l.b16 %v66
  %v210 = vunpack.c.l.b16 %v67
  %v211 = vunpack.c.l.b16 %v68
  %v212 = vunpack.c.l.b16 %v69
  %v213 = vunpack.c.l.b16 %v70
  %v214 = vunpack.c.l.b16 %v71
  %v215 = vunpack.c.l.b16 %v72
  %v216 = vunpack.c.l.b16 %v73
  %v217 = vunpack.c.l.b16 %v74
  %v218 = vunpack.c.l.b16 %v75
  %v219 = vunpack.c.l.b16 %v76
  %v220 = vunpack.c.l.b16 %v77
  %v221 = vunpack.c.l.b16 %v78
  %v222 = vunpack.c.l.b16 %v79
  %v223 = vunpack.c.l.b16 %v80
  %v224 = vunpack.c.l.b16 %v81
  %v225 = vunpack.c.l.b16 %v82
  %v226 = vpack.c.b16 %v177, %v176
  %v227 = vpack.c.b16 %v179, %v178
  %v228 = vpack.c.b16 %v181, %v180
  %v229 = vpack.c.b16 %v183, %v182
  %v230 = vpack.c.b16 %v185, %v184
  %v231 = vpack.c.b16 %v187, %v186
  %v232 = vpack.c.b16 %v189, %v188
  %v233 = vpack.c.b16 %v191, %v190
  %v234 = vpack.c.b16 %v193, %v192
  %v235 = vpack.c.b16 %v195, %v194
  %v236 = vpack.c.b16 %v197, %v196
  %v237 = vpack.c.b16 %v199, %v198
  %v238 = vpack.c.b16 %v201, %v200
  %v239 = vpack.c.b16 %v203, %v202
  %v240 = vpack.c.b16 %v205, %v204
  %v241 = vpack.c.b16 %v207, %v206
  %v242 = vpack.c.b16 %v209, %v208
  %v243 = vpack.c.b16 %v211, %v210
  %v244 = vpack.c.b16 %v213, %v212
  %v245 = vpack.c.b16 %v215, %v214
  %v246 = vpack.c.b16 %v217, %v216
  %v247 = vpack.c.b16 %v219, %v218
  %v248 = vpack.c.b16 %v221, %v220
  %v249 = vpack.c.b16 %v223, %v222
  %v250 = vpack.c.b16 %v225, %v224
  %vm276 = vcmask 130048
  %v277 = vsel %vm276, %v122, 0
  %279 = vmatpush.bf16.msra.mxu0 %v233
  %280 = vmatpush.bf16.msra.mxu0 %v232
  %281 = vmatpush.bf16.msra.mxu0 %v231
  %282 = vmatpush.bf16.msra.mxu0 %v230
  %283 = vmatpush.bf16.msra.mxu0 %v229
  %284 = vmatpush.bf16.msra.mxu0 %v228
  %285 = vmatpush.bf16.msra.mxu0 %v227
  %286 = vmatpush.bf16.msra.mxu0 %v226
  %287 = vmatmul.bf16.gmra.mxu0 %v119
  %v288 = vpop.f32.mrf.mxu0
  %v289 = vadd.f32 %v114, %v288
  %v290 = vpop.f32.mrf.mxu0
  %291 = vdwg.mxu0
  %292 = vmatpush.bf16.msra.mxu0 %v241
  %293 = vmatpush.bf16.msra.mxu0 %v240
  %294 = vmatpush.bf16.msra.mxu0 %v239
  %295 = vmatpush.bf16.msra.mxu0 %v238
  %296 = vmatpush.bf16.msra.mxu0 %v237
  %297 = vmatpush.bf16.msra.mxu0 %v236
  %298 = vmatpush.bf16.msra.mxu0 %v235
  %299 = vmatpush.bf16.msra.mxu0 %v234
  %300 = vmatmul.bf16.gmra.mxu0 %v120
  %v301 = vpop.f32.mrf.mxu0
  %v302 = vadd.f32 %v289, %v301
  %v303 = vpop.f32.mrf.mxu0
  %304 = vdwg.mxu0
  %305 = vmatpush.bf16.msra.mxu0 %v249
  %306 = vmatpush.bf16.msra.mxu0 %v248
  %307 = vmatpush.bf16.msra.mxu0 %v247
  %308 = vmatpush.bf16.msra.mxu0 %v246
  %309 = vmatpush.bf16.msra.mxu0 %v245
  %310 = vmatpush.bf16.msra.mxu0 %v244
  %311 = vmatpush.bf16.msra.mxu0 %v243
  %312 = vmatpush.bf16.msra.mxu0 %v242
  %313 = vmatmul.bf16.gmra.mxu0 %v121
  %v314 = vpop.f32.mrf.mxu0
  %v315 = vadd.f32 %v302, %v314
  %v316 = vpop.f32.mrf.mxu0
  %317 = vdwg.mxu0
  %318 = vmatpush.bf16.msra.mxu0 0
  %319 = vmatpush.bf16.msra.mxu0 0
  %320 = vmatpush.bf16.msra.mxu0 0
  %321 = vmatpush.bf16.msra.mxu0 0
  %322 = vmatpush.bf16.msra.mxu0 0
  %323 = vmatpush.bf16.msra.mxu0 0
  %324 = vmatpush.bf16.msra.mxu0 0
  %325 = vmatpush.bf16.msra.mxu0 %v250
  %326 = vmatmul.bf16.gmra.mxu0 %v277
  %v327 = vpop.f32.mrf.mxu0
  %v328 = vadd.f32 %v315, %v327
  %v329 = vpop.f32.mrf.mxu0
  %330 = vdwg.mxu0
  %v331 = vld [vmem:[%s4] sm:$0x1]
  %v333 = vperm.slane %v331, 0
  %v335 = vadd.f32 %v328, %v333
  %vm336 = vcmp.gt.f32.partialorder %v335, 0.0
  %v337 = vmul.f32 %v335, 0.2
  %v338 = vsel %vm336, %v335, %v337
  %v339 = vpack.c.bf16 %v338, %v338
  %v340 = vld [vmem:[%s5] sm:$0xf]
  %v341 = vld [vmem:[%s5 + $0x4] sm:$0xf]
  %v342 = vld [vmem:[%s5 + $0x8] sm:$0x1]
  %v343 = vld [vmem:[%s6] sm:$0xf]
  %v344 = vld [vmem:[%s6 + $0x4] sm:$0xf]
  %v345 = vld [vmem:[%s6 + $0x8] sm:$0x1]
  %v349 = vunpack.c.l.b16 %v343
  %v350 = vunpack.c.l.b16 %v344
  %v351 = vunpack.c.l.b16 %v345
  %v352 = vpack.c.b16 %v350, %v349
  %v353 = vpack.c.b16 %v351, %v351
  %v356 = vsel %vm100, %v353, 0
  %358 = vmatpush.bf16.msra.mxu0 0
  %359 = vmatpush.bf16.msra.mxu0 0
  %360 = vmatpush.bf16.msra.mxu0 0
  %361 = vmatpush.bf16.msra.mxu0 0
  %362 = vmatpush.bf16.msra.mxu0 0
  %363 = vmatpush.bf16.msra.mxu0 0
  %364 = vmatpush.bf16.msra.mxu0 %v356
  %365 = vmatpush.bf16.msra.mxu0 %v352
  %366 = vmatmul.bf16.gmra.mxu0 %v98
  %v367 = vpop.f32.mrf.mxu0
  %v368 = vadd.f32 0.0, %v367
  %v369 = vpop.f32.mrf.mxu0
  %370 = vdwg.mxu0
  %v374 = vunpack.c.l.b16 %v340
  %v375 = vunpack.c.l.b16 %v341
  %v376 = vunpack.c.l.b16 %v342
  %v377 = vpack.c.b16 %v375, %v374
  %v378 = vpack.c.b16 %v376, %v376
  %v381 = vsel %vm96, %v339, 0
  %v384 = vsel %vm100, %v378, 0
  %386 = vmatpush.bf16.msra.mxu0 0
  %387 = vmatpush.bf16.msra.mxu0 0
  %388 = vmatpush.bf16.msra.mxu0 0
  %389 = vmatpush.bf16.msra.mxu0 0
  %390 = vmatpush.bf16.msra.mxu0 0
  %391 = vmatpush.bf16.msra.mxu0 0
  %392 = vmatpush.bf16.msra.mxu0 %v384
  %393 = vmatpush.bf16.msra.mxu0 %v377
  %394 = vmatmul.bf16.gmra.mxu0 %v381
  %v395 = vpop.f32.mrf.mxu0
  %v396 = vadd.f32 %v368, %v395
  %v397 = vpop.f32.mrf.mxu0
  %398 = vdwg.mxu0
  %v399 = vld [vmem:[#allocation2] sm:$0x1]
  %v401 = vperm.slane %v399, 0
  %v403 = vadd.f32 %v396, %v401
  %vm404 = vcmask 1024
  %405 = vst.msk [vmem:[%s8] sm:$0x3] %vm404, %v403
  // Predicated region
  $region34: #{netD_forward.9} parent=0 // pred_check
    _
  $region35: #{netD_forward.9} parent=0 // pred_check_branch
    %407 = sbr.rel (0) target = $region37
  $region36: #{netD_forward.9} parent=0 // pred_region
    _
  $region37: #{netD_forward.9} parent=0 // pred_fallthru
    _
  // Predicated region
  $region38: #{netD_forward.9} parent=0 // pred_check
    _
  $region39: #{netD_forward.9} parent=0 // pred_check_branch
    %409 = sbr.rel (0) target = $region41
  $region40: #{netD_forward.9} parent=0 // pred_region
    _
  $region41: #{netD_forward.9} parent=0 // pred_fallthru
    _

// kernel: netD_forward.8
$region0: #{netD_forward.8}
  #allocation0 [shape = 'u32[]', space=smem, size = 0x4, offset = 0x4, fixed_abs, tag = 'smem constant byte address 0x4 - core index']
  #allocation1 [shape = 'u32[72,128]{1,0:T(1,128)}', space=vmem, size = 0x9000, scoped, tag = 'internal scratch']
  %s0 = inlined_call_operand.vmem [shape: bf16[50,2304], index: 0, kind: input, shape index: {}]
  %s1 = inlined_call_operand.vmem [shape: bf16[2304,16], index: 1, kind: input, shape index: {}]
  %s2 = inlined_call_operand.vmem [shape: f32[1,16], index: 2, kind: input, shape index: {}]
  %s3 = inlined_call_operand.vmem [shape: f32[1,16], index: 3, kind: input, shape index: {}]
  %s4 = inlined_call_operand.vmem [shape: bf16[50,16], index: 4, kind: output, shape index: {}]
  %s5 = sld [smem:[#allocation0]]
  $region26: #{netD_forward.8} parent=0
    _
  %s7 = ssub.s32 1, %s5
  %s8 = scalar_select 0, %s7, %s5
  // Predicated region
  $region2: #{netD_forward.8} parent=0 // pred_check
    _
  $region3: #{netD_forward.8} parent=0 // pred_check_branch
    %10 = sbr.rel (0) target = $region5
  $region4: #{netD_forward.8} parent=0 // pred_region
    _
  $region5: #{netD_forward.8} parent=0 // pred_fallthru
    _
  // Predicated region
  $region6: #{netD_forward.8} parent=0 // pred_check
    _
  $region7: #{netD_forward.8} parent=0 // pred_check_branch
    %12 = sbr.rel (0) target = $region9
  $region8: #{netD_forward.8} parent=0 // pred_region
    _
  $region9: #{netD_forward.8} parent=0 // pred_fallthru
    _
  // Predicated region
  $region10: #{netD_forward.8} parent=0 // pred_check
    _
  $region11: #{netD_forward.8} parent=0 // pred_check_branch
    %14 = sbr.rel (0) target = $region13
  $region12: #{netD_forward.8} parent=0 // pred_region
    _
  $region13: #{netD_forward.8} parent=0 // pred_fallthru
    _
  // Predicated region
  $region14: #{netD_forward.8} parent=0 // pred_check
    _
  $region15: #{netD_forward.8} parent=0 // pred_check_branch
    %16 = sbr.rel (0) target = $region17
  $region16: #{netD_forward.8} parent=0 // pred_region
    _
  $region17: #{netD_forward.8} parent=0 // pred_fallthru
    _
  %v17 = vld [vmem:[%s0] sm:$0xff]
  %v18 = vld [vmem:[%s0 + $0x8] sm:$0xff]
  %v19 = vld [vmem:[%s0 + $0x10] sm:$0xff]
  %v20 = vld [vmem:[%s0 + $0x18] sm:$0xff]
  %v21 = vld [vmem:[%s0 + $0x20] sm:$0xff]
  %v22 = vld [vmem:[%s0 + $0x28] sm:$0xff]
  %v23 = vld [vmem:[%s0 + $0x30] sm:$0xff]
  %v24 = vld [vmem:[%s0 + $0x38] sm:$0xff]
  %v25 = vld [vmem:[%s0 + $0x40] sm:$0xff]
  %v26 = vld [vmem:[%s0 + $0x48] sm:$0xff]
  %v27 = vld [vmem:[%s0 + $0x50] sm:$0xff]
  %v28 = vld [vmem:[%s0 + $0x58] sm:$0xff]
  %v29 = vld [vmem:[%s0 + $0x60] sm:$0xff]
  %v30 = vld [vmem:[%s0 + $0x68] sm:$0xff]
  %v31 = vld [vmem:[%s0 + $0x70] sm:$0xff]
  %v32 = vld [vmem:[%s0 + $0x78] sm:$0xff]
  %v33 = vld [vmem:[%s0 + $0x80] sm:$0xff]
  %v34 = vld [vmem:[%s0 + $0x88] sm:$0xff]
  %v35 = vld [vmem:[%s0 + $0x90] sm:$0xff]
  %v36 = vld [vmem:[%s0 + $0x98] sm:$0xff]
  %v37 = vld [vmem:[%s0 + $0xa0] sm:$0xff]
  %v38 = vld [vmem:[%s0 + $0xa8] sm:$0xff]
  %v39 = vld [vmem:[%s0 + $0xb0] sm:$0xff]
  %v40 = vld [vmem:[%s0 + $0xb8] sm:$0xff]
  %v41 = vld [vmem:[%s0 + $0xc0] sm:$0xff]
  %v42 = vld [vmem:[%s0 + $0xc8] sm:$0xff]
  %v43 = vld [vmem:[%s0 + $0xd0] sm:$0xff]
  %v44 = vld [vmem:[%s0 + $0xd8] sm:$0xff]
  %v45 = vld [vmem:[%s0 + $0xe0] sm:$0xff]
  %v46 = vld [vmem:[%s0 + $0xe8] sm:$0xff]
  %v47 = vld [vmem:[%s0 + $0xf0] sm:$0xff]
  %v48 = vld [vmem:[%s0 + $0xf8] sm:$0xff]
  %v49 = vld [vmem:[%s0 + $0x100] sm:$0xff]
  %v50 = vld [vmem:[%s0 + $0x108] sm:$0xff]
  %v51 = vld [vmem:[%s0 + $0x110] sm:$0xff]
  %v52 = vld [vmem:[%s0 + $0x118] sm:$0xff]
  %v53 = vld [vmem:[%s0 + $0x120] sm:$0xff]
  %v54 = vld [vmem:[%s0 + $0x128] sm:$0xff]
  %v55 = vld [vmem:[%s0 + $0x130] sm:$0xff]
  %v56 = vld [vmem:[%s0 + $0x138] sm:$0xff]
  %v57 = vld [vmem:[%s0 + $0x140] sm:$0xff]
  %v58 = vld [vmem:[%s0 + $0x148] sm:$0xff]
  %v59 = vld [vmem:[%s0 + $0x150] sm:$0xff]
  %v60 = vld [vmem:[%s0 + $0x158] sm:$0xff]
  %v61 = vld [vmem:[%s0 + $0x160] sm:$0xff]
  %v62 = vld [vmem:[%s0 + $0x168] sm:$0xff]
  %v63 = vld [vmem:[%s0 + $0x170] sm:$0xff]
  %v64 = vld [vmem:[%s0 + $0x178] sm:$0xff]
  %v65 = vld [vmem:[%s0 + $0x180] sm:$0xff]
  %v66 = vld [vmem:[%s0 + $0x188] sm:$0xff]
  %v67 = vld [vmem:[%s0 + $0x190] sm:$0xff]
  %v68 = vld [vmem:[%s0 + $0x198] sm:$0xff]
  %v69 = vld [vmem:[%s0 + $0x1a0] sm:$0xff]
  %v70 = vld [vmem:[%s0 + $0x1a8] sm:$0xff]
  %v71 = vld [vmem:[%s0 + $0x1b0] sm:$0x11]
  %v72 = vld [vmem:[%s0 + $0x1b8] sm:$0x11]
  %v73 = vld [vmem:[%s0 + $0x1c0] sm:$0x11]
  %v74 = vld [vmem:[%s0 + $0x1c8] sm:$0x11]
  %v75 = vld [vmem:[%s0 + $0x1d0] sm:$0x11]
  %v76 = vld [vmem:[%s0 + $0x1d8] sm:$0x11]
  %v77 = vld [vmem:[%s0 + $0x1e0] sm:$0x11]
  %v78 = vld [vmem:[%s0 + $0x1e8] sm:$0x11]
  %v79 = vld [vmem:[%s0 + $0x1f0] sm:$0x11]
  %v80 = vld [vmem:[%s1] sm:$0xf]
  %v81 = vld [vmem:[%s1 + $0x4] sm:$0xf]
  %v82 = vld [vmem:[%s1 + $0x8] sm:$0xf]
  %v83 = vld [vmem:[%s1 + $0xc] sm:$0xf]
  %v84 = vld [vmem:[%s1 + $0x10] sm:$0xf]
  %v85 = vld [vmem:[%s1 + $0x14] sm:$0xf]
  %v86 = vld [vmem:[%s1 + $0x18] sm:$0xf]
  %v87 = vld [vmem:[%s1 + $0x1c] sm:$0xf]
  %v88 = vld [vmem:[%s1 + $0x20] sm:$0xf]
  %v89 = vld [vmem:[%s1 + $0x24] sm:$0xf]
  %v90 = vld [vmem:[%s1 + $0x28] sm:$0xf]
  %v91 = vld [vmem:[%s1 + $0x2c] sm:$0xf]
  %v92 = vld [vmem:[%s1 + $0x30] sm:$0xf]
  %v93 = vld [vmem:[%s1 + $0x34] sm:$0xf]
  %v94 = vld [vmem:[%s1 + $0x38] sm:$0xf]
  %v95 = vld [vmem:[%s1 + $0x3c] sm:$0xf]
  %v96 = vld [vmem:[%s1 + $0x40] sm:$0xf]
  %v97 = vld [vmem:[%s1 + $0x44] sm:$0xf]
  %v98 = vld [vmem:[%s1 + $0x48] sm:$0xf]
  %v99 = vld [vmem:[%s1 + $0x4c] sm:$0xf]
  %v100 = vld [vmem:[%s1 + $0x50] sm:$0xf]
  %v101 = vld [vmem:[%s1 + $0x54] sm:$0xf]
  %v102 = vld [vmem:[%s1 + $0x58] sm:$0xf]
  %v103 = vld [vmem:[%s1 + $0x5c] sm:$0xf]
  %v104 = vld [vmem:[%s1 + $0x60] sm:$0xf]
  %v105 = vld [vmem:[%s1 + $0x64] sm:$0xf]
  %v106 = vld [vmem:[%s1 + $0x68] sm:$0xf]
  %v107 = vld [vmem:[%s1 + $0x6c] sm:$0xf]
  %v108 = vld [vmem:[%s1 + $0x70] sm:$0xf]
  %v109 = vld [vmem:[%s1 + $0x74] sm:$0xf]
  %v110 = vld [vmem:[%s1 + $0x78] sm:$0xf]
  %v111 = vld [vmem:[%s1 + $0x7c] sm:$0xf]
  %v112 = vld [vmem:[%s1 + $0x80] sm:$0xf]
  %v113 = vld [vmem:[%s1 + $0x84] sm:$0xf]
  %v114 = vld [vmem:[%s1 + $0x88] sm:$0xf]
  %v115 = vld [vmem:[%s1 + $0x8c] sm:$0xf]
  %v116 = vld [vmem:[%s1 + $0x90] sm:$0xf]
  %v117 = vld [vmem:[%s1 + $0x94] sm:$0xf]
  %v118 = vld [vmem:[%s1 + $0x98] sm:$0xf]
  %v119 = vld [vmem:[%s1 + $0x9c] sm:$0xf]
  %v120 = vld [vmem:[%s1 + $0xa0] sm:$0xf]
  %v121 = vld [vmem:[%s1 + $0xa4] sm:$0xf]
  %v122 = vld [vmem:[%s1 + $0xa8] sm:$0xf]
  %v123 = vld [vmem:[%s1 + $0xac] sm:$0xf]
  %v124 = vld [vmem:[%s1 + $0xb0] sm:$0xf]
  %v125 = vld [vmem:[%s1 + $0xb4] sm:$0xf]
  %v126 = vld [vmem:[%s1 + $0xb8] sm:$0xf]
  %v127 = vld [vmem:[%s1 + $0xbc] sm:$0xf]
  %v128 = vld [vmem:[%s1 + $0xc0] sm:$0xf]
  %v129 = vld [vmem:[%s1 + $0xc4] sm:$0xf]
  %v130 = vld [vmem:[%s1 + $0xc8] sm:$0xf]
  %v131 = vld [vmem:[%s1 + $0xcc] sm:$0xf]
  %v132 = vld [vmem:[%s1 + $0xd0] sm:$0xf]
  %v133 = vld [vmem:[%s1 + $0xd4] sm:$0xf]
  %v134 = vld [vmem:[%s1 + $0xd8] sm:$0xf]
  %v135 = vld [vmem:[%s1 + $0xdc] sm:$0xf]
  %v136 = vld [vmem:[%s1 + $0xe0] sm:$0xf]
  %v137 = vld [vmem:[%s1 + $0xe4] sm:$0xf]
  %v138 = vld [vmem:[%s1 + $0xe8] sm:$0xf]
  %v139 = vld [vmem:[%s1 + $0xec] sm:$0xf]
  %v140 = vld [vmem:[%s1 + $0xf0] sm:$0xf]
  %v141 = vld [vmem:[%s1 + $0xf4] sm:$0xf]
  %v142 = vld [vmem:[%s1 + $0xf8] sm:$0xf]
  %v143 = vld [vmem:[%s1 + $0xfc] sm:$0xf]
  %v144 = vld [vmem:[%s1 + $0x100] sm:$0xf]
  %v145 = vld [vmem:[%s1 + $0x104] sm:$0xf]
  %v146 = vld [vmem:[%s1 + $0x108] sm:$0xf]
  %v147 = vld [vmem:[%s1 + $0x10c] sm:$0xf]
  %v148 = vld [vmem:[%s1 + $0x110] sm:$0xf]
  %v149 = vld [vmem:[%s1 + $0x114] sm:$0xf]
  %v150 = vld [vmem:[%s1 + $0x118] sm:$0xf]
  %v151 = vld [vmem:[%s1 + $0x11c] sm:$0xf]
  %v152 = vld [vmem:[%s1 + $0x120] sm:$0xf]
  %v153 = vld [vmem:[%s1 + $0x124] sm:$0xf]
  %v154 = vld [vmem:[%s1 + $0x128] sm:$0xf]
  %v155 = vld [vmem:[%s1 + $0x12c] sm:$0xf]
  %v156 = vld [vmem:[%s1 + $0x130] sm:$0xf]
  %v157 = vld [vmem:[%s1 + $0x134] sm:$0xf]
  %v158 = vld [vmem:[%s1 + $0x138] sm:$0xf]
  %v159 = vld [vmem:[%s1 + $0x13c] sm:$0xf]
  %v160 = vld [vmem:[%s1 + $0x140] sm:$0xf]
  %v161 = vld [vmem:[%s1 + $0x144] sm:$0xf]
  %v162 = vld [vmem:[%s1 + $0x148] sm:$0xf]
  %v163 = vld [vmem:[%s1 + $0x14c] sm:$0xf]
  %v164 = vld [vmem:[%s1 + $0x150] sm:$0xf]
  %v165 = vld [vmem:[%s1 + $0x154] sm:$0xf]
  %v166 = vld [vmem:[%s1 + $0x158] sm:$0xf]
  %v167 = vld [vmem:[%s1 + $0x15c] sm:$0xf]
  %v168 = vld [vmem:[%s1 + $0x160] sm:$0xf]
  %v169 = vld [vmem:[%s1 + $0x164] sm:$0xf]
  %v170 = vld [vmem:[%s1 + $0x168] sm:$0xf]
  %v171 = vld [vmem:[%s1 + $0x16c] sm:$0xf]
  %v172 = vld [vmem:[%s1 + $0x170] sm:$0xf]
  %v173 = vld [vmem:[%s1 + $0x174] sm:$0xf]
  %v174 = vld [vmem:[%s1 + $0x178] sm:$0xf]
  %v175 = vld [vmem:[%s1 + $0x17c] sm:$0xf]
  %v176 = vld [vmem:[%s1 + $0x180] sm:$0xf]
  %v177 = vld [vmem:[%s1 + $0x184] sm:$0xf]
  %v178 = vld [vmem:[%s1 + $0x188] sm:$0xf]
  %v179 = vld [vmem:[%s1 + $0x18c] sm:$0xf]
  %v180 = vld [vmem:[%s1 + $0x190] sm:$0xf]
  %v181 = vld [vmem:[%s1 + $0x194] sm:$0xf]
  %v182 = vld [vmem:[%s1 + $0x198] sm:$0xf]
  %v183 = vld [vmem:[%s1 + $0x19c] sm:$0xf]
  %v184 = vld [vmem:[%s1 + $0x1a0] sm:$0xf]
  %v185 = vld [vmem:[%s1 + $0x1a4] sm:$0xf]
  %v186 = vld [vmem:[%s1 + $0x1a8] sm:$0xf]
  %v187 = vld [vmem:[%s1 + $0x1ac] sm:$0xf]
  %v188 = vld [vmem:[%s1 + $0x1b0] sm:$0xf]
  %v189 = vld [vmem:[%s1 + $0x1b4] sm:$0xf]
  %v190 = vld [vmem:[%s1 + $0x1b8] sm:$0xf]
  %v191 = vld [vmem:[%s1 + $0x1bc] sm:$0xf]
  %v192 = vld [vmem:[%s1 + $0x1c0] sm:$0xf]
  %v193 = vld [vmem:[%s1 + $0x1c4] sm:$0xf]
  %v194 = vld [vmem:[%s1 + $0x1c8] sm:$0xf]
  %v195 = vld [vmem:[%s1 + $0x1cc] sm:$0xf]
  %v196 = vld [vmem:[%s1 + $0x1d0] sm:$0xf]
  %v197 = vld [vmem:[%s1 + $0x1d4] sm:$0xf]
  %v198 = vld [vmem:[%s1 + $0x1d8] sm:$0xf]
  %v199 = vld [vmem:[%s1 + $0x1dc] sm:$0xf]
  %v200 = vld [vmem:[%s1 + $0x1e0] sm:$0xf]
  %v201 = vld [vmem:[%s1 + $0x1e4] sm:$0xf]
  %v202 = vld [vmem:[%s1 + $0x1e8] sm:$0xf]
  %v203 = vld [vmem:[%s1 + $0x1ec] sm:$0xf]
  %v204 = vld [vmem:[%s1 + $0x1f0] sm:$0xf]
  %v205 = vld [vmem:[%s1 + $0x1f4] sm:$0xf]
  %v206 = vld [vmem:[%s1 + $0x1f8] sm:$0xf]
  %v207 = vld [vmem:[%s1 + $0x1fc] sm:$0xf]
  %v208 = vld [vmem:[%s1 + $0x200] sm:$0xf]
  %v209 = vld [vmem:[%s1 + $0x204] sm:$0xf]
  %v210 = vld [vmem:[%s1 + $0x208] sm:$0xf]
  %v211 = vld [vmem:[%s1 + $0x20c] sm:$0xf]
  %v212 = vld [vmem:[%s1 + $0x210] sm:$0xf]
  %v213 = vld [vmem:[%s1 + $0x214] sm:$0xf]
  %v214 = vld [vmem:[%s1 + $0x218] sm:$0xf]
  %v215 = vld [vmem:[%s1 + $0x21c] sm:$0xf]
  %v216 = vld [vmem:[%s1 + $0x220] sm:$0xf]
  %v217 = vld [vmem:[%s1 + $0x224] sm:$0xf]
  %v218 = vld [vmem:[%s1 + $0x228] sm:$0xf]
  %v219 = vld [vmem:[%s1 + $0x22c] sm:$0xf]
  %v220 = vld [vmem:[%s1 + $0x230] sm:$0xf]
  %v221 = vld [vmem:[%s1 + $0x234] sm:$0xf]
  %v222 = vld [vmem:[%s1 + $0x238] sm:$0xf]
  %v223 = vld [vmem:[%s1 + $0x23c] sm:$0xf]
  %v224 = vld [vmem:[%s1 + $0x240] sm:$0xf]
  %v225 = vld [vmem:[%s1 + $0x244] sm:$0xf]
  %v226 = vld [vmem:[%s1 + $0x248] sm:$0xf]
  %v227 = vld [vmem:[%s1 + $0x24c] sm:$0xf]
  %v228 = vld [vmem:[%s1 + $0x250] sm:$0xf]
  %v229 = vld [vmem:[%s1 + $0x254] sm:$0xf]
  %v230 = vld [vmem:[%s1 + $0x258] sm:$0xf]
  %v231 = vld [vmem:[%s1 + $0x25c] sm:$0xf]
  %v232 = vld [vmem:[%s1 + $0x260] sm:$0xf]
  %v233 = vld [vmem:[%s1 + $0x264] sm:$0xf]
  %v234 = vld [vmem:[%s1 + $0x268] sm:$0xf]
  %v235 = vld [vmem:[%s1 + $0x26c] sm:$0xf]
  %v236 = vld [vmem:[%s1 + $0x270] sm:$0xf]
  %v237 = vld [vmem:[%s1 + $0x274] sm:$0xf]
  %v238 = vld [vmem:[%s1 + $0x278] sm:$0xf]
  %v239 = vld [vmem:[%s1 + $0x27c] sm:$0xf]
  %v240 = vld [vmem:[%s1 + $0x280] sm:$0xf]
  %v241 = vld [vmem:[%s1 + $0x284] sm:$0xf]
  %v242 = vld [vmem:[%s1 + $0x288] sm:$0xf]
  %v243 = vld [vmem:[%s1 + $0x28c] sm:$0xf]
  %v244 = vld [vmem:[%s1 + $0x290] sm:$0xf]
  %v245 = vld [vmem:[%s1 + $0x294] sm:$0xf]
  %v246 = vld [vmem:[%s1 + $0x298] sm:$0xf]
  %v247 = vld [vmem:[%s1 + $0x29c] sm:$0xf]
  %v248 = vld [vmem:[%s1 + $0x2a0] sm:$0xf]
  %v249 = vld [vmem:[%s1 + $0x2a4] sm:$0xf]
  %v250 = vld [vmem:[%s1 + $0x2a8] sm:$0xf]
  %v251 = vld [vmem:[%s1 + $0x2ac] sm:$0xf]
  %v252 = vld [vmem:[%s1 + $0x2b0] sm:$0xf]
  %v253 = vld [vmem:[%s1 + $0x2b4] sm:$0xf]
  %v254 = vld [vmem:[%s1 + $0x2b8] sm:$0xf]
  %v255 = vld [vmem:[%s1 + $0x2bc] sm:$0xf]
  %v256 = vld [vmem:[%s1 + $0x2c0] sm:$0xf]
  %v257 = vld [vmem:[%s1 + $0x2c4] sm:$0xf]
  %v258 = vld [vmem:[%s1 + $0x2c8] sm:$0xf]
  %v259 = vld [vmem:[%s1 + $0x2cc] sm:$0xf]
  %v260 = vld [vmem:[%s1 + $0x2d0] sm:$0xf]
  %v261 = vld [vmem:[%s1 + $0x2d4] sm:$0xf]
  %v262 = vld [vmem:[%s1 + $0x2d8] sm:$0xf]
  %v263 = vld [vmem:[%s1 + $0x2dc] sm:$0xf]
  %v264 = vld [vmem:[%s1 + $0x2e0] sm:$0xf]
  %v265 = vld [vmem:[%s1 + $0x2e4] sm:$0xf]
  %v266 = vld [vmem:[%s1 + $0x2e8] sm:$0xf]
  %v267 = vld [vmem:[%s1 + $0x2ec] sm:$0xf]
  %v268 = vld [vmem:[%s1 + $0x2f0] sm:$0xf]
  %v269 = vld [vmem:[%s1 + $0x2f4] sm:$0xf]
  %v270 = vld [vmem:[%s1 + $0x2f8] sm:$0xf]
  %v271 = vld [vmem:[%s1 + $0x2fc] sm:$0xf]
  %v272 = vld [vmem:[%s1 + $0x300] sm:$0xf]
  %v273 = vld [vmem:[%s1 + $0x304] sm:$0xf]
  %v274 = vld [vmem:[%s1 + $0x308] sm:$0xf]
  %v275 = vld [vmem:[%s1 + $0x30c] sm:$0xf]
  %v276 = vld [vmem:[%s1 + $0x310] sm:$0xf]
  %v277 = vld [vmem:[%s1 + $0x314] sm:$0xf]
  %v278 = vld [vmem:[%s1 + $0x318] sm:$0xf]
  %v279 = vld [vmem:[%s1 + $0x31c] sm:$0xf]
  %v280 = vld [vmem:[%s1 + $0x320] sm:$0xf]
  %v281 = vld [vmem:[%s1 + $0x324] sm:$0xf]
  %v282 = vld [vmem:[%s1 + $0x328] sm:$0xf]
  %v283 = vld [vmem:[%s1 + $0x32c] sm:$0xf]
  %v284 = vld [vmem:[%s1 + $0x330] sm:$0xf]
  %v285 = vld [vmem:[%s1 + $0x334] sm:$0xf]
  %v286 = vld [vmem:[%s1 + $0x338] sm:$0xf]
  %v287 = vld [vmem:[%s1 + $0x33c] sm:$0xf]
  %v288 = vld [vmem:[%s1 + $0x340] sm:$0xf]
  %v289 = vld [vmem:[%s1 + $0x344] sm:$0xf]
  %v290 = vld [vmem:[%s1 + $0x348] sm:$0xf]
  %v291 = vld [vmem:[%s1 + $0x34c] sm:$0xf]
  %v292 = vld [vmem:[%s1 + $0x350] sm:$0xf]
  %v293 = vld [vmem:[%s1 + $0x354] sm:$0xf]
  %v294 = vld [vmem:[%s1 + $0x358] sm:$0xf]
  %v295 = vld [vmem:[%s1 + $0x35c] sm:$0xf]
  %v296 = vld [vmem:[%s1 + $0x360] sm:$0xf]
  %v297 = vld [vmem:[%s1 + $0x364] sm:$0xf]
  %v298 = vld [vmem:[%s1 + $0x368] sm:$0xf]
  %v299 = vld [vmem:[%s1 + $0x36c] sm:$0xf]
  %v300 = vld [vmem:[%s1 + $0x370] sm:$0xf]
  %v301 = vld [vmem:[%s1 + $0x374] sm:$0xf]
  %v302 = vld [vmem:[%s1 + $0x378] sm:$0xf]
  %v303 = vld [vmem:[%s1 + $0x37c] sm:$0xf]
  %v304 = vld [vmem:[%s1 + $0x380] sm:$0xf]
  %v305 = vld [vmem:[%s1 + $0x384] sm:$0xf]
  %v306 = vld [vmem:[%s1 + $0x388] sm:$0xf]
  %v307 = vld [vmem:[%s1 + $0x38c] sm:$0xf]
  %v308 = vld [vmem:[%s1 + $0x390] sm:$0xf]
  %v309 = vld [vmem:[%s1 + $0x394] sm:$0xf]
  %v310 = vld [vmem:[%s1 + $0x398] sm:$0xf]
  %v311 = vld [vmem:[%s1 + $0x39c] sm:$0xf]
  %v312 = vld [vmem:[%s1 + $0x3a0] sm:$0xf]
  %v313 = vld [vmem:[%s1 + $0x3a4] sm:$0xf]
  %v314 = vld [vmem:[%s1 + $0x3a8] sm:$0xf]
  %v315 = vld [vmem:[%s1 + $0x3ac] sm:$0xf]
  %v316 = vld [vmem:[%s1 + $0x3b0] sm:$0xf]
  %v317 = vld [vmem:[%s1 + $0x3b4] sm:$0xf]
  %v318 = vld [vmem:[%s1 + $0x3b8] sm:$0xf]
  %v319 = vld [vmem:[%s1 + $0x3bc] sm:$0xf]
  %v320 = vld [vmem:[%s1 + $0x3c0] sm:$0xf]
  %v321 = vld [vmem:[%s1 + $0x3c4] sm:$0xf]
  %v322 = vld [vmem:[%s1 + $0x3c8] sm:$0xf]
  %v323 = vld [vmem:[%s1 + $0x3cc] sm:$0xf]
  %v324 = vld [vmem:[%s1 + $0x3d0] sm:$0xf]
  %v325 = vld [vmem:[%s1 + $0x3d4] sm:$0xf]
  %v326 = vld [vmem:[%s1 + $0x3d8] sm:$0xf]
  %v327 = vld [vmem:[%s1 + $0x3dc] sm:$0xf]
  %v328 = vld [vmem:[%s1 + $0x3e0] sm:$0xf]
  %v329 = vld [vmem:[%s1 + $0x3e4] sm:$0xf]
  %v330 = vld [vmem:[%s1 + $0x3e8] sm:$0xf]
  %v331 = vld [vmem:[%s1 + $0x3ec] sm:$0xf]
  %v332 = vld [vmem:[%s1 + $0x3f0] sm:$0xf]
  %v333 = vld [vmem:[%s1 + $0x3f4] sm:$0xf]
  %v334 = vld [vmem:[%s1 + $0x3f8] sm:$0xf]
  %v335 = vld [vmem:[%s1 + $0x3fc] sm:$0xf]
  %v336 = vld [vmem:[%s1 + $0x400] sm:$0xf]
  %v337 = vld [vmem:[%s1 + $0x404] sm:$0xf]
  %v338 = vld [vmem:[%s1 + $0x408] sm:$0xf]
  %v339 = vld [vmem:[%s1 + $0x40c] sm:$0xf]
  %v340 = vld [vmem:[%s1 + $0x410] sm:$0xf]
  %v341 = vld [vmem:[%s1 + $0x414] sm:$0xf]
  %v342 = vld [vmem:[%s1 + $0x418] sm:$0xf]
  %v343 = vld [vmem:[%s1 + $0x41c] sm:$0xf]
  %v344 = vld [vmem:[%s1 + $0x420] sm:$0xf]
  %v345 = vld [vmem:[%s1 + $0x424] sm:$0xf]
  %v346 = vld [vmem:[%s1 + $0x428] sm:$0xf]
  %v347 = vld [vmem:[%s1 + $0x42c] sm:$0xf]
  %v348 = vld [vmem:[%s1 + $0x430] sm:$0xf]
  %v349 = vld [vmem:[%s1 + $0x434] sm:$0xf]
  %v350 = vld [vmem:[%s1 + $0x438] sm:$0xf]
  %v351 = vld [vmem:[%s1 + $0x43c] sm:$0xf]
  %v352 = vld [vmem:[%s1 + $0x440] sm:$0xf]
  %v353 = vld [vmem:[%s1 + $0x444] sm:$0xf]
  %v354 = vld [vmem:[%s1 + $0x448] sm:$0xf]
  %v355 = vld [vmem:[%s1 + $0x44c] sm:$0xf]
  %v356 = vld [vmem:[%s1 + $0x450] sm:$0xf]
  %v357 = vld [vmem:[%s1 + $0x454] sm:$0xf]
  %v358 = vld [vmem:[%s1 + $0x458] sm:$0xf]
  %v359 = vld [vmem:[%s1 + $0x45c] sm:$0xf]
  %v360 = vld [vmem:[%s1 + $0x460] sm:$0xf]
  %v361 = vld [vmem:[%s1 + $0x464] sm:$0xf]
  %v362 = vld [vmem:[%s1 + $0x468] sm:$0xf]
  %v363 = vld [vmem:[%s1 + $0x46c] sm:$0xf]
  %v364 = vld [vmem:[%s1 + $0x470] sm:$0xf]
  %v365 = vld [vmem:[%s1 + $0x474] sm:$0xf]
  %v366 = vld [vmem:[%s1 + $0x478] sm:$0xf]
  %v367 = vld [vmem:[%s1 + $0x47c] sm:$0xf]
  %v431 = vunpack.c.l.b16 %v17
  %v432 = vunpack.c.h.b16 %v17
  %v433 = vunpack.c.l.b16 %v18
  %v434 = vunpack.c.h.b16 %v18
  %v435 = vunpack.c.l.b16 %v19
  %v436 = vunpack.c.h.b16 %v19
  %v437 = vunpack.c.l.b16 %v20
  %v438 = vunpack.c.h.b16 %v20
  %v439 = vunpack.c.l.b16 %v21
  %v440 = vunpack.c.h.b16 %v21
  %v441 = vunpack.c.l.b16 %v22
  %v442 = vunpack.c.h.b16 %v22
  %v443 = vunpack.c.l.b16 %v23
  %v444 = vunpack.c.h.b16 %v23
  %v445 = vunpack.c.l.b16 %v24
  %v446 = vunpack.c.h.b16 %v24
  %v447 = vunpack.c.l.b16 %v25
  %v448 = vunpack.c.h.b16 %v25
  %v449 = vunpack.c.l.b16 %v26
  %v450 = vunpack.c.h.b16 %v26
  %v451 = vunpack.c.l.b16 %v27
  %v452 = vunpack.c.h.b16 %v27
  %v453 = vunpack.c.l.b16 %v28
  %v454 = vunpack.c.h.b16 %v28
  %v455 = vunpack.c.l.b16 %v29
  %v456 = vunpack.c.h.b16 %v29
  %v457 = vunpack.c.l.b16 %v30
  %v458 = vunpack.c.h.b16 %v30
  %v459 = vunpack.c.l.b16 %v31
  %v460 = vunpack.c.h.b16 %v31
  %v461 = vunpack.c.l.b16 %v32
  %v462 = vunpack.c.h.b16 %v32
  %v463 = vunpack.c.l.b16 %v33
  %v464 = vunpack.c.h.b16 %v33
  %v465 = vunpack.c.l.b16 %v34
  %v466 = vunpack.c.h.b16 %v34
  %v467 = vunpack.c.l.b16 %v35
  %v468 = vunpack.c.h.b16 %v35
  %v469 = vunpack.c.l.b16 %v36
  %v470 = vunpack.c.h.b16 %v36
  %v471 = vunpack.c.l.b16 %v37
  %v472 = vunpack.c.h.b16 %v37
  %v473 = vunpack.c.l.b16 %v38
  %v474 = vunpack.c.h.b16 %v38
  %v475 = vunpack.c.l.b16 %v39
  %v476 = vunpack.c.h.b16 %v39
  %v477 = vunpack.c.l.b16 %v40
  %v478 = vunpack.c.h.b16 %v40
  %v479 = vunpack.c.l.b16 %v41
  %v480 = vunpack.c.h.b16 %v41
  %v481 = vunpack.c.l.b16 %v42
  %v482 = vunpack.c.h.b16 %v42
  %v483 = vunpack.c.l.b16 %v43
  %v484 = vunpack.c.h.b16 %v43
  %v485 = vunpack.c.l.b16 %v44
  %v486 = vunpack.c.h.b16 %v44
  %v487 = vunpack.c.l.b16 %v45
  %v488 = vunpack.c.h.b16 %v45
  %v489 = vunpack.c.l.b16 %v46
  %v490 = vunpack.c.h.b16 %v46
  %v491 = vunpack.c.l.b16 %v47
  %v492 = vunpack.c.h.b16 %v47
  %v493 = vunpack.c.l.b16 %v48
  %v494 = vunpack.c.h.b16 %v48
  %v495 = vunpack.c.l.b16 %v49
  %v496 = vunpack.c.h.b16 %v49
  %v497 = vunpack.c.l.b16 %v50
  %v498 = vunpack.c.h.b16 %v50
  %v499 = vunpack.c.l.b16 %v51
  %v500 = vunpack.c.h.b16 %v51
  %v501 = vunpack.c.l.b16 %v52
  %v502 = vunpack.c.h.b16 %v52
  %v503 = vunpack.c.l.b16 %v53
  %v504 = vunpack.c.h.b16 %v53
  %v505 = vunpack.c.l.b16 %v54
  %v506 = vunpack.c.h.b16 %v54
  %v507 = vunpack.c.l.b16 %v55
  %v508 = vunpack.c.h.b16 %v55
  %v509 = vunpack.c.l.b16 %v56
  %v510 = vunpack.c.h.b16 %v56
  %v511 = vunpack.c.l.b16 %v57
  %v512 = vunpack.c.h.b16 %v57
  %v513 = vunpack.c.l.b16 %v58
  %v514 = vunpack.c.h.b16 %v58
  %v515 = vunpack.c.l.b16 %v59
  %v516 = vunpack.c.h.b16 %v59
  %v517 = vunpack.c.l.b16 %v60
  %v518 = vunpack.c.h.b16 %v60
  %v519 = vunpack.c.l.b16 %v61
  %v520 = vunpack.c.h.b16 %v61
  %v521 = vunpack.c.l.b16 %v62
  %v522 = vunpack.c.h.b16 %v62
  %v523 = vunpack.c.l.b16 %v63
  %v524 = vunpack.c.h.b16 %v63
  %v525 = vunpack.c.l.b16 %v64
  %v526 = vunpack.c.h.b16 %v64
  %v527 = vunpack.c.l.b16 %v65
  %v528 = vunpack.c.h.b16 %v65
  %v529 = vunpack.c.l.b16 %v66
  %v530 = vunpack.c.h.b16 %v66
  %v531 = vunpack.c.l.b16 %v67
  %v532 = vunpack.c.h.b16 %v67
  %v533 = vunpack.c.l.b16 %v68
  %v534 = vunpack.c.h.b16 %v68
  %v535 = vunpack.c.l.b16 %v69
  %v536 = vunpack.c.h.b16 %v69
  %v537 = vunpack.c.l.b16 %v70
  %v538 = vunpack.c.h.b16 %v70
  %v539 = vunpack.c.l.b16 %v71
  %v540 = vunpack.c.h.b16 %v71
  %v541 = vunpack.c.l.b16 %v72
  %v542 = vunpack.c.h.b16 %v72
  %v543 = vunpack.c.l.b16 %v73
  %v544 = vunpack.c.h.b16 %v73
  %v545 = vunpack.c.l.b16 %v74
  %v546 = vunpack.c.h.b16 %v74
  %v547 = vunpack.c.l.b16 %v75
  %v548 = vunpack.c.h.b16 %v75
  %v549 = vunpack.c.l.b16 %v76
  %v550 = vunpack.c.h.b16 %v76
  %v551 = vunpack.c.l.b16 %v77
  %v552 = vunpack.c.h.b16 %v77
  %v553 = vunpack.c.l.b16 %v78
  %v554 = vunpack.c.h.b16 %v78
  %v555 = vunpack.c.l.b16 %v79
  %v556 = vunpack.c.h.b16 %v79
  %v557 = vpack.c.b16 %v449, %v431
  %v558 = vpack.c.b16 %v450, %v432
  %v559 = vpack.c.b16 %v451, %v433
  %v560 = vpack.c.b16 %v452, %v434
  %v561 = vpack.c.b16 %v453, %v435
  %v562 = vpack.c.b16 %v454, %v436
  %v563 = vpack.c.b16 %v455, %v437
  %v564 = vpack.c.b16 %v456, %v438
  %v565 = vpack.c.b16 %v457, %v439
  %v566 = vpack.c.b16 %v458, %v440
  %v567 = vpack.c.b16 %v459, %v441
  %v568 = vpack.c.b16 %v460, %v442
  %v569 = vpack.c.b16 %v461, %v443
  %v570 = vpack.c.b16 %v462, %v444
  %v571 = vpack.c.b16 %v463, %v445
  %v572 = vpack.c.b16 %v464, %v446
  %v573 = vpack.c.b16 %v465, %v447
  %v574 = vpack.c.b16 %v466, %v448
  %v575 = vpack.c.b16 %v485, %v467
  %v576 = vpack.c.b16 %v486, %v468
  %v577 = vpack.c.b16 %v487, %v469
  %v578 = vpack.c.b16 %v488, %v470
  %v579 = vpack.c.b16 %v489, %v471
  %v580 = vpack.c.b16 %v490, %v472
  %v581 = vpack.c.b16 %v491, %v473
  %v582 = vpack.c.b16 %v492, %v474
  %v583 = vpack.c.b16 %v493, %v475
  %v584 = vpack.c.b16 %v494, %v476
  %v585 = vpack.c.b16 %v495, %v477
  %v586 = vpack.c.b16 %v496, %v478
  %v587 = vpack.c.b16 %v497, %v479
  %v588 = vpack.c.b16 %v498, %v480
  %v589 = vpack.c.b16 %v499, %v481
  %v590 = vpack.c.b16 %v500, %v482
  %v591 = vpack.c.b16 %v501, %v483
  %v592 = vpack.c.b16 %v502, %v484
  %v593 = vpack.c.b16 %v521, %v503
  %v594 = vpack.c.b16 %v522, %v504
  %v595 = vpack.c.b16 %v523, %v505
  %v596 = vpack.c.b16 %v524, %v506
  %v597 = vpack.c.b16 %v525, %v507
  %v598 = vpack.c.b16 %v526, %v508
  %v599 = vpack.c.b16 %v527, %v509
  %v600 = vpack.c.b16 %v528, %v510
  %v601 = vpack.c.b16 %v529, %v511
  %v602 = vpack.c.b16 %v530, %v512
  %v603 = vpack.c.b16 %v531, %v513
  %v604 = vpack.c.b16 %v532, %v514
  %v605 = vpack.c.b16 %v533, %v515
  %v606 = vpack.c.b16 %v534, %v516
  %v607 = vpack.c.b16 %v535, %v517
  %v608 = vpack.c.b16 %v536, %v518
  %v609 = vpack.c.b16 %v537, %v519
  %v610 = vpack.c.b16 %v538, %v520
  %v611 = vpack.c.b16 %v539, %v539
  %v612 = vpack.c.b16 %v540, %v540
  %v613 = vpack.c.b16 %v541, %v541
  %v614 = vpack.c.b16 %v542, %v542
  %v615 = vpack.c.b16 %v543, %v543
  %v616 = vpack.c.b16 %v544, %v544
  %v617 = vpack.c.b16 %v545, %v545
  %v618 = vpack.c.b16 %v546, %v546
  %v619 = vpack.c.b16 %v547, %v547
  %v620 = vpack.c.b16 %v548, %v548
  %v621 = vpack.c.b16 %v549, %v549
  %v622 = vpack.c.b16 %v550, %v550
  %v623 = vpack.c.b16 %v551, %v551
  %v624 = vpack.c.b16 %v552, %v552
  %v625 = vpack.c.b16 %v553, %v553
  %v626 = vpack.c.b16 %v554, %v554
  %v627 = vpack.c.b16 %v555, %v555
  %v628 = vpack.c.b16 %v556, %v556
  %v989 = vunpack.c.l.b16 %v80
  %v990 = vunpack.c.l.b16 %v81
  %v991 = vunpack.c.l.b16 %v82
  %v992 = vunpack.c.l.b16 %v83
  %v993 = vunpack.c.l.b16 %v84
  %v994 = vunpack.c.l.b16 %v85
  %v995 = vunpack.c.l.b16 %v86
  %v996 = vunpack.c.l.b16 %v87
  %v997 = vunpack.c.l.b16 %v88
  %v998 = vunpack.c.l.b16 %v89
  %v999 = vunpack.c.l.b16 %v90
  %v1000 = vunpack.c.l.b16 %v91
  %v1001 = vunpack.c.l.b16 %v92
  %v1002 = vunpack.c.l.b16 %v93
  %v1003 = vunpack.c.l.b16 %v94
  %v1004 = vunpack.c.l.b16 %v95
  %v1005 = vunpack.c.l.b16 %v96
  %v1006 = vunpack.c.l.b16 %v97
  %v1007 = vunpack.c.l.b16 %v98
  %v1008 = vunpack.c.l.b16 %v99
  %v1009 = vunpack.c.l.b16 %v100
  %v1010 = vunpack.c.l.b16 %v101
  %v1011 = vunpack.c.l.b16 %v102
  %v1012 = vunpack.c.l.b16 %v103
  %v1013 = vunpack.c.l.b16 %v104
  %v1014 = vunpack.c.l.b16 %v105
  %v1015 = vunpack.c.l.b16 %v106
  %v1016 = vunpack.c.l.b16 %v107
  %v1017 = vunpack.c.l.b16 %v108
  %v1018 = vunpack.c.l.b16 %v109
  %v1019 = vunpack.c.l.b16 %v110
  %v1020 = vunpack.c.l.b16 %v111
  %v1021 = vunpack.c.l.b16 %v112
  %v1022 = vunpack.c.l.b16 %v113
  %v1023 = vunpack.c.l.b16 %v114
  %v1024 = vunpack.c.l.b16 %v115
  %v1025 = vunpack.c.l.b16 %v116
  %v1026 = vunpack.c.l.b16 %v117
  %v1027 = vunpack.c.l.b16 %v118
  %v1028 = vunpack.c.l.b16 %v119
  %v1029 = vunpack.c.l.b16 %v120
  %v1030 = vunpack.c.l.b16 %v121
  %v1031 = vunpack.c.l.b16 %v122
  %v1032 = vunpack.c.l.b16 %v123
  %v1033 = vunpack.c.l.b16 %v124
  %v1034 = vunpack.c.l.b16 %v125
  %v1035 = vunpack.c.l.b16 %v126
  %v1036 = vunpack.c.l.b16 %v127
  %v1037 = vunpack.c.l.b16 %v128
  %v1038 = vunpack.c.l.b16 %v129
  %v1039 = vunpack.c.l.b16 %v130
  %v1040 = vunpack.c.l.b16 %v131
  %v1041 = vunpack.c.l.b16 %v132
  %v1042 = vunpack.c.l.b16 %v133
  %v1043 = vunpack.c.l.b16 %v134
  %v1044 = vunpack.c.l.b16 %v135
  %v1045 = vunpack.c.l.b16 %v136
  %v1046 = vunpack.c.l.b16 %v137
  %v1047 = vunpack.c.l.b16 %v138
  %v1048 = vunpack.c.l.b16 %v139
  %v1049 = vunpack.c.l.b16 %v140
  %v1050 = vunpack.c.l.b16 %v141
  %v1051 = vunpack.c.l.b16 %v142
  %v1052 = vunpack.c.l.b16 %v143
  %v1053 = vunpack.c.l.b16 %v144
  %v1054 = vunpack.c.l.b16 %v145
  %v1055 = vunpack.c.l.b16 %v146
  %v1056 = vunpack.c.l.b16 %v147
  %v1057 = vunpack.c.l.b16 %v148
  %v1058 = vunpack.c.l.b16 %v149
  %v1059 = vunpack.c.l.b16 %v150
  %v1060 = vunpack.c.l.b16 %v151
  %v1061 = vunpack.c.l.b16 %v152
  %v1062 = vunpack.c.l.b16 %v153
  %v1063 = vunpack.c.l.b16 %v154
  %v1064 = vunpack.c.l.b16 %v155
  %v1065 = vunpack.c.l.b16 %v156
  %v1066 = vunpack.c.l.b16 %v157
  %v1067 = vunpack.c.l.b16 %v158
  %v1068 = vunpack.c.l.b16 %v159
  %v1069 = vunpack.c.l.b16 %v160
  %v1070 = vunpack.c.l.b16 %v161
  %v1071 = vunpack.c.l.b16 %v162
  %v1072 = vunpack.c.l.b16 %v163
  %v1073 = vunpack.c.l.b16 %v164
  %v1074 = vunpack.c.l.b16 %v165
  %v1075 = vunpack.c.l.b16 %v166
  %v1076 = vunpack.c.l.b16 %v167
  %v1077 = vunpack.c.l.b16 %v168
  %v1078 = vunpack.c.l.b16 %v169
  %v1079 = vunpack.c.l.b16 %v170
  %v1080 = vunpack.c.l.b16 %v171
  %v1081 = vunpack.c.l.b16 %v172
  %v1082 = vunpack.c.l.b16 %v173
  %v1083 = vunpack.c.l.b16 %v174
  %v1084 = vunpack.c.l.b16 %v175
  %v1085 = vunpack.c.l.b16 %v176
  %v1086 = vunpack.c.l.b16 %v177
  %v1087 = vunpack.c.l.b16 %v178
  %v1088 = vunpack.c.l.b16 %v179
  %v1089 = vunpack.c.l.b16 %v180
  %v1090 = vunpack.c.l.b16 %v181
  %v1091 = vunpack.c.l.b16 %v182
  %v1092 = vunpack.c.l.b16 %v183
  %v1093 = vunpack.c.l.b16 %v184
  %v1094 = vunpack.c.l.b16 %v185
  %v1095 = vunpack.c.l.b16 %v186
  %v1096 = vunpack.c.l.b16 %v187
  %v1097 = vunpack.c.l.b16 %v188
  %v1098 = vunpack.c.l.b16 %v189
  %v1099 = vunpack.c.l.b16 %v190
  %v1100 = vunpack.c.l.b16 %v191
  %v1101 = vunpack.c.l.b16 %v192
  %v1102 = vunpack.c.l.b16 %v193
  %v1103 = vunpack.c.l.b16 %v194
  %v1104 = vunpack.c.l.b16 %v195
  %v1105 = vunpack.c.l.b16 %v196
  %v1106 = vunpack.c.l.b16 %v197
  %v1107 = vunpack.c.l.b16 %v198
  %v1108 = vunpack.c.l.b16 %v199
  %v1109 = vunpack.c.l.b16 %v200
  %v1110 = vunpack.c.l.b16 %v201
  %v1111 = vunpack.c.l.b16 %v202
  %v1112 = vunpack.c.l.b16 %v203
  %v1113 = vunpack.c.l.b16 %v204
  %v1114 = vunpack.c.l.b16 %v205
  %v1115 = vunpack.c.l.b16 %v206
  %v1116 = vunpack.c.l.b16 %v207
  %v1117 = vunpack.c.l.b16 %v208
  %v1118 = vunpack.c.l.b16 %v209
  %v1119 = vunpack.c.l.b16 %v210
  %v1120 = vunpack.c.l.b16 %v211
  %v1121 = vunpack.c.l.b16 %v212
  %v1122 = vunpack.c.l.b16 %v213
  %v1123 = vunpack.c.l.b16 %v214
  %v1124 = vunpack.c.l.b16 %v215
  %v1125 = vunpack.c.l.b16 %v216
  %v1126 = vunpack.c.l.b16 %v217
  %v1127 = vunpack.c.l.b16 %v218
  %v1128 = vunpack.c.l.b16 %v219
  %v1129 = vunpack.c.l.b16 %v220
  %v1130 = vunpack.c.l.b16 %v221
  %v1131 = vunpack.c.l.b16 %v222
  %v1132 = vunpack.c.l.b16 %v223
  %v1133 = vunpack.c.l.b16 %v224
  %v1134 = vunpack.c.l.b16 %v225
  %v1135 = vunpack.c.l.b16 %v226
  %v1136 = vunpack.c.l.b16 %v227
  %v1137 = vunpack.c.l.b16 %v228
  %v1138 = vunpack.c.l.b16 %v229
  %v1139 = vunpack.c.l.b16 %v230
  %v1140 = vunpack.c.l.b16 %v231
  %v1141 = vunpack.c.l.b16 %v232
  %v1142 = vunpack.c.l.b16 %v233
  %v1143 = vunpack.c.l.b16 %v234
  %v1144 = vunpack.c.l.b16 %v235
  %v1145 = vunpack.c.l.b16 %v236
  %v1146 = vunpack.c.l.b16 %v237
  %v1147 = vunpack.c.l.b16 %v238
  %v1148 = vunpack.c.l.b16 %v239
  %v1149 = vunpack.c.l.b16 %v240
  %v1150 = vunpack.c.l.b16 %v241
  %v1151 = vunpack.c.l.b16 %v242
  %v1152 = vunpack.c.l.b16 %v243
  %v1153 = vunpack.c.l.b16 %v244
  %v1154 = vunpack.c.l.b16 %v245
  %v1155 = vunpack.c.l.b16 %v246
  %v1156 = vunpack.c.l.b16 %v247
  %v1157 = vunpack.c.l.b16 %v248
  %v1158 = vunpack.c.l.b16 %v249
  %v1159 = vunpack.c.l.b16 %v250
  %v1160 = vunpack.c.l.b16 %v251
  %v1161 = vunpack.c.l.b16 %v252
  %v1162 = vunpack.c.l.b16 %v253
  %v1163 = vunpack.c.l.b16 %v254
  %v1164 = vunpack.c.l.b16 %v255
  %v1165 = vunpack.c.l.b16 %v256
  %v1166 = vunpack.c.l.b16 %v257
  %v1167 = vunpack.c.l.b16 %v258
  %v1168 = vunpack.c.l.b16 %v259
  %v1169 = vunpack.c.l.b16 %v260
  %v1170 = vunpack.c.l.b16 %v261
  %v1171 = vunpack.c.l.b16 %v262
  %v1172 = vunpack.c.l.b16 %v263
  %v1173 = vunpack.c.l.b16 %v264
  %v1174 = vunpack.c.l.b16 %v265
  %v1175 = vunpack.c.l.b16 %v266
  %v1176 = vunpack.c.l.b16 %v267
  %v1177 = vunpack.c.l.b16 %v268
  %v1178 = vunpack.c.l.b16 %v269
  %v1179 = vunpack.c.l.b16 %v270
  %v1180 = vunpack.c.l.b16 %v271
  %v1181 = vunpack.c.l.b16 %v272
  %v1182 = vunpack.c.l.b16 %v273
  %v1183 = vunpack.c.l.b16 %v274
  %v1184 = vunpack.c.l.b16 %v275
  %v1185 = vunpack.c.l.b16 %v276
  %v1186 = vunpack.c.l.b16 %v277
  %v1187 = vunpack.c.l.b16 %v278
  %v1188 = vunpack.c.l.b16 %v279
  %v1189 = vunpack.c.l.b16 %v280
  %v1190 = vunpack.c.l.b16 %v281
  %v1191 = vunpack.c.l.b16 %v282
  %v1192 = vunpack.c.l.b16 %v283
  %v1193 = vunpack.c.l.b16 %v284
  %v1194 = vunpack.c.l.b16 %v285
  %v1195 = vunpack.c.l.b16 %v286
  %v1196 = vunpack.c.l.b16 %v287
  %v1197 = vunpack.c.l.b16 %v288
  %v1198 = vunpack.c.l.b16 %v289
  %v1199 = vunpack.c.l.b16 %v290
  %v1200 = vunpack.c.l.b16 %v291
  %v1201 = vunpack.c.l.b16 %v292
  %v1202 = vunpack.c.l.b16 %v293
  %v1203 = vunpack.c.l.b16 %v294
  %v1204 = vunpack.c.l.b16 %v295
  %v1205 = vunpack.c.l.b16 %v296
  %v1206 = vunpack.c.l.b16 %v297
  %v1207 = vunpack.c.l.b16 %v298
  %v1208 = vunpack.c.l.b16 %v299
  %v1209 = vunpack.c.l.b16 %v300
  %v1210 = vunpack.c.l.b16 %v301
  %v1211 = vunpack.c.l.b16 %v302
  %v1212 = vunpack.c.l.b16 %v303
  %v1213 = vunpack.c.l.b16 %v304
  %v1214 = vunpack.c.l.b16 %v305
  %v1215 = vunpack.c.l.b16 %v306
  %v1216 = vunpack.c.l.b16 %v307
  %v1217 = vunpack.c.l.b16 %v308
  %v1218 = vunpack.c.l.b16 %v309
  %v1219 = vunpack.c.l.b16 %v310
  %v1220 = vunpack.c.l.b16 %v311
  %v1221 = vunpack.c.l.b16 %v312
  %v1222 = vunpack.c.l.b16 %v313
  %v1223 = vunpack.c.l.b16 %v314
  %v1224 = vunpack.c.l.b16 %v315
  %v1225 = vunpack.c.l.b16 %v316
  %v1226 = vunpack.c.l.b16 %v317
  %v1227 = vunpack.c.l.b16 %v318
  %v1228 = vunpack.c.l.b16 %v319
  %v1229 = vunpack.c.l.b16 %v320
  %v1230 = vunpack.c.l.b16 %v321
  %v1231 = vunpack.c.l.b16 %v322
  %v1232 = vunpack.c.l.b16 %v323
  %v1233 = vunpack.c.l.b16 %v324
  %v1234 = vunpack.c.l.b16 %v325
  %v1235 = vunpack.c.l.b16 %v326
  %v1236 = vunpack.c.l.b16 %v327
  %v1237 = vunpack.c.l.b16 %v328
  %v1238 = vunpack.c.l.b16 %v329
  %v1239 = vunpack.c.l.b16 %v330
  %v1240 = vunpack.c.l.b16 %v331
  %v1241 = vunpack.c.l.b16 %v332
  %v1242 = vunpack.c.l.b16 %v333
  %v1243 = vunpack.c.l.b16 %v334
  %v1244 = vunpack.c.l.b16 %v335
  %v1245 = vunpack.c.l.b16 %v336
  %v1246 = vunpack.c.l.b16 %v337
  %v1247 = vunpack.c.l.b16 %v338
  %v1248 = vunpack.c.l.b16 %v339
  %v1249 = vunpack.c.l.b16 %v340
  %v1250 = vunpack.c.l.b16 %v341
  %v1251 = vunpack.c.l.b16 %v342
  %v1252 = vunpack.c.l.b16 %v343
  %v1253 = vunpack.c.l.b16 %v344
  %v1254 = vunpack.c.l.b16 %v345
  %v1255 = vunpack.c.l.b16 %v346
  %v1256 = vunpack.c.l.b16 %v347
  %v1257 = vunpack.c.l.b16 %v348
  %v1258 = vunpack.c.l.b16 %v349
  %v1259 = vunpack.c.l.b16 %v350
  %v1260 = vunpack.c.l.b16 %v351
  %v1261 = vunpack.c.l.b16 %v352
  %v1262 = vunpack.c.l.b16 %v353
  %v1263 = vunpack.c.l.b16 %v354
  %v1264 = vunpack.c.l.b16 %v355
  %v1265 = vunpack.c.l.b16 %v356
  %v1266 = vunpack.c.l.b16 %v357
  %v1267 = vunpack.c.l.b16 %v358
  %v1268 = vunpack.c.l.b16 %v359
  %v1269 = vunpack.c.l.b16 %v360
  %v1270 = vunpack.c.l.b16 %v361
  %v1271 = vunpack.c.l.b16 %v362
  %v1272 = vunpack.c.l.b16 %v363
  %v1273 = vunpack.c.l.b16 %v364
  %v1274 = vunpack.c.l.b16 %v365
  %v1275 = vunpack.c.l.b16 %v366
  %v1276 = vunpack.c.l.b16 %v367
  %v1277 = vpack.c.b16 %v990, %v989
  %v1278 = vpack.c.b16 %v992, %v991
  %v1279 = vpack.c.b16 %v994, %v993
  %v1280 = vpack.c.b16 %v996, %v995
  %v1281 = vpack.c.b16 %v998, %v997
  %v1282 = vpack.c.b16 %v1000, %v999
  %v1283 = vpack.c.b16 %v1002, %v1001
  %v1284 = vpack.c.b16 %v1004, %v1003
  %v1285 = vpack.c.b16 %v1006, %v1005
  %v1286 = vpack.c.b16 %v1008, %v1007
  %v1287 = vpack.c.b16 %v1010, %v1009
  %v1288 = vpack.c.b16 %v1012, %v1011
  %v1289 = vpack.c.b16 %v1014, %v1013
  %v1290 = vpack.c.b16 %v1016, %v1015
  %v1291 = vpack.c.b16 %v1018, %v1017
  %v1292 = vpack.c.b16 %v1020, %v1019
  %v1293 = vpack.c.b16 %v1022, %v1021
  %v1294 = vpack.c.b16 %v1024, %v1023
  %v1295 = vpack.c.b16 %v1026, %v1025
  %v1296 = vpack.c.b16 %v1028, %v1027
  %v1297 = vpack.c.b16 %v1030, %v1029
  %v1298 = vpack.c.b16 %v1032, %v1031
  %v1299 = vpack.c.b16 %v1034, %v1033
  %v1300 = vpack.c.b16 %v1036, %v1035
  %v1301 = vpack.c.b16 %v1038, %v1037
  %v1302 = vpack.c.b16 %v1040, %v1039
  %v1303 = vpack.c.b16 %v1042, %v1041
  %v1304 = vpack.c.b16 %v1044, %v1043
  %v1305 = vpack.c.b16 %v1046, %v1045
  %v1306 = vpack.c.b16 %v1048, %v1047
  %v1307 = vpack.c.b16 %v1050, %v1049
  %v1308 = vpack.c.b16 %v1052, %v1051
  %v1309 = vpack.c.b16 %v1054, %v1053
  %v1310 = vpack.c.b16 %v1056, %v1055
  %v1311 = vpack.c.b16 %v1058, %v1057
  %v1312 = vpack.c.b16 %v1060, %v1059
  %v1313 = vpack.c.b16 %v1062, %v1061
  %v1314 = vpack.c.b16 %v1064, %v1063
  %v1315 = vpack.c.b16 %v1066, %v1065
  %v1316 = vpack.c.b16 %v1068, %v1067
  %v1317 = vpack.c.b16 %v1070, %v1069
  %v1318 = vpack.c.b16 %v1072, %v1071
  %v1319 = vpack.c.b16 %v1074, %v1073
  %v1320 = vpack.c.b16 %v1076, %v1075
  %v1321 = vpack.c.b16 %v1078, %v1077
  %v1322 = vpack.c.b16 %v1080, %v1079
  %v1323 = vpack.c.b16 %v1082, %v1081
  %v1324 = vpack.c.b16 %v1084, %v1083
  %v1325 = vpack.c.b16 %v1086, %v1085
  %v1326 = vpack.c.b16 %v1088, %v1087
  %v1327 = vpack.c.b16 %v1090, %v1089
  %v1328 = vpack.c.b16 %v1092, %v1091
  %v1329 = vpack.c.b16 %v1094, %v1093
  %v1330 = vpack.c.b16 %v1096, %v1095
  %v1331 = vpack.c.b16 %v1098, %v1097
  %v1332 = vpack.c.b16 %v1100, %v1099
  %v1333 = vpack.c.b16 %v1102, %v1101
  %v1334 = vpack.c.b16 %v1104, %v1103
  %v1335 = vpack.c.b16 %v1106, %v1105
  %v1336 = vpack.c.b16 %v1108, %v1107
  %v1337 = vpack.c.b16 %v1110, %v1109
  %v1338 = vpack.c.b16 %v1112, %v1111
  %v1339 = vpack.c.b16 %v1114, %v1113
  %v1340 = vpack.c.b16 %v1116, %v1115
  %v1341 = vpack.c.b16 %v1118, %v1117
  %v1342 = vpack.c.b16 %v1120, %v1119
  %v1343 = vpack.c.b16 %v1122, %v1121
  %v1344 = vpack.c.b16 %v1124, %v1123
  %v1345 = vpack.c.b16 %v1126, %v1125
  %v1346 = vpack.c.b16 %v1128, %v1127
  %v1347 = vpack.c.b16 %v1130, %v1129
  %v1348 = vpack.c.b16 %v1132, %v1131
  %v1349 = vpack.c.b16 %v1134, %v1133
  %v1350 = vpack.c.b16 %v1136, %v1135
  %v1351 = vpack.c.b16 %v1138, %v1137
  %v1352 = vpack.c.b16 %v1140, %v1139
  %v1353 = vpack.c.b16 %v1142, %v1141
  %v1354 = vpack.c.b16 %v1144, %v1143
  %v1355 = vpack.c.b16 %v1146, %v1145
  %v1356 = vpack.c.b16 %v1148, %v1147
  %v1357 = vpack.c.b16 %v1150, %v1149
  %v1358 = vpack.c.b16 %v1152, %v1151
  %v1359 = vpack.c.b16 %v1154, %v1153
  %v1360 = vpack.c.b16 %v1156, %v1155
  %v1361 = vpack.c.b16 %v1158, %v1157
  %v1362 = vpack.c.b16 %v1160, %v1159
  %v1363 = vpack.c.b16 %v1162, %v1161
  %v1364 = vpack.c.b16 %v1164, %v1163
  %v1365 = vpack.c.b16 %v1166, %v1165
  %v1366 = vpack.c.b16 %v1168, %v1167
  %v1367 = vpack.c.b16 %v1170, %v1169
  %v1368 = vpack.c.b16 %v1172, %v1171
  %v1369 = vpack.c.b16 %v1174, %v1173
  %v1370 = vpack.c.b16 %v1176, %v1175
  %v1371 = vpack.c.b16 %v1178, %v1177
  %v1372 = vpack.c.b16 %v1180, %v1179
  %v1373 = vpack.c.b16 %v1182, %v1181
  %v1374 = vpack.c.b16 %v1184, %v1183
  %v1375 = vpack.c.b16 %v1186, %v1185
  %v1376 = vpack.c.b16 %v1188, %v1187
  %v1377 = vpack.c.b16 %v1190, %v1189
  %v1378 = vpack.c.b16 %v1192, %v1191
  %v1379 = vpack.c.b16 %v1194, %v1193
  %v1380 = vpack.c.b16 %v1196, %v1195
  %v1381 = vpack.c.b16 %v1198, %v1197
  %v1382 = vpack.c.b16 %v1200, %v1199
  %v1383 = vpack.c.b16 %v1202, %v1201
  %v1384 = vpack.c.b16 %v1204, %v1203
  %v1385 = vpack.c.b16 %v1206, %v1205
  %v1386 = vpack.c.b16 %v1208, %v1207
  %v1387 = vpack.c.b16 %v1210, %v1209
  %v1388 = vpack.c.b16 %v1212, %v1211
  %v1389 = vpack.c.b16 %v1214, %v1213
  %v1390 = vpack.c.b16 %v1216, %v1215
  %v1391 = vpack.c.b16 %v1218, %v1217
  %v1392 = vpack.c.b16 %v1220, %v1219
  %v1393 = vpack.c.b16 %v1222, %v1221
  %v1394 = vpack.c.b16 %v1224, %v1223
  %v1395 = vpack.c.b16 %v1226, %v1225
  %v1396 = vpack.c.b16 %v1228, %v1227
  %v1397 = vpack.c.b16 %v1230, %v1229
  %v1398 = vpack.c.b16 %v1232, %v1231
  %v1399 = vpack.c.b16 %v1234, %v1233
  %v1400 = vpack.c.b16 %v1236, %v1235
  %v1401 = vpack.c.b16 %v1238, %v1237
  %v1402 = vpack.c.b16 %v1240, %v1239
  %v1403 = vpack.c.b16 %v1242, %v1241
  %v1404 = vpack.c.b16 %v1244, %v1243
  %v1405 = vpack.c.b16 %v1246, %v1245
  %v1406 = vpack.c.b16 %v1248, %v1247
  %v1407 = vpack.c.b16 %v1250, %v1249
  %v1408 = vpack.c.b16 %v1252, %v1251
  %v1409 = vpack.c.b16 %v1254, %v1253
  %v1410 = vpack.c.b16 %v1256, %v1255
  %v1411 = vpack.c.b16 %v1258, %v1257
  %v1412 = vpack.c.b16 %v1260, %v1259
  %v1413 = vpack.c.b16 %v1262, %v1261
  %v1414 = vpack.c.b16 %v1264, %v1263
  %v1415 = vpack.c.b16 %v1266, %v1265
  %v1416 = vpack.c.b16 %v1268, %v1267
  %v1417 = vpack.c.b16 %v1270, %v1269
  %v1418 = vpack.c.b16 %v1272, %v1271
  %v1419 = vpack.c.b16 %v1274, %v1273
  %v1420 = vpack.c.b16 %v1276, %v1275
  %1565 = vmatpush.bf16.msra.mxu0 %v1284
  %1566 = vmatpush.bf16.msra.mxu0 %v1283
  %1567 = vmatpush.bf16.msra.mxu0 %v1282
  %1568 = vmatpush.bf16.msra.mxu0 %v1281
  %1569 = vmatpush.bf16.msra.mxu0 %v1280
  %1570 = vmatpush.bf16.msra.mxu0 %v1279
  %1571 = vmatpush.bf16.msra.mxu0 %v1278
  %1572 = vmatpush.bf16.msra.mxu0 %v1277
  %1573 = vmatmul.bf16.gmra.mxu0 %v557
  %v1574 = vpop.f32.mrf.mxu0
  %v1575 = vadd.f32 0.0, %v1574
  %v1576 = vpop.f32.mrf.mxu0
  %v1577 = vadd.f32 0.0, %v1576
  %1578 = vmatmul.bf16.gmra.mxu0 %v575
  %v1579 = vpop.f32.mrf.mxu0
  %v1580 = vadd.f32 0.0, %v1579
  %v1581 = vpop.f32.mrf.mxu0
  %v1582 = vadd.f32 0.0, %v1581
  %1583 = vmatmul.bf16.gmra.mxu0 %v593
  %v1584 = vpop.f32.mrf.mxu0
  %v1585 = vadd.f32 0.0, %v1584
  %v1586 = vpop.f32.mrf.mxu0
  %v1587 = vadd.f32 0.0, %v1586
  %1588 = vmatmul.bf16.gmra.mxu0 %v611
  %v1589 = vpop.f32.mrf.mxu0
  %v1590 = vadd.f32 0.0, %v1589
  %v1591 = vpop.f32.mrf.mxu0
  %1592 = vdwg.mxu0
  %1593 = vmatpush.bf16.msra.mxu0 %v1292
  %1594 = vmatpush.bf16.msra.mxu0 %v1291
  %1595 = vmatpush.bf16.msra.mxu0 %v1290
  %1596 = vmatpush.bf16.msra.mxu0 %v1289
  %1597 = vmatpush.bf16.msra.mxu0 %v1288
  %1598 = vmatpush.bf16.msra.mxu0 %v1287
  %1599 = vmatpush.bf16.msra.mxu0 %v1286
  %1600 = vmatpush.bf16.msra.mxu0 %v1285
  %1601 = vmatmul.bf16.gmra.mxu0 %v558
  %v1602 = vpop.f32.mrf.mxu0
  %v1603 = vadd.f32 %v1575, %v1602
  %v1604 = vpop.f32.mrf.mxu0
  %v1605 = vadd.f32 %v1577, %v1604
  %1606 = vmatmul.bf16.gmra.mxu0 %v576
  %v1607 = vpop.f32.mrf.mxu0
  %v1608 = vadd.f32 %v1580, %v1607
  %v1609 = vpop.f32.mrf.mxu0
  %v1610 = vadd.f32 %v1582, %v1609
  %1611 = vmatmul.bf16.gmra.mxu0 %v594
  %v1612 = vpop.f32.mrf.mxu0
  %v1613 = vadd.f32 %v1585, %v1612
  %v1614 = vpop.f32.mrf.mxu0
  %v1615 = vadd.f32 %v1587, %v1614
  %1616 = vmatmul.bf16.gmra.mxu0 %v612
  %v1617 = vpop.f32.mrf.mxu0
  %v1618 = vadd.f32 %v1590, %v1617
  %v1619 = vpop.f32.mrf.mxu0
  %1620 = vdwg.mxu0
  %1621 = vmatpush.bf16.msra.mxu0 %v1300
  %1622 = vmatpush.bf16.msra.mxu0 %v1299
  %1623 = vmatpush.bf16.msra.mxu0 %v1298
  %1624 = vmatpush.bf16.msra.mxu0 %v1297
  %1625 = vmatpush.bf16.msra.mxu0 %v1296
  %1626 = vmatpush.bf16.msra.mxu0 %v1295
  %1627 = vmatpush.bf16.msra.mxu0 %v1294
  %1628 = vmatpush.bf16.msra.mxu0 %v1293
  %1629 = vmatmul.bf16.gmra.mxu0 %v559
  %v1630 = vpop.f32.mrf.mxu0
  %v1631 = vadd.f32 %v1603, %v1630
  %v1632 = vpop.f32.mrf.mxu0
  %v1633 = vadd.f32 %v1605, %v1632
  %1634 = vmatmul.bf16.gmra.mxu0 %v577
  %v1635 = vpop.f32.mrf.mxu0
  %v1636 = vadd.f32 %v1608, %v1635
  %v1637 = vpop.f32.mrf.mxu0
  %v1638 = vadd.f32 %v1610, %v1637
  %1639 = vmatmul.bf16.gmra.mxu0 %v595
  %v1640 = vpop.f32.mrf.mxu0
  %v1641 = vadd.f32 %v1613, %v1640
  %v1642 = vpop.f32.mrf.mxu0
  %v1643 = vadd.f32 %v1615, %v1642
  %1644 = vmatmul.bf16.gmra.mxu0 %v613
  %v1645 = vpop.f32.mrf.mxu0
  %v1646 = vadd.f32 %v1618, %v1645
  %v1647 = vpop.f32.mrf.mxu0
  %1648 = vdwg.mxu0
  %1649 = vmatpush.bf16.msra.mxu0 %v1308
  %1650 = vmatpush.bf16.msra.mxu0 %v1307
  %1651 = vmatpush.bf16.msra.mxu0 %v1306
  %1652 = vmatpush.bf16.msra.mxu0 %v1305
  %1653 = vmatpush.bf16.msra.mxu0 %v1304
  %1654 = vmatpush.bf16.msra.mxu0 %v1303
  %1655 = vmatpush.bf16.msra.mxu0 %v1302
  %1656 = vmatpush.bf16.msra.mxu0 %v1301
  %1657 = vmatmul.bf16.gmra.mxu0 %v560
  %v1658 = vpop.f32.mrf.mxu0
  %v1659 = vadd.f32 %v1631, %v1658
  %v1660 = vpop.f32.mrf.mxu0
  %v1661 = vadd.f32 %v1633, %v1660
  %1662 = vmatmul.bf16.gmra.mxu0 %v578
  %v1663 = vpop.f32.mrf.mxu0
  %v1664 = vadd.f32 %v1636, %v1663
  %v1665 = vpop.f32.mrf.mxu0
  %v1666 = vadd.f32 %v1638, %v1665
  %1667 = vmatmul.bf16.gmra.mxu0 %v596
  %v1668 = vpop.f32.mrf.mxu0
  %v1669 = vadd.f32 %v1641, %v1668
  %v1670 = vpop.f32.mrf.mxu0
  %v1671 = vadd.f32 %v1643, %v1670
  %1672 = vmatmul.bf16.gmra.mxu0 %v614
  %v1673 = vpop.f32.mrf.mxu0
  %v1674 = vadd.f32 %v1646, %v1673
  %v1675 = vpop.f32.mrf.mxu0
  %1676 = vdwg.mxu0
  %1677 = vmatpush.bf16.msra.mxu0 %v1316
  %1678 = vmatpush.bf16.msra.mxu0 %v1315
  %1679 = vmatpush.bf16.msra.mxu0 %v1314
  %1680 = vmatpush.bf16.msra.mxu0 %v1313
  %1681 = vmatpush.bf16.msra.mxu0 %v1312
  %1682 = vmatpush.bf16.msra.mxu0 %v1311
  %1683 = vmatpush.bf16.msra.mxu0 %v1310
  %1684 = vmatpush.bf16.msra.mxu0 %v1309
  %1685 = vmatmul.bf16.gmra.mxu0 %v561
  %v1686 = vpop.f32.mrf.mxu0
  %v1687 = vadd.f32 %v1659, %v1686
  %v1688 = vpop.f32.mrf.mxu0
  %v1689 = vadd.f32 %v1661, %v1688
  %1690 = vmatmul.bf16.gmra.mxu0 %v579
  %v1691 = vpop.f32.mrf.mxu0
  %v1692 = vadd.f32 %v1664, %v1691
  %v1693 = vpop.f32.mrf.mxu0
  %v1694 = vadd.f32 %v1666, %v1693
  %1695 = vmatmul.bf16.gmra.mxu0 %v597
  %v1696 = vpop.f32.mrf.mxu0
  %v1697 = vadd.f32 %v1669, %v1696
  %v1698 = vpop.f32.mrf.mxu0
  %v1699 = vadd.f32 %v1671, %v1698
  %1700 = vmatmul.bf16.gmra.mxu0 %v615
  %v1701 = vpop.f32.mrf.mxu0
  %v1702 = vadd.f32 %v1674, %v1701
  %v1703 = vpop.f32.mrf.mxu0
  %1704 = vdwg.mxu0
  %1705 = vmatpush.bf16.msra.mxu0 %v1324
  %1706 = vmatpush.bf16.msra.mxu0 %v1323
  %1707 = vmatpush.bf16.msra.mxu0 %v1322
  %1708 = vmatpush.bf16.msra.mxu0 %v1321
  %1709 = vmatpush.bf16.msra.mxu0 %v1320
  %1710 = vmatpush.bf16.msra.mxu0 %v1319
  %1711 = vmatpush.bf16.msra.mxu0 %v1318
  %1712 = vmatpush.bf16.msra.mxu0 %v1317
  %1713 = vmatmul.bf16.gmra.mxu0 %v562
  %v1714 = vpop.f32.mrf.mxu0
  %v1715 = vadd.f32 %v1687, %v1714
  %v1716 = vpop.f32.mrf.mxu0
  %v1717 = vadd.f32 %v1689, %v1716
  %1718 = vmatmul.bf16.gmra.mxu0 %v580
  %v1719 = vpop.f32.mrf.mxu0
  %v1720 = vadd.f32 %v1692, %v1719
  %v1721 = vpop.f32.mrf.mxu0
  %v1722 = vadd.f32 %v1694, %v1721
  %1723 = vmatmul.bf16.gmra.mxu0 %v598
  %v1724 = vpop.f32.mrf.mxu0
  %v1725 = vadd.f32 %v1697, %v1724
  %v1726 = vpop.f32.mrf.mxu0
  %v1727 = vadd.f32 %v1699, %v1726
  %1728 = vmatmul.bf16.gmra.mxu0 %v616
  %v1729 = vpop.f32.mrf.mxu0
  %v1730 = vadd.f32 %v1702, %v1729
  %v1731 = vpop.f32.mrf.mxu0
  %1732 = vdwg.mxu0
  %1733 = vmatpush.bf16.msra.mxu0 %v1332
  %1734 = vmatpush.bf16.msra.mxu0 %v1331
  %1735 = vmatpush.bf16.msra.mxu0 %v1330
  %1736 = vmatpush.bf16.msra.mxu0 %v1329
  %1737 = vmatpush.bf16.msra.mxu0 %v1328
  %1738 = vmatpush.bf16.msra.mxu0 %v1327
  %1739 = vmatpush.bf16.msra.mxu0 %v1326
  %1740 = vmatpush.bf16.msra.mxu0 %v1325
  %1741 = vmatmul.bf16.gmra.mxu0 %v563
  %v1742 = vpop.f32.mrf.mxu0
  %v1743 = vadd.f32 %v1715, %v1742
  %v1744 = vpop.f32.mrf.mxu0
  %v1745 = vadd.f32 %v1717, %v1744
  %1746 = vmatmul.bf16.gmra.mxu0 %v581
  %v1747 = vpop.f32.mrf.mxu0
  %v1748 = vadd.f32 %v1720, %v1747
  %v1749 = vpop.f32.mrf.mxu0
  %v1750 = vadd.f32 %v1722, %v1749
  %1751 = vmatmul.bf16.gmra.mxu0 %v599
  %v1752 = vpop.f32.mrf.mxu0
  %v1753 = vadd.f32 %v1725, %v1752
  %v1754 = vpop.f32.mrf.mxu0
  %v1755 = vadd.f32 %v1727, %v1754
  %1756 = vmatmul.bf16.gmra.mxu0 %v617
  %v1757 = vpop.f32.mrf.mxu0
  %v1758 = vadd.f32 %v1730, %v1757
  %v1759 = vpop.f32.mrf.mxu0
  %1760 = vdwg.mxu0
  %1761 = vmatpush.bf16.msra.mxu0 %v1340
  %1762 = vmatpush.bf16.msra.mxu0 %v1339
  %1763 = vmatpush.bf16.msra.mxu0 %v1338
  %1764 = vmatpush.bf16.msra.mxu0 %v1337
  %1765 = vmatpush.bf16.msra.mxu0 %v1336
  %1766 = vmatpush.bf16.msra.mxu0 %v1335
  %1767 = vmatpush.bf16.msra.mxu0 %v1334
  %1768 = vmatpush.bf16.msra.mxu0 %v1333
  %1769 = vmatmul.bf16.gmra.mxu0 %v564
  %v1770 = vpop.f32.mrf.mxu0
  %v1771 = vadd.f32 %v1743, %v1770
  %v1772 = vpop.f32.mrf.mxu0
  %v1773 = vadd.f32 %v1745, %v1772
  %1774 = vmatmul.bf16.gmra.mxu0 %v582
  %v1775 = vpop.f32.mrf.mxu0
  %v1776 = vadd.f32 %v1748, %v1775
  %v1777 = vpop.f32.mrf.mxu0
  %v1778 = vadd.f32 %v1750, %v1777
  %1779 = vmatmul.bf16.gmra.mxu0 %v600
  %v1780 = vpop.f32.mrf.mxu0
  %v1781 = vadd.f32 %v1753, %v1780
  %v1782 = vpop.f32.mrf.mxu0
  %v1783 = vadd.f32 %v1755, %v1782
  %1784 = vmatmul.bf16.gmra.mxu0 %v618
  %v1785 = vpop.f32.mrf.mxu0
  %v1786 = vadd.f32 %v1758, %v1785
  %v1787 = vpop.f32.mrf.mxu0
  %1788 = vdwg.mxu0
  %1789 = vmatpush.bf16.msra.mxu0 %v1348
  %1790 = vmatpush.bf16.msra.mxu0 %v1347
  %1791 = vmatpush.bf16.msra.mxu0 %v1346
  %1792 = vmatpush.bf16.msra.mxu0 %v1345
  %1793 = vmatpush.bf16.msra.mxu0 %v1344
  %1794 = vmatpush.bf16.msra.mxu0 %v1343
  %1795 = vmatpush.bf16.msra.mxu0 %v1342
  %1796 = vmatpush.bf16.msra.mxu0 %v1341
  %1797 = vmatmul.bf16.gmra.mxu0 %v565
  %v1798 = vpop.f32.mrf.mxu0
  %v1799 = vadd.f32 %v1771, %v1798
  %v1800 = vpop.f32.mrf.mxu0
  %v1801 = vadd.f32 %v1773, %v1800
  %1802 = vmatmul.bf16.gmra.mxu0 %v583
  %v1803 = vpop.f32.mrf.mxu0
  %v1804 = vadd.f32 %v1776, %v1803
  %v1805 = vpop.f32.mrf.mxu0
  %v1806 = vadd.f32 %v1778, %v1805
  %1807 = vmatmul.bf16.gmra.mxu0 %v601
  %v1808 = vpop.f32.mrf.mxu0
  %v1809 = vadd.f32 %v1781, %v1808
  %v1810 = vpop.f32.mrf.mxu0
  %v1811 = vadd.f32 %v1783, %v1810
  %1812 = vmatmul.bf16.gmra.mxu0 %v619
  %v1813 = vpop.f32.mrf.mxu0
  %v1814 = vadd.f32 %v1786, %v1813
  %v1815 = vpop.f32.mrf.mxu0
  %1816 = vdwg.mxu0
  %1817 = vmatpush.bf16.msra.mxu0 %v1356
  %1818 = vmatpush.bf16.msra.mxu0 %v1355
  %1819 = vmatpush.bf16.msra.mxu0 %v1354
  %1820 = vmatpush.bf16.msra.mxu0 %v1353
  %1821 = vmatpush.bf16.msra.mxu0 %v1352
  %1822 = vmatpush.bf16.msra.mxu0 %v1351
  %1823 = vmatpush.bf16.msra.mxu0 %v1350
  %1824 = vmatpush.bf16.msra.mxu0 %v1349
  %1825 = vmatmul.bf16.gmra.mxu0 %v566
  %v1826 = vpop.f32.mrf.mxu0
  %v1827 = vadd.f32 %v1799, %v1826
  %v1828 = vpop.f32.mrf.mxu0
  %v1829 = vadd.f32 %v1801, %v1828
  %1830 = vmatmul.bf16.gmra.mxu0 %v584
  %v1831 = vpop.f32.mrf.mxu0
  %v1832 = vadd.f32 %v1804, %v1831
  %v1833 = vpop.f32.mrf.mxu0
  %v1834 = vadd.f32 %v1806, %v1833
  %1835 = vmatmul.bf16.gmra.mxu0 %v602
  %v1836 = vpop.f32.mrf.mxu0
  %v1837 = vadd.f32 %v1809, %v1836
  %v1838 = vpop.f32.mrf.mxu0
  %v1839 = vadd.f32 %v1811, %v1838
  %1840 = vmatmul.bf16.gmra.mxu0 %v620
  %v1841 = vpop.f32.mrf.mxu0
  %v1842 = vadd.f32 %v1814, %v1841
  %v1843 = vpop.f32.mrf.mxu0
  %1844 = vdwg.mxu0
  %1845 = vmatpush.bf16.msra.mxu0 %v1364
  %1846 = vmatpush.bf16.msra.mxu0 %v1363
  %1847 = vmatpush.bf16.msra.mxu0 %v1362
  %1848 = vmatpush.bf16.msra.mxu0 %v1361
  %1849 = vmatpush.bf16.msra.mxu0 %v1360
  %1850 = vmatpush.bf16.msra.mxu0 %v1359
  %1851 = vmatpush.bf16.msra.mxu0 %v1358
  %1852 = vmatpush.bf16.msra.mxu0 %v1357
  %1853 = vmatmul.bf16.gmra.mxu0 %v567
  %v1854 = vpop.f32.mrf.mxu0
  %v1855 = vadd.f32 %v1827, %v1854
  %v1856 = vpop.f32.mrf.mxu0
  %v1857 = vadd.f32 %v1829, %v1856
  %1858 = vmatmul.bf16.gmra.mxu0 %v585
  %v1859 = vpop.f32.mrf.mxu0
  %v1860 = vadd.f32 %v1832, %v1859
  %v1861 = vpop.f32.mrf.mxu0
  %v1862 = vadd.f32 %v1834, %v1861
  %1863 = vmatmul.bf16.gmra.mxu0 %v603
  %v1864 = vpop.f32.mrf.mxu0
  %v1865 = vadd.f32 %v1837, %v1864
  %v1866 = vpop.f32.mrf.mxu0
  %v1867 = vadd.f32 %v1839, %v1866
  %1868 = vmatmul.bf16.gmra.mxu0 %v621
  %v1869 = vpop.f32.mrf.mxu0
  %v1870 = vadd.f32 %v1842, %v1869
  %v1871 = vpop.f32.mrf.mxu0
  %1872 = vdwg.mxu0
  %1873 = vmatpush.bf16.msra.mxu0 %v1372
  %1874 = vmatpush.bf16.msra.mxu0 %v1371
  %1875 = vmatpush.bf16.msra.mxu0 %v1370
  %1876 = vmatpush.bf16.msra.mxu0 %v1369
  %1877 = vmatpush.bf16.msra.mxu0 %v1368
  %1878 = vmatpush.bf16.msra.mxu0 %v1367
  %1879 = vmatpush.bf16.msra.mxu0 %v1366
  %1880 = vmatpush.bf16.msra.mxu0 %v1365
  %1881 = vmatmul.bf16.gmra.mxu0 %v568
  %v1882 = vpop.f32.mrf.mxu0
  %v1883 = vadd.f32 %v1855, %v1882
  %v1884 = vpop.f32.mrf.mxu0
  %v1885 = vadd.f32 %v1857, %v1884
  %1886 = vmatmul.bf16.gmra.mxu0 %v586
  %v1887 = vpop.f32.mrf.mxu0
  %v1888 = vadd.f32 %v1860, %v1887
  %v1889 = vpop.f32.mrf.mxu0
  %v1890 = vadd.f32 %v1862, %v1889
  %1891 = vmatmul.bf16.gmra.mxu0 %v604
  %v1892 = vpop.f32.mrf.mxu0
  %v1893 = vadd.f32 %v1865, %v1892
  %v1894 = vpop.f32.mrf.mxu0
  %v1895 = vadd.f32 %v1867, %v1894
  %1896 = vmatmul.bf16.gmra.mxu0 %v622
  %v1897 = vpop.f32.mrf.mxu0
  %v1898 = vadd.f32 %v1870, %v1897
  %v1899 = vpop.f32.mrf.mxu0
  %1900 = vdwg.mxu0
  %1901 = vmatpush.bf16.msra.mxu0 %v1380
  %1902 = vmatpush.bf16.msra.mxu0 %v1379
  %1903 = vmatpush.bf16.msra.mxu0 %v1378
  %1904 = vmatpush.bf16.msra.mxu0 %v1377
  %1905 = vmatpush.bf16.msra.mxu0 %v1376
  %1906 = vmatpush.bf16.msra.mxu0 %v1375
  %1907 = vmatpush.bf16.msra.mxu0 %v1374
  %1908 = vmatpush.bf16.msra.mxu0 %v1373
  %1909 = vmatmul.bf16.gmra.mxu0 %v569
  %v1910 = vpop.f32.mrf.mxu0
  %v1911 = vadd.f32 %v1883, %v1910
  %v1912 = vpop.f32.mrf.mxu0
  %v1913 = vadd.f32 %v1885, %v1912
  %1914 = vmatmul.bf16.gmra.mxu0 %v587
  %v1915 = vpop.f32.mrf.mxu0
  %v1916 = vadd.f32 %v1888, %v1915
  %v1917 = vpop.f32.mrf.mxu0
  %v1918 = vadd.f32 %v1890, %v1917
  %1919 = vmatmul.bf16.gmra.mxu0 %v605
  %v1920 = vpop.f32.mrf.mxu0
  %v1921 = vadd.f32 %v1893, %v1920
  %v1922 = vpop.f32.mrf.mxu0
  %v1923 = vadd.f32 %v1895, %v1922
  %1924 = vmatmul.bf16.gmra.mxu0 %v623
  %v1925 = vpop.f32.mrf.mxu0
  %v1926 = vadd.f32 %v1898, %v1925
  %v1927 = vpop.f32.mrf.mxu0
  %1928 = vdwg.mxu0
  %1929 = vmatpush.bf16.msra.mxu0 %v1388
  %1930 = vmatpush.bf16.msra.mxu0 %v1387
  %1931 = vmatpush.bf16.msra.mxu0 %v1386
  %1932 = vmatpush.bf16.msra.mxu0 %v1385
  %1933 = vmatpush.bf16.msra.mxu0 %v1384
  %1934 = vmatpush.bf16.msra.mxu0 %v1383
  %1935 = vmatpush.bf16.msra.mxu0 %v1382
  %1936 = vmatpush.bf16.msra.mxu0 %v1381
  %1937 = vmatmul.bf16.gmra.mxu0 %v570
  %v1938 = vpop.f32.mrf.mxu0
  %v1939 = vadd.f32 %v1911, %v1938
  %v1940 = vpop.f32.mrf.mxu0
  %v1941 = vadd.f32 %v1913, %v1940
  %1942 = vmatmul.bf16.gmra.mxu0 %v588
  %v1943 = vpop.f32.mrf.mxu0
  %v1944 = vadd.f32 %v1916, %v1943
  %v1945 = vpop.f32.mrf.mxu0
  %v1946 = vadd.f32 %v1918, %v1945
  %1947 = vmatmul.bf16.gmra.mxu0 %v606
  %v1948 = vpop.f32.mrf.mxu0
  %v1949 = vadd.f32 %v1921, %v1948
  %v1950 = vpop.f32.mrf.mxu0
  %v1951 = vadd.f32 %v1923, %v1950
  %1952 = vmatmul.bf16.gmra.mxu0 %v624
  %v1953 = vpop.f32.mrf.mxu0
  %v1954 = vadd.f32 %v1926, %v1953
  %v1955 = vpop.f32.mrf.mxu0
  %1956 = vdwg.mxu0
  %1957 = vmatpush.bf16.msra.mxu0 %v1396
  %1958 = vmatpush.bf16.msra.mxu0 %v1395
  %1959 = vmatpush.bf16.msra.mxu0 %v1394
  %1960 = vmatpush.bf16.msra.mxu0 %v1393
  %1961 = vmatpush.bf16.msra.mxu0 %v1392
  %1962 = vmatpush.bf16.msra.mxu0 %v1391
  %1963 = vmatpush.bf16.msra.mxu0 %v1390
  %1964 = vmatpush.bf16.msra.mxu0 %v1389
  %1965 = vmatmul.bf16.gmra.mxu0 %v571
  %v1966 = vpop.f32.mrf.mxu0
  %v1967 = vadd.f32 %v1939, %v1966
  %v1968 = vpop.f32.mrf.mxu0
  %v1969 = vadd.f32 %v1941, %v1968
  %1970 = vmatmul.bf16.gmra.mxu0 %v589
  %v1971 = vpop.f32.mrf.mxu0
  %v1972 = vadd.f32 %v1944, %v1971
  %v1973 = vpop.f32.mrf.mxu0
  %v1974 = vadd.f32 %v1946, %v1973
  %1975 = vmatmul.bf16.gmra.mxu0 %v607
  %v1976 = vpop.f32.mrf.mxu0
  %v1977 = vadd.f32 %v1949, %v1976
  %v1978 = vpop.f32.mrf.mxu0
  %v1979 = vadd.f32 %v1951, %v1978
  %1980 = vmatmul.bf16.gmra.mxu0 %v625
  %v1981 = vpop.f32.mrf.mxu0
  %v1982 = vadd.f32 %v1954, %v1981
  %v1983 = vpop.f32.mrf.mxu0
  %1984 = vdwg.mxu0
  %1985 = vmatpush.bf16.msra.mxu0 %v1404
  %1986 = vmatpush.bf16.msra.mxu0 %v1403
  %1987 = vmatpush.bf16.msra.mxu0 %v1402
  %1988 = vmatpush.bf16.msra.mxu0 %v1401
  %1989 = vmatpush.bf16.msra.mxu0 %v1400
  %1990 = vmatpush.bf16.msra.mxu0 %v1399
  %1991 = vmatpush.bf16.msra.mxu0 %v1398
  %1992 = vmatpush.bf16.msra.mxu0 %v1397
  %1993 = vmatmul.bf16.gmra.mxu0 %v572
  %v1994 = vpop.f32.mrf.mxu0
  %v1995 = vadd.f32 %v1967, %v1994
  %v1996 = vpop.f32.mrf.mxu0
  %v1997 = vadd.f32 %v1969, %v1996
  %1998 = vmatmul.bf16.gmra.mxu0 %v590
  %v1999 = vpop.f32.mrf.mxu0
  %v2000 = vadd.f32 %v1972, %v1999
  %v2001 = vpop.f32.mrf.mxu0
  %v2002 = vadd.f32 %v1974, %v2001
  %2003 = vmatmul.bf16.gmra.mxu0 %v608
  %v2004 = vpop.f32.mrf.mxu0
  %v2005 = vadd.f32 %v1977, %v2004
  %v2006 = vpop.f32.mrf.mxu0
  %v2007 = vadd.f32 %v1979, %v2006
  %2008 = vmatmul.bf16.gmra.mxu0 %v626
  %v2009 = vpop.f32.mrf.mxu0
  %v2010 = vadd.f32 %v1982, %v2009
  %v2011 = vpop.f32.mrf.mxu0
  %2012 = vdwg.mxu0
  %2013 = vmatpush.bf16.msra.mxu0 %v1412
  %2014 = vmatpush.bf16.msra.mxu0 %v1411
  %2015 = vmatpush.bf16.msra.mxu0 %v1410
  %2016 = vmatpush.bf16.msra.mxu0 %v1409
  %2017 = vmatpush.bf16.msra.mxu0 %v1408
  %2018 = vmatpush.bf16.msra.mxu0 %v1407
  %2019 = vmatpush.bf16.msra.mxu0 %v1406
  %2020 = vmatpush.bf16.msra.mxu0 %v1405
  %2021 = vmatmul.bf16.gmra.mxu0 %v573
  %v2022 = vpop.f32.mrf.mxu0
  %v2023 = vadd.f32 %v1995, %v2022
  %v2024 = vpop.f32.mrf.mxu0
  %v2025 = vadd.f32 %v1997, %v2024
  %2026 = vmatmul.bf16.gmra.mxu0 %v591
  %v2027 = vpop.f32.mrf.mxu0
  %v2028 = vadd.f32 %v2000, %v2027
  %v2029 = vpop.f32.mrf.mxu0
  %v2030 = vadd.f32 %v2002, %v2029
  %2031 = vmatmul.bf16.gmra.mxu0 %v609
  %v2032 = vpop.f32.mrf.mxu0
  %v2033 = vadd.f32 %v2005, %v2032
  %v2034 = vpop.f32.mrf.mxu0
  %v2035 = vadd.f32 %v2007, %v2034
  %2036 = vmatmul.bf16.gmra.mxu0 %v627
  %v2037 = vpop.f32.mrf.mxu0
  %v2038 = vadd.f32 %v2010, %v2037
  %v2039 = vpop.f32.mrf.mxu0
  %2040 = vdwg.mxu0
  %2041 = vmatpush.bf16.msra.mxu0 %v1420
  %2042 = vmatpush.bf16.msra.mxu0 %v1419
  %2043 = vmatpush.bf16.msra.mxu0 %v1418
  %2044 = vmatpush.bf16.msra.mxu0 %v1417
  %2045 = vmatpush.bf16.msra.mxu0 %v1416
  %2046 = vmatpush.bf16.msra.mxu0 %v1415
  %2047 = vmatpush.bf16.msra.mxu0 %v1414
  %2048 = vmatpush.bf16.msra.mxu0 %v1413
  %2049 = vmatmul.bf16.gmra.mxu0 %v574
  %v2050 = vpop.f32.mrf.mxu0
  %v2051 = vadd.f32 %v2023, %v2050
  %v2052 = vpop.f32.mrf.mxu0
  %v2053 = vadd.f32 %v2025, %v2052
  %2054 = vmatmul.bf16.gmra.mxu0 %v592
  %v2055 = vpop.f32.mrf.mxu0
  %v2056 = vadd.f32 %v2028, %v2055
  %v2057 = vpop.f32.mrf.mxu0
  %v2058 = vadd.f32 %v2030, %v2057
  %2059 = vmatmul.bf16.gmra.mxu0 %v610
  %v2060 = vpop.f32.mrf.mxu0
  %v2061 = vadd.f32 %v2033, %v2060
  %v2062 = vpop.f32.mrf.mxu0
  %v2063 = vadd.f32 %v2035, %v2062
  %2064 = vmatmul.bf16.gmra.mxu0 %v628
  %v2065 = vpop.f32.mrf.mxu0
  %v2066 = vadd.f32 %v2038, %v2065
  %v2067 = vpop.f32.mrf.mxu0
  %2068 = vdwg.mxu0
  %vm2069 = vcmask 130048
  %v2070 = vsel %vm2069, %v2051, 0.0
  %v2071 = vsel %vm2069, %v2053, 0.0
  %v2072 = vadd.f32 %v2070, %v2071
  %v2073 = vsel %vm2069, %v2056, 0.0
  %v2074 = vadd.f32 %v2072, %v2073
  %v2075 = vsel %vm2069, %v2058, 0.0
  %v2076 = vadd.f32 %v2074, %v2075
  %v2077 = vsel %vm2069, %v2061, 0.0
  %v2078 = vadd.f32 %v2076, %v2077
  %v2079 = vsel %vm2069, %v2063, 0.0
  %v2080 = vadd.f32 %v2078, %v2079
  %vm2081 = vcmask 123904
  %v2082 = vsel %vm2081, %v2066, 0.0
  %v2083 = vadd.f32 %v2080, %v2082
  %v2084 = vrot.slane %v2083, 4
  %v2085 = vadd.f32 %v2083, %v2084
  %v2086 = vrot.slane %v2085, 2
  %v2087 = vadd.f32 %v2085, %v2086
  %v2088 = vrot.slane %v2087, 1
  %v2089 = vadd.f32 %v2087, %v2088
  %v2090 = vmul.f32 %v2051, %v2051
  %v2091 = vmul.f32 %v2053, %v2053
  %v2092 = vmul.f32 %v2056, %v2056
  %v2093 = vmul.f32 %v2058, %v2058
  %v2094 = vmul.f32 %v2061, %v2061
  %v2095 = vmul.f32 %v2063, %v2063
  %v2096 = vmul.f32 %v2066, %v2066
  %v2097 = vsel %vm2069, %v2090, 0.0
  %v2098 = vsel %vm2069, %v2091, 0.0
  %v2099 = vadd.f32 %v2097, %v2098
  %v2100 = vsel %vm2069, %v2092, 0.0
  %v2101 = vadd.f32 %v2099, %v2100
  %v2102 = vsel %vm2069, %v2093, 0.0
  %v2103 = vadd.f32 %v2101, %v2102
  %v2104 = vsel %vm2069, %v2094, 0.0
  %v2105 = vadd.f32 %v2103, %v2104
  %v2106 = vsel %vm2069, %v2095, 0.0
  %v2107 = vadd.f32 %v2105, %v2106
  %v2108 = vsel %vm2081, %v2096, 0.0
  %v2109 = vadd.f32 %v2107, %v2108
  %v2110 = vrot.slane %v2109, 4
  %v2111 = vadd.f32 %v2109, %v2110
  %v2112 = vrot.slane %v2111, 2
  %v2113 = vadd.f32 %v2111, %v2112
  %v2114 = vrot.slane %v2113, 1
  %v2115 = vadd.f32 %v2113, %v2114
  %v2116 = vrcp.pop 50.0
  %v2117 = vmul.f32 50.0, %v2116
  %v2118 = vsub.f32 1.0, %v2117
  %v2119 = vmul.f32 %v2116, %v2118
  %v2120 = vadd.f32 %v2116, %v2119
  %vm2121 = vweird.f32 %v2116
  %v2122 = vsel %vm2121, %v2116, %v2120
  %v2123 = vmul.f32 %v2089, %v2122
  %v2124 = vmul.f32 %v2115, %v2122
  %v2125 = vmul.f32 %v2123, %v2123
  %v2126 = vsub.f32 %v2124, %v2125
  %v2127 = vld [vmem:[%s2] sm:$0x1]
  %v2128 = vadd.f32 %v2126, 1e-05
  %v2129 = vrsqrt.pop %v2128
  %v2130 = vmul.f32 %v2129, %v2128
  %v2131 = vmul.f32 %v2130, %v2129
  %v2132 = vmul.f32 0.5, %v2131
  %v2133 = vsub.f32 1.5, %v2132
  %v2134 = vmul.f32 %v2129, %v2133
  %vm2135 = vweird.f32 %v2128
  %vm2136 = vweird.f32 %v2129
  %vm2137 = vmor %vm2135, %vm2136
  %v2138 = vsel %vm2137, %v2129, %v2134
  %v2139 = vmul.f32 %v2127, %v2138
  %v2140 = vld [vmem:[%s3] sm:$0x1]
  %v2141 = vmul.f32 %v2123, %v2139
  %v2142 = vsub.f32 %v2140, %v2141
  %v2144 = vperm.slane %v2139, 0
  %v2146 = vmul.f32 %v2051, %v2144
  %v2147 = vmul.f32 %v2053, %v2144
  %v2148 = vmul.f32 %v2056, %v2144
  %v2149 = vmul.f32 %v2058, %v2144
  %v2150 = vmul.f32 %v2061, %v2144
  %v2151 = vmul.f32 %v2063, %v2144
  %v2152 = vmul.f32 %v2066, %v2144
  %v2154 = vperm.slane %v2142, 0
  %v2156 = vadd.f32 %v2146, %v2154
  %v2157 = vadd.f32 %v2147, %v2154
  %v2158 = vadd.f32 %v2148, %v2154
  %v2159 = vadd.f32 %v2149, %v2154
  %v2160 = vadd.f32 %v2150, %v2154
  %v2161 = vadd.f32 %v2151, %v2154
  %v2162 = vadd.f32 %v2152, %v2154
  %v2163 = vpack.c.bf16 %v2156, %v2156
  %v2164 = vpack.c.bf16 %v2157, %v2157
  %v2165 = vpack.c.bf16 %v2158, %v2158
  %v2166 = vpack.c.bf16 %v2159, %v2159
  %v2167 = vpack.c.bf16 %v2160, %v2160
  %v2168 = vpack.c.bf16 %v2161, %v2161
  %v2169 = vpack.c.bf16 %v2162, %v2162
  %vm2170 = vcmask 125952
  %2171 = vst.msk [vmem:[%s4] sm:$0xf] %vm2170, %v2163
  %2172 = vst.msk [vmem:[%s4 + $0x4] sm:$0xf] %vm2170, %v2164
  %2173 = vst.msk [vmem:[%s4 + $0x8] sm:$0xf] %vm2170, %v2165
  %2174 = vst.msk [vmem:[%s4 + $0xc] sm:$0xf] %vm2170, %v2166
  %2175 = vst.msk [vmem:[%s4 + $0x10] sm:$0xf] %vm2170, %v2167
  %2176 = vst.msk [vmem:[%s4 + $0x14] sm:$0xf] %vm2170, %v2168
  %vm2177 = vcmask 122880
  %2178 = vst.msk [vmem:[%s4 + $0x18] sm:$0x1] %vm2177, %v2169
  // Predicated region
  $region18: #{netD_forward.8} parent=0 // pred_check
    _
  $region19: #{netD_forward.8} parent=0 // pred_check_branch
    %2180 = sbr.rel (0) target = $region21
  $region20: #{netD_forward.8} parent=0 // pred_region
    _
  $region21: #{netD_forward.8} parent=0 // pred_fallthru
    _
  // Predicated region
  $region22: #{netD_forward.8} parent=0 // pred_check
    _
  $region23: #{netD_forward.8} parent=0 // pred_check_branch
    %2182 = sbr.rel (0) target = $region25
  $region24: #{netD_forward.8} parent=0 // pred_region
    _
  $region25: #{netD_forward.8} parent=0 // pred_fallthru
    _

</llo_original>
